<compile_context>
chip_gen: v7x
topology: tpu7x:2x2x1
jax: 0.10.0
libtpu: 0.0.40
codegen_flags: <defaults>
</compile_context>

<pallas_src>
import functools
import math

import jax
import jax.numpy as jnp
from jax import lax
from jax.experimental import pallas as pl
from jax.experimental.pallas import tpu as pltpu


def _mhia_kernel(
    u_ref, f_ref,
    wqkv_u_ref, wqkv_f_ref,
    wout_u_ref, wout_f_ref,
    out_u_ref, out_f_ref,
    *, B, Nu, Nf, H, Kd, Vd, norm_factor, matmul_dtype,
):
    # Cast only matmul operands (MXU inputs); accumulate in f32.
    def mx(x):
        return x.astype(matmul_dtype)

    def nn(a, b):                       # a @ b
        return jnp.dot(mx(a), mx(b), preferred_element_type=jnp.float32)

    def nt(a, b):                       # a @ b.T (no materialized transpose)
        return lax.dot_general(mx(a), mx(b), (((1,), (1,)), ((), ())),
                               preferred_element_type=jnp.float32)

    def tn(a, b):                       # a.T @ b (no materialized transpose)
        return lax.dot_general(mx(a), mx(b), (((0,), (0,)), ((), ())),
                               preferred_element_type=jnp.float32)

    u2 = u_ref[...]                     # (B*Nu, D)
    f2 = f_ref[...]                     # (B*Nf, D)

    # --- Fused QKV projections: one lane-dense matmul per side --------------
    qkv_u = nn(u2, wqkv_u_ref[...])     # (B*Nu, 3*H*Kd)
    qkv_f = nn(f2, wqkv_f_ref[...])     # (B*Nf, 3*H*Kd)

    o_q, o_k, o_v = 0, H * Kd, 2 * H * Kd

    # --- Per-(batch, head) interactive score core ----------------------------
    comp_fins = []
    for b in range(B):
        ru = slice(b * Nu, (b + 1) * Nu)
        rf = slice(b * Nf, (b + 1) * Nf)
        for h in range(H):
            q_u = qkv_u[ru, o_q + h * Kd: o_q + (h + 1) * Kd]   # (Nu, Kd)
            k_u = qkv_u[ru, o_k + h * Kd: o_k + (h + 1) * Kd]   # (Nu, Kd)
            q_f = qkv_f[rf, o_q + h * Kd: o_q + (h + 1) * Kd]   # (Nf, Kd)
            k_f = qkv_f[rf, o_k + h * Kd: o_k + (h + 1) * Kd]   # (Nf, Kd)

            comp_u = norm_factor * nt(q_u, k_u)                 # (Nu, Nu)
            comp_f = norm_factor * nt(q_f, k_f)                 # (Nf, Nf)
            comp_int = norm_factor * nt(q_u, k_f)               # (Nu, Nf)

            if Nu == Nf:
                # Block decomposition of [comp_u | comp_int] @ [comp_f ; comp_int]
                # (valid only when Nu == Nf): no lane-axis concatenation.
                comp_fin = nn(comp_u, comp_f) + nn(comp_int, comp_int)
            else:
                cat_l = jnp.concatenate([comp_u, comp_int], axis=1)  # (Nu, Nu+Nf)
                cat_r = jnp.concatenate([comp_f, comp_int], axis=0)  # (Nf+Nu, Nf)
                comp_fin = nn(cat_l, cat_r)                          # (Nu, Nf)
            comp_fins.append(comp_fin)

    # --- One batched, numerically-stable softmax over the stacked slab -------
    comp_all = jnp.concatenate(comp_fins, axis=0)                # (B*H*Nu, Nf) f32
    m = jnp.max(comp_all, axis=-1, keepdims=True)
    e = jnp.exp(comp_all - m)
    attn_all = e * pl.reciprocal(jnp.sum(e, axis=-1, keepdims=True), approx=True)

    # --- Attention-weighted values, heads packed along lanes -----------------
    heads_u_rows, heads_f_rows = [], []
    for b in range(B):
        ru = slice(b * Nu, (b + 1) * Nu)
        rf = slice(b * Nf, (b + 1) * Nf)
        hu, hf = [], []
        for h in range(H):
            idx = b * H + h
            attn = attn_all[idx * Nu:(idx + 1) * Nu, :]          # (Nu, Nf)
            v_u = qkv_u[ru, o_v + h * Vd: o_v + (h + 1) * Vd]    # (Nu, Vd)
            v_f = qkv_f[rf, o_v + h * Vd: o_v + (h + 1) * Vd]    # (Nf, Vd)
            hu.append(nn(attn, v_f))                             # (Nu, Vd)
            hf.append(tn(attn, v_u))                             # (Nf, Vd)
        heads_u_rows.append(jnp.concatenate(hu, axis=1))         # (Nu, H*Vd)
        heads_f_rows.append(jnp.concatenate(hf, axis=1))         # (Nf, H*Vd)
    heads_u_all = jnp.concatenate(heads_u_rows, axis=0)          # (B*Nu, H*Vd)
    heads_f_all = jnp.concatenate(heads_f_rows, axis=0)          # (B*Nf, H*Vd)

    # --- Single fused output projection (head reduction folded into K) -------
    out_u_ref[...] = nn(heads_u_all, wout_u_ref[...]).astype(out_u_ref.dtype)
    out_f_ref[...] = nn(heads_f_all, wout_f_ref[...]).astype(out_f_ref.dtype)


def fuse_params(params):
    """Pre-fold heads into 2-D, matmul-ready weights (done once, outside the kernel)."""
    H, D, Kd = params["W_query_u"].shape
    E = params["W_out_u"].shape[-1]

    def to2d(w):  # (H, D, K) -> (D, H*K), column index = h*K + k
        return jnp.transpose(w, (1, 0, 2)).reshape(D, -1)

    return {
        "W_qkv_u": jnp.concatenate(
            [to2d(params["W_query_u"]), to2d(params["W_key_u"]), to2d(params["W_val_u"])], axis=1),
        "W_qkv_f": jnp.concatenate(
            [to2d(params["W_query_f"]), to2d(params["W_key_f"]), to2d(params["W_val_f"])], axis=1),
        "W_out_u": params["W_out_u"].reshape(H * Kd, E),
        "W_out_f": params["W_out_f"].reshape(H * Kd, E),
    }


def mhia_forward(u, f, fused, *, n_heads, key_dim, val_dim, norm_factor,
                 matmul_dtype=jnp.float32):
    B, Nu, D = u.shape
    _, Nf, _ = f.shape
    E = fused["W_out_u"].shape[-1]

    # Layout plumbing in the wrapper: fold batch into the matmul M dimension.
    u2 = u.reshape(B * Nu, D)
    f2 = f.reshape(B * Nf, D)

    kernel = functools.partial(
        _mhia_kernel, B=B, Nu=Nu, Nf=Nf, H=n_heads, Kd=key_dim, Vd=val_dim,
        norm_factor=norm_factor, matmul_dtype=matmul_dtype)

    vspec = pl.BlockSpec(memory_space=pltpu.MemorySpace.VMEM)

    out_u2, out_f2 = pl.pallas_call(
        kernel,
        out_shape=(
            jax.ShapeDtypeStruct((B * Nu, E), u.dtype),
            jax.ShapeDtypeStruct((B * Nf, E), f.dtype),
        ),
        in_specs=[vspec] * 6,
        out_specs=(vspec, vspec),
    )(u2, f2, fused["W_qkv_u"], fused["W_qkv_f"], fused["W_out_u"], fused["W_out_f"])

    return out_u2.reshape(B, Nu, E), out_f2.reshape(B, Nf, E)


class MultiHeadInteractiveAttention:
    """JAX/Pallas port of the PyTorch MultiHeadInteractiveAttention (forward only)."""

    def __init__(self, n_heads, input_dim, embed_dim=None, val_dim=None, key_dim=None,
                 *, key, matmul_dtype=jnp.float32):
        if val_dim is None:
            val_dim = embed_dim // n_heads
        if key_dim is None:
            key_dim = val_dim
        assert key_dim == val_dim, "PyTorch module requires key_dim == val_dim for W_out."
        self.n_heads = n_heads
        self.input_dim = input_dim
        self.embed_dim = embed_dim
        self.val_dim = val_dim
        self.key_dim = key_dim
        self.norm_factor = 1.0 / math.sqrt(key_dim)
        # On v6e / v7x pass matmul_dtype=jnp.bfloat16 for ~2-4x MXU throughput;
        # softmax / accumulation stay f32 inside the kernel (required on v5e).
        self.matmul_dtype = matmul_dtype

        keys = jax.random.split(key, 8)

        def init(k, shape):
            stdv = 1.0 / math.sqrt(shape[-1])
            return jax.random.uniform(k, shape, jnp.float32, -stdv, stdv)

        self.params = {
            "W_query_u": init(keys[0], (n_heads, input_dim, key_dim)),
            "W_key_u":   init(keys[1], (n_heads, input_dim, key_dim)),
            "W_val_u":   init(keys[2], (n_heads, input_dim, val_dim)),
            "W_query_f": init(keys[3], (n_heads, input_dim, key_dim)),
            "W_key_f":   init(keys[4], (n_heads, input_dim, key_dim)),
            "W_val_f":   init(keys[5], (n_heads, input_dim, val_dim)),
            "W_out_u":   init(keys[6], (n_heads, key_dim, embed_dim)),
            "W_out_f":   init(keys[7], (n_heads, key_dim, embed_dim)),
        }
        # Fuse once at construction: no per-call weight transposes / concats.
        self.fused = fuse_params(self.params)

    def __call__(self, u, f):
        return mhia_forward(
            u, f, self.fused,
            n_heads=self.n_heads, key_dim=self.key_dim, val_dim=self.val_dim,
            norm_factor=self.norm_factor, matmul_dtype=self.matmul_dtype)


def _reference(u, f, params, norm_factor):
    """Pure-JAX replica of the PyTorch forward, for correctness checking."""
    HI = lax.Precision.HIGHEST

    def proj(x, w):  # (B, N, D), (H, D, K) -> (H, B, N, K)
        return jnp.einsum("bnd,hdk->hbnk", x, w, precision=HI)

    Q_u = proj(u, params["W_query_u"])
    K_u = proj(u, params["W_key_u"])
    V_u = proj(u, params["W_val_u"])
    Q_f = proj(f, params["W_query_f"])
    K_f = proj(f, params["W_key_f"])
    V_f = proj(f, params["W_val_f"])

    comp_u = norm_factor * jnp.einsum("hbik,hbjk->hbij", Q_u, K_u, precision=HI)
    comp_f = norm_factor * jnp.einsum("hbik,hbjk->hbij", Q_f, K_f, precision=HI)
    comp_int = norm_factor * jnp.einsum("hbik,hbjk->hbij", Q_u, K_f, precision=HI)

    cat_l = jnp.concatenate([comp_u, comp_int], axis=-1)
    cat_r = jnp.concatenate([comp_f, comp_int], axis=2)
    comp_fin = jnp.einsum("hbik,hbkj->hbij", cat_l, cat_r, precision=HI)

    attn_u = jax.nn.softmax(comp_fin, axis=-1)
    attn_f = jnp.transpose(attn_u, (0, 1, 3, 2))
    heads_u = jnp.einsum("hbij,hbjv->hbiv", attn_u, V_f, precision=HI)
    heads_f = jnp.einsum("hbij,hbjv->hbiv", attn_f, V_u, precision=HI)

    out_u = jnp.einsum("hbiv,hve->bie", heads_u, params["W_out_u"], precision=HI)
    out_f = jnp.einsum("hbiv,hve->bie", heads_f, params["W_out_f"], precision=HI)
    return out_u, out_f


if __name__ == "__main__":
    key = jax.random.PRNGKey(0)
    k_u, k_f, k_p = jax.random.split(key, 3)

    B, Nu, Nf = 2, 16, 16
    n_heads, input_dim, embed_dim = 4, 16, 128   # H*Kd = 128, E = 128 -> lane-dense matmuls

    u = jax.random.normal(k_u, (B, Nu, input_dim), dtype=jnp.float32)
    f = jax.random.normal(k_f, (B, Nf, input_dim), dtype=jnp.float32)

    attn = MultiHeadInteractiveAttention(n_heads, input_dim, embed_dim, key=k_p)
    out_u, out_f = attn(u, f)
    jax.block_until_ready((out_u, out_f))

    ref_u, ref_f = _reference(u, f, attn.params, attn.norm_factor)
    assert out_u.shape == (B, Nu, embed_dim)
    assert out_f.shape == (B, Nf, embed_dim)
    assert jnp.allclose(out_u, ref_u, atol=2e-3, rtol=2e-3), float(jnp.max(jnp.abs(out_u - ref_u)))
    assert jnp.allclose(out_f, ref_f, atol=2e-3, rtol=2e-3), float(jnp.max(jnp.abs(out_f - ref_f)))

    print("KERNEL_OK")
</pallas_src>

<mosaic_0001>
module attributes {stable_mosaic.version = 11 : i64} {
  func.func @_mhia_kernel(%arg0: memref<32x16xf32, #tpu.memory_space<vmem>>, %arg1: memref<32x16xf32, #tpu.memory_space<vmem>>, %arg2: memref<16x384xf32, #tpu.memory_space<vmem>>, %arg3: memref<16x384xf32, #tpu.memory_space<vmem>>, %arg4: memref<128x128xf32, #tpu.memory_space<vmem>>, %arg5: memref<128x128xf32, #tpu.memory_space<vmem>>, %arg6: memref<32x128xf32, #tpu.memory_space<vmem>>, %arg7: memref<32x128xf32, #tpu.memory_space<vmem>>) attributes {dimension_semantics = [], scalar_prefetch = 0 : i64, scratch_operands = 0 : i64, tpu.core_type = #tpu.core_type<tc>} {
    %c0 = arith.constant 0 : index
    %c0_0 = arith.constant 0 : index
    %0 = vector.load %arg0[%c0, %c0_0] : memref<32x16xf32, #tpu.memory_space<vmem>>, vector<32x16xf32>
    %c0_1 = arith.constant 0 : index
    %c0_2 = arith.constant 0 : index
    %1 = vector.load %arg1[%c0_1, %c0_2] : memref<32x16xf32, #tpu.memory_space<vmem>>, vector<32x16xf32>
    %c0_3 = arith.constant 0 : index
    %c0_4 = arith.constant 0 : index
    %2 = vector.load %arg2[%c0_3, %c0_4] : memref<16x384xf32, #tpu.memory_space<vmem>>, vector<16x384xf32>
    %cst = arith.constant dense<0.000000e+00> : vector<32x384xf32>
    %3 = tpu.matmul %0, %2, %cst {dimension_numbers = #tpu.dot_dimension_numbers<[1], [0], [0], [1], [0, 0, 1, 1], [], []>} : vector<32x16xf32>, vector<16x384xf32>, vector<32x384xf32> -> vector<32x384xf32>
    %c0_5 = arith.constant 0 : index
    %c0_6 = arith.constant 0 : index
    %4 = vector.load %arg3[%c0_5, %c0_6] : memref<16x384xf32, #tpu.memory_space<vmem>>, vector<16x384xf32>
    %cst_7 = arith.constant dense<0.000000e+00> : vector<32x384xf32>
    %5 = tpu.matmul %1, %4, %cst_7 {dimension_numbers = #tpu.dot_dimension_numbers<[1], [0], [0], [1], [0, 0, 1, 1], [], []>} : vector<32x16xf32>, vector<16x384xf32>, vector<32x384xf32> -> vector<32x384xf32>
    %6 = vector.extract_strided_slice %3 {offsets = [0, 0], sizes = [16, 32], strides = [1, 1]} : vector<32x384xf32> to vector<16x32xf32>
    %7 = vector.extract_strided_slice %3 {offsets = [0, 128], sizes = [16, 32], strides = [1, 1]} : vector<32x384xf32> to vector<16x32xf32>
    %8 = vector.extract_strided_slice %5 {offsets = [0, 0], sizes = [16, 32], strides = [1, 1]} : vector<32x384xf32> to vector<16x32xf32>
    %9 = vector.extract_strided_slice %5 {offsets = [0, 128], sizes = [16, 32], strides = [1, 1]} : vector<32x384xf32> to vector<16x32xf32>
    %cst_8 = arith.constant dense<0.000000e+00> : vector<16x16xf32>
    %10 = tpu.matmul %6, %7, %cst_8 {dimension_numbers = #tpu.dot_dimension_numbers<[1], [1], [0], [0], [0, 0, 1, 0], [], []>} : vector<16x32xf32>, vector<16x32xf32>, vector<16x16xf32> -> vector<16x16xf32>
    %cst_9 = arith.constant 0.176776692 : f32
    %11 = vector.broadcast %cst_9 : f32 to vector<16x16xf32>
    %12 = arith.mulf %11, %10 : vector<16x16xf32>
    %cst_10 = arith.constant dense<0.000000e+00> : vector<16x16xf32>
    %13 = tpu.matmul %8, %9, %cst_10 {dimension_numbers = #tpu.dot_dimension_numbers<[1], [1], [0], [0], [0, 0, 1, 0], [], []>} : vector<16x32xf32>, vector<16x32xf32>, vector<16x16xf32> -> vector<16x16xf32>
    %cst_11 = arith.constant 0.176776692 : f32
    %14 = vector.broadcast %cst_11 : f32 to vector<16x16xf32>
    %15 = arith.mulf %14, %13 : vector<16x16xf32>
    %cst_12 = arith.constant dense<0.000000e+00> : vector<16x16xf32>
    %16 = tpu.matmul %6, %9, %cst_12 {dimension_numbers = #tpu.dot_dimension_numbers<[1], [1], [0], [0], [0, 0, 1, 0], [], []>} : vector<16x32xf32>, vector<16x32xf32>, vector<16x16xf32> -> vector<16x16xf32>
    %cst_13 = arith.constant 0.176776692 : f32
    %17 = vector.broadcast %cst_13 : f32 to vector<16x16xf32>
    %18 = arith.mulf %17, %16 : vector<16x16xf32>
    %cst_14 = arith.constant dense<0.000000e+00> : vector<16x16xf32>
    %19 = tpu.matmul %12, %15, %cst_14 {dimension_numbers = #tpu.dot_dimension_numbers<[1], [0], [0], [1], [0, 0, 1, 1], [], []>} : vector<16x16xf32>, vector<16x16xf32>, vector<16x16xf32> -> vector<16x16xf32>
    %cst_15 = arith.constant dense<0.000000e+00> : vector<16x16xf32>
    %20 = tpu.matmul %18, %18, %cst_15 {dimension_numbers = #tpu.dot_dimension_numbers<[1], [0], [0], [1], [0, 0, 1, 1], [], []>} : vector<16x16xf32>, vector<16x16xf32>, vector<16x16xf32> -> vector<16x16xf32>
    %21 = arith.addf %19, %20 : vector<16x16xf32>
    %22 = vector.extract_strided_slice %3 {offsets = [0, 32], sizes = [16, 32], strides = [1, 1]} : vector<32x384xf32> to vector<16x32xf32>
    %23 = vector.extract_strided_slice %3 {offsets = [0, 160], sizes = [16, 32], strides = [1, 1]} : vector<32x384xf32> to vector<16x32xf32>
    %24 = vector.extract_strided_slice %5 {offsets = [0, 32], sizes = [16, 32], strides = [1, 1]} : vector<32x384xf32> to vector<16x32xf32>
    %25 = vector.extract_strided_slice %5 {offsets = [0, 160], sizes = [16, 32], strides = [1, 1]} : vector<32x384xf32> to vector<16x32xf32>
    %cst_16 = arith.constant dense<0.000000e+00> : vector<16x16xf32>
    %26 = tpu.matmul %22, %23, %cst_16 {dimension_numbers = #tpu.dot_dimension_numbers<[1], [1], [0], [0], [0, 0, 1, 0], [], []>} : vector<16x32xf32>, vector<16x32xf32>, vector<16x16xf32> -> vector<16x16xf32>
    %cst_17 = arith.constant 0.176776692 : f32
    %27 = vector.broadcast %cst_17 : f32 to vector<16x16xf32>
    %28 = arith.mulf %27, %26 : vector<16x16xf32>
    %cst_18 = arith.constant dense<0.000000e+00> : vector<16x16xf32>
    %29 = tpu.matmul %24, %25, %cst_18 {dimension_numbers = #tpu.dot_dimension_numbers<[1], [1], [0], [0], [0, 0, 1, 0], [], []>} : vector<16x32xf32>, vector<16x32xf32>, vector<16x16xf32> -> vector<16x16xf32>
    %cst_19 = arith.constant 0.176776692 : f32
    %30 = vector.broadcast %cst_19 : f32 to vector<16x16xf32>
    %31 = arith.mulf %30, %29 : vector<16x16xf32>
    %cst_20 = arith.constant dense<0.000000e+00> : vector<16x16xf32>
    %32 = tpu.matmul %22, %25, %cst_20 {dimension_numbers = #tpu.dot_dimension_numbers<[1], [1], [0], [0], [0, 0, 1, 0], [], []>} : vector<16x32xf32>, vector<16x32xf32>, vector<16x16xf32> -> vector<16x16xf32>
    %cst_21 = arith.constant 0.176776692 : f32
    %33 = vector.broadcast %cst_21 : f32 to vector<16x16xf32>
    %34 = arith.mulf %33, %32 : vector<16x16xf32>
    %cst_22 = arith.constant dense<0.000000e+00> : vector<16x16xf32>
    %35 = tpu.matmul %28, %31, %cst_22 {dimension_numbers = #tpu.dot_dimension_numbers<[1], [0], [0], [1], [0, 0, 1, 1], [], []>} : vector<16x16xf32>, vector<16x16xf32>, vector<16x16xf32> -> vector<16x16xf32>
    %cst_23 = arith.constant dense<0.000000e+00> : vector<16x16xf32>
    %36 = tpu.matmul %34, %34, %cst_23 {dimension_numbers = #tpu.dot_dimension_numbers<[1], [0], [0], [1], [0, 0, 1, 1], [], []>} : vector<16x16xf32>, vector<16x16xf32>, vector<16x16xf32> -> vector<16x16xf32>
    %37 = arith.addf %35, %36 : vector<16x16xf32>
    %38 = vector.extract_strided_slice %3 {offsets = [0, 64], sizes = [16, 32], strides = [1, 1]} : vector<32x384xf32> to vector<16x32xf32>
    %39 = vector.extract_strided_slice %3 {offsets = [0, 192], sizes = [16, 32], strides = [1, 1]} : vector<32x384xf32> to vector<16x32xf32>
    %40 = vector.extract_strided_slice %5 {offsets = [0, 64], sizes = [16, 32], strides = [1, 1]} : vector<32x384xf32> to vector<16x32xf32>
    %41 = vector.extract_strided_slice %5 {offsets = [0, 192], sizes = [16, 32], strides = [1, 1]} : vector<32x384xf32> to vector<16x32xf32>
    %cst_24 = arith.constant dense<0.000000e+00> : vector<16x16xf32>
    %42 = tpu.matmul %38, %39, %cst_24 {dimension_numbers = #tpu.dot_dimension_numbers<[1], [1], [0], [0], [0, 0, 1, 0], [], []>} : vector<16x32xf32>, vector<16x32xf32>, vector<16x16xf32> -> vector<16x16xf32>
    %cst_25 = arith.constant 0.176776692 : f32
    %43 = vector.broadcast %cst_25 : f32 to vector<16x16xf32>
    %44 = arith.mulf %43, %42 : vector<16x16xf32>
    %cst_26 = arith.constant dense<0.000000e+00> : vector<16x16xf32>
    %45 = tpu.matmul %40, %41, %cst_26 {dimension_numbers = #tpu.dot_dimension_numbers<[1], [1], [0], [0], [0, 0, 1, 0], [], []>} : vector<16x32xf32>, vector<16x32xf32>, vector<16x16xf32> -> vector<16x16xf32>
    %cst_27 = arith.constant 0.176776692 : f32
    %46 = vector.broadcast %cst_27 : f32 to vector<16x16xf32>
    %47 = arith.mulf %46, %45 : vector<16x16xf32>
    %cst_28 = arith.constant dense<0.000000e+00> : vector<16x16xf32>
    %48 = tpu.matmul %38, %41, %cst_28 {dimension_numbers = #tpu.dot_dimension_numbers<[1], [1], [0], [0], [0, 0, 1, 0], [], []>} : vector<16x32xf32>, vector<16x32xf32>, vector<16x16xf32> -> vector<16x16xf32>
    %cst_29 = arith.constant 0.176776692 : f32
    %49 = vector.broadcast %cst_29 : f32 to vector<16x16xf32>
    %50 = arith.mulf %49, %48 : vector<16x16xf32>
    %cst_30 = arith.constant dense<0.000000e+00> : vector<16x16xf32>
    %51 = tpu.matmul %44, %47, %cst_30 {dimension_numbers = #tpu.dot_dimension_numbers<[1], [0], [0], [1], [0, 0, 1, 1], [], []>} : vector<16x16xf32>, vector<16x16xf32>, vector<16x16xf32> -> vector<16x16xf32>
    %cst_31 = arith.constant dense<0.000000e+00> : vector<16x16xf32>
    %52 = tpu.matmul %50, %50, %cst_31 {dimension_numbers = #tpu.dot_dimension_numbers<[1], [0], [0], [1], [0, 0, 1, 1], [], []>} : vector<16x16xf32>, vector<16x16xf32>, vector<16x16xf32> -> vector<16x16xf32>
    %53 = arith.addf %51, %52 : vector<16x16xf32>
    %54 = vector.extract_strided_slice %3 {offsets = [0, 96], sizes = [16, 32], strides = [1, 1]} : vector<32x384xf32> to vector<16x32xf32>
    %55 = vector.extract_strided_slice %3 {offsets = [0, 224], sizes = [16, 32], strides = [1, 1]} : vector<32x384xf32> to vector<16x32xf32>
    %56 = vector.extract_strided_slice %5 {offsets = [0, 96], sizes = [16, 32], strides = [1, 1]} : vector<32x384xf32> to vector<16x32xf32>
    %57 = vector.extract_strided_slice %5 {offsets = [0, 224], sizes = [16, 32], strides = [1, 1]} : vector<32x384xf32> to vector<16x32xf32>
    %cst_32 = arith.constant dense<0.000000e+00> : vector<16x16xf32>
    %58 = tpu.matmul %54, %55, %cst_32 {dimension_numbers = #tpu.dot_dimension_numbers<[1], [1], [0], [0], [0, 0, 1, 0], [], []>} : vector<16x32xf32>, vector<16x32xf32>, vector<16x16xf32> -> vector<16x16xf32>
    %cst_33 = arith.constant 0.176776692 : f32
    %59 = vector.broadcast %cst_33 : f32 to vector<16x16xf32>
    %60 = arith.mulf %59, %58 : vector<16x16xf32>
    %cst_34 = arith.constant dense<0.000000e+00> : vector<16x16xf32>
    %61 = tpu.matmul %56, %57, %cst_34 {dimension_numbers = #tpu.dot_dimension_numbers<[1], [1], [0], [0], [0, 0, 1, 0], [], []>} : vector<16x32xf32>, vector<16x32xf32>, vector<16x16xf32> -> vector<16x16xf32>
    %cst_35 = arith.constant 0.176776692 : f32
    %62 = vector.broadcast %cst_35 : f32 to vector<16x16xf32>
    %63 = arith.mulf %62, %61 : vector<16x16xf32>
    %cst_36 = arith.constant dense<0.000000e+00> : vector<16x16xf32>
    %64 = tpu.matmul %54, %57, %cst_36 {dimension_numbers = #tpu.dot_dimension_numbers<[1], [1], [0], [0], [0, 0, 1, 0], [], []>} : vector<16x32xf32>, vector<16x32xf32>, vector<16x16xf32> -> vector<16x16xf32>
    %cst_37 = arith.constant 0.176776692 : f32
    %65 = vector.broadcast %cst_37 : f32 to vector<16x16xf32>
    %66 = arith.mulf %65, %64 : vector<16x16xf32>
    %cst_38 = arith.constant dense<0.000000e+00> : vector<16x16xf32>
    %67 = tpu.matmul %60, %63, %cst_38 {dimension_numbers = #tpu.dot_dimension_numbers<[1], [0], [0], [1], [0, 0, 1, 1], [], []>} : vector<16x16xf32>, vector<16x16xf32>, vector<16x16xf32> -> vector<16x16xf32>
    %cst_39 = arith.constant dense<0.000000e+00> : vector<16x16xf32>
    %68 = tpu.matmul %66, %66, %cst_39 {dimension_numbers = #tpu.dot_dimension_numbers<[1], [0], [0], [1], [0, 0, 1, 1], [], []>} : vector<16x16xf32>, vector<16x16xf32>, vector<16x16xf32> -> vector<16x16xf32>
    %69 = arith.addf %67, %68 : vector<16x16xf32>
    %70 = vector.extract_strided_slice %3 {offsets = [16, 0], sizes = [16, 32], strides = [1, 1]} : vector<32x384xf32> to vector<16x32xf32>
    %71 = vector.extract_strided_slice %3 {offsets = [16, 128], sizes = [16, 32], strides = [1, 1]} : vector<32x384xf32> to vector<16x32xf32>
    %72 = vector.extract_strided_slice %5 {offsets = [16, 0], sizes = [16, 32], strides = [1, 1]} : vector<32x384xf32> to vector<16x32xf32>
    %73 = vector.extract_strided_slice %5 {offsets = [16, 128], sizes = [16, 32], strides = [1, 1]} : vector<32x384xf32> to vector<16x32xf32>
    %cst_40 = arith.constant dense<0.000000e+00> : vector<16x16xf32>
    %74 = tpu.matmul %70, %71, %cst_40 {dimension_numbers = #tpu.dot_dimension_numbers<[1], [1], [0], [0], [0, 0, 1, 0], [], []>} : vector<16x32xf32>, vector<16x32xf32>, vector<16x16xf32> -> vector<16x16xf32>
    %cst_41 = arith.constant 0.176776692 : f32
    %75 = vector.broadcast %cst_41 : f32 to vector<16x16xf32>
    %76 = arith.mulf %75, %74 : vector<16x16xf32>
    %cst_42 = arith.constant dense<0.000000e+00> : vector<16x16xf32>
    %77 = tpu.matmul %72, %73, %cst_42 {dimension_numbers = #tpu.dot_dimension_numbers<[1], [1], [0], [0], [0, 0, 1, 0], [], []>} : vector<16x32xf32>, vector<16x32xf32>, vector<16x16xf32> -> vector<16x16xf32>
    %cst_43 = arith.constant 0.176776692 : f32
    %78 = vector.broadcast %cst_43 : f32 to vector<16x16xf32>
    %79 = arith.mulf %78, %77 : vector<16x16xf32>
    %cst_44 = arith.constant dense<0.000000e+00> : vector<16x16xf32>
    %80 = tpu.matmul %70, %73, %cst_44 {dimension_numbers = #tpu.dot_dimension_numbers<[1], [1], [0], [0], [0, 0, 1, 0], [], []>} : vector<16x32xf32>, vector<16x32xf32>, vector<16x16xf32> -> vector<16x16xf32>
    %cst_45 = arith.constant 0.176776692 : f32
    %81 = vector.broadcast %cst_45 : f32 to vector<16x16xf32>
    %82 = arith.mulf %81, %80 : vector<16x16xf32>
    %cst_46 = arith.constant dense<0.000000e+00> : vector<16x16xf32>
    %83 = tpu.matmul %76, %79, %cst_46 {dimension_numbers = #tpu.dot_dimension_numbers<[1], [0], [0], [1], [0, 0, 1, 1], [], []>} : vector<16x16xf32>, vector<16x16xf32>, vector<16x16xf32> -> vector<16x16xf32>
    %cst_47 = arith.constant dense<0.000000e+00> : vector<16x16xf32>
    %84 = tpu.matmul %82, %82, %cst_47 {dimension_numbers = #tpu.dot_dimension_numbers<[1], [0], [0], [1], [0, 0, 1, 1], [], []>} : vector<16x16xf32>, vector<16x16xf32>, vector<16x16xf32> -> vector<16x16xf32>
    %85 = arith.addf %83, %84 : vector<16x16xf32>
    %86 = vector.extract_strided_slice %3 {offsets = [16, 32], sizes = [16, 32], strides = [1, 1]} : vector<32x384xf32> to vector<16x32xf32>
    %87 = vector.extract_strided_slice %3 {offsets = [16, 160], sizes = [16, 32], strides = [1, 1]} : vector<32x384xf32> to vector<16x32xf32>
    %88 = vector.extract_strided_slice %5 {offsets = [16, 32], sizes = [16, 32], strides = [1, 1]} : vector<32x384xf32> to vector<16x32xf32>
    %89 = vector.extract_strided_slice %5 {offsets = [16, 160], sizes = [16, 32], strides = [1, 1]} : vector<32x384xf32> to vector<16x32xf32>
    %cst_48 = arith.constant dense<0.000000e+00> : vector<16x16xf32>
    %90 = tpu.matmul %86, %87, %cst_48 {dimension_numbers = #tpu.dot_dimension_numbers<[1], [1], [0], [0], [0, 0, 1, 0], [], []>} : vector<16x32xf32>, vector<16x32xf32>, vector<16x16xf32> -> vector<16x16xf32>
    %cst_49 = arith.constant 0.176776692 : f32
    %91 = vector.broadcast %cst_49 : f32 to vector<16x16xf32>
    %92 = arith.mulf %91, %90 : vector<16x16xf32>
    %cst_50 = arith.constant dense<0.000000e+00> : vector<16x16xf32>
    %93 = tpu.matmul %88, %89, %cst_50 {dimension_numbers = #tpu.dot_dimension_numbers<[1], [1], [0], [0], [0, 0, 1, 0], [], []>} : vector<16x32xf32>, vector<16x32xf32>, vector<16x16xf32> -> vector<16x16xf32>
    %cst_51 = arith.constant 0.176776692 : f32
    %94 = vector.broadcast %cst_51 : f32 to vector<16x16xf32>
    %95 = arith.mulf %94, %93 : vector<16x16xf32>
    %cst_52 = arith.constant dense<0.000000e+00> : vector<16x16xf32>
    %96 = tpu.matmul %86, %89, %cst_52 {dimension_numbers = #tpu.dot_dimension_numbers<[1], [1], [0], [0], [0, 0, 1, 0], [], []>} : vector<16x32xf32>, vector<16x32xf32>, vector<16x16xf32> -> vector<16x16xf32>
    %cst_53 = arith.constant 0.176776692 : f32
    %97 = vector.broadcast %cst_53 : f32 to vector<16x16xf32>
    %98 = arith.mulf %97, %96 : vector<16x16xf32>
    %cst_54 = arith.constant dense<0.000000e+00> : vector<16x16xf32>
    %99 = tpu.matmul %92, %95, %cst_54 {dimension_numbers = #tpu.dot_dimension_numbers<[1], [0], [0], [1], [0, 0, 1, 1], [], []>} : vector<16x16xf32>, vector<16x16xf32>, vector<16x16xf32> -> vector<16x16xf32>
    %cst_55 = arith.constant dense<0.000000e+00> : vector<16x16xf32>
    %100 = tpu.matmul %98, %98, %cst_55 {dimension_numbers = #tpu.dot_dimension_numbers<[1], [0], [0], [1], [0, 0, 1, 1], [], []>} : vector<16x16xf32>, vector<16x16xf32>, vector<16x16xf32> -> vector<16x16xf32>
    %101 = arith.addf %99, %100 : vector<16x16xf32>
    %102 = vector.extract_strided_slice %3 {offsets = [16, 64], sizes = [16, 32], strides = [1, 1]} : vector<32x384xf32> to vector<16x32xf32>
    %103 = vector.extract_strided_slice %3 {offsets = [16, 192], sizes = [16, 32], strides = [1, 1]} : vector<32x384xf32> to vector<16x32xf32>
    %104 = vector.extract_strided_slice %5 {offsets = [16, 64], sizes = [16, 32], strides = [1, 1]} : vector<32x384xf32> to vector<16x32xf32>
    %105 = vector.extract_strided_slice %5 {offsets = [16, 192], sizes = [16, 32], strides = [1, 1]} : vector<32x384xf32> to vector<16x32xf32>
    %cst_56 = arith.constant dense<0.000000e+00> : vector<16x16xf32>
    %106 = tpu.matmul %102, %103, %cst_56 {dimension_numbers = #tpu.dot_dimension_numbers<[1], [1], [0], [0], [0, 0, 1, 0], [], []>} : vector<16x32xf32>, vector<16x32xf32>, vector<16x16xf32> -> vector<16x16xf32>
    %cst_57 = arith.constant 0.176776692 : f32
    %107 = vector.broadcast %cst_57 : f32 to vector<16x16xf32>
    %108 = arith.mulf %107, %106 : vector<16x16xf32>
    %cst_58 = arith.constant dense<0.000000e+00> : vector<16x16xf32>
    %109 = tpu.matmul %104, %105, %cst_58 {dimension_numbers = #tpu.dot_dimension_numbers<[1], [1], [0], [0], [0, 0, 1, 0], [], []>} : vector<16x32xf32>, vector<16x32xf32>, vector<16x16xf32> -> vector<16x16xf32>
    %cst_59 = arith.constant 0.176776692 : f32
    %110 = vector.broadcast %cst_59 : f32 to vector<16x16xf32>
    %111 = arith.mulf %110, %109 : vector<16x16xf32>
    %cst_60 = arith.constant dense<0.000000e+00> : vector<16x16xf32>
    %112 = tpu.matmul %102, %105, %cst_60 {dimension_numbers = #tpu.dot_dimension_numbers<[1], [1], [0], [0], [0, 0, 1, 0], [], []>} : vector<16x32xf32>, vector<16x32xf32>, vector<16x16xf32> -> vector<16x16xf32>
    %cst_61 = arith.constant 0.176776692 : f32
    %113 = vector.broadcast %cst_61 : f32 to vector<16x16xf32>
    %114 = arith.mulf %113, %112 : vector<16x16xf32>
    %cst_62 = arith.constant dense<0.000000e+00> : vector<16x16xf32>
    %115 = tpu.matmul %108, %111, %cst_62 {dimension_numbers = #tpu.dot_dimension_numbers<[1], [0], [0], [1], [0, 0, 1, 1], [], []>} : vector<16x16xf32>, vector<16x16xf32>, vector<16x16xf32> -> vector<16x16xf32>
    %cst_63 = arith.constant dense<0.000000e+00> : vector<16x16xf32>
    %116 = tpu.matmul %114, %114, %cst_63 {dimension_numbers = #tpu.dot_dimension_numbers<[1], [0], [0], [1], [0, 0, 1, 1], [], []>} : vector<16x16xf32>, vector<16x16xf32>, vector<16x16xf32> -> vector<16x16xf32>
    %117 = arith.addf %115, %116 : vector<16x16xf32>
    %118 = vector.extract_strided_slice %3 {offsets = [16, 96], sizes = [16, 32], strides = [1, 1]} : vector<32x384xf32> to vector<16x32xf32>
    %119 = vector.extract_strided_slice %3 {offsets = [16, 224], sizes = [16, 32], strides = [1, 1]} : vector<32x384xf32> to vector<16x32xf32>
    %120 = vector.extract_strided_slice %5 {offsets = [16, 96], sizes = [16, 32], strides = [1, 1]} : vector<32x384xf32> to vector<16x32xf32>
    %121 = vector.extract_strided_slice %5 {offsets = [16, 224], sizes = [16, 32], strides = [1, 1]} : vector<32x384xf32> to vector<16x32xf32>
    %cst_64 = arith.constant dense<0.000000e+00> : vector<16x16xf32>
    %122 = tpu.matmul %118, %119, %cst_64 {dimension_numbers = #tpu.dot_dimension_numbers<[1], [1], [0], [0], [0, 0, 1, 0], [], []>} : vector<16x32xf32>, vector<16x32xf32>, vector<16x16xf32> -> vector<16x16xf32>
    %cst_65 = arith.constant 0.176776692 : f32
    %123 = vector.broadcast %cst_65 : f32 to vector<16x16xf32>
    %124 = arith.mulf %123, %122 : vector<16x16xf32>
    %cst_66 = arith.constant dense<0.000000e+00> : vector<16x16xf32>
    %125 = tpu.matmul %120, %121, %cst_66 {dimension_numbers = #tpu.dot_dimension_numbers<[1], [1], [0], [0], [0, 0, 1, 0], [], []>} : vector<16x32xf32>, vector<16x32xf32>, vector<16x16xf32> -> vector<16x16xf32>
    %cst_67 = arith.constant 0.176776692 : f32
    %126 = vector.broadcast %cst_67 : f32 to vector<16x16xf32>
    %127 = arith.mulf %126, %125 : vector<16x16xf32>
    %cst_68 = arith.constant dense<0.000000e+00> : vector<16x16xf32>
    %128 = tpu.matmul %118, %121, %cst_68 {dimension_numbers = #tpu.dot_dimension_numbers<[1], [1], [0], [0], [0, 0, 1, 0], [], []>} : vector<16x32xf32>, vector<16x32xf32>, vector<16x16xf32> -> vector<16x16xf32>
    %cst_69 = arith.constant 0.176776692 : f32
    %129 = vector.broadcast %cst_69 : f32 to vector<16x16xf32>
    %130 = arith.mulf %129, %128 : vector<16x16xf32>
    %cst_70 = arith.constant dense<0.000000e+00> : vector<16x16xf32>
    %131 = tpu.matmul %124, %127, %cst_70 {dimension_numbers = #tpu.dot_dimension_numbers<[1], [0], [0], [1], [0, 0, 1, 1], [], []>} : vector<16x16xf32>, vector<16x16xf32>, vector<16x16xf32> -> vector<16x16xf32>
    %cst_71 = arith.constant dense<0.000000e+00> : vector<16x16xf32>
    %132 = tpu.matmul %130, %130, %cst_71 {dimension_numbers = #tpu.dot_dimension_numbers<[1], [0], [0], [1], [0, 0, 1, 1], [], []>} : vector<16x16xf32>, vector<16x16xf32>, vector<16x16xf32> -> vector<16x16xf32>
    %133 = arith.addf %131, %132 : vector<16x16xf32>
    %134 = tpu.concatenate %21, %37, %53, %69, %85, %101, %117, %133 in 0 : vector<16x16xf32>, vector<16x16xf32>, vector<16x16xf32>, vector<16x16xf32>, vector<16x16xf32>, vector<16x16xf32>, vector<16x16xf32>, vector<16x16xf32> -> vector<128x16xf32>
    %cst_72 = arith.constant dense<0xFF800000> : vector<128xf32>
    %135 = vector.multi_reduction <maximumf>, %134, %cst_72 [1] : vector<128x16xf32> to vector<128xf32>
    %136 = vector.shape_cast %135 : vector<128xf32> to vector<128x1xf32>
    %137 = vector.broadcast %136 : vector<128x1xf32> to vector<128x16xf32>
    %138 = arith.subf %134, %137 : vector<128x16xf32>
    %139 = math.exp %138 : vector<128x16xf32>
    %cst_73 = arith.constant dense<0.000000e+00> : vector<128xf32>
    %140 = vector.multi_reduction <add>, %139, %cst_73 [1] : vector<128x16xf32> to vector<128xf32>
    %141 = vector.shape_cast %140 : vector<128xf32> to vector<128x1xf32>
    %142 = tpu.reciprocal %141 {approx = true} : vector<128x1xf32> -> vector<128x1xf32>
    %143 = vector.broadcast %142 : vector<128x1xf32> to vector<128x16xf32>
    %144 = arith.mulf %139, %143 : vector<128x16xf32>
    %145 = vector.extract_strided_slice %144 {offsets = [0, 0], sizes = [16, 16], strides = [1, 1]} : vector<128x16xf32> to vector<16x16xf32>
    %146 = vector.extract_strided_slice %3 {offsets = [0, 256], sizes = [16, 32], strides = [1, 1]} : vector<32x384xf32> to vector<16x32xf32>
    %147 = vector.extract_strided_slice %5 {offsets = [0, 256], sizes = [16, 32], strides = [1, 1]} : vector<32x384xf32> to vector<16x32xf32>
    %cst_74 = arith.constant dense<0.000000e+00> : vector<16x32xf32>
    %148 = tpu.matmul %145, %147, %cst_74 {dimension_numbers = #tpu.dot_dimension_numbers<[1], [0], [0], [1], [0, 0, 1, 1], [], []>} : vector<16x16xf32>, vector<16x32xf32>, vector<16x32xf32> -> vector<16x32xf32>
    %cst_75 = arith.constant dense<0.000000e+00> : vector<16x32xf32>
    %149 = tpu.matmul %145, %146, %cst_75 {dimension_numbers = #tpu.dot_dimension_numbers<[0], [0], [1], [1], [0, 1, 1, 1], [], []>} : vector<16x16xf32>, vector<16x32xf32>, vector<16x32xf32> -> vector<16x32xf32>
    %150 = vector.extract_strided_slice %144 {offsets = [16, 0], sizes = [16, 16], strides = [1, 1]} : vector<128x16xf32> to vector<16x16xf32>
    %151 = vector.extract_strided_slice %3 {offsets = [0, 288], sizes = [16, 32], strides = [1, 1]} : vector<32x384xf32> to vector<16x32xf32>
    %152 = vector.extract_strided_slice %5 {offsets = [0, 288], sizes = [16, 32], strides = [1, 1]} : vector<32x384xf32> to vector<16x32xf32>
    %cst_76 = arith.constant dense<0.000000e+00> : vector<16x32xf32>
    %153 = tpu.matmul %150, %152, %cst_76 {dimension_numbers = #tpu.dot_dimension_numbers<[1], [0], [0], [1], [0, 0, 1, 1], [], []>} : vector<16x16xf32>, vector<16x32xf32>, vector<16x32xf32> -> vector<16x32xf32>
    %cst_77 = arith.constant dense<0.000000e+00> : vector<16x32xf32>
    %154 = tpu.matmul %150, %151, %cst_77 {dimension_numbers = #tpu.dot_dimension_numbers<[0], [0], [1], [1], [0, 1, 1, 1], [], []>} : vector<16x16xf32>, vector<16x32xf32>, vector<16x32xf32> -> vector<16x32xf32>
    %155 = vector.extract_strided_slice %144 {offsets = [32, 0], sizes = [16, 16], strides = [1, 1]} : vector<128x16xf32> to vector<16x16xf32>
    %156 = vector.extract_strided_slice %3 {offsets = [0, 320], sizes = [16, 32], strides = [1, 1]} : vector<32x384xf32> to vector<16x32xf32>
    %157 = vector.extract_strided_slice %5 {offsets = [0, 320], sizes = [16, 32], strides = [1, 1]} : vector<32x384xf32> to vector<16x32xf32>
    %cst_78 = arith.constant dense<0.000000e+00> : vector<16x32xf32>
    %158 = tpu.matmul %155, %157, %cst_78 {dimension_numbers = #tpu.dot_dimension_numbers<[1], [0], [0], [1], [0, 0, 1, 1], [], []>} : vector<16x16xf32>, vector<16x32xf32>, vector<16x32xf32> -> vector<16x32xf32>
    %cst_79 = arith.constant dense<0.000000e+00> : vector<16x32xf32>
    %159 = tpu.matmul %155, %156, %cst_79 {dimension_numbers = #tpu.dot_dimension_numbers<[0], [0], [1], [1], [0, 1, 1, 1], [], []>} : vector<16x16xf32>, vector<16x32xf32>, vector<16x32xf32> -> vector<16x32xf32>
    %160 = vector.extract_strided_slice %144 {offsets = [48, 0], sizes = [16, 16], strides = [1, 1]} : vector<128x16xf32> to vector<16x16xf32>
    %161 = vector.extract_strided_slice %3 {offsets = [0, 352], sizes = [16, 32], strides = [1, 1]} : vector<32x384xf32> to vector<16x32xf32>
    %162 = vector.extract_strided_slice %5 {offsets = [0, 352], sizes = [16, 32], strides = [1, 1]} : vector<32x384xf32> to vector<16x32xf32>
    %cst_80 = arith.constant dense<0.000000e+00> : vector<16x32xf32>
    %163 = tpu.matmul %160, %162, %cst_80 {dimension_numbers = #tpu.dot_dimension_numbers<[1], [0], [0], [1], [0, 0, 1, 1], [], []>} : vector<16x16xf32>, vector<16x32xf32>, vector<16x32xf32> -> vector<16x32xf32>
    %cst_81 = arith.constant dense<0.000000e+00> : vector<16x32xf32>
    %164 = tpu.matmul %160, %161, %cst_81 {dimension_numbers = #tpu.dot_dimension_numbers<[0], [0], [1], [1], [0, 1, 1, 1], [], []>} : vector<16x16xf32>, vector<16x32xf32>, vector<16x32xf32> -> vector<16x32xf32>
    %165 = tpu.concatenate %148, %153, %158, %163 in 1 : vector<16x32xf32>, vector<16x32xf32>, vector<16x32xf32>, vector<16x32xf32> -> vector<16x128xf32>
    %166 = tpu.concatenate %149, %154, %159, %164 in 1 : vector<16x32xf32>, vector<16x32xf32>, vector<16x32xf32>, vector<16x32xf32> -> vector<16x128xf32>
    %167 = vector.extract_strided_slice %144 {offsets = [64, 0], sizes = [16, 16], strides = [1, 1]} : vector<128x16xf32> to vector<16x16xf32>
    %168 = vector.extract_strided_slice %3 {offsets = [16, 256], sizes = [16, 32], strides = [1, 1]} : vector<32x384xf32> to vector<16x32xf32>
    %169 = vector.extract_strided_slice %5 {offsets = [16, 256], sizes = [16, 32], strides = [1, 1]} : vector<32x384xf32> to vector<16x32xf32>
    %cst_82 = arith.constant dense<0.000000e+00> : vector<16x32xf32>
    %170 = tpu.matmul %167, %169, %cst_82 {dimension_numbers = #tpu.dot_dimension_numbers<[1], [0], [0], [1], [0, 0, 1, 1], [], []>} : vector<16x16xf32>, vector<16x32xf32>, vector<16x32xf32> -> vector<16x32xf32>
    %cst_83 = arith.constant dense<0.000000e+00> : vector<16x32xf32>
    %171 = tpu.matmul %167, %168, %cst_83 {dimension_numbers = #tpu.dot_dimension_numbers<[0], [0], [1], [1], [0, 1, 1, 1], [], []>} : vector<16x16xf32>, vector<16x32xf32>, vector<16x32xf32> -> vector<16x32xf32>
    %172 = vector.extract_strided_slice %144 {offsets = [80, 0], sizes = [16, 16], strides = [1, 1]} : vector<128x16xf32> to vector<16x16xf32>
    %173 = vector.extract_strided_slice %3 {offsets = [16, 288], sizes = [16, 32], strides = [1, 1]} : vector<32x384xf32> to vector<16x32xf32>
    %174 = vector.extract_strided_slice %5 {offsets = [16, 288], sizes = [16, 32], strides = [1, 1]} : vector<32x384xf32> to vector<16x32xf32>
    %cst_84 = arith.constant dense<0.000000e+00> : vector<16x32xf32>
    %175 = tpu.matmul %172, %174, %cst_84 {dimension_numbers = #tpu.dot_dimension_numbers<[1], [0], [0], [1], [0, 0, 1, 1], [], []>} : vector<16x16xf32>, vector<16x32xf32>, vector<16x32xf32> -> vector<16x32xf32>
    %cst_85 = arith.constant dense<0.000000e+00> : vector<16x32xf32>
    %176 = tpu.matmul %172, %173, %cst_85 {dimension_numbers = #tpu.dot_dimension_numbers<[0], [0], [1], [1], [0, 1, 1, 1], [], []>} : vector<16x16xf32>, vector<16x32xf32>, vector<16x32xf32> -> vector<16x32xf32>
    %177 = vector.extract_strided_slice %144 {offsets = [96, 0], sizes = [16, 16], strides = [1, 1]} : vector<128x16xf32> to vector<16x16xf32>
    %178 = vector.extract_strided_slice %3 {offsets = [16, 320], sizes = [16, 32], strides = [1, 1]} : vector<32x384xf32> to vector<16x32xf32>
    %179 = vector.extract_strided_slice %5 {offsets = [16, 320], sizes = [16, 32], strides = [1, 1]} : vector<32x384xf32> to vector<16x32xf32>
    %cst_86 = arith.constant dense<0.000000e+00> : vector<16x32xf32>
    %180 = tpu.matmul %177, %179, %cst_86 {dimension_numbers = #tpu.dot_dimension_numbers<[1], [0], [0], [1], [0, 0, 1, 1], [], []>} : vector<16x16xf32>, vector<16x32xf32>, vector<16x32xf32> -> vector<16x32xf32>
    %cst_87 = arith.constant dense<0.000000e+00> : vector<16x32xf32>
    %181 = tpu.matmul %177, %178, %cst_87 {dimension_numbers = #tpu.dot_dimension_numbers<[0], [0], [1], [1], [0, 1, 1, 1], [], []>} : vector<16x16xf32>, vector<16x32xf32>, vector<16x32xf32> -> vector<16x32xf32>
    %182 = vector.extract_strided_slice %144 {offsets = [112, 0], sizes = [16, 16], strides = [1, 1]} : vector<128x16xf32> to vector<16x16xf32>
    %183 = vector.extract_strided_slice %3 {offsets = [16, 352], sizes = [16, 32], strides = [1, 1]} : vector<32x384xf32> to vector<16x32xf32>
    %184 = vector.extract_strided_slice %5 {offsets = [16, 352], sizes = [16, 32], strides = [1, 1]} : vector<32x384xf32> to vector<16x32xf32>
    %cst_88 = arith.constant dense<0.000000e+00> : vector<16x32xf32>
    %185 = tpu.matmul %182, %184, %cst_88 {dimension_numbers = #tpu.dot_dimension_numbers<[1], [0], [0], [1], [0, 0, 1, 1], [], []>} : vector<16x16xf32>, vector<16x32xf32>, vector<16x32xf32> -> vector<16x32xf32>
    %cst_89 = arith.constant dense<0.000000e+00> : vector<16x32xf32>
    %186 = tpu.matmul %182, %183, %cst_89 {dimension_numbers = #tpu.dot_dimension_numbers<[0], [0], [1], [1], [0, 1, 1, 1], [], []>} : vector<16x16xf32>, vector<16x32xf32>, vector<16x32xf32> -> vector<16x32xf32>
    %187 = tpu.concatenate %170, %175, %180, %185 in 1 : vector<16x32xf32>, vector<16x32xf32>, vector<16x32xf32>, vector<16x32xf32> -> vector<16x128xf32>
    %188 = tpu.concatenate %171, %176, %181, %186 in 1 : vector<16x32xf32>, vector<16x32xf32>, vector<16x32xf32>, vector<16x32xf32> -> vector<16x128xf32>
    %189 = tpu.concatenate %165, %187 in 0 : vector<16x128xf32>, vector<16x128xf32> -> vector<32x128xf32>
    %190 = tpu.concatenate %166, %188 in 0 : vector<16x128xf32>, vector<16x128xf32> -> vector<32x128xf32>
    %c0_90 = arith.constant 0 : index
    %c0_91 = arith.constant 0 : index
    %191 = vector.load %arg4[%c0_90, %c0_91] : memref<128x128xf32, #tpu.memory_space<vmem>>, vector<128x128xf32>
    %cst_92 = arith.constant dense<0.000000e+00> : vector<32x128xf32>
    %192 = tpu.matmul %189, %191, %cst_92 {dimension_numbers = #tpu.dot_dimension_numbers<[1], [0], [0], [1], [0, 0, 1, 1], [], []>} : vector<32x128xf32>, vector<128x128xf32>, vector<32x128xf32> -> vector<32x128xf32>
    %c0_93 = arith.constant 0 : index
    %c0_94 = arith.constant 0 : index
    %193 = vector.load %arg6[%c0_93, %c0_94] : memref<32x128xf32, #tpu.memory_space<vmem>>, vector<32x128xf32>
    tpu.vector_store %arg6[%c0_93, %c0_94], %192 {strides = array<i32>} : memref<32x128xf32, #tpu.memory_space<vmem>>, vector<32x128xf32>,
    %c0_95 = arith.constant 0 : index
    %c0_96 = arith.constant 0 : index
    %194 = vector.load %arg5[%c0_95, %c0_96] : memref<128x128xf32, #tpu.memory_space<vmem>>, vector<128x128xf32>
    %cst_97 = arith.constant dense<0.000000e+00> : vector<32x128xf32>
    %195 = tpu.matmul %190, %194, %cst_97 {dimension_numbers = #tpu.dot_dimension_numbers<[1], [0], [0], [1], [0, 0, 1, 1], [], []>} : vector<32x128xf32>, vector<128x128xf32>, vector<32x128xf32> -> vector<32x128xf32>
    %c0_98 = arith.constant 0 : index
    %c0_99 = arith.constant 0 : index
    %196 = vector.load %arg7[%c0_98, %c0_99] : memref<32x128xf32, #tpu.memory_space<vmem>>, vector<32x128xf32>
    tpu.vector_store %arg7[%c0_98, %c0_99], %195 {strides = array<i32>} : memref<32x128xf32, #tpu.memory_space<vmem>>, vector<32x128xf32>,
    return
  }
}

</mosaic_0001>

<llo_original>
// kernel: tpu_custom_call.1
$region0: #{tpu_custom_call.1}
  #allocation0 [shape = 'u32[]', space=smem, size = 0x4, offset = 0x4, fixed_abs, tag = 'smem constant byte address 0x4 - core index']
  #allocation1 [shape = 'u32[144,128]{1,0:T(1,128)}', space=vmem, size = 0x12000, scoped, tag = 'internal scratch']
  %s0 = inlined_call_operand.vmem [shape: f32[32,16], index: 0, kind: input, shape index: {}]
  %s1 = inlined_call_operand.vmem [shape: f32[32,16], index: 1, kind: input, shape index: {}]
  %s2 = inlined_call_operand.vmem [shape: f32[16,384], index: 2, kind: input, shape index: {}]
  %s3 = inlined_call_operand.vmem [shape: f32[16,384], index: 3, kind: input, shape index: {}]
  %s4 = inlined_call_operand.hbm [shape: f32[128,128], index: 4, kind: input, shape index: {}]
  %s5 = inlined_call_operand.hbm [shape: f32[128,128], index: 5, kind: input, shape index: {}]
  %s6 = inlined_call_operand.hbm [shape: f32[32,128], index: 6, kind: output, shape index: {0}]
  %s7 = inlined_call_operand.hbm [shape: f32[32,128], index: 7, kind: output, shape index: {1}]
  %8 = xla_tuple %s6, %s7
  %s9 = sld [smem:[#allocation0]]
  $region50: #{tpu_custom_call.1} parent=0
    _
  %s11 = ssub.s32 1, %s9
  %s12 = scalar_select 0, %s11, %s9
  $region1: #{tpu_custom_call.1} parent=0
    #allocation2 [shape = 'u8[65536]{0}', space=vmem, size = 0x10000, scoped, tag = 'input window, operand 4, single buffered']
    #allocation3 [shape = 's32[1]{0}', space=sflag, size = 0x4, scoped, tag = 'scoped memory for tpu_custom_call.1']
    #allocation4 [shape = 's32[1]{0}', space=sflag, size = 0x4, scoped, tag = 'scoped memory for tpu_custom_call.1']
    #allocation5 [shape = 'u8[65536]{0}', space=vmem, size = 0x10000, scoped, tag = 'input window, operand 5, single buffered']
    #allocation6 [shape = 's32[1]{0}', space=sflag, size = 0x4, scoped, tag = 'scoped memory for tpu_custom_call.1']
    #allocation7 [shape = 'u8[16384]{0}', space=vmem, size = 0x4000, scoped, tag = 'output window, operand 0, single buffered']
    #allocation8 [shape = 'u8[16384]{0}', space=vmem, size = 0x4000, scoped, tag = 'output window, operand 1, single buffered']
    #allocation9 [shape = 's32[1]{0}', space=sflag, size = 0x4, scoped, tag = 'scoped memory for tpu_custom_call.1']
    %13 = vsyncpa [#allocation3], 0
    %14 = vsyncpa [#allocation6], 0
    %15 = vsyncpa [#allocation4], 0
    %16 = vsyncpa [#allocation9], 0
    // Predicated region
    $region2: #{tpu_custom_call.1} parent=1 // pred_check
      _
    $region3: #{tpu_custom_call.1} parent=1 // pred_check_branch
      %18 = sbr.rel (0) target = $region5
    $region4: #{tpu_custom_call.1} parent=1 // pred_region
      _
    $region5: #{tpu_custom_call.1} parent=1 // pred_fallthru
      _
    // Predicated region
    $region6: #{tpu_custom_call.1} parent=1 // pred_check
      _
    $region7: #{tpu_custom_call.1} parent=1 // pred_check_branch
      %20 = sbr.rel (0) target = $region9
    $region8: #{tpu_custom_call.1} parent=1 // pred_region
      _
    $region9: #{tpu_custom_call.1} parent=1 // pred_fallthru
      _
    // Predicated region
    $region10: #{tpu_custom_call.1} parent=1 // pred_check
      _
    $region11: #{tpu_custom_call.1} parent=1 // pred_check_branch
      %22 = sbr.rel (0) target = $region13
    $region12: #{tpu_custom_call.1} parent=1 // pred_region
      _
    $region13: #{tpu_custom_call.1} parent=1 // pred_fallthru
      _
    // Predicated region
    $region14: #{tpu_custom_call.1} parent=1 // pred_check
      _
    $region15: #{tpu_custom_call.1} parent=1 // pred_check_branch
      %24 = sbr.rel (0) target = $region17
    $region16: #{tpu_custom_call.1} parent=1 // pred_region
      _
    $region17: #{tpu_custom_call.1} parent=1 // pred_fallthru
      _
    // Predicated region
    $region18: #{tpu_custom_call.1} parent=1 // pred_check
      _
    $region19: #{tpu_custom_call.1} parent=1 // pred_check_branch
      %26 = sbr.rel (0) target = $region21
    $region20: #{tpu_custom_call.1} parent=1 // pred_region
      %s28 = ssub.s32 2048, 2048
      %29 = vsyncadd [#allocation3], %s28
      %s30 = sshll.u32 [#allocation2], 4
      %s31 = int_to_ptr.vmem [resolvable:$true] %s30
      %36 = dma.hbm_to_vmem [thread:$0]  %s4, 2048, %s31, [#allocation3], 128, 128, 8
    $region21: #{tpu_custom_call.1} parent=1 // pred_fallthru
      _
    // Predicated region
    $region22: #{tpu_custom_call.1} parent=1 // pred_check
      _
    $region23: #{tpu_custom_call.1} parent=1 // pred_check_branch
      %38 = sbr.rel (0) target = $region25
    $region24: #{tpu_custom_call.1} parent=1 // pred_region
      %s40 = ssub.s32 2048, 2048
      %41 = vsyncadd [#allocation6], %s40
      %s42 = sshll.u32 [#allocation5], 4
      %s43 = int_to_ptr.vmem [resolvable:$true] %s42
      %48 = dma.hbm_to_vmem [thread:$0]  %s5, 2048, %s43, [#allocation6], 128, 128, 8
    $region25: #{tpu_custom_call.1} parent=1 // pred_fallthru
      _
    // Predicated region
    $region26: #{tpu_custom_call.1} parent=1 // pred_check
      _
    $region27: #{tpu_custom_call.1} parent=1 // pred_check_branch
      %50 = sbr.rel (0) target = $region29
    $region28: #{tpu_custom_call.1} parent=1 // pred_region
      %51 = dma.done [#allocation3], 2048
    $region29: #{tpu_custom_call.1} parent=1 // pred_fallthru
      _
    // Predicated region
    $region30: #{tpu_custom_call.1} parent=1 // pred_check
      _
    $region31: #{tpu_custom_call.1} parent=1 // pred_check_branch
      %53 = sbr.rel (0) target = $region33
    $region32: #{tpu_custom_call.1} parent=1 // pred_region
      %54 = dma.done [#allocation6], 2048
    $region33: #{tpu_custom_call.1} parent=1 // pred_fallthru
      _
    %v55 = vld [vmem:[%s0] sm:$0xff]
    %v56 = vld [vmem:[%s0 + $0x8] sm:$0xff]
    %v57 = vld [vmem:[%s0 + $0x10] sm:$0xff]
    %v58 = vld [vmem:[%s0 + $0x18] sm:$0xff]
    %v59 = vld [vmem:[%s1] sm:$0xff]
    %v60 = vld [vmem:[%s1 + $0x8] sm:$0xff]
    %v61 = vld [vmem:[%s1 + $0x10] sm:$0xff]
    %v62 = vld [vmem:[%s1 + $0x18] sm:$0xff]
    %v63 = vld [vmem:[%s2] sm:$0xff]
    %v64 = vld [vmem:[%s2 + $0x8] sm:$0xff]
    %v65 = vld [vmem:[%s2 + $0x10] sm:$0xff]
    %v66 = vld [vmem:[%s2 + $0x18] sm:$0xff]
    %v67 = vld [vmem:[%s2 + $0x20] sm:$0xff]
    %v68 = vld [vmem:[%s2 + $0x28] sm:$0xff]
    %vm69 = vcmask 130048
    %v71 = vsel %vm69, %v55, 0
    %v74 = vsel %vm69, %v56, 0
    %v77 = vsel %vm69, %v57, 0
    %v80 = vsel %vm69, %v58, 0
    %82 = vmatprep.subr.mxu0 %v64
    %83 = vmatpush1.msra.mxu0 %v63
    %84 = vmatprep.subr.mxu0 %v67
    %85 = vmatpush1.msra.mxu0 %v66
    %86 = vmatprep.subr.mxu0 0.0
    %87 = vmatpush1.msra.mxu0 0.0
    %88 = vmatprep.subr.mxu0 0.0
    %89 = vmatpush1.msra.mxu0 0.0
    %90 = vmatprep.subr.mxu0 0.0
    %91 = vmatpush1.msra.mxu0 0.0
    %92 = vmatprep.subr.mxu0 0.0
    %93 = vmatpush1.msra.mxu0 0.0
    %94 = vmatprep.subr.mxu0 0.0
    %95 = vmatpush1.msra.mxu0 0.0
    %96 = vmatprep.subr.mxu0 0.0
    %97 = vmatpush1.msra.mxu0 0.0
    %98 = vmatprep.subr.mxu0 0.0
    %99 = vmatpush1.msra.mxu0 0.0
    %100 = vmatprep.subr.mxu0 0.0
    %101 = vmatpush1.msra.mxu0 0.0
    %102 = vmatprep.subr.mxu0 0.0
    %103 = vmatpush1.msra.mxu0 0.0
    %104 = vmatprep.subr.mxu0 0.0
    %105 = vmatpush1.msra.mxu0 0.0
    %106 = vmatprep.subr.mxu0 0.0
    %107 = vmatpush1.msra.mxu0 0.0
    %108 = vmatprep.subr.mxu0 0.0
    %109 = vmatpush1.msra.mxu0 0.0
    %110 = vmatprep.subr.mxu0 0.0
    %111 = vmatpush1.msra.mxu0 0.0
    %112 = vmatprep.subr.mxu0 0.0
    %113 = vmatpush1.msra.mxu0 0.0
    %114 = vmatprep.subr.mxu0 0.0
    %115 = vmatpush1.msra.mxu0 0.0
    %116 = vmatprep.subr.mxu0 0.0
    %117 = vmatpush1.msra.mxu0 0.0
    %118 = vmatprep.subr.mxu0 0.0
    %119 = vmatpush1.msra.mxu0 0.0
    %120 = vmatprep.subr.mxu0 0.0
    %121 = vmatpush1.msra.mxu0 0.0
    %122 = vmatprep.subr.mxu0 0.0
    %123 = vmatpush1.msra.mxu0 0.0
    %124 = vmatprep.subr.mxu0 0.0
    %125 = vmatpush1.msra.mxu0 0.0
    %126 = vmatprep.subr.mxu0 0.0
    %127 = vmatpush1.msra.mxu0 0.0
    %128 = vmatprep.subr.mxu0 0.0
    %129 = vmatpush1.msra.mxu0 0.0
    %130 = vmatprep.subr.mxu0 0.0
    %131 = vmatpush1.msra.mxu0 0.0
    %132 = vmatprep.subr.mxu0 0.0
    %133 = vmatpush1.msra.mxu0 0.0
    %134 = vmatprep.subr.mxu0 0.0
    %135 = vmatpush1.msra.mxu0 0.0
    %136 = vmatprep.subr.mxu0 0.0
    %137 = vmatpush1.msra.mxu0 0.0
    %138 = vmatprep.subr.mxu0 0.0
    %139 = vmatpush1.msra.mxu0 0.0
    %140 = vmatprep.subr.mxu0 0.0
    %141 = vmatpush1.msra.mxu0 0.0
    %142 = vmatprep.subr.mxu0 0.0
    %143 = vmatpush1.msra.mxu0 0.0
    %144 = vmatprep.subr.mxu0 0.0
    %145 = vmatpush1.msra.mxu0 0.0
    %146 = vmatprep.mubr.f32.mxu0 0.0
    %147 = vmatmul.mubr.f32.gmra.mrb[0].mxu0 %v71
    %v148 = vpop.f32.mrb[0].mxu0
    %v149 = vadd.f32 0.0, %v148
    %v150 = vpop.f32.mrb[0].mxu0
    %v151 = vadd.f32 0.0, %v150
    %152 = vmatprep.mubr.f32.mxu0 0.0
    %153 = vmatmul.mubr.f32.gmra.mrb[0].mxu0 %v74
    %v154 = vpop.f32.mrb[0].mxu0
    %v155 = vadd.f32 0.0, %v154
    %v156 = vpop.f32.mrb[0].mxu0
    %v157 = vadd.f32 0.0, %v156
    %158 = vmatprep.mubr.f32.mxu0 0.0
    %159 = vmatmul.mubr.f32.gmra.mrb[0].mxu0 %v77
    %v160 = vpop.f32.mrb[0].mxu0
    %v161 = vadd.f32 0.0, %v160
    %v162 = vpop.f32.mrb[0].mxu0
    %v163 = vadd.f32 0.0, %v162
    %164 = vmatprep.mubr.f32.mxu0 0.0
    %165 = vmatmul.mubr.f32.gmra.mrb[0].mxu0 %v80
    %v166 = vpop.f32.mrb[0].mxu0
    %v167 = vadd.f32 0.0, %v166
    %v168 = vpop.f32.mrb[0].mxu0
    %v169 = vadd.f32 0.0, %v168
    %170 = vdwg.mxu0
    %171 = vmatprep.subr.mxu0 0.0
    %172 = vmatpush1.msra.mxu0 %v65
    %173 = vmatprep.subr.mxu0 0.0
    %174 = vmatpush1.msra.mxu0 %v68
    %175 = vmatprep.subr.mxu0 0.0
    %176 = vmatpush1.msra.mxu0 0.0
    %177 = vmatprep.subr.mxu0 0.0
    %178 = vmatpush1.msra.mxu0 0.0
    %179 = vmatprep.subr.mxu0 0.0
    %180 = vmatpush1.msra.mxu0 0.0
    %181 = vmatprep.subr.mxu0 0.0
    %182 = vmatpush1.msra.mxu0 0.0
    %183 = vmatprep.subr.mxu0 0.0
    %184 = vmatpush1.msra.mxu0 0.0
    %185 = vmatprep.subr.mxu0 0.0
    %186 = vmatpush1.msra.mxu0 0.0
    %187 = vmatprep.subr.mxu0 0.0
    %188 = vmatpush1.msra.mxu0 0.0
    %189 = vmatprep.subr.mxu0 0.0
    %190 = vmatpush1.msra.mxu0 0.0
    %191 = vmatprep.subr.mxu0 0.0
    %192 = vmatpush1.msra.mxu0 0.0
    %193 = vmatprep.subr.mxu0 0.0
    %194 = vmatpush1.msra.mxu0 0.0
    %195 = vmatprep.subr.mxu0 0.0
    %196 = vmatpush1.msra.mxu0 0.0
    %197 = vmatprep.subr.mxu0 0.0
    %198 = vmatpush1.msra.mxu0 0.0
    %199 = vmatprep.subr.mxu0 0.0
    %200 = vmatpush1.msra.mxu0 0.0
    %201 = vmatprep.subr.mxu0 0.0
    %202 = vmatpush1.msra.mxu0 0.0
    %203 = vmatprep.subr.mxu0 0.0
    %204 = vmatpush1.msra.mxu0 0.0
    %205 = vmatprep.subr.mxu0 0.0
    %206 = vmatpush1.msra.mxu0 0.0
    %207 = vmatprep.subr.mxu0 0.0
    %208 = vmatpush1.msra.mxu0 0.0
    %209 = vmatprep.subr.mxu0 0.0
    %210 = vmatpush1.msra.mxu0 0.0
    %211 = vmatprep.subr.mxu0 0.0
    %212 = vmatpush1.msra.mxu0 0.0
    %213 = vmatprep.subr.mxu0 0.0
    %214 = vmatpush1.msra.mxu0 0.0
    %215 = vmatprep.subr.mxu0 0.0
    %216 = vmatpush1.msra.mxu0 0.0
    %217 = vmatprep.subr.mxu0 0.0
    %218 = vmatpush1.msra.mxu0 0.0
    %219 = vmatprep.subr.mxu0 0.0
    %220 = vmatpush1.msra.mxu0 0.0
    %221 = vmatprep.subr.mxu0 0.0
    %222 = vmatpush1.msra.mxu0 0.0
    %223 = vmatprep.subr.mxu0 0.0
    %224 = vmatpush1.msra.mxu0 0.0
    %225 = vmatprep.subr.mxu0 0.0
    %226 = vmatpush1.msra.mxu0 0.0
    %227 = vmatprep.subr.mxu0 0.0
    %228 = vmatpush1.msra.mxu0 0.0
    %229 = vmatprep.subr.mxu0 0.0
    %230 = vmatpush1.msra.mxu0 0.0
    %231 = vmatprep.subr.mxu0 0.0
    %232 = vmatpush1.msra.mxu0 0.0
    %233 = vmatprep.subr.mxu0 0.0
    %234 = vmatpush1.msra.mxu0 0.0
    %235 = vmatprep.mubr.f32.mxu0 0.0
    %236 = vmatmul.mubr.f32.gmra.mrb[0].mxu0 %v71
    %v237 = vpop.f32.mrb[0].mxu0
    %v238 = vadd.f32 0.0, %v237
    %v239 = vpop.f32.mrb[0].mxu0
    %240 = vmatprep.mubr.f32.mxu0 0.0
    %241 = vmatmul.mubr.f32.gmra.mrb[0].mxu0 %v74
    %v242 = vpop.f32.mrb[0].mxu0
    %v243 = vadd.f32 0.0, %v242
    %v244 = vpop.f32.mrb[0].mxu0
    %245 = vmatprep.mubr.f32.mxu0 0.0
    %246 = vmatmul.mubr.f32.gmra.mrb[0].mxu0 %v77
    %v247 = vpop.f32.mrb[0].mxu0
    %v248 = vadd.f32 0.0, %v247
    %v249 = vpop.f32.mrb[0].mxu0
    %250 = vmatprep.mubr.f32.mxu0 0.0
    %251 = vmatmul.mubr.f32.gmra.mrb[0].mxu0 %v80
    %v252 = vpop.f32.mrb[0].mxu0
    %v253 = vadd.f32 0.0, %v252
    %v254 = vpop.f32.mrb[0].mxu0
    %255 = vdwg.mxu0
    %v256 = vld [vmem:[%s3] sm:$0xff]
    %v257 = vld [vmem:[%s3 + $0x8] sm:$0xff]
    %v258 = vld [vmem:[%s3 + $0x10] sm:$0xff]
    %v259 = vld [vmem:[%s3 + $0x18] sm:$0xff]
    %v260 = vld [vmem:[%s3 + $0x20] sm:$0xff]
    %v261 = vld [vmem:[%s3 + $0x28] sm:$0xff]
    %v263 = vsel %vm69, %v59, 0
    %v266 = vsel %vm69, %v60, 0
    %v269 = vsel %vm69, %v61, 0
    %v272 = vsel %vm69, %v62, 0
    %274 = vmatprep.subr.mxu0 %v257
    %275 = vmatpush1.msra.mxu0 %v256
    %276 = vmatprep.subr.mxu0 %v260
    %277 = vmatpush1.msra.mxu0 %v259
    %278 = vmatprep.subr.mxu0 0.0
    %279 = vmatpush1.msra.mxu0 0.0
    %280 = vmatprep.subr.mxu0 0.0
    %281 = vmatpush1.msra.mxu0 0.0
    %282 = vmatprep.subr.mxu0 0.0
    %283 = vmatpush1.msra.mxu0 0.0
    %284 = vmatprep.subr.mxu0 0.0
    %285 = vmatpush1.msra.mxu0 0.0
    %286 = vmatprep.subr.mxu0 0.0
    %287 = vmatpush1.msra.mxu0 0.0
    %288 = vmatprep.subr.mxu0 0.0
    %289 = vmatpush1.msra.mxu0 0.0
    %290 = vmatprep.subr.mxu0 0.0
    %291 = vmatpush1.msra.mxu0 0.0
    %292 = vmatprep.subr.mxu0 0.0
    %293 = vmatpush1.msra.mxu0 0.0
    %294 = vmatprep.subr.mxu0 0.0
    %295 = vmatpush1.msra.mxu0 0.0
    %296 = vmatprep.subr.mxu0 0.0
    %297 = vmatpush1.msra.mxu0 0.0
    %298 = vmatprep.subr.mxu0 0.0
    %299 = vmatpush1.msra.mxu0 0.0
    %300 = vmatprep.subr.mxu0 0.0
    %301 = vmatpush1.msra.mxu0 0.0
    %302 = vmatprep.subr.mxu0 0.0
    %303 = vmatpush1.msra.mxu0 0.0
    %304 = vmatprep.subr.mxu0 0.0
    %305 = vmatpush1.msra.mxu0 0.0
    %306 = vmatprep.subr.mxu0 0.0
    %307 = vmatpush1.msra.mxu0 0.0
    %308 = vmatprep.subr.mxu0 0.0
    %309 = vmatpush1.msra.mxu0 0.0
    %310 = vmatprep.subr.mxu0 0.0
    %311 = vmatpush1.msra.mxu0 0.0
    %312 = vmatprep.subr.mxu0 0.0
    %313 = vmatpush1.msra.mxu0 0.0
    %314 = vmatprep.subr.mxu0 0.0
    %315 = vmatpush1.msra.mxu0 0.0
    %316 = vmatprep.subr.mxu0 0.0
    %317 = vmatpush1.msra.mxu0 0.0
    %318 = vmatprep.subr.mxu0 0.0
    %319 = vmatpush1.msra.mxu0 0.0
    %320 = vmatprep.subr.mxu0 0.0
    %321 = vmatpush1.msra.mxu0 0.0
    %322 = vmatprep.subr.mxu0 0.0
    %323 = vmatpush1.msra.mxu0 0.0
    %324 = vmatprep.subr.mxu0 0.0
    %325 = vmatpush1.msra.mxu0 0.0
    %326 = vmatprep.subr.mxu0 0.0
    %327 = vmatpush1.msra.mxu0 0.0
    %328 = vmatprep.subr.mxu0 0.0
    %329 = vmatpush1.msra.mxu0 0.0
    %330 = vmatprep.subr.mxu0 0.0
    %331 = vmatpush1.msra.mxu0 0.0
    %332 = vmatprep.subr.mxu0 0.0
    %333 = vmatpush1.msra.mxu0 0.0
    %334 = vmatprep.subr.mxu0 0.0
    %335 = vmatpush1.msra.mxu0 0.0
    %336 = vmatprep.subr.mxu0 0.0
    %337 = vmatpush1.msra.mxu0 0.0
    %338 = vmatprep.mubr.f32.mxu0 0.0
    %339 = vmatmul.mubr.f32.gmra.mrb[0].mxu0 %v263
    %v340 = vpop.f32.mrb[0].mxu0
    %v341 = vadd.f32 0.0, %v340
    %v342 = vpop.f32.mrb[0].mxu0
    %v343 = vadd.f32 0.0, %v342
    %344 = vmatprep.mubr.f32.mxu0 0.0
    %345 = vmatmul.mubr.f32.gmra.mrb[0].mxu0 %v266
    %v346 = vpop.f32.mrb[0].mxu0
    %v347 = vadd.f32 0.0, %v346
    %v348 = vpop.f32.mrb[0].mxu0
    %v349 = vadd.f32 0.0, %v348
    %350 = vmatprep.mubr.f32.mxu0 0.0
    %351 = vmatmul.mubr.f32.gmra.mrb[0].mxu0 %v269
    %v352 = vpop.f32.mrb[0].mxu0
    %v353 = vadd.f32 0.0, %v352
    %v354 = vpop.f32.mrb[0].mxu0
    %v355 = vadd.f32 0.0, %v354
    %356 = vmatprep.mubr.f32.mxu0 0.0
    %357 = vmatmul.mubr.f32.gmra.mrb[0].mxu0 %v272
    %v358 = vpop.f32.mrb[0].mxu0
    %v359 = vadd.f32 0.0, %v358
    %v360 = vpop.f32.mrb[0].mxu0
    %v361 = vadd.f32 0.0, %v360
    %362 = vdwg.mxu0
    %363 = vmatprep.subr.mxu0 0.0
    %364 = vmatpush1.msra.mxu0 %v258
    %365 = vmatprep.subr.mxu0 0.0
    %366 = vmatpush1.msra.mxu0 %v261
    %367 = vmatprep.subr.mxu0 0.0
    %368 = vmatpush1.msra.mxu0 0.0
    %369 = vmatprep.subr.mxu0 0.0
    %370 = vmatpush1.msra.mxu0 0.0
    %371 = vmatprep.subr.mxu0 0.0
    %372 = vmatpush1.msra.mxu0 0.0
    %373 = vmatprep.subr.mxu0 0.0
    %374 = vmatpush1.msra.mxu0 0.0
    %375 = vmatprep.subr.mxu0 0.0
    %376 = vmatpush1.msra.mxu0 0.0
    %377 = vmatprep.subr.mxu0 0.0
    %378 = vmatpush1.msra.mxu0 0.0
    %379 = vmatprep.subr.mxu0 0.0
    %380 = vmatpush1.msra.mxu0 0.0
    %381 = vmatprep.subr.mxu0 0.0
    %382 = vmatpush1.msra.mxu0 0.0
    %383 = vmatprep.subr.mxu0 0.0
    %384 = vmatpush1.msra.mxu0 0.0
    %385 = vmatprep.subr.mxu0 0.0
    %386 = vmatpush1.msra.mxu0 0.0
    %387 = vmatprep.subr.mxu0 0.0
    %388 = vmatpush1.msra.mxu0 0.0
    %389 = vmatprep.subr.mxu0 0.0
    %390 = vmatpush1.msra.mxu0 0.0
    %391 = vmatprep.subr.mxu0 0.0
    %392 = vmatpush1.msra.mxu0 0.0
    %393 = vmatprep.subr.mxu0 0.0
    %394 = vmatpush1.msra.mxu0 0.0
    %395 = vmatprep.subr.mxu0 0.0
    %396 = vmatpush1.msra.mxu0 0.0
    %397 = vmatprep.subr.mxu0 0.0
    %398 = vmatpush1.msra.mxu0 0.0
    %399 = vmatprep.subr.mxu0 0.0
    %400 = vmatpush1.msra.mxu0 0.0
    %401 = vmatprep.subr.mxu0 0.0
    %402 = vmatpush1.msra.mxu0 0.0
    %403 = vmatprep.subr.mxu0 0.0
    %404 = vmatpush1.msra.mxu0 0.0
    %405 = vmatprep.subr.mxu0 0.0
    %406 = vmatpush1.msra.mxu0 0.0
    %407 = vmatprep.subr.mxu0 0.0
    %408 = vmatpush1.msra.mxu0 0.0
    %409 = vmatprep.subr.mxu0 0.0
    %410 = vmatpush1.msra.mxu0 0.0
    %411 = vmatprep.subr.mxu0 0.0
    %412 = vmatpush1.msra.mxu0 0.0
    %413 = vmatprep.subr.mxu0 0.0
    %414 = vmatpush1.msra.mxu0 0.0
    %415 = vmatprep.subr.mxu0 0.0
    %416 = vmatpush1.msra.mxu0 0.0
    %417 = vmatprep.subr.mxu0 0.0
    %418 = vmatpush1.msra.mxu0 0.0
    %419 = vmatprep.subr.mxu0 0.0
    %420 = vmatpush1.msra.mxu0 0.0
    %421 = vmatprep.subr.mxu0 0.0
    %422 = vmatpush1.msra.mxu0 0.0
    %423 = vmatprep.subr.mxu0 0.0
    %424 = vmatpush1.msra.mxu0 0.0
    %425 = vmatprep.subr.mxu0 0.0
    %426 = vmatpush1.msra.mxu0 0.0
    %427 = vmatprep.mubr.f32.mxu0 0.0
    %428 = vmatmul.mubr.f32.gmra.mrb[0].mxu0 %v263
    %v429 = vpop.f32.mrb[0].mxu0
    %v430 = vadd.f32 0.0, %v429
    %v431 = vpop.f32.mrb[0].mxu0
    %432 = vmatprep.mubr.f32.mxu0 0.0
    %433 = vmatmul.mubr.f32.gmra.mrb[0].mxu0 %v266
    %v434 = vpop.f32.mrb[0].mxu0
    %v435 = vadd.f32 0.0, %v434
    %v436 = vpop.f32.mrb[0].mxu0
    %437 = vmatprep.mubr.f32.mxu0 0.0
    %438 = vmatmul.mubr.f32.gmra.mrb[0].mxu0 %v269
    %v439 = vpop.f32.mrb[0].mxu0
    %v440 = vadd.f32 0.0, %v439
    %v441 = vpop.f32.mrb[0].mxu0
    %442 = vmatprep.mubr.f32.mxu0 0.0
    %443 = vmatmul.mubr.f32.gmra.mrb[0].mxu0 %v272
    %v444 = vpop.f32.mrb[0].mxu0
    %v445 = vadd.f32 0.0, %v444
    %v446 = vpop.f32.mrb[0].mxu0
    %447 = vdwg.mxu0
    %vm448 = vcmask 261120
    %v450 = vsel %vm448, %v149, 0
    %v453 = vsel %vm448, %v155, 0
    %v456 = vsel %vm448, %v151, 0
    %v459 = vsel %vm448, %v157, 0
    %461 = vmatprep.subr.mxu0 0.0
    %462 = vmatpush1.xpose.msra.mxu0 %v456
    %463 = vmatprep.subr.mxu0 0.0
    %464 = vmatpush1.xpose.msra.mxu0 %v459
    %465 = vmatprep.subr.mxu0 0.0
    %466 = vmatpush1.xpose.msra.mxu0 0.0
    %467 = vmatprep.subr.mxu0 0.0
    %468 = vmatpush1.xpose.msra.mxu0 0.0
    %469 = vmatprep.subr.mxu0 0.0
    %470 = vmatpush1.xpose.msra.mxu0 0.0
    %471 = vmatprep.subr.mxu0 0.0
    %472 = vmatpush1.xpose.msra.mxu0 0.0
    %473 = vmatprep.subr.mxu0 0.0
    %474 = vmatpush1.xpose.msra.mxu0 0.0
    %475 = vmatprep.subr.mxu0 0.0
    %476 = vmatpush1.xpose.msra.mxu0 0.0
    %477 = vmatprep.subr.mxu0 0.0
    %478 = vmatpush1.xpose.msra.mxu0 0.0
    %479 = vmatprep.subr.mxu0 0.0
    %480 = vmatpush1.xpose.msra.mxu0 0.0
    %481 = vmatprep.subr.mxu0 0.0
    %482 = vmatpush1.xpose.msra.mxu0 0.0
    %483 = vmatprep.subr.mxu0 0.0
    %484 = vmatpush1.xpose.msra.mxu0 0.0
    %485 = vmatprep.subr.mxu0 0.0
    %486 = vmatpush1.xpose.msra.mxu0 0.0
    %487 = vmatprep.subr.mxu0 0.0
    %488 = vmatpush1.xpose.msra.mxu0 0.0
    %489 = vmatprep.subr.mxu0 0.0
    %490 = vmatpush1.xpose.msra.mxu0 0.0
    %491 = vmatprep.subr.mxu0 0.0
    %492 = vmatpush1.xpose.msra.mxu0 0.0
    %493 = vmatprep.subr.mxu0 0.0
    %494 = vmatpush1.xpose.msra.mxu0 0.0
    %495 = vmatprep.subr.mxu0 0.0
    %496 = vmatpush1.xpose.msra.mxu0 0.0
    %497 = vmatprep.subr.mxu0 0.0
    %498 = vmatpush1.xpose.msra.mxu0 0.0
    %499 = vmatprep.subr.mxu0 0.0
    %500 = vmatpush1.xpose.msra.mxu0 0.0
    %501 = vmatprep.subr.mxu0 0.0
    %502 = vmatpush1.xpose.msra.mxu0 0.0
    %503 = vmatprep.subr.mxu0 0.0
    %504 = vmatpush1.xpose.msra.mxu0 0.0
    %505 = vmatprep.subr.mxu0 0.0
    %506 = vmatpush1.xpose.msra.mxu0 0.0
    %507 = vmatprep.subr.mxu0 0.0
    %508 = vmatpush1.xpose.msra.mxu0 0.0
    %509 = vmatprep.subr.mxu0 0.0
    %510 = vmatpush1.xpose.msra.mxu0 0.0
    %511 = vmatprep.subr.mxu0 0.0
    %512 = vmatpush1.xpose.msra.mxu0 0.0
    %513 = vmatprep.subr.mxu0 0.0
    %514 = vmatpush1.xpose.msra.mxu0 0.0
    %515 = vmatprep.subr.mxu0 0.0
    %516 = vmatpush1.xpose.msra.mxu0 0.0
    %517 = vmatprep.subr.mxu0 0.0
    %518 = vmatpush1.xpose.msra.mxu0 0.0
    %519 = vmatprep.subr.mxu0 0.0
    %520 = vmatpush1.xpose.msra.mxu0 0.0
    %521 = vmatprep.subr.mxu0 0.0
    %522 = vmatpush1.xpose.msra.mxu0 0.0
    %523 = vmatprep.subr.mxu0 0.0
    %524 = vmatpush1.xpose.msra.mxu0 0.0
    %525 = vmatprep.mubr.f32.mxu0 0.0
    %526 = vmatmul.mubr.f32.gmra.mrb[0].mxu0 %v450
    %v527 = vpop.f32.mrb[0].mxu0
    %v528 = vadd.f32 0.0, %v527
    %v529 = vpop.f32.mrb[0].mxu0
    %530 = vmatprep.mubr.f32.mxu0 0.0
    %531 = vmatmul.mubr.f32.gmra.mrb[0].mxu0 %v453
    %v532 = vpop.f32.mrb[0].mxu0
    %v533 = vadd.f32 0.0, %v532
    %v534 = vpop.f32.mrb[0].mxu0
    %535 = vdwg.mxu0
    %v536 = vmul.f32 %v528, 0.17677669
    %v537 = vmul.f32 %v533, 0.17677669
    %v539 = vsel %vm448, %v341, 0
    %v542 = vsel %vm448, %v347, 0
    %v545 = vsel %vm448, %v343, 0
    %v548 = vsel %vm448, %v349, 0
    %550 = vmatprep.subr.mxu0 0.0
    %551 = vmatpush1.xpose.msra.mxu0 %v545
    %552 = vmatprep.subr.mxu0 0.0
    %553 = vmatpush1.xpose.msra.mxu0 %v548
    %554 = vmatprep.subr.mxu0 0.0
    %555 = vmatpush1.xpose.msra.mxu0 0.0
    %556 = vmatprep.subr.mxu0 0.0
    %557 = vmatpush1.xpose.msra.mxu0 0.0
    %558 = vmatprep.subr.mxu0 0.0
    %559 = vmatpush1.xpose.msra.mxu0 0.0
    %560 = vmatprep.subr.mxu0 0.0
    %561 = vmatpush1.xpose.msra.mxu0 0.0
    %562 = vmatprep.subr.mxu0 0.0
    %563 = vmatpush1.xpose.msra.mxu0 0.0
    %564 = vmatprep.subr.mxu0 0.0
    %565 = vmatpush1.xpose.msra.mxu0 0.0
    %566 = vmatprep.subr.mxu0 0.0
    %567 = vmatpush1.xpose.msra.mxu0 0.0
    %568 = vmatprep.subr.mxu0 0.0
    %569 = vmatpush1.xpose.msra.mxu0 0.0
    %570 = vmatprep.subr.mxu0 0.0
    %571 = vmatpush1.xpose.msra.mxu0 0.0
    %572 = vmatprep.subr.mxu0 0.0
    %573 = vmatpush1.xpose.msra.mxu0 0.0
    %574 = vmatprep.subr.mxu0 0.0
    %575 = vmatpush1.xpose.msra.mxu0 0.0
    %576 = vmatprep.subr.mxu0 0.0
    %577 = vmatpush1.xpose.msra.mxu0 0.0
    %578 = vmatprep.subr.mxu0 0.0
    %579 = vmatpush1.xpose.msra.mxu0 0.0
    %580 = vmatprep.subr.mxu0 0.0
    %581 = vmatpush1.xpose.msra.mxu0 0.0
    %582 = vmatprep.subr.mxu0 0.0
    %583 = vmatpush1.xpose.msra.mxu0 0.0
    %584 = vmatprep.subr.mxu0 0.0
    %585 = vmatpush1.xpose.msra.mxu0 0.0
    %586 = vmatprep.subr.mxu0 0.0
    %587 = vmatpush1.xpose.msra.mxu0 0.0
    %588 = vmatprep.subr.mxu0 0.0
    %589 = vmatpush1.xpose.msra.mxu0 0.0
    %590 = vmatprep.subr.mxu0 0.0
    %591 = vmatpush1.xpose.msra.mxu0 0.0
    %592 = vmatprep.subr.mxu0 0.0
    %593 = vmatpush1.xpose.msra.mxu0 0.0
    %594 = vmatprep.subr.mxu0 0.0
    %595 = vmatpush1.xpose.msra.mxu0 0.0
    %596 = vmatprep.subr.mxu0 0.0
    %597 = vmatpush1.xpose.msra.mxu0 0.0
    %598 = vmatprep.subr.mxu0 0.0
    %599 = vmatpush1.xpose.msra.mxu0 0.0
    %600 = vmatprep.subr.mxu0 0.0
    %601 = vmatpush1.xpose.msra.mxu0 0.0
    %602 = vmatprep.subr.mxu0 0.0
    %603 = vmatpush1.xpose.msra.mxu0 0.0
    %604 = vmatprep.subr.mxu0 0.0
    %605 = vmatpush1.xpose.msra.mxu0 0.0
    %606 = vmatprep.subr.mxu0 0.0
    %607 = vmatpush1.xpose.msra.mxu0 0.0
    %608 = vmatprep.subr.mxu0 0.0
    %609 = vmatpush1.xpose.msra.mxu0 0.0
    %610 = vmatprep.subr.mxu0 0.0
    %611 = vmatpush1.xpose.msra.mxu0 0.0
    %612 = vmatprep.subr.mxu0 0.0
    %613 = vmatpush1.xpose.msra.mxu0 0.0
    %614 = vmatprep.mubr.f32.mxu0 0.0
    %615 = vmatmul.mubr.f32.gmra.mrb[0].mxu0 %v539
    %v616 = vpop.f32.mrb[0].mxu0
    %v617 = vadd.f32 0.0, %v616
    %v618 = vpop.f32.mrb[0].mxu0
    %619 = vmatprep.mubr.f32.mxu0 0.0
    %620 = vmatmul.mubr.f32.gmra.mrb[0].mxu0 %v542
    %v621 = vpop.f32.mrb[0].mxu0
    %v622 = vadd.f32 0.0, %v621
    %v623 = vpop.f32.mrb[0].mxu0
    %624 = vdwg.mxu0
    %v625 = vmul.f32 %v617, 0.17677669
    %v626 = vmul.f32 %v622, 0.17677669
    %627 = vmatprep.subr.mxu0 0.0
    %628 = vmatpush1.xpose.msra.mxu0 %v545
    %629 = vmatprep.subr.mxu0 0.0
    %630 = vmatpush1.xpose.msra.mxu0 %v548
    %631 = vmatprep.subr.mxu0 0.0
    %632 = vmatpush1.xpose.msra.mxu0 0.0
    %633 = vmatprep.subr.mxu0 0.0
    %634 = vmatpush1.xpose.msra.mxu0 0.0
    %635 = vmatprep.subr.mxu0 0.0
    %636 = vmatpush1.xpose.msra.mxu0 0.0
    %637 = vmatprep.subr.mxu0 0.0
    %638 = vmatpush1.xpose.msra.mxu0 0.0
    %639 = vmatprep.subr.mxu0 0.0
    %640 = vmatpush1.xpose.msra.mxu0 0.0
    %641 = vmatprep.subr.mxu0 0.0
    %642 = vmatpush1.xpose.msra.mxu0 0.0
    %643 = vmatprep.subr.mxu0 0.0
    %644 = vmatpush1.xpose.msra.mxu0 0.0
    %645 = vmatprep.subr.mxu0 0.0
    %646 = vmatpush1.xpose.msra.mxu0 0.0
    %647 = vmatprep.subr.mxu0 0.0
    %648 = vmatpush1.xpose.msra.mxu0 0.0
    %649 = vmatprep.subr.mxu0 0.0
    %650 = vmatpush1.xpose.msra.mxu0 0.0
    %651 = vmatprep.subr.mxu0 0.0
    %652 = vmatpush1.xpose.msra.mxu0 0.0
    %653 = vmatprep.subr.mxu0 0.0
    %654 = vmatpush1.xpose.msra.mxu0 0.0
    %655 = vmatprep.subr.mxu0 0.0
    %656 = vmatpush1.xpose.msra.mxu0 0.0
    %657 = vmatprep.subr.mxu0 0.0
    %658 = vmatpush1.xpose.msra.mxu0 0.0
    %659 = vmatprep.subr.mxu0 0.0
    %660 = vmatpush1.xpose.msra.mxu0 0.0
    %661 = vmatprep.subr.mxu0 0.0
    %662 = vmatpush1.xpose.msra.mxu0 0.0
    %663 = vmatprep.subr.mxu0 0.0
    %664 = vmatpush1.xpose.msra.mxu0 0.0
    %665 = vmatprep.subr.mxu0 0.0
    %666 = vmatpush1.xpose.msra.mxu0 0.0
    %667 = vmatprep.subr.mxu0 0.0
    %668 = vmatpush1.xpose.msra.mxu0 0.0
    %669 = vmatprep.subr.mxu0 0.0
    %670 = vmatpush1.xpose.msra.mxu0 0.0
    %671 = vmatprep.subr.mxu0 0.0
    %672 = vmatpush1.xpose.msra.mxu0 0.0
    %673 = vmatprep.subr.mxu0 0.0
    %674 = vmatpush1.xpose.msra.mxu0 0.0
    %675 = vmatprep.subr.mxu0 0.0
    %676 = vmatpush1.xpose.msra.mxu0 0.0
    %677 = vmatprep.subr.mxu0 0.0
    %678 = vmatpush1.xpose.msra.mxu0 0.0
    %679 = vmatprep.subr.mxu0 0.0
    %680 = vmatpush1.xpose.msra.mxu0 0.0
    %681 = vmatprep.subr.mxu0 0.0
    %682 = vmatpush1.xpose.msra.mxu0 0.0
    %683 = vmatprep.subr.mxu0 0.0
    %684 = vmatpush1.xpose.msra.mxu0 0.0
    %685 = vmatprep.subr.mxu0 0.0
    %686 = vmatpush1.xpose.msra.mxu0 0.0
    %687 = vmatprep.subr.mxu0 0.0
    %688 = vmatpush1.xpose.msra.mxu0 0.0
    %689 = vmatprep.subr.mxu0 0.0
    %690 = vmatpush1.xpose.msra.mxu0 0.0
    %691 = vmatprep.mubr.f32.mxu0 0.0
    %692 = vmatmul.mubr.f32.gmra.mrb[0].mxu0 %v450
    %v693 = vpop.f32.mrb[0].mxu0
    %v694 = vadd.f32 0.0, %v693
    %v695 = vpop.f32.mrb[0].mxu0
    %696 = vmatprep.mubr.f32.mxu0 0.0
    %697 = vmatmul.mubr.f32.gmra.mrb[0].mxu0 %v453
    %v698 = vpop.f32.mrb[0].mxu0
    %v699 = vadd.f32 0.0, %v698
    %v700 = vpop.f32.mrb[0].mxu0
    %701 = vdwg.mxu0
    %v702 = vmul.f32 %v694, 0.17677669
    %v703 = vmul.f32 %v699, 0.17677669
    %v705 = vsel %vm69, %v702, 0
    %v708 = vsel %vm69, %v703, 0
    %710 = vmatprep.subr.mxu0 0.0
    %711 = vmatpush1.msra.mxu0 %v702
    %712 = vmatprep.subr.mxu0 0.0
    %713 = vmatpush1.msra.mxu0 %v703
    %714 = vmatprep.subr.mxu0 0.0
    %715 = vmatpush1.msra.mxu0 0.0
    %716 = vmatprep.subr.mxu0 0.0
    %717 = vmatpush1.msra.mxu0 0.0
    %718 = vmatprep.subr.mxu0 0.0
    %719 = vmatpush1.msra.mxu0 0.0
    %720 = vmatprep.subr.mxu0 0.0
    %721 = vmatpush1.msra.mxu0 0.0
    %722 = vmatprep.subr.mxu0 0.0
    %723 = vmatpush1.msra.mxu0 0.0
    %724 = vmatprep.subr.mxu0 0.0
    %725 = vmatpush1.msra.mxu0 0.0
    %726 = vmatprep.subr.mxu0 0.0
    %727 = vmatpush1.msra.mxu0 0.0
    %728 = vmatprep.subr.mxu0 0.0
    %729 = vmatpush1.msra.mxu0 0.0
    %730 = vmatprep.subr.mxu0 0.0
    %731 = vmatpush1.msra.mxu0 0.0
    %732 = vmatprep.subr.mxu0 0.0
    %733 = vmatpush1.msra.mxu0 0.0
    %734 = vmatprep.subr.mxu0 0.0
    %735 = vmatpush1.msra.mxu0 0.0
    %736 = vmatprep.subr.mxu0 0.0
    %737 = vmatpush1.msra.mxu0 0.0
    %738 = vmatprep.subr.mxu0 0.0
    %739 = vmatpush1.msra.mxu0 0.0
    %740 = vmatprep.subr.mxu0 0.0
    %741 = vmatpush1.msra.mxu0 0.0
    %742 = vmatprep.subr.mxu0 0.0
    %743 = vmatpush1.msra.mxu0 0.0
    %744 = vmatprep.subr.mxu0 0.0
    %745 = vmatpush1.msra.mxu0 0.0
    %746 = vmatprep.subr.mxu0 0.0
    %747 = vmatpush1.msra.mxu0 0.0
    %748 = vmatprep.subr.mxu0 0.0
    %749 = vmatpush1.msra.mxu0 0.0
    %750 = vmatprep.subr.mxu0 0.0
    %751 = vmatpush1.msra.mxu0 0.0
    %752 = vmatprep.subr.mxu0 0.0
    %753 = vmatpush1.msra.mxu0 0.0
    %754 = vmatprep.subr.mxu0 0.0
    %755 = vmatpush1.msra.mxu0 0.0
    %756 = vmatprep.subr.mxu0 0.0
    %757 = vmatpush1.msra.mxu0 0.0
    %758 = vmatprep.subr.mxu0 0.0
    %759 = vmatpush1.msra.mxu0 0.0
    %760 = vmatprep.subr.mxu0 0.0
    %761 = vmatpush1.msra.mxu0 0.0
    %762 = vmatprep.subr.mxu0 0.0
    %763 = vmatpush1.msra.mxu0 0.0
    %764 = vmatprep.subr.mxu0 0.0
    %765 = vmatpush1.msra.mxu0 0.0
    %766 = vmatprep.subr.mxu0 0.0
    %767 = vmatpush1.msra.mxu0 0.0
    %768 = vmatprep.subr.mxu0 0.0
    %769 = vmatpush1.msra.mxu0 0.0
    %770 = vmatprep.subr.mxu0 0.0
    %771 = vmatpush1.msra.mxu0 0.0
    %772 = vmatprep.subr.mxu0 0.0
    %773 = vmatpush1.msra.mxu0 0.0
    %774 = vmatprep.mubr.f32.mxu0 0.0
    %775 = vmatmul.mubr.f32.gmra.mrb[0].mxu0 %v705
    %v776 = vpop.f32.mrb[0].mxu0
    %v777 = vadd.f32 0.0, %v776
    %v778 = vpop.f32.mrb[0].mxu0
    %779 = vmatprep.mubr.f32.mxu0 0.0
    %780 = vmatmul.mubr.f32.gmra.mrb[0].mxu0 %v708
    %v781 = vpop.f32.mrb[0].mxu0
    %v782 = vadd.f32 0.0, %v781
    %v783 = vpop.f32.mrb[0].mxu0
    %784 = vdwg.mxu0
    %v786 = vsel %vm69, %v536, 0
    %v789 = vsel %vm69, %v537, 0
    %791 = vmatprep.subr.mxu0 0.0
    %792 = vmatpush1.msra.mxu0 %v625
    %793 = vmatprep.subr.mxu0 0.0
    %794 = vmatpush1.msra.mxu0 %v626
    %795 = vmatprep.subr.mxu0 0.0
    %796 = vmatpush1.msra.mxu0 0.0
    %797 = vmatprep.subr.mxu0 0.0
    %798 = vmatpush1.msra.mxu0 0.0
    %799 = vmatprep.subr.mxu0 0.0
    %800 = vmatpush1.msra.mxu0 0.0
    %801 = vmatprep.subr.mxu0 0.0
    %802 = vmatpush1.msra.mxu0 0.0
    %803 = vmatprep.subr.mxu0 0.0
    %804 = vmatpush1.msra.mxu0 0.0
    %805 = vmatprep.subr.mxu0 0.0
    %806 = vmatpush1.msra.mxu0 0.0
    %807 = vmatprep.subr.mxu0 0.0
    %808 = vmatpush1.msra.mxu0 0.0
    %809 = vmatprep.subr.mxu0 0.0
    %810 = vmatpush1.msra.mxu0 0.0
    %811 = vmatprep.subr.mxu0 0.0
    %812 = vmatpush1.msra.mxu0 0.0
    %813 = vmatprep.subr.mxu0 0.0
    %814 = vmatpush1.msra.mxu0 0.0
    %815 = vmatprep.subr.mxu0 0.0
    %816 = vmatpush1.msra.mxu0 0.0
    %817 = vmatprep.subr.mxu0 0.0
    %818 = vmatpush1.msra.mxu0 0.0
    %819 = vmatprep.subr.mxu0 0.0
    %820 = vmatpush1.msra.mxu0 0.0
    %821 = vmatprep.subr.mxu0 0.0
    %822 = vmatpush1.msra.mxu0 0.0
    %823 = vmatprep.subr.mxu0 0.0
    %824 = vmatpush1.msra.mxu0 0.0
    %825 = vmatprep.subr.mxu0 0.0
    %826 = vmatpush1.msra.mxu0 0.0
    %827 = vmatprep.subr.mxu0 0.0
    %828 = vmatpush1.msra.mxu0 0.0
    %829 = vmatprep.subr.mxu0 0.0
    %830 = vmatpush1.msra.mxu0 0.0
    %831 = vmatprep.subr.mxu0 0.0
    %832 = vmatpush1.msra.mxu0 0.0
    %833 = vmatprep.subr.mxu0 0.0
    %834 = vmatpush1.msra.mxu0 0.0
    %835 = vmatprep.subr.mxu0 0.0
    %836 = vmatpush1.msra.mxu0 0.0
    %837 = vmatprep.subr.mxu0 0.0
    %838 = vmatpush1.msra.mxu0 0.0
    %839 = vmatprep.subr.mxu0 0.0
    %840 = vmatpush1.msra.mxu0 0.0
    %841 = vmatprep.subr.mxu0 0.0
    %842 = vmatpush1.msra.mxu0 0.0
    %843 = vmatprep.subr.mxu0 0.0
    %844 = vmatpush1.msra.mxu0 0.0
    %845 = vmatprep.subr.mxu0 0.0
    %846 = vmatpush1.msra.mxu0 0.0
    %847 = vmatprep.subr.mxu0 0.0
    %848 = vmatpush1.msra.mxu0 0.0
    %849 = vmatprep.subr.mxu0 0.0
    %850 = vmatpush1.msra.mxu0 0.0
    %851 = vmatprep.subr.mxu0 0.0
    %852 = vmatpush1.msra.mxu0 0.0
    %853 = vmatprep.subr.mxu0 0.0
    %854 = vmatpush1.msra.mxu0 0.0
    %855 = vmatprep.mubr.f32.mxu0 0.0
    %856 = vmatmul.mubr.f32.gmra.mrb[0].mxu0 %v786
    %v857 = vpop.f32.mrb[0].mxu0
    %v858 = vadd.f32 %v777, %v857
    %v859 = vpop.f32.mrb[0].mxu0
    %860 = vmatprep.mubr.f32.mxu0 0.0
    %861 = vmatmul.mubr.f32.gmra.mrb[0].mxu0 %v789
    %v862 = vpop.f32.mrb[0].mxu0
    %v863 = vadd.f32 %v782, %v862
    %v864 = vpop.f32.mrb[0].mxu0
    %865 = vdwg.mxu0
    %866 = vrot.lane.b32.xlu0 %v149, 96
    %v867 = vpop.permute.xlu0 %866
    %868 = vrot.lane.b32.xlu0 %v155, 96
    %v869 = vpop.permute.xlu0 %868
    %870 = vrot.lane.b32.xlu0 %v151, 96
    %v871 = vpop.permute.xlu0 %870
    %872 = vrot.lane.b32.xlu0 %v157, 96
    %v873 = vpop.permute.xlu0 %872
    %v874 = vsel %vm448, %v867, 0
    %v876 = vsel %vm448, %v869, 0
    %v878 = vsel %vm448, %v871, 0
    %v880 = vsel %vm448, %v873, 0
    %882 = vmatprep.subr.mxu0 0.0
    %883 = vmatpush1.xpose.msra.mxu0 %v878
    %884 = vmatprep.subr.mxu0 0.0
    %885 = vmatpush1.xpose.msra.mxu0 %v880
    %886 = vmatprep.subr.mxu0 0.0
    %887 = vmatpush1.xpose.msra.mxu0 0.0
    %888 = vmatprep.subr.mxu0 0.0
    %889 = vmatpush1.xpose.msra.mxu0 0.0
    %890 = vmatprep.subr.mxu0 0.0
    %891 = vmatpush1.xpose.msra.mxu0 0.0
    %892 = vmatprep.subr.mxu0 0.0
    %893 = vmatpush1.xpose.msra.mxu0 0.0
    %894 = vmatprep.subr.mxu0 0.0
    %895 = vmatpush1.xpose.msra.mxu0 0.0
    %896 = vmatprep.subr.mxu0 0.0
    %897 = vmatpush1.xpose.msra.mxu0 0.0
    %898 = vmatprep.subr.mxu0 0.0
    %899 = vmatpush1.xpose.msra.mxu0 0.0
    %900 = vmatprep.subr.mxu0 0.0
    %901 = vmatpush1.xpose.msra.mxu0 0.0
    %902 = vmatprep.subr.mxu0 0.0
    %903 = vmatpush1.xpose.msra.mxu0 0.0
    %904 = vmatprep.subr.mxu0 0.0
    %905 = vmatpush1.xpose.msra.mxu0 0.0
    %906 = vmatprep.subr.mxu0 0.0
    %907 = vmatpush1.xpose.msra.mxu0 0.0
    %908 = vmatprep.subr.mxu0 0.0
    %909 = vmatpush1.xpose.msra.mxu0 0.0
    %910 = vmatprep.subr.mxu0 0.0
    %911 = vmatpush1.xpose.msra.mxu0 0.0
    %912 = vmatprep.subr.mxu0 0.0
    %913 = vmatpush1.xpose.msra.mxu0 0.0
    %914 = vmatprep.subr.mxu0 0.0
    %915 = vmatpush1.xpose.msra.mxu0 0.0
    %916 = vmatprep.subr.mxu0 0.0
    %917 = vmatpush1.xpose.msra.mxu0 0.0
    %918 = vmatprep.subr.mxu0 0.0
    %919 = vmatpush1.xpose.msra.mxu0 0.0
    %920 = vmatprep.subr.mxu0 0.0
    %921 = vmatpush1.xpose.msra.mxu0 0.0
    %922 = vmatprep.subr.mxu0 0.0
    %923 = vmatpush1.xpose.msra.mxu0 0.0
    %924 = vmatprep.subr.mxu0 0.0
    %925 = vmatpush1.xpose.msra.mxu0 0.0
    %926 = vmatprep.subr.mxu0 0.0
    %927 = vmatpush1.xpose.msra.mxu0 0.0
    %928 = vmatprep.subr.mxu0 0.0
    %929 = vmatpush1.xpose.msra.mxu0 0.0
    %930 = vmatprep.subr.mxu0 0.0
    %931 = vmatpush1.xpose.msra.mxu0 0.0
    %932 = vmatprep.subr.mxu0 0.0
    %933 = vmatpush1.xpose.msra.mxu0 0.0
    %934 = vmatprep.subr.mxu0 0.0
    %935 = vmatpush1.xpose.msra.mxu0 0.0
    %936 = vmatprep.subr.mxu0 0.0
    %937 = vmatpush1.xpose.msra.mxu0 0.0
    %938 = vmatprep.subr.mxu0 0.0
    %939 = vmatpush1.xpose.msra.mxu0 0.0
    %940 = vmatprep.subr.mxu0 0.0
    %941 = vmatpush1.xpose.msra.mxu0 0.0
    %942 = vmatprep.subr.mxu0 0.0
    %943 = vmatpush1.xpose.msra.mxu0 0.0
    %944 = vmatprep.subr.mxu0 0.0
    %945 = vmatpush1.xpose.msra.mxu0 0.0
    %946 = vmatprep.mubr.f32.mxu0 0.0
    %947 = vmatmul.mubr.f32.gmra.mrb[0].mxu0 %v874
    %v948 = vpop.f32.mrb[0].mxu0
    %v949 = vadd.f32 0.0, %v948
    %v950 = vpop.f32.mrb[0].mxu0
    %951 = vmatprep.mubr.f32.mxu0 0.0
    %952 = vmatmul.mubr.f32.gmra.mrb[0].mxu0 %v876
    %v953 = vpop.f32.mrb[0].mxu0
    %v954 = vadd.f32 0.0, %v953
    %v955 = vpop.f32.mrb[0].mxu0
    %956 = vdwg.mxu0
    %v957 = vmul.f32 %v949, 0.17677669
    %v958 = vmul.f32 %v954, 0.17677669
    %959 = vrot.lane.b32.xlu0 %v341, 96
    %v960 = vpop.permute.xlu0 %959
    %961 = vrot.lane.b32.xlu0 %v347, 96
    %v962 = vpop.permute.xlu0 %961
    %963 = vrot.lane.b32.xlu0 %v343, 96
    %v964 = vpop.permute.xlu0 %963
    %965 = vrot.lane.b32.xlu0 %v349, 96
    %v966 = vpop.permute.xlu0 %965
    %v967 = vsel %vm448, %v960, 0
    %v969 = vsel %vm448, %v962, 0
    %v971 = vsel %vm448, %v964, 0
    %v973 = vsel %vm448, %v966, 0
    %975 = vmatprep.subr.mxu0 0.0
    %976 = vmatpush1.xpose.msra.mxu0 %v971
    %977 = vmatprep.subr.mxu0 0.0
    %978 = vmatpush1.xpose.msra.mxu0 %v973
    %979 = vmatprep.subr.mxu0 0.0
    %980 = vmatpush1.xpose.msra.mxu0 0.0
    %981 = vmatprep.subr.mxu0 0.0
    %982 = vmatpush1.xpose.msra.mxu0 0.0
    %983 = vmatprep.subr.mxu0 0.0
    %984 = vmatpush1.xpose.msra.mxu0 0.0
    %985 = vmatprep.subr.mxu0 0.0
    %986 = vmatpush1.xpose.msra.mxu0 0.0
    %987 = vmatprep.subr.mxu0 0.0
    %988 = vmatpush1.xpose.msra.mxu0 0.0
    %989 = vmatprep.subr.mxu0 0.0
    %990 = vmatpush1.xpose.msra.mxu0 0.0
    %991 = vmatprep.subr.mxu0 0.0
    %992 = vmatpush1.xpose.msra.mxu0 0.0
    %993 = vmatprep.subr.mxu0 0.0
    %994 = vmatpush1.xpose.msra.mxu0 0.0
    %995 = vmatprep.subr.mxu0 0.0
    %996 = vmatpush1.xpose.msra.mxu0 0.0
    %997 = vmatprep.subr.mxu0 0.0
    %998 = vmatpush1.xpose.msra.mxu0 0.0
    %999 = vmatprep.subr.mxu0 0.0
    %1000 = vmatpush1.xpose.msra.mxu0 0.0
    %1001 = vmatprep.subr.mxu0 0.0
    %1002 = vmatpush1.xpose.msra.mxu0 0.0
    %1003 = vmatprep.subr.mxu0 0.0
    %1004 = vmatpush1.xpose.msra.mxu0 0.0
    %1005 = vmatprep.subr.mxu0 0.0
    %1006 = vmatpush1.xpose.msra.mxu0 0.0
    %1007 = vmatprep.subr.mxu0 0.0
    %1008 = vmatpush1.xpose.msra.mxu0 0.0
    %1009 = vmatprep.subr.mxu0 0.0
    %1010 = vmatpush1.xpose.msra.mxu0 0.0
    %1011 = vmatprep.subr.mxu0 0.0
    %1012 = vmatpush1.xpose.msra.mxu0 0.0
    %1013 = vmatprep.subr.mxu0 0.0
    %1014 = vmatpush1.xpose.msra.mxu0 0.0
    %1015 = vmatprep.subr.mxu0 0.0
    %1016 = vmatpush1.xpose.msra.mxu0 0.0
    %1017 = vmatprep.subr.mxu0 0.0
    %1018 = vmatpush1.xpose.msra.mxu0 0.0
    %1019 = vmatprep.subr.mxu0 0.0
    %1020 = vmatpush1.xpose.msra.mxu0 0.0
    %1021 = vmatprep.subr.mxu0 0.0
    %1022 = vmatpush1.xpose.msra.mxu0 0.0
    %1023 = vmatprep.subr.mxu0 0.0
    %1024 = vmatpush1.xpose.msra.mxu0 0.0
    %1025 = vmatprep.subr.mxu0 0.0
    %1026 = vmatpush1.xpose.msra.mxu0 0.0
    %1027 = vmatprep.subr.mxu0 0.0
    %1028 = vmatpush1.xpose.msra.mxu0 0.0
    %1029 = vmatprep.subr.mxu0 0.0
    %1030 = vmatpush1.xpose.msra.mxu0 0.0
    %1031 = vmatprep.subr.mxu0 0.0
    %1032 = vmatpush1.xpose.msra.mxu0 0.0
    %1033 = vmatprep.subr.mxu0 0.0
    %1034 = vmatpush1.xpose.msra.mxu0 0.0
    %1035 = vmatprep.subr.mxu0 0.0
    %1036 = vmatpush1.xpose.msra.mxu0 0.0
    %1037 = vmatprep.subr.mxu0 0.0
    %1038 = vmatpush1.xpose.msra.mxu0 0.0
    %1039 = vmatprep.mubr.f32.mxu0 0.0
    %1040 = vmatmul.mubr.f32.gmra.mrb[0].mxu0 %v967
    %v1041 = vpop.f32.mrb[0].mxu0
    %v1042 = vadd.f32 0.0, %v1041
    %v1043 = vpop.f32.mrb[0].mxu0
    %1044 = vmatprep.mubr.f32.mxu0 0.0
    %1045 = vmatmul.mubr.f32.gmra.mrb[0].mxu0 %v969
    %v1046 = vpop.f32.mrb[0].mxu0
    %v1047 = vadd.f32 0.0, %v1046
    %v1048 = vpop.f32.mrb[0].mxu0
    %1049 = vdwg.mxu0
    %v1050 = vmul.f32 %v1042, 0.17677669
    %v1051 = vmul.f32 %v1047, 0.17677669
    %1052 = vmatprep.subr.mxu0 0.0
    %1053 = vmatpush1.xpose.msra.mxu0 %v971
    %1054 = vmatprep.subr.mxu0 0.0
    %1055 = vmatpush1.xpose.msra.mxu0 %v973
    %1056 = vmatprep.subr.mxu0 0.0
    %1057 = vmatpush1.xpose.msra.mxu0 0.0
    %1058 = vmatprep.subr.mxu0 0.0
    %1059 = vmatpush1.xpose.msra.mxu0 0.0
    %1060 = vmatprep.subr.mxu0 0.0
    %1061 = vmatpush1.xpose.msra.mxu0 0.0
    %1062 = vmatprep.subr.mxu0 0.0
    %1063 = vmatpush1.xpose.msra.mxu0 0.0
    %1064 = vmatprep.subr.mxu0 0.0
    %1065 = vmatpush1.xpose.msra.mxu0 0.0
    %1066 = vmatprep.subr.mxu0 0.0
    %1067 = vmatpush1.xpose.msra.mxu0 0.0
    %1068 = vmatprep.subr.mxu0 0.0
    %1069 = vmatpush1.xpose.msra.mxu0 0.0
    %1070 = vmatprep.subr.mxu0 0.0
    %1071 = vmatpush1.xpose.msra.mxu0 0.0
    %1072 = vmatprep.subr.mxu0 0.0
    %1073 = vmatpush1.xpose.msra.mxu0 0.0
    %1074 = vmatprep.subr.mxu0 0.0
    %1075 = vmatpush1.xpose.msra.mxu0 0.0
    %1076 = vmatprep.subr.mxu0 0.0
    %1077 = vmatpush1.xpose.msra.mxu0 0.0
    %1078 = vmatprep.subr.mxu0 0.0
    %1079 = vmatpush1.xpose.msra.mxu0 0.0
    %1080 = vmatprep.subr.mxu0 0.0
    %1081 = vmatpush1.xpose.msra.mxu0 0.0
    %1082 = vmatprep.subr.mxu0 0.0
    %1083 = vmatpush1.xpose.msra.mxu0 0.0
    %1084 = vmatprep.subr.mxu0 0.0
    %1085 = vmatpush1.xpose.msra.mxu0 0.0
    %1086 = vmatprep.subr.mxu0 0.0
    %1087 = vmatpush1.xpose.msra.mxu0 0.0
    %1088 = vmatprep.subr.mxu0 0.0
    %1089 = vmatpush1.xpose.msra.mxu0 0.0
    %1090 = vmatprep.subr.mxu0 0.0
    %1091 = vmatpush1.xpose.msra.mxu0 0.0
    %1092 = vmatprep.subr.mxu0 0.0
    %1093 = vmatpush1.xpose.msra.mxu0 0.0
    %1094 = vmatprep.subr.mxu0 0.0
    %1095 = vmatpush1.xpose.msra.mxu0 0.0
    %1096 = vmatprep.subr.mxu0 0.0
    %1097 = vmatpush1.xpose.msra.mxu0 0.0
    %1098 = vmatprep.subr.mxu0 0.0
    %1099 = vmatpush1.xpose.msra.mxu0 0.0
    %1100 = vmatprep.subr.mxu0 0.0
    %1101 = vmatpush1.xpose.msra.mxu0 0.0
    %1102 = vmatprep.subr.mxu0 0.0
    %1103 = vmatpush1.xpose.msra.mxu0 0.0
    %1104 = vmatprep.subr.mxu0 0.0
    %1105 = vmatpush1.xpose.msra.mxu0 0.0
    %1106 = vmatprep.subr.mxu0 0.0
    %1107 = vmatpush1.xpose.msra.mxu0 0.0
    %1108 = vmatprep.subr.mxu0 0.0
    %1109 = vmatpush1.xpose.msra.mxu0 0.0
    %1110 = vmatprep.subr.mxu0 0.0
    %1111 = vmatpush1.xpose.msra.mxu0 0.0
    %1112 = vmatprep.subr.mxu0 0.0
    %1113 = vmatpush1.xpose.msra.mxu0 0.0
    %1114 = vmatprep.subr.mxu0 0.0
    %1115 = vmatpush1.xpose.msra.mxu0 0.0
    %1116 = vmatprep.mubr.f32.mxu0 0.0
    %1117 = vmatmul.mubr.f32.gmra.mrb[0].mxu0 %v874
    %v1118 = vpop.f32.mrb[0].mxu0
    %v1119 = vadd.f32 0.0, %v1118
    %v1120 = vpop.f32.mrb[0].mxu0
    %1121 = vmatprep.mubr.f32.mxu0 0.0
    %1122 = vmatmul.mubr.f32.gmra.mrb[0].mxu0 %v876
    %v1123 = vpop.f32.mrb[0].mxu0
    %v1124 = vadd.f32 0.0, %v1123
    %v1125 = vpop.f32.mrb[0].mxu0
    %1126 = vdwg.mxu0
    %v1127 = vmul.f32 %v1119, 0.17677669
    %v1128 = vmul.f32 %v1124, 0.17677669
    %v1130 = vsel %vm69, %v1127, 0
    %v1133 = vsel %vm69, %v1128, 0
    %1135 = vmatprep.subr.mxu0 0.0
    %1136 = vmatpush1.msra.mxu0 %v1127
    %1137 = vmatprep.subr.mxu0 0.0
    %1138 = vmatpush1.msra.mxu0 %v1128
    %1139 = vmatprep.subr.mxu0 0.0
    %1140 = vmatpush1.msra.mxu0 0.0
    %1141 = vmatprep.subr.mxu0 0.0
    %1142 = vmatpush1.msra.mxu0 0.0
    %1143 = vmatprep.subr.mxu0 0.0
    %1144 = vmatpush1.msra.mxu0 0.0
    %1145 = vmatprep.subr.mxu0 0.0
    %1146 = vmatpush1.msra.mxu0 0.0
    %1147 = vmatprep.subr.mxu0 0.0
    %1148 = vmatpush1.msra.mxu0 0.0
    %1149 = vmatprep.subr.mxu0 0.0
    %1150 = vmatpush1.msra.mxu0 0.0
    %1151 = vmatprep.subr.mxu0 0.0
    %1152 = vmatpush1.msra.mxu0 0.0
    %1153 = vmatprep.subr.mxu0 0.0
    %1154 = vmatpush1.msra.mxu0 0.0
    %1155 = vmatprep.subr.mxu0 0.0
    %1156 = vmatpush1.msra.mxu0 0.0
    %1157 = vmatprep.subr.mxu0 0.0
    %1158 = vmatpush1.msra.mxu0 0.0
    %1159 = vmatprep.subr.mxu0 0.0
    %1160 = vmatpush1.msra.mxu0 0.0
    %1161 = vmatprep.subr.mxu0 0.0
    %1162 = vmatpush1.msra.mxu0 0.0
    %1163 = vmatprep.subr.mxu0 0.0
    %1164 = vmatpush1.msra.mxu0 0.0
    %1165 = vmatprep.subr.mxu0 0.0
    %1166 = vmatpush1.msra.mxu0 0.0
    %1167 = vmatprep.subr.mxu0 0.0
    %1168 = vmatpush1.msra.mxu0 0.0
    %1169 = vmatprep.subr.mxu0 0.0
    %1170 = vmatpush1.msra.mxu0 0.0
    %1171 = vmatprep.subr.mxu0 0.0
    %1172 = vmatpush1.msra.mxu0 0.0
    %1173 = vmatprep.subr.mxu0 0.0
    %1174 = vmatpush1.msra.mxu0 0.0
    %1175 = vmatprep.subr.mxu0 0.0
    %1176 = vmatpush1.msra.mxu0 0.0
    %1177 = vmatprep.subr.mxu0 0.0
    %1178 = vmatpush1.msra.mxu0 0.0
    %1179 = vmatprep.subr.mxu0 0.0
    %1180 = vmatpush1.msra.mxu0 0.0
    %1181 = vmatprep.subr.mxu0 0.0
    %1182 = vmatpush1.msra.mxu0 0.0
    %1183 = vmatprep.subr.mxu0 0.0
    %1184 = vmatpush1.msra.mxu0 0.0
    %1185 = vmatprep.subr.mxu0 0.0
    %1186 = vmatpush1.msra.mxu0 0.0
    %1187 = vmatprep.subr.mxu0 0.0
    %1188 = vmatpush1.msra.mxu0 0.0
    %1189 = vmatprep.subr.mxu0 0.0
    %1190 = vmatpush1.msra.mxu0 0.0
    %1191 = vmatprep.subr.mxu0 0.0
    %1192 = vmatpush1.msra.mxu0 0.0
    %1193 = vmatprep.subr.mxu0 0.0
    %1194 = vmatpush1.msra.mxu0 0.0
    %1195 = vmatprep.subr.mxu0 0.0
    %1196 = vmatpush1.msra.mxu0 0.0
    %1197 = vmatprep.subr.mxu0 0.0
    %1198 = vmatpush1.msra.mxu0 0.0
    %1199 = vmatprep.mubr.f32.mxu0 0.0
    %1200 = vmatmul.mubr.f32.gmra.mrb[0].mxu0 %v1130
    %v1201 = vpop.f32.mrb[0].mxu0
    %v1202 = vadd.f32 0.0, %v1201
    %v1203 = vpop.f32.mrb[0].mxu0
    %1204 = vmatprep.mubr.f32.mxu0 0.0
    %1205 = vmatmul.mubr.f32.gmra.mrb[0].mxu0 %v1133
    %v1206 = vpop.f32.mrb[0].mxu0
    %v1207 = vadd.f32 0.0, %v1206
    %v1208 = vpop.f32.mrb[0].mxu0
    %1209 = vdwg.mxu0
    %v1211 = vsel %vm69, %v957, 0
    %v1214 = vsel %vm69, %v958, 0
    %1216 = vmatprep.subr.mxu0 0.0
    %1217 = vmatpush1.msra.mxu0 %v1050
    %1218 = vmatprep.subr.mxu0 0.0
    %1219 = vmatpush1.msra.mxu0 %v1051
    %1220 = vmatprep.subr.mxu0 0.0
    %1221 = vmatpush1.msra.mxu0 0.0
    %1222 = vmatprep.subr.mxu0 0.0
    %1223 = vmatpush1.msra.mxu0 0.0
    %1224 = vmatprep.subr.mxu0 0.0
    %1225 = vmatpush1.msra.mxu0 0.0
    %1226 = vmatprep.subr.mxu0 0.0
    %1227 = vmatpush1.msra.mxu0 0.0
    %1228 = vmatprep.subr.mxu0 0.0
    %1229 = vmatpush1.msra.mxu0 0.0
    %1230 = vmatprep.subr.mxu0 0.0
    %1231 = vmatpush1.msra.mxu0 0.0
    %1232 = vmatprep.subr.mxu0 0.0
    %1233 = vmatpush1.msra.mxu0 0.0
    %1234 = vmatprep.subr.mxu0 0.0
    %1235 = vmatpush1.msra.mxu0 0.0
    %1236 = vmatprep.subr.mxu0 0.0
    %1237 = vmatpush1.msra.mxu0 0.0
    %1238 = vmatprep.subr.mxu0 0.0
    %1239 = vmatpush1.msra.mxu0 0.0
    %1240 = vmatprep.subr.mxu0 0.0
    %1241 = vmatpush1.msra.mxu0 0.0
    %1242 = vmatprep.subr.mxu0 0.0
    %1243 = vmatpush1.msra.mxu0 0.0
    %1244 = vmatprep.subr.mxu0 0.0
    %1245 = vmatpush1.msra.mxu0 0.0
    %1246 = vmatprep.subr.mxu0 0.0
    %1247 = vmatpush1.msra.mxu0 0.0
    %1248 = vmatprep.subr.mxu0 0.0
    %1249 = vmatpush1.msra.mxu0 0.0
    %1250 = vmatprep.subr.mxu0 0.0
    %1251 = vmatpush1.msra.mxu0 0.0
    %1252 = vmatprep.subr.mxu0 0.0
    %1253 = vmatpush1.msra.mxu0 0.0
    %1254 = vmatprep.subr.mxu0 0.0
    %1255 = vmatpush1.msra.mxu0 0.0
    %1256 = vmatprep.subr.mxu0 0.0
    %1257 = vmatpush1.msra.mxu0 0.0
    %1258 = vmatprep.subr.mxu0 0.0
    %1259 = vmatpush1.msra.mxu0 0.0
    %1260 = vmatprep.subr.mxu0 0.0
    %1261 = vmatpush1.msra.mxu0 0.0
    %1262 = vmatprep.subr.mxu0 0.0
    %1263 = vmatpush1.msra.mxu0 0.0
    %1264 = vmatprep.subr.mxu0 0.0
    %1265 = vmatpush1.msra.mxu0 0.0
    %1266 = vmatprep.subr.mxu0 0.0
    %1267 = vmatpush1.msra.mxu0 0.0
    %1268 = vmatprep.subr.mxu0 0.0
    %1269 = vmatpush1.msra.mxu0 0.0
    %1270 = vmatprep.subr.mxu0 0.0
    %1271 = vmatpush1.msra.mxu0 0.0
    %1272 = vmatprep.subr.mxu0 0.0
    %1273 = vmatpush1.msra.mxu0 0.0
    %1274 = vmatprep.subr.mxu0 0.0
    %1275 = vmatpush1.msra.mxu0 0.0
    %1276 = vmatprep.subr.mxu0 0.0
    %1277 = vmatpush1.msra.mxu0 0.0
    %1278 = vmatprep.subr.mxu0 0.0
    %1279 = vmatpush1.msra.mxu0 0.0
    %1280 = vmatprep.mubr.f32.mxu0 0.0
    %1281 = vmatmul.mubr.f32.gmra.mrb[0].mxu0 %v1211
    %v1282 = vpop.f32.mrb[0].mxu0
    %v1283 = vadd.f32 %v1202, %v1282
    %v1284 = vpop.f32.mrb[0].mxu0
    %1285 = vmatprep.mubr.f32.mxu0 0.0
    %1286 = vmatmul.mubr.f32.gmra.mrb[0].mxu0 %v1214
    %v1287 = vpop.f32.mrb[0].mxu0
    %v1288 = vadd.f32 %v1207, %v1287
    %v1289 = vpop.f32.mrb[0].mxu0
    %1290 = vdwg.mxu0
    %1291 = vrot.lane.b32.xlu0 %v149, 64
    %v1292 = vpop.permute.xlu0 %1291
    %1293 = vrot.lane.b32.xlu0 %v155, 64
    %v1294 = vpop.permute.xlu0 %1293
    %1295 = vrot.lane.b32.xlu0 %v151, 64
    %v1296 = vpop.permute.xlu0 %1295
    %1297 = vrot.lane.b32.xlu0 %v157, 64
    %v1298 = vpop.permute.xlu0 %1297
    %v1299 = vsel %vm448, %v1292, 0
    %v1301 = vsel %vm448, %v1294, 0
    %v1303 = vsel %vm448, %v1296, 0
    %v1305 = vsel %vm448, %v1298, 0
    %1307 = vmatprep.subr.mxu0 0.0
    %1308 = vmatpush1.xpose.msra.mxu0 %v1303
    %1309 = vmatprep.subr.mxu0 0.0
    %1310 = vmatpush1.xpose.msra.mxu0 %v1305
    %1311 = vmatprep.subr.mxu0 0.0
    %1312 = vmatpush1.xpose.msra.mxu0 0.0
    %1313 = vmatprep.subr.mxu0 0.0
    %1314 = vmatpush1.xpose.msra.mxu0 0.0
    %1315 = vmatprep.subr.mxu0 0.0
    %1316 = vmatpush1.xpose.msra.mxu0 0.0
    %1317 = vmatprep.subr.mxu0 0.0
    %1318 = vmatpush1.xpose.msra.mxu0 0.0
    %1319 = vmatprep.subr.mxu0 0.0
    %1320 = vmatpush1.xpose.msra.mxu0 0.0
    %1321 = vmatprep.subr.mxu0 0.0
    %1322 = vmatpush1.xpose.msra.mxu0 0.0
    %1323 = vmatprep.subr.mxu0 0.0
    %1324 = vmatpush1.xpose.msra.mxu0 0.0
    %1325 = vmatprep.subr.mxu0 0.0
    %1326 = vmatpush1.xpose.msra.mxu0 0.0
    %1327 = vmatprep.subr.mxu0 0.0
    %1328 = vmatpush1.xpose.msra.mxu0 0.0
    %1329 = vmatprep.subr.mxu0 0.0
    %1330 = vmatpush1.xpose.msra.mxu0 0.0
    %1331 = vmatprep.subr.mxu0 0.0
    %1332 = vmatpush1.xpose.msra.mxu0 0.0
    %1333 = vmatprep.subr.mxu0 0.0
    %1334 = vmatpush1.xpose.msra.mxu0 0.0
    %1335 = vmatprep.subr.mxu0 0.0
    %1336 = vmatpush1.xpose.msra.mxu0 0.0
    %1337 = vmatprep.subr.mxu0 0.0
    %1338 = vmatpush1.xpose.msra.mxu0 0.0
    %1339 = vmatprep.subr.mxu0 0.0
    %1340 = vmatpush1.xpose.msra.mxu0 0.0
    %1341 = vmatprep.subr.mxu0 0.0
    %1342 = vmatpush1.xpose.msra.mxu0 0.0
    %1343 = vmatprep.subr.mxu0 0.0
    %1344 = vmatpush1.xpose.msra.mxu0 0.0
    %1345 = vmatprep.subr.mxu0 0.0
    %1346 = vmatpush1.xpose.msra.mxu0 0.0
    %1347 = vmatprep.subr.mxu0 0.0
    %1348 = vmatpush1.xpose.msra.mxu0 0.0
    %1349 = vmatprep.subr.mxu0 0.0
    %1350 = vmatpush1.xpose.msra.mxu0 0.0
    %1351 = vmatprep.subr.mxu0 0.0
    %1352 = vmatpush1.xpose.msra.mxu0 0.0
    %1353 = vmatprep.subr.mxu0 0.0
    %1354 = vmatpush1.xpose.msra.mxu0 0.0
    %1355 = vmatprep.subr.mxu0 0.0
    %1356 = vmatpush1.xpose.msra.mxu0 0.0
    %1357 = vmatprep.subr.mxu0 0.0
    %1358 = vmatpush1.xpose.msra.mxu0 0.0
    %1359 = vmatprep.subr.mxu0 0.0
    %1360 = vmatpush1.xpose.msra.mxu0 0.0
    %1361 = vmatprep.subr.mxu0 0.0
    %1362 = vmatpush1.xpose.msra.mxu0 0.0
    %1363 = vmatprep.subr.mxu0 0.0
    %1364 = vmatpush1.xpose.msra.mxu0 0.0
    %1365 = vmatprep.subr.mxu0 0.0
    %1366 = vmatpush1.xpose.msra.mxu0 0.0
    %1367 = vmatprep.subr.mxu0 0.0
    %1368 = vmatpush1.xpose.msra.mxu0 0.0
    %1369 = vmatprep.subr.mxu0 0.0
    %1370 = vmatpush1.xpose.msra.mxu0 0.0
    %1371 = vmatprep.mubr.f32.mxu0 0.0
    %1372 = vmatmul.mubr.f32.gmra.mrb[0].mxu0 %v1299
    %v1373 = vpop.f32.mrb[0].mxu0
    %v1374 = vadd.f32 0.0, %v1373
    %v1375 = vpop.f32.mrb[0].mxu0
    %1376 = vmatprep.mubr.f32.mxu0 0.0
    %1377 = vmatmul.mubr.f32.gmra.mrb[0].mxu0 %v1301
    %v1378 = vpop.f32.mrb[0].mxu0
    %v1379 = vadd.f32 0.0, %v1378
    %v1380 = vpop.f32.mrb[0].mxu0
    %1381 = vdwg.mxu0
    %v1382 = vmul.f32 %v1374, 0.17677669
    %v1383 = vmul.f32 %v1379, 0.17677669
    %1384 = vrot.lane.b32.xlu0 %v341, 64
    %v1385 = vpop.permute.xlu0 %1384
    %1386 = vrot.lane.b32.xlu0 %v347, 64
    %v1387 = vpop.permute.xlu0 %1386
    %1388 = vrot.lane.b32.xlu0 %v343, 64
    %v1389 = vpop.permute.xlu0 %1388
    %1390 = vrot.lane.b32.xlu0 %v349, 64
    %v1391 = vpop.permute.xlu0 %1390
    %v1392 = vsel %vm448, %v1385, 0
    %v1394 = vsel %vm448, %v1387, 0
    %v1396 = vsel %vm448, %v1389, 0
    %v1398 = vsel %vm448, %v1391, 0
    %1400 = vmatprep.subr.mxu0 0.0
    %1401 = vmatpush1.xpose.msra.mxu0 %v1396
    %1402 = vmatprep.subr.mxu0 0.0
    %1403 = vmatpush1.xpose.msra.mxu0 %v1398
    %1404 = vmatprep.subr.mxu0 0.0
    %1405 = vmatpush1.xpose.msra.mxu0 0.0
    %1406 = vmatprep.subr.mxu0 0.0
    %1407 = vmatpush1.xpose.msra.mxu0 0.0
    %1408 = vmatprep.subr.mxu0 0.0
    %1409 = vmatpush1.xpose.msra.mxu0 0.0
    %1410 = vmatprep.subr.mxu0 0.0
    %1411 = vmatpush1.xpose.msra.mxu0 0.0
    %1412 = vmatprep.subr.mxu0 0.0
    %1413 = vmatpush1.xpose.msra.mxu0 0.0
    %1414 = vmatprep.subr.mxu0 0.0
    %1415 = vmatpush1.xpose.msra.mxu0 0.0
    %1416 = vmatprep.subr.mxu0 0.0
    %1417 = vmatpush1.xpose.msra.mxu0 0.0
    %1418 = vmatprep.subr.mxu0 0.0
    %1419 = vmatpush1.xpose.msra.mxu0 0.0
    %1420 = vmatprep.subr.mxu0 0.0
    %1421 = vmatpush1.xpose.msra.mxu0 0.0
    %1422 = vmatprep.subr.mxu0 0.0
    %1423 = vmatpush1.xpose.msra.mxu0 0.0
    %1424 = vmatprep.subr.mxu0 0.0
    %1425 = vmatpush1.xpose.msra.mxu0 0.0
    %1426 = vmatprep.subr.mxu0 0.0
    %1427 = vmatpush1.xpose.msra.mxu0 0.0
    %1428 = vmatprep.subr.mxu0 0.0
    %1429 = vmatpush1.xpose.msra.mxu0 0.0
    %1430 = vmatprep.subr.mxu0 0.0
    %1431 = vmatpush1.xpose.msra.mxu0 0.0
    %1432 = vmatprep.subr.mxu0 0.0
    %1433 = vmatpush1.xpose.msra.mxu0 0.0
    %1434 = vmatprep.subr.mxu0 0.0
    %1435 = vmatpush1.xpose.msra.mxu0 0.0
    %1436 = vmatprep.subr.mxu0 0.0
    %1437 = vmatpush1.xpose.msra.mxu0 0.0
    %1438 = vmatprep.subr.mxu0 0.0
    %1439 = vmatpush1.xpose.msra.mxu0 0.0
    %1440 = vmatprep.subr.mxu0 0.0
    %1441 = vmatpush1.xpose.msra.mxu0 0.0
    %1442 = vmatprep.subr.mxu0 0.0
    %1443 = vmatpush1.xpose.msra.mxu0 0.0
    %1444 = vmatprep.subr.mxu0 0.0
    %1445 = vmatpush1.xpose.msra.mxu0 0.0
    %1446 = vmatprep.subr.mxu0 0.0
    %1447 = vmatpush1.xpose.msra.mxu0 0.0
    %1448 = vmatprep.subr.mxu0 0.0
    %1449 = vmatpush1.xpose.msra.mxu0 0.0
    %1450 = vmatprep.subr.mxu0 0.0
    %1451 = vmatpush1.xpose.msra.mxu0 0.0
    %1452 = vmatprep.subr.mxu0 0.0
    %1453 = vmatpush1.xpose.msra.mxu0 0.0
    %1454 = vmatprep.subr.mxu0 0.0
    %1455 = vmatpush1.xpose.msra.mxu0 0.0
    %1456 = vmatprep.subr.mxu0 0.0
    %1457 = vmatpush1.xpose.msra.mxu0 0.0
    %1458 = vmatprep.subr.mxu0 0.0
    %1459 = vmatpush1.xpose.msra.mxu0 0.0
    %1460 = vmatprep.subr.mxu0 0.0
    %1461 = vmatpush1.xpose.msra.mxu0 0.0
    %1462 = vmatprep.subr.mxu0 0.0
    %1463 = vmatpush1.xpose.msra.mxu0 0.0
    %1464 = vmatprep.mubr.f32.mxu0 0.0
    %1465 = vmatmul.mubr.f32.gmra.mrb[0].mxu0 %v1392
    %v1466 = vpop.f32.mrb[0].mxu0
    %v1467 = vadd.f32 0.0, %v1466
    %v1468 = vpop.f32.mrb[0].mxu0
    %1469 = vmatprep.mubr.f32.mxu0 0.0
    %1470 = vmatmul.mubr.f32.gmra.mrb[0].mxu0 %v1394
    %v1471 = vpop.f32.mrb[0].mxu0
    %v1472 = vadd.f32 0.0, %v1471
    %v1473 = vpop.f32.mrb[0].mxu0
    %1474 = vdwg.mxu0
    %v1475 = vmul.f32 %v1467, 0.17677669
    %v1476 = vmul.f32 %v1472, 0.17677669
    %1477 = vmatprep.subr.mxu0 0.0
    %1478 = vmatpush1.xpose.msra.mxu0 %v1396
    %1479 = vmatprep.subr.mxu0 0.0
    %1480 = vmatpush1.xpose.msra.mxu0 %v1398
    %1481 = vmatprep.subr.mxu0 0.0
    %1482 = vmatpush1.xpose.msra.mxu0 0.0
    %1483 = vmatprep.subr.mxu0 0.0
    %1484 = vmatpush1.xpose.msra.mxu0 0.0
    %1485 = vmatprep.subr.mxu0 0.0
    %1486 = vmatpush1.xpose.msra.mxu0 0.0
    %1487 = vmatprep.subr.mxu0 0.0
    %1488 = vmatpush1.xpose.msra.mxu0 0.0
    %1489 = vmatprep.subr.mxu0 0.0
    %1490 = vmatpush1.xpose.msra.mxu0 0.0
    %1491 = vmatprep.subr.mxu0 0.0
    %1492 = vmatpush1.xpose.msra.mxu0 0.0
    %1493 = vmatprep.subr.mxu0 0.0
    %1494 = vmatpush1.xpose.msra.mxu0 0.0
    %1495 = vmatprep.subr.mxu0 0.0
    %1496 = vmatpush1.xpose.msra.mxu0 0.0
    %1497 = vmatprep.subr.mxu0 0.0
    %1498 = vmatpush1.xpose.msra.mxu0 0.0
    %1499 = vmatprep.subr.mxu0 0.0
    %1500 = vmatpush1.xpose.msra.mxu0 0.0
    %1501 = vmatprep.subr.mxu0 0.0
    %1502 = vmatpush1.xpose.msra.mxu0 0.0
    %1503 = vmatprep.subr.mxu0 0.0
    %1504 = vmatpush1.xpose.msra.mxu0 0.0
    %1505 = vmatprep.subr.mxu0 0.0
    %1506 = vmatpush1.xpose.msra.mxu0 0.0
    %1507 = vmatprep.subr.mxu0 0.0
    %1508 = vmatpush1.xpose.msra.mxu0 0.0
    %1509 = vmatprep.subr.mxu0 0.0
    %1510 = vmatpush1.xpose.msra.mxu0 0.0
    %1511 = vmatprep.subr.mxu0 0.0
    %1512 = vmatpush1.xpose.msra.mxu0 0.0
    %1513 = vmatprep.subr.mxu0 0.0
    %1514 = vmatpush1.xpose.msra.mxu0 0.0
    %1515 = vmatprep.subr.mxu0 0.0
    %1516 = vmatpush1.xpose.msra.mxu0 0.0
    %1517 = vmatprep.subr.mxu0 0.0
    %1518 = vmatpush1.xpose.msra.mxu0 0.0
    %1519 = vmatprep.subr.mxu0 0.0
    %1520 = vmatpush1.xpose.msra.mxu0 0.0
    %1521 = vmatprep.subr.mxu0 0.0
    %1522 = vmatpush1.xpose.msra.mxu0 0.0
    %1523 = vmatprep.subr.mxu0 0.0
    %1524 = vmatpush1.xpose.msra.mxu0 0.0
    %1525 = vmatprep.subr.mxu0 0.0
    %1526 = vmatpush1.xpose.msra.mxu0 0.0
    %1527 = vmatprep.subr.mxu0 0.0
    %1528 = vmatpush1.xpose.msra.mxu0 0.0
    %1529 = vmatprep.subr.mxu0 0.0
    %1530 = vmatpush1.xpose.msra.mxu0 0.0
    %1531 = vmatprep.subr.mxu0 0.0
    %1532 = vmatpush1.xpose.msra.mxu0 0.0
    %1533 = vmatprep.subr.mxu0 0.0
    %1534 = vmatpush1.xpose.msra.mxu0 0.0
    %1535 = vmatprep.subr.mxu0 0.0
    %1536 = vmatpush1.xpose.msra.mxu0 0.0
    %1537 = vmatprep.subr.mxu0 0.0
    %1538 = vmatpush1.xpose.msra.mxu0 0.0
    %1539 = vmatprep.subr.mxu0 0.0
    %1540 = vmatpush1.xpose.msra.mxu0 0.0
    %1541 = vmatprep.mubr.f32.mxu0 0.0
    %1542 = vmatmul.mubr.f32.gmra.mrb[0].mxu0 %v1299
    %v1543 = vpop.f32.mrb[0].mxu0
    %v1544 = vadd.f32 0.0, %v1543
    %v1545 = vpop.f32.mrb[0].mxu0
    %1546 = vmatprep.mubr.f32.mxu0 0.0
    %1547 = vmatmul.mubr.f32.gmra.mrb[0].mxu0 %v1301
    %v1548 = vpop.f32.mrb[0].mxu0
    %v1549 = vadd.f32 0.0, %v1548
    %v1550 = vpop.f32.mrb[0].mxu0
    %1551 = vdwg.mxu0
    %v1552 = vmul.f32 %v1544, 0.17677669
    %v1553 = vmul.f32 %v1549, 0.17677669
    %v1555 = vsel %vm69, %v1552, 0
    %v1558 = vsel %vm69, %v1553, 0
    %1560 = vmatprep.subr.mxu0 0.0
    %1561 = vmatpush1.msra.mxu0 %v1552
    %1562 = vmatprep.subr.mxu0 0.0
    %1563 = vmatpush1.msra.mxu0 %v1553
    %1564 = vmatprep.subr.mxu0 0.0
    %1565 = vmatpush1.msra.mxu0 0.0
    %1566 = vmatprep.subr.mxu0 0.0
    %1567 = vmatpush1.msra.mxu0 0.0
    %1568 = vmatprep.subr.mxu0 0.0
    %1569 = vmatpush1.msra.mxu0 0.0
    %1570 = vmatprep.subr.mxu0 0.0
    %1571 = vmatpush1.msra.mxu0 0.0
    %1572 = vmatprep.subr.mxu0 0.0
    %1573 = vmatpush1.msra.mxu0 0.0
    %1574 = vmatprep.subr.mxu0 0.0
    %1575 = vmatpush1.msra.mxu0 0.0
    %1576 = vmatprep.subr.mxu0 0.0
    %1577 = vmatpush1.msra.mxu0 0.0
    %1578 = vmatprep.subr.mxu0 0.0
    %1579 = vmatpush1.msra.mxu0 0.0
    %1580 = vmatprep.subr.mxu0 0.0
    %1581 = vmatpush1.msra.mxu0 0.0
    %1582 = vmatprep.subr.mxu0 0.0
    %1583 = vmatpush1.msra.mxu0 0.0
    %1584 = vmatprep.subr.mxu0 0.0
    %1585 = vmatpush1.msra.mxu0 0.0
    %1586 = vmatprep.subr.mxu0 0.0
    %1587 = vmatpush1.msra.mxu0 0.0
    %1588 = vmatprep.subr.mxu0 0.0
    %1589 = vmatpush1.msra.mxu0 0.0
    %1590 = vmatprep.subr.mxu0 0.0
    %1591 = vmatpush1.msra.mxu0 0.0
    %1592 = vmatprep.subr.mxu0 0.0
    %1593 = vmatpush1.msra.mxu0 0.0
    %1594 = vmatprep.subr.mxu0 0.0
    %1595 = vmatpush1.msra.mxu0 0.0
    %1596 = vmatprep.subr.mxu0 0.0
    %1597 = vmatpush1.msra.mxu0 0.0
    %1598 = vmatprep.subr.mxu0 0.0
    %1599 = vmatpush1.msra.mxu0 0.0
    %1600 = vmatprep.subr.mxu0 0.0
    %1601 = vmatpush1.msra.mxu0 0.0
    %1602 = vmatprep.subr.mxu0 0.0
    %1603 = vmatpush1.msra.mxu0 0.0
    %1604 = vmatprep.subr.mxu0 0.0
    %1605 = vmatpush1.msra.mxu0 0.0
    %1606 = vmatprep.subr.mxu0 0.0
    %1607 = vmatpush1.msra.mxu0 0.0
    %1608 = vmatprep.subr.mxu0 0.0
    %1609 = vmatpush1.msra.mxu0 0.0
    %1610 = vmatprep.subr.mxu0 0.0
    %1611 = vmatpush1.msra.mxu0 0.0
    %1612 = vmatprep.subr.mxu0 0.0
    %1613 = vmatpush1.msra.mxu0 0.0
    %1614 = vmatprep.subr.mxu0 0.0
    %1615 = vmatpush1.msra.mxu0 0.0
    %1616 = vmatprep.subr.mxu0 0.0
    %1617 = vmatpush1.msra.mxu0 0.0
    %1618 = vmatprep.subr.mxu0 0.0
    %1619 = vmatpush1.msra.mxu0 0.0
    %1620 = vmatprep.subr.mxu0 0.0
    %1621 = vmatpush1.msra.mxu0 0.0
    %1622 = vmatprep.subr.mxu0 0.0
    %1623 = vmatpush1.msra.mxu0 0.0
    %1624 = vmatprep.mubr.f32.mxu0 0.0
    %1625 = vmatmul.mubr.f32.gmra.mrb[0].mxu0 %v1555
    %v1626 = vpop.f32.mrb[0].mxu0
    %v1627 = vadd.f32 0.0, %v1626
    %v1628 = vpop.f32.mrb[0].mxu0
    %1629 = vmatprep.mubr.f32.mxu0 0.0
    %1630 = vmatmul.mubr.f32.gmra.mrb[0].mxu0 %v1558
    %v1631 = vpop.f32.mrb[0].mxu0
    %v1632 = vadd.f32 0.0, %v1631
    %v1633 = vpop.f32.mrb[0].mxu0
    %1634 = vdwg.mxu0
    %v1636 = vsel %vm69, %v1382, 0
    %v1639 = vsel %vm69, %v1383, 0
    %1641 = vmatprep.subr.mxu0 0.0
    %1642 = vmatpush1.msra.mxu0 %v1475
    %1643 = vmatprep.subr.mxu0 0.0
    %1644 = vmatpush1.msra.mxu0 %v1476
    %1645 = vmatprep.subr.mxu0 0.0
    %1646 = vmatpush1.msra.mxu0 0.0
    %1647 = vmatprep.subr.mxu0 0.0
    %1648 = vmatpush1.msra.mxu0 0.0
    %1649 = vmatprep.subr.mxu0 0.0
    %1650 = vmatpush1.msra.mxu0 0.0
    %1651 = vmatprep.subr.mxu0 0.0
    %1652 = vmatpush1.msra.mxu0 0.0
    %1653 = vmatprep.subr.mxu0 0.0
    %1654 = vmatpush1.msra.mxu0 0.0
    %1655 = vmatprep.subr.mxu0 0.0
    %1656 = vmatpush1.msra.mxu0 0.0
    %1657 = vmatprep.subr.mxu0 0.0
    %1658 = vmatpush1.msra.mxu0 0.0
    %1659 = vmatprep.subr.mxu0 0.0
    %1660 = vmatpush1.msra.mxu0 0.0
    %1661 = vmatprep.subr.mxu0 0.0
    %1662 = vmatpush1.msra.mxu0 0.0
    %1663 = vmatprep.subr.mxu0 0.0
    %1664 = vmatpush1.msra.mxu0 0.0
    %1665 = vmatprep.subr.mxu0 0.0
    %1666 = vmatpush1.msra.mxu0 0.0
    %1667 = vmatprep.subr.mxu0 0.0
    %1668 = vmatpush1.msra.mxu0 0.0
    %1669 = vmatprep.subr.mxu0 0.0
    %1670 = vmatpush1.msra.mxu0 0.0
    %1671 = vmatprep.subr.mxu0 0.0
    %1672 = vmatpush1.msra.mxu0 0.0
    %1673 = vmatprep.subr.mxu0 0.0
    %1674 = vmatpush1.msra.mxu0 0.0
    %1675 = vmatprep.subr.mxu0 0.0
    %1676 = vmatpush1.msra.mxu0 0.0
    %1677 = vmatprep.subr.mxu0 0.0
    %1678 = vmatpush1.msra.mxu0 0.0
    %1679 = vmatprep.subr.mxu0 0.0
    %1680 = vmatpush1.msra.mxu0 0.0
    %1681 = vmatprep.subr.mxu0 0.0
    %1682 = vmatpush1.msra.mxu0 0.0
    %1683 = vmatprep.subr.mxu0 0.0
    %1684 = vmatpush1.msra.mxu0 0.0
    %1685 = vmatprep.subr.mxu0 0.0
    %1686 = vmatpush1.msra.mxu0 0.0
    %1687 = vmatprep.subr.mxu0 0.0
    %1688 = vmatpush1.msra.mxu0 0.0
    %1689 = vmatprep.subr.mxu0 0.0
    %1690 = vmatpush1.msra.mxu0 0.0
    %1691 = vmatprep.subr.mxu0 0.0
    %1692 = vmatpush1.msra.mxu0 0.0
    %1693 = vmatprep.subr.mxu0 0.0
    %1694 = vmatpush1.msra.mxu0 0.0
    %1695 = vmatprep.subr.mxu0 0.0
    %1696 = vmatpush1.msra.mxu0 0.0
    %1697 = vmatprep.subr.mxu0 0.0
    %1698 = vmatpush1.msra.mxu0 0.0
    %1699 = vmatprep.subr.mxu0 0.0
    %1700 = vmatpush1.msra.mxu0 0.0
    %1701 = vmatprep.subr.mxu0 0.0
    %1702 = vmatpush1.msra.mxu0 0.0
    %1703 = vmatprep.subr.mxu0 0.0
    %1704 = vmatpush1.msra.mxu0 0.0
    %1705 = vmatprep.mubr.f32.mxu0 0.0
    %1706 = vmatmul.mubr.f32.gmra.mrb[0].mxu0 %v1636
    %v1707 = vpop.f32.mrb[0].mxu0
    %v1708 = vadd.f32 %v1627, %v1707
    %v1709 = vpop.f32.mrb[0].mxu0
    %1710 = vmatprep.mubr.f32.mxu0 0.0
    %1711 = vmatmul.mubr.f32.gmra.mrb[0].mxu0 %v1639
    %v1712 = vpop.f32.mrb[0].mxu0
    %v1713 = vadd.f32 %v1632, %v1712
    %v1714 = vpop.f32.mrb[0].mxu0
    %1715 = vdwg.mxu0
    %1716 = vrot.lane.b32.xlu0 %v149, 32
    %v1717 = vpop.permute.xlu0 %1716
    %1718 = vrot.lane.b32.xlu0 %v155, 32
    %v1719 = vpop.permute.xlu0 %1718
    %1720 = vrot.lane.b32.xlu0 %v151, 32
    %v1721 = vpop.permute.xlu0 %1720
    %1722 = vrot.lane.b32.xlu0 %v157, 32
    %v1723 = vpop.permute.xlu0 %1722
    %v1724 = vsel %vm448, %v1717, 0
    %v1726 = vsel %vm448, %v1719, 0
    %v1728 = vsel %vm448, %v1721, 0
    %v1730 = vsel %vm448, %v1723, 0
    %1732 = vmatprep.subr.mxu0 0.0
    %1733 = vmatpush1.xpose.msra.mxu0 %v1728
    %1734 = vmatprep.subr.mxu0 0.0
    %1735 = vmatpush1.xpose.msra.mxu0 %v1730
    %1736 = vmatprep.subr.mxu0 0.0
    %1737 = vmatpush1.xpose.msra.mxu0 0.0
    %1738 = vmatprep.subr.mxu0 0.0
    %1739 = vmatpush1.xpose.msra.mxu0 0.0
    %1740 = vmatprep.subr.mxu0 0.0
    %1741 = vmatpush1.xpose.msra.mxu0 0.0
    %1742 = vmatprep.subr.mxu0 0.0
    %1743 = vmatpush1.xpose.msra.mxu0 0.0
    %1744 = vmatprep.subr.mxu0 0.0
    %1745 = vmatpush1.xpose.msra.mxu0 0.0
    %1746 = vmatprep.subr.mxu0 0.0
    %1747 = vmatpush1.xpose.msra.mxu0 0.0
    %1748 = vmatprep.subr.mxu0 0.0
    %1749 = vmatpush1.xpose.msra.mxu0 0.0
    %1750 = vmatprep.subr.mxu0 0.0
    %1751 = vmatpush1.xpose.msra.mxu0 0.0
    %1752 = vmatprep.subr.mxu0 0.0
    %1753 = vmatpush1.xpose.msra.mxu0 0.0
    %1754 = vmatprep.subr.mxu0 0.0
    %1755 = vmatpush1.xpose.msra.mxu0 0.0
    %1756 = vmatprep.subr.mxu0 0.0
    %1757 = vmatpush1.xpose.msra.mxu0 0.0
    %1758 = vmatprep.subr.mxu0 0.0
    %1759 = vmatpush1.xpose.msra.mxu0 0.0
    %1760 = vmatprep.subr.mxu0 0.0
    %1761 = vmatpush1.xpose.msra.mxu0 0.0
    %1762 = vmatprep.subr.mxu0 0.0
    %1763 = vmatpush1.xpose.msra.mxu0 0.0
    %1764 = vmatprep.subr.mxu0 0.0
    %1765 = vmatpush1.xpose.msra.mxu0 0.0
    %1766 = vmatprep.subr.mxu0 0.0
    %1767 = vmatpush1.xpose.msra.mxu0 0.0
    %1768 = vmatprep.subr.mxu0 0.0
    %1769 = vmatpush1.xpose.msra.mxu0 0.0
    %1770 = vmatprep.subr.mxu0 0.0
    %1771 = vmatpush1.xpose.msra.mxu0 0.0
    %1772 = vmatprep.subr.mxu0 0.0
    %1773 = vmatpush1.xpose.msra.mxu0 0.0
    %1774 = vmatprep.subr.mxu0 0.0
    %1775 = vmatpush1.xpose.msra.mxu0 0.0
    %1776 = vmatprep.subr.mxu0 0.0
    %1777 = vmatpush1.xpose.msra.mxu0 0.0
    %1778 = vmatprep.subr.mxu0 0.0
    %1779 = vmatpush1.xpose.msra.mxu0 0.0
    %1780 = vmatprep.subr.mxu0 0.0
    %1781 = vmatpush1.xpose.msra.mxu0 0.0
    %1782 = vmatprep.subr.mxu0 0.0
    %1783 = vmatpush1.xpose.msra.mxu0 0.0
    %1784 = vmatprep.subr.mxu0 0.0
    %1785 = vmatpush1.xpose.msra.mxu0 0.0
    %1786 = vmatprep.subr.mxu0 0.0
    %1787 = vmatpush1.xpose.msra.mxu0 0.0
    %1788 = vmatprep.subr.mxu0 0.0
    %1789 = vmatpush1.xpose.msra.mxu0 0.0
    %1790 = vmatprep.subr.mxu0 0.0
    %1791 = vmatpush1.xpose.msra.mxu0 0.0
    %1792 = vmatprep.subr.mxu0 0.0
    %1793 = vmatpush1.xpose.msra.mxu0 0.0
    %1794 = vmatprep.subr.mxu0 0.0
    %1795 = vmatpush1.xpose.msra.mxu0 0.0
    %1796 = vmatprep.mubr.f32.mxu0 0.0
    %1797 = vmatmul.mubr.f32.gmra.mrb[0].mxu0 %v1724
    %v1798 = vpop.f32.mrb[0].mxu0
    %v1799 = vadd.f32 0.0, %v1798
    %v1800 = vpop.f32.mrb[0].mxu0
    %1801 = vmatprep.mubr.f32.mxu0 0.0
    %1802 = vmatmul.mubr.f32.gmra.mrb[0].mxu0 %v1726
    %v1803 = vpop.f32.mrb[0].mxu0
    %v1804 = vadd.f32 0.0, %v1803
    %v1805 = vpop.f32.mrb[0].mxu0
    %1806 = vdwg.mxu0
    %v1807 = vmul.f32 %v1799, 0.17677669
    %v1808 = vmul.f32 %v1804, 0.17677669
    %1809 = vrot.lane.b32.xlu0 %v341, 32
    %v1810 = vpop.permute.xlu0 %1809
    %1811 = vrot.lane.b32.xlu0 %v347, 32
    %v1812 = vpop.permute.xlu0 %1811
    %1813 = vrot.lane.b32.xlu0 %v343, 32
    %v1814 = vpop.permute.xlu0 %1813
    %1815 = vrot.lane.b32.xlu0 %v349, 32
    %v1816 = vpop.permute.xlu0 %1815
    %v1817 = vsel %vm448, %v1810, 0
    %v1819 = vsel %vm448, %v1812, 0
    %v1821 = vsel %vm448, %v1814, 0
    %v1823 = vsel %vm448, %v1816, 0
    %1825 = vmatprep.subr.mxu0 0.0
    %1826 = vmatpush1.xpose.msra.mxu0 %v1821
    %1827 = vmatprep.subr.mxu0 0.0
    %1828 = vmatpush1.xpose.msra.mxu0 %v1823
    %1829 = vmatprep.subr.mxu0 0.0
    %1830 = vmatpush1.xpose.msra.mxu0 0.0
    %1831 = vmatprep.subr.mxu0 0.0
    %1832 = vmatpush1.xpose.msra.mxu0 0.0
    %1833 = vmatprep.subr.mxu0 0.0
    %1834 = vmatpush1.xpose.msra.mxu0 0.0
    %1835 = vmatprep.subr.mxu0 0.0
    %1836 = vmatpush1.xpose.msra.mxu0 0.0
    %1837 = vmatprep.subr.mxu0 0.0
    %1838 = vmatpush1.xpose.msra.mxu0 0.0
    %1839 = vmatprep.subr.mxu0 0.0
    %1840 = vmatpush1.xpose.msra.mxu0 0.0
    %1841 = vmatprep.subr.mxu0 0.0
    %1842 = vmatpush1.xpose.msra.mxu0 0.0
    %1843 = vmatprep.subr.mxu0 0.0
    %1844 = vmatpush1.xpose.msra.mxu0 0.0
    %1845 = vmatprep.subr.mxu0 0.0
    %1846 = vmatpush1.xpose.msra.mxu0 0.0
    %1847 = vmatprep.subr.mxu0 0.0
    %1848 = vmatpush1.xpose.msra.mxu0 0.0
    %1849 = vmatprep.subr.mxu0 0.0
    %1850 = vmatpush1.xpose.msra.mxu0 0.0
    %1851 = vmatprep.subr.mxu0 0.0
    %1852 = vmatpush1.xpose.msra.mxu0 0.0
    %1853 = vmatprep.subr.mxu0 0.0
    %1854 = vmatpush1.xpose.msra.mxu0 0.0
    %1855 = vmatprep.subr.mxu0 0.0
    %1856 = vmatpush1.xpose.msra.mxu0 0.0
    %1857 = vmatprep.subr.mxu0 0.0
    %1858 = vmatpush1.xpose.msra.mxu0 0.0
    %1859 = vmatprep.subr.mxu0 0.0
    %1860 = vmatpush1.xpose.msra.mxu0 0.0
    %1861 = vmatprep.subr.mxu0 0.0
    %1862 = vmatpush1.xpose.msra.mxu0 0.0
    %1863 = vmatprep.subr.mxu0 0.0
    %1864 = vmatpush1.xpose.msra.mxu0 0.0
    %1865 = vmatprep.subr.mxu0 0.0
    %1866 = vmatpush1.xpose.msra.mxu0 0.0
    %1867 = vmatprep.subr.mxu0 0.0
    %1868 = vmatpush1.xpose.msra.mxu0 0.0
    %1869 = vmatprep.subr.mxu0 0.0
    %1870 = vmatpush1.xpose.msra.mxu0 0.0
    %1871 = vmatprep.subr.mxu0 0.0
    %1872 = vmatpush1.xpose.msra.mxu0 0.0
    %1873 = vmatprep.subr.mxu0 0.0
    %1874 = vmatpush1.xpose.msra.mxu0 0.0
    %1875 = vmatprep.subr.mxu0 0.0
    %1876 = vmatpush1.xpose.msra.mxu0 0.0
    %1877 = vmatprep.subr.mxu0 0.0
    %1878 = vmatpush1.xpose.msra.mxu0 0.0
    %1879 = vmatprep.subr.mxu0 0.0
    %1880 = vmatpush1.xpose.msra.mxu0 0.0
    %1881 = vmatprep.subr.mxu0 0.0
    %1882 = vmatpush1.xpose.msra.mxu0 0.0
    %1883 = vmatprep.subr.mxu0 0.0
    %1884 = vmatpush1.xpose.msra.mxu0 0.0
    %1885 = vmatprep.subr.mxu0 0.0
    %1886 = vmatpush1.xpose.msra.mxu0 0.0
    %1887 = vmatprep.subr.mxu0 0.0
    %1888 = vmatpush1.xpose.msra.mxu0 0.0
    %1889 = vmatprep.mubr.f32.mxu0 0.0
    %1890 = vmatmul.mubr.f32.gmra.mrb[0].mxu0 %v1817
    %v1891 = vpop.f32.mrb[0].mxu0
    %v1892 = vadd.f32 0.0, %v1891
    %v1893 = vpop.f32.mrb[0].mxu0
    %1894 = vmatprep.mubr.f32.mxu0 0.0
    %1895 = vmatmul.mubr.f32.gmra.mrb[0].mxu0 %v1819
    %v1896 = vpop.f32.mrb[0].mxu0
    %v1897 = vadd.f32 0.0, %v1896
    %v1898 = vpop.f32.mrb[0].mxu0
    %1899 = vdwg.mxu0
    %v1900 = vmul.f32 %v1892, 0.17677669
    %v1901 = vmul.f32 %v1897, 0.17677669
    %1902 = vmatprep.subr.mxu0 0.0
    %1903 = vmatpush1.xpose.msra.mxu0 %v1821
    %1904 = vmatprep.subr.mxu0 0.0
    %1905 = vmatpush1.xpose.msra.mxu0 %v1823
    %1906 = vmatprep.subr.mxu0 0.0
    %1907 = vmatpush1.xpose.msra.mxu0 0.0
    %1908 = vmatprep.subr.mxu0 0.0
    %1909 = vmatpush1.xpose.msra.mxu0 0.0
    %1910 = vmatprep.subr.mxu0 0.0
    %1911 = vmatpush1.xpose.msra.mxu0 0.0
    %1912 = vmatprep.subr.mxu0 0.0
    %1913 = vmatpush1.xpose.msra.mxu0 0.0
    %1914 = vmatprep.subr.mxu0 0.0
    %1915 = vmatpush1.xpose.msra.mxu0 0.0
    %1916 = vmatprep.subr.mxu0 0.0
    %1917 = vmatpush1.xpose.msra.mxu0 0.0
    %1918 = vmatprep.subr.mxu0 0.0
    %1919 = vmatpush1.xpose.msra.mxu0 0.0
    %1920 = vmatprep.subr.mxu0 0.0
    %1921 = vmatpush1.xpose.msra.mxu0 0.0
    %1922 = vmatprep.subr.mxu0 0.0
    %1923 = vmatpush1.xpose.msra.mxu0 0.0
    %1924 = vmatprep.subr.mxu0 0.0
    %1925 = vmatpush1.xpose.msra.mxu0 0.0
    %1926 = vmatprep.subr.mxu0 0.0
    %1927 = vmatpush1.xpose.msra.mxu0 0.0
    %1928 = vmatprep.subr.mxu0 0.0
    %1929 = vmatpush1.xpose.msra.mxu0 0.0
    %1930 = vmatprep.subr.mxu0 0.0
    %1931 = vmatpush1.xpose.msra.mxu0 0.0
    %1932 = vmatprep.subr.mxu0 0.0
    %1933 = vmatpush1.xpose.msra.mxu0 0.0
    %1934 = vmatprep.subr.mxu0 0.0
    %1935 = vmatpush1.xpose.msra.mxu0 0.0
    %1936 = vmatprep.subr.mxu0 0.0
    %1937 = vmatpush1.xpose.msra.mxu0 0.0
    %1938 = vmatprep.subr.mxu0 0.0
    %1939 = vmatpush1.xpose.msra.mxu0 0.0
    %1940 = vmatprep.subr.mxu0 0.0
    %1941 = vmatpush1.xpose.msra.mxu0 0.0
    %1942 = vmatprep.subr.mxu0 0.0
    %1943 = vmatpush1.xpose.msra.mxu0 0.0
    %1944 = vmatprep.subr.mxu0 0.0
    %1945 = vmatpush1.xpose.msra.mxu0 0.0
    %1946 = vmatprep.subr.mxu0 0.0
    %1947 = vmatpush1.xpose.msra.mxu0 0.0
    %1948 = vmatprep.subr.mxu0 0.0
    %1949 = vmatpush1.xpose.msra.mxu0 0.0
    %1950 = vmatprep.subr.mxu0 0.0
    %1951 = vmatpush1.xpose.msra.mxu0 0.0
    %1952 = vmatprep.subr.mxu0 0.0
    %1953 = vmatpush1.xpose.msra.mxu0 0.0
    %1954 = vmatprep.subr.mxu0 0.0
    %1955 = vmatpush1.xpose.msra.mxu0 0.0
    %1956 = vmatprep.subr.mxu0 0.0
    %1957 = vmatpush1.xpose.msra.mxu0 0.0
    %1958 = vmatprep.subr.mxu0 0.0
    %1959 = vmatpush1.xpose.msra.mxu0 0.0
    %1960 = vmatprep.subr.mxu0 0.0
    %1961 = vmatpush1.xpose.msra.mxu0 0.0
    %1962 = vmatprep.subr.mxu0 0.0
    %1963 = vmatpush1.xpose.msra.mxu0 0.0
    %1964 = vmatprep.subr.mxu0 0.0
    %1965 = vmatpush1.xpose.msra.mxu0 0.0
    %1966 = vmatprep.mubr.f32.mxu0 0.0
    %1967 = vmatmul.mubr.f32.gmra.mrb[0].mxu0 %v1724
    %v1968 = vpop.f32.mrb[0].mxu0
    %v1969 = vadd.f32 0.0, %v1968
    %v1970 = vpop.f32.mrb[0].mxu0
    %1971 = vmatprep.mubr.f32.mxu0 0.0
    %1972 = vmatmul.mubr.f32.gmra.mrb[0].mxu0 %v1726
    %v1973 = vpop.f32.mrb[0].mxu0
    %v1974 = vadd.f32 0.0, %v1973
    %v1975 = vpop.f32.mrb[0].mxu0
    %1976 = vdwg.mxu0
    %v1977 = vmul.f32 %v1969, 0.17677669
    %v1978 = vmul.f32 %v1974, 0.17677669
    %v1980 = vsel %vm69, %v1977, 0
    %v1983 = vsel %vm69, %v1978, 0
    %1985 = vmatprep.subr.mxu0 0.0
    %1986 = vmatpush1.msra.mxu0 %v1977
    %1987 = vmatprep.subr.mxu0 0.0
    %1988 = vmatpush1.msra.mxu0 %v1978
    %1989 = vmatprep.subr.mxu0 0.0
    %1990 = vmatpush1.msra.mxu0 0.0
    %1991 = vmatprep.subr.mxu0 0.0
    %1992 = vmatpush1.msra.mxu0 0.0
    %1993 = vmatprep.subr.mxu0 0.0
    %1994 = vmatpush1.msra.mxu0 0.0
    %1995 = vmatprep.subr.mxu0 0.0
    %1996 = vmatpush1.msra.mxu0 0.0
    %1997 = vmatprep.subr.mxu0 0.0
    %1998 = vmatpush1.msra.mxu0 0.0
    %1999 = vmatprep.subr.mxu0 0.0
    %2000 = vmatpush1.msra.mxu0 0.0
    %2001 = vmatprep.subr.mxu0 0.0
    %2002 = vmatpush1.msra.mxu0 0.0
    %2003 = vmatprep.subr.mxu0 0.0
    %2004 = vmatpush1.msra.mxu0 0.0
    %2005 = vmatprep.subr.mxu0 0.0
    %2006 = vmatpush1.msra.mxu0 0.0
    %2007 = vmatprep.subr.mxu0 0.0
    %2008 = vmatpush1.msra.mxu0 0.0
    %2009 = vmatprep.subr.mxu0 0.0
    %2010 = vmatpush1.msra.mxu0 0.0
    %2011 = vmatprep.subr.mxu0 0.0
    %2012 = vmatpush1.msra.mxu0 0.0
    %2013 = vmatprep.subr.mxu0 0.0
    %2014 = vmatpush1.msra.mxu0 0.0
    %2015 = vmatprep.subr.mxu0 0.0
    %2016 = vmatpush1.msra.mxu0 0.0
    %2017 = vmatprep.subr.mxu0 0.0
    %2018 = vmatpush1.msra.mxu0 0.0
    %2019 = vmatprep.subr.mxu0 0.0
    %2020 = vmatpush1.msra.mxu0 0.0
    %2021 = vmatprep.subr.mxu0 0.0
    %2022 = vmatpush1.msra.mxu0 0.0
    %2023 = vmatprep.subr.mxu0 0.0
    %2024 = vmatpush1.msra.mxu0 0.0
    %2025 = vmatprep.subr.mxu0 0.0
    %2026 = vmatpush1.msra.mxu0 0.0
    %2027 = vmatprep.subr.mxu0 0.0
    %2028 = vmatpush1.msra.mxu0 0.0
    %2029 = vmatprep.subr.mxu0 0.0
    %2030 = vmatpush1.msra.mxu0 0.0
    %2031 = vmatprep.subr.mxu0 0.0
    %2032 = vmatpush1.msra.mxu0 0.0
    %2033 = vmatprep.subr.mxu0 0.0
    %2034 = vmatpush1.msra.mxu0 0.0
    %2035 = vmatprep.subr.mxu0 0.0
    %2036 = vmatpush1.msra.mxu0 0.0
    %2037 = vmatprep.subr.mxu0 0.0
    %2038 = vmatpush1.msra.mxu0 0.0
    %2039 = vmatprep.subr.mxu0 0.0
    %2040 = vmatpush1.msra.mxu0 0.0
    %2041 = vmatprep.subr.mxu0 0.0
    %2042 = vmatpush1.msra.mxu0 0.0
    %2043 = vmatprep.subr.mxu0 0.0
    %2044 = vmatpush1.msra.mxu0 0.0
    %2045 = vmatprep.subr.mxu0 0.0
    %2046 = vmatpush1.msra.mxu0 0.0
    %2047 = vmatprep.subr.mxu0 0.0
    %2048 = vmatpush1.msra.mxu0 0.0
    %2049 = vmatprep.mubr.f32.mxu0 0.0
    %2050 = vmatmul.mubr.f32.gmra.mrb[0].mxu0 %v1980
    %v2051 = vpop.f32.mrb[0].mxu0
    %v2052 = vadd.f32 0.0, %v2051
    %v2053 = vpop.f32.mrb[0].mxu0
    %2054 = vmatprep.mubr.f32.mxu0 0.0
    %2055 = vmatmul.mubr.f32.gmra.mrb[0].mxu0 %v1983
    %v2056 = vpop.f32.mrb[0].mxu0
    %v2057 = vadd.f32 0.0, %v2056
    %v2058 = vpop.f32.mrb[0].mxu0
    %2059 = vdwg.mxu0
    %v2061 = vsel %vm69, %v1807, 0
    %v2064 = vsel %vm69, %v1808, 0
    %2066 = vmatprep.subr.mxu0 0.0
    %2067 = vmatpush1.msra.mxu0 %v1900
    %2068 = vmatprep.subr.mxu0 0.0
    %2069 = vmatpush1.msra.mxu0 %v1901
    %2070 = vmatprep.subr.mxu0 0.0
    %2071 = vmatpush1.msra.mxu0 0.0
    %2072 = vmatprep.subr.mxu0 0.0
    %2073 = vmatpush1.msra.mxu0 0.0
    %2074 = vmatprep.subr.mxu0 0.0
    %2075 = vmatpush1.msra.mxu0 0.0
    %2076 = vmatprep.subr.mxu0 0.0
    %2077 = vmatpush1.msra.mxu0 0.0
    %2078 = vmatprep.subr.mxu0 0.0
    %2079 = vmatpush1.msra.mxu0 0.0
    %2080 = vmatprep.subr.mxu0 0.0
    %2081 = vmatpush1.msra.mxu0 0.0
    %2082 = vmatprep.subr.mxu0 0.0
    %2083 = vmatpush1.msra.mxu0 0.0
    %2084 = vmatprep.subr.mxu0 0.0
    %2085 = vmatpush1.msra.mxu0 0.0
    %2086 = vmatprep.subr.mxu0 0.0
    %2087 = vmatpush1.msra.mxu0 0.0
    %2088 = vmatprep.subr.mxu0 0.0
    %2089 = vmatpush1.msra.mxu0 0.0
    %2090 = vmatprep.subr.mxu0 0.0
    %2091 = vmatpush1.msra.mxu0 0.0
    %2092 = vmatprep.subr.mxu0 0.0
    %2093 = vmatpush1.msra.mxu0 0.0
    %2094 = vmatprep.subr.mxu0 0.0
    %2095 = vmatpush1.msra.mxu0 0.0
    %2096 = vmatprep.subr.mxu0 0.0
    %2097 = vmatpush1.msra.mxu0 0.0
    %2098 = vmatprep.subr.mxu0 0.0
    %2099 = vmatpush1.msra.mxu0 0.0
    %2100 = vmatprep.subr.mxu0 0.0
    %2101 = vmatpush1.msra.mxu0 0.0
    %2102 = vmatprep.subr.mxu0 0.0
    %2103 = vmatpush1.msra.mxu0 0.0
    %2104 = vmatprep.subr.mxu0 0.0
    %2105 = vmatpush1.msra.mxu0 0.0
    %2106 = vmatprep.subr.mxu0 0.0
    %2107 = vmatpush1.msra.mxu0 0.0
    %2108 = vmatprep.subr.mxu0 0.0
    %2109 = vmatpush1.msra.mxu0 0.0
    %2110 = vmatprep.subr.mxu0 0.0
    %2111 = vmatpush1.msra.mxu0 0.0
    %2112 = vmatprep.subr.mxu0 0.0
    %2113 = vmatpush1.msra.mxu0 0.0
    %2114 = vmatprep.subr.mxu0 0.0
    %2115 = vmatpush1.msra.mxu0 0.0
    %2116 = vmatprep.subr.mxu0 0.0
    %2117 = vmatpush1.msra.mxu0 0.0
    %2118 = vmatprep.subr.mxu0 0.0
    %2119 = vmatpush1.msra.mxu0 0.0
    %2120 = vmatprep.subr.mxu0 0.0
    %2121 = vmatpush1.msra.mxu0 0.0
    %2122 = vmatprep.subr.mxu0 0.0
    %2123 = vmatpush1.msra.mxu0 0.0
    %2124 = vmatprep.subr.mxu0 0.0
    %2125 = vmatpush1.msra.mxu0 0.0
    %2126 = vmatprep.subr.mxu0 0.0
    %2127 = vmatpush1.msra.mxu0 0.0
    %2128 = vmatprep.subr.mxu0 0.0
    %2129 = vmatpush1.msra.mxu0 0.0
    %2130 = vmatprep.mubr.f32.mxu0 0.0
    %2131 = vmatmul.mubr.f32.gmra.mrb[0].mxu0 %v2061
    %v2132 = vpop.f32.mrb[0].mxu0
    %v2133 = vadd.f32 %v2052, %v2132
    %v2134 = vpop.f32.mrb[0].mxu0
    %2135 = vmatprep.mubr.f32.mxu0 0.0
    %2136 = vmatmul.mubr.f32.gmra.mrb[0].mxu0 %v2064
    %v2137 = vpop.f32.mrb[0].mxu0
    %v2138 = vadd.f32 %v2057, %v2137
    %v2139 = vpop.f32.mrb[0].mxu0
    %2140 = vdwg.mxu0
    %v2142 = vsel %vm448, %v161, 0
    %v2145 = vsel %vm448, %v167, 0
    %v2148 = vsel %vm448, %v163, 0
    %v2151 = vsel %vm448, %v169, 0
    %2153 = vmatprep.subr.mxu0 0.0
    %2154 = vmatpush1.xpose.msra.mxu0 %v2148
    %2155 = vmatprep.subr.mxu0 0.0
    %2156 = vmatpush1.xpose.msra.mxu0 %v2151
    %2157 = vmatprep.subr.mxu0 0.0
    %2158 = vmatpush1.xpose.msra.mxu0 0.0
    %2159 = vmatprep.subr.mxu0 0.0
    %2160 = vmatpush1.xpose.msra.mxu0 0.0
    %2161 = vmatprep.subr.mxu0 0.0
    %2162 = vmatpush1.xpose.msra.mxu0 0.0
    %2163 = vmatprep.subr.mxu0 0.0
    %2164 = vmatpush1.xpose.msra.mxu0 0.0
    %2165 = vmatprep.subr.mxu0 0.0
    %2166 = vmatpush1.xpose.msra.mxu0 0.0
    %2167 = vmatprep.subr.mxu0 0.0
    %2168 = vmatpush1.xpose.msra.mxu0 0.0
    %2169 = vmatprep.subr.mxu0 0.0
    %2170 = vmatpush1.xpose.msra.mxu0 0.0
    %2171 = vmatprep.subr.mxu0 0.0
    %2172 = vmatpush1.xpose.msra.mxu0 0.0
    %2173 = vmatprep.subr.mxu0 0.0
    %2174 = vmatpush1.xpose.msra.mxu0 0.0
    %2175 = vmatprep.subr.mxu0 0.0
    %2176 = vmatpush1.xpose.msra.mxu0 0.0
    %2177 = vmatprep.subr.mxu0 0.0
    %2178 = vmatpush1.xpose.msra.mxu0 0.0
    %2179 = vmatprep.subr.mxu0 0.0
    %2180 = vmatpush1.xpose.msra.mxu0 0.0
    %2181 = vmatprep.subr.mxu0 0.0
    %2182 = vmatpush1.xpose.msra.mxu0 0.0
    %2183 = vmatprep.subr.mxu0 0.0
    %2184 = vmatpush1.xpose.msra.mxu0 0.0
    %2185 = vmatprep.subr.mxu0 0.0
    %2186 = vmatpush1.xpose.msra.mxu0 0.0
    %2187 = vmatprep.subr.mxu0 0.0
    %2188 = vmatpush1.xpose.msra.mxu0 0.0
    %2189 = vmatprep.subr.mxu0 0.0
    %2190 = vmatpush1.xpose.msra.mxu0 0.0
    %2191 = vmatprep.subr.mxu0 0.0
    %2192 = vmatpush1.xpose.msra.mxu0 0.0
    %2193 = vmatprep.subr.mxu0 0.0
    %2194 = vmatpush1.xpose.msra.mxu0 0.0
    %2195 = vmatprep.subr.mxu0 0.0
    %2196 = vmatpush1.xpose.msra.mxu0 0.0
    %2197 = vmatprep.subr.mxu0 0.0
    %2198 = vmatpush1.xpose.msra.mxu0 0.0
    %2199 = vmatprep.subr.mxu0 0.0
    %2200 = vmatpush1.xpose.msra.mxu0 0.0
    %2201 = vmatprep.subr.mxu0 0.0
    %2202 = vmatpush1.xpose.msra.mxu0 0.0
    %2203 = vmatprep.subr.mxu0 0.0
    %2204 = vmatpush1.xpose.msra.mxu0 0.0
    %2205 = vmatprep.subr.mxu0 0.0
    %2206 = vmatpush1.xpose.msra.mxu0 0.0
    %2207 = vmatprep.subr.mxu0 0.0
    %2208 = vmatpush1.xpose.msra.mxu0 0.0
    %2209 = vmatprep.subr.mxu0 0.0
    %2210 = vmatpush1.xpose.msra.mxu0 0.0
    %2211 = vmatprep.subr.mxu0 0.0
    %2212 = vmatpush1.xpose.msra.mxu0 0.0
    %2213 = vmatprep.subr.mxu0 0.0
    %2214 = vmatpush1.xpose.msra.mxu0 0.0
    %2215 = vmatprep.subr.mxu0 0.0
    %2216 = vmatpush1.xpose.msra.mxu0 0.0
    %2217 = vmatprep.mubr.f32.mxu0 0.0
    %2218 = vmatmul.mubr.f32.gmra.mrb[0].mxu0 %v2142
    %v2219 = vpop.f32.mrb[0].mxu0
    %v2220 = vadd.f32 0.0, %v2219
    %v2221 = vpop.f32.mrb[0].mxu0
    %2222 = vmatprep.mubr.f32.mxu0 0.0
    %2223 = vmatmul.mubr.f32.gmra.mrb[0].mxu0 %v2145
    %v2224 = vpop.f32.mrb[0].mxu0
    %v2225 = vadd.f32 0.0, %v2224
    %v2226 = vpop.f32.mrb[0].mxu0
    %2227 = vdwg.mxu0
    %v2228 = vmul.f32 %v2220, 0.17677669
    %v2229 = vmul.f32 %v2225, 0.17677669
    %v2231 = vsel %vm448, %v353, 0
    %v2234 = vsel %vm448, %v359, 0
    %v2237 = vsel %vm448, %v355, 0
    %v2240 = vsel %vm448, %v361, 0
    %2242 = vmatprep.subr.mxu0 0.0
    %2243 = vmatpush1.xpose.msra.mxu0 %v2237
    %2244 = vmatprep.subr.mxu0 0.0
    %2245 = vmatpush1.xpose.msra.mxu0 %v2240
    %2246 = vmatprep.subr.mxu0 0.0
    %2247 = vmatpush1.xpose.msra.mxu0 0.0
    %2248 = vmatprep.subr.mxu0 0.0
    %2249 = vmatpush1.xpose.msra.mxu0 0.0
    %2250 = vmatprep.subr.mxu0 0.0
    %2251 = vmatpush1.xpose.msra.mxu0 0.0
    %2252 = vmatprep.subr.mxu0 0.0
    %2253 = vmatpush1.xpose.msra.mxu0 0.0
    %2254 = vmatprep.subr.mxu0 0.0
    %2255 = vmatpush1.xpose.msra.mxu0 0.0
    %2256 = vmatprep.subr.mxu0 0.0
    %2257 = vmatpush1.xpose.msra.mxu0 0.0
    %2258 = vmatprep.subr.mxu0 0.0
    %2259 = vmatpush1.xpose.msra.mxu0 0.0
    %2260 = vmatprep.subr.mxu0 0.0
    %2261 = vmatpush1.xpose.msra.mxu0 0.0
    %2262 = vmatprep.subr.mxu0 0.0
    %2263 = vmatpush1.xpose.msra.mxu0 0.0
    %2264 = vmatprep.subr.mxu0 0.0
    %2265 = vmatpush1.xpose.msra.mxu0 0.0
    %2266 = vmatprep.subr.mxu0 0.0
    %2267 = vmatpush1.xpose.msra.mxu0 0.0
    %2268 = vmatprep.subr.mxu0 0.0
    %2269 = vmatpush1.xpose.msra.mxu0 0.0
    %2270 = vmatprep.subr.mxu0 0.0
    %2271 = vmatpush1.xpose.msra.mxu0 0.0
    %2272 = vmatprep.subr.mxu0 0.0
    %2273 = vmatpush1.xpose.msra.mxu0 0.0
    %2274 = vmatprep.subr.mxu0 0.0
    %2275 = vmatpush1.xpose.msra.mxu0 0.0
    %2276 = vmatprep.subr.mxu0 0.0
    %2277 = vmatpush1.xpose.msra.mxu0 0.0
    %2278 = vmatprep.subr.mxu0 0.0
    %2279 = vmatpush1.xpose.msra.mxu0 0.0
    %2280 = vmatprep.subr.mxu0 0.0
    %2281 = vmatpush1.xpose.msra.mxu0 0.0
    %2282 = vmatprep.subr.mxu0 0.0
    %2283 = vmatpush1.xpose.msra.mxu0 0.0
    %2284 = vmatprep.subr.mxu0 0.0
    %2285 = vmatpush1.xpose.msra.mxu0 0.0
    %2286 = vmatprep.subr.mxu0 0.0
    %2287 = vmatpush1.xpose.msra.mxu0 0.0
    %2288 = vmatprep.subr.mxu0 0.0
    %2289 = vmatpush1.xpose.msra.mxu0 0.0
    %2290 = vmatprep.subr.mxu0 0.0
    %2291 = vmatpush1.xpose.msra.mxu0 0.0
    %2292 = vmatprep.subr.mxu0 0.0
    %2293 = vmatpush1.xpose.msra.mxu0 0.0
    %2294 = vmatprep.subr.mxu0 0.0
    %2295 = vmatpush1.xpose.msra.mxu0 0.0
    %2296 = vmatprep.subr.mxu0 0.0
    %2297 = vmatpush1.xpose.msra.mxu0 0.0
    %2298 = vmatprep.subr.mxu0 0.0
    %2299 = vmatpush1.xpose.msra.mxu0 0.0
    %2300 = vmatprep.subr.mxu0 0.0
    %2301 = vmatpush1.xpose.msra.mxu0 0.0
    %2302 = vmatprep.subr.mxu0 0.0
    %2303 = vmatpush1.xpose.msra.mxu0 0.0
    %2304 = vmatprep.subr.mxu0 0.0
    %2305 = vmatpush1.xpose.msra.mxu0 0.0
    %2306 = vmatprep.mubr.f32.mxu0 0.0
    %2307 = vmatmul.mubr.f32.gmra.mrb[0].mxu0 %v2231
    %v2308 = vpop.f32.mrb[0].mxu0
    %v2309 = vadd.f32 0.0, %v2308
    %v2310 = vpop.f32.mrb[0].mxu0
    %2311 = vmatprep.mubr.f32.mxu0 0.0
    %2312 = vmatmul.mubr.f32.gmra.mrb[0].mxu0 %v2234
    %v2313 = vpop.f32.mrb[0].mxu0
    %v2314 = vadd.f32 0.0, %v2313
    %v2315 = vpop.f32.mrb[0].mxu0
    %2316 = vdwg.mxu0
    %v2317 = vmul.f32 %v2309, 0.17677669
    %v2318 = vmul.f32 %v2314, 0.17677669
    %2319 = vmatprep.subr.mxu0 0.0
    %2320 = vmatpush1.xpose.msra.mxu0 %v2237
    %2321 = vmatprep.subr.mxu0 0.0
    %2322 = vmatpush1.xpose.msra.mxu0 %v2240
    %2323 = vmatprep.subr.mxu0 0.0
    %2324 = vmatpush1.xpose.msra.mxu0 0.0
    %2325 = vmatprep.subr.mxu0 0.0
    %2326 = vmatpush1.xpose.msra.mxu0 0.0
    %2327 = vmatprep.subr.mxu0 0.0
    %2328 = vmatpush1.xpose.msra.mxu0 0.0
    %2329 = vmatprep.subr.mxu0 0.0
    %2330 = vmatpush1.xpose.msra.mxu0 0.0
    %2331 = vmatprep.subr.mxu0 0.0
    %2332 = vmatpush1.xpose.msra.mxu0 0.0
    %2333 = vmatprep.subr.mxu0 0.0
    %2334 = vmatpush1.xpose.msra.mxu0 0.0
    %2335 = vmatprep.subr.mxu0 0.0
    %2336 = vmatpush1.xpose.msra.mxu0 0.0
    %2337 = vmatprep.subr.mxu0 0.0
    %2338 = vmatpush1.xpose.msra.mxu0 0.0
    %2339 = vmatprep.subr.mxu0 0.0
    %2340 = vmatpush1.xpose.msra.mxu0 0.0
    %2341 = vmatprep.subr.mxu0 0.0
    %2342 = vmatpush1.xpose.msra.mxu0 0.0
    %2343 = vmatprep.subr.mxu0 0.0
    %2344 = vmatpush1.xpose.msra.mxu0 0.0
    %2345 = vmatprep.subr.mxu0 0.0
    %2346 = vmatpush1.xpose.msra.mxu0 0.0
    %2347 = vmatprep.subr.mxu0 0.0
    %2348 = vmatpush1.xpose.msra.mxu0 0.0
    %2349 = vmatprep.subr.mxu0 0.0
    %2350 = vmatpush1.xpose.msra.mxu0 0.0
    %2351 = vmatprep.subr.mxu0 0.0
    %2352 = vmatpush1.xpose.msra.mxu0 0.0
    %2353 = vmatprep.subr.mxu0 0.0
    %2354 = vmatpush1.xpose.msra.mxu0 0.0
    %2355 = vmatprep.subr.mxu0 0.0
    %2356 = vmatpush1.xpose.msra.mxu0 0.0
    %2357 = vmatprep.subr.mxu0 0.0
    %2358 = vmatpush1.xpose.msra.mxu0 0.0
    %2359 = vmatprep.subr.mxu0 0.0
    %2360 = vmatpush1.xpose.msra.mxu0 0.0
    %2361 = vmatprep.subr.mxu0 0.0
    %2362 = vmatpush1.xpose.msra.mxu0 0.0
    %2363 = vmatprep.subr.mxu0 0.0
    %2364 = vmatpush1.xpose.msra.mxu0 0.0
    %2365 = vmatprep.subr.mxu0 0.0
    %2366 = vmatpush1.xpose.msra.mxu0 0.0
    %2367 = vmatprep.subr.mxu0 0.0
    %2368 = vmatpush1.xpose.msra.mxu0 0.0
    %2369 = vmatprep.subr.mxu0 0.0
    %2370 = vmatpush1.xpose.msra.mxu0 0.0
    %2371 = vmatprep.subr.mxu0 0.0
    %2372 = vmatpush1.xpose.msra.mxu0 0.0
    %2373 = vmatprep.subr.mxu0 0.0
    %2374 = vmatpush1.xpose.msra.mxu0 0.0
    %2375 = vmatprep.subr.mxu0 0.0
    %2376 = vmatpush1.xpose.msra.mxu0 0.0
    %2377 = vmatprep.subr.mxu0 0.0
    %2378 = vmatpush1.xpose.msra.mxu0 0.0
    %2379 = vmatprep.subr.mxu0 0.0
    %2380 = vmatpush1.xpose.msra.mxu0 0.0
    %2381 = vmatprep.subr.mxu0 0.0
    %2382 = vmatpush1.xpose.msra.mxu0 0.0
    %2383 = vmatprep.mubr.f32.mxu0 0.0
    %2384 = vmatmul.mubr.f32.gmra.mrb[0].mxu0 %v2142
    %v2385 = vpop.f32.mrb[0].mxu0
    %v2386 = vadd.f32 0.0, %v2385
    %v2387 = vpop.f32.mrb[0].mxu0
    %2388 = vmatprep.mubr.f32.mxu0 0.0
    %2389 = vmatmul.mubr.f32.gmra.mrb[0].mxu0 %v2145
    %v2390 = vpop.f32.mrb[0].mxu0
    %v2391 = vadd.f32 0.0, %v2390
    %v2392 = vpop.f32.mrb[0].mxu0
    %2393 = vdwg.mxu0
    %v2394 = vmul.f32 %v2386, 0.17677669
    %v2395 = vmul.f32 %v2391, 0.17677669
    %v2397 = vsel %vm69, %v2394, 0
    %v2400 = vsel %vm69, %v2395, 0
    %2402 = vmatprep.subr.mxu0 0.0
    %2403 = vmatpush1.msra.mxu0 %v2394
    %2404 = vmatprep.subr.mxu0 0.0
    %2405 = vmatpush1.msra.mxu0 %v2395
    %2406 = vmatprep.subr.mxu0 0.0
    %2407 = vmatpush1.msra.mxu0 0.0
    %2408 = vmatprep.subr.mxu0 0.0
    %2409 = vmatpush1.msra.mxu0 0.0
    %2410 = vmatprep.subr.mxu0 0.0
    %2411 = vmatpush1.msra.mxu0 0.0
    %2412 = vmatprep.subr.mxu0 0.0
    %2413 = vmatpush1.msra.mxu0 0.0
    %2414 = vmatprep.subr.mxu0 0.0
    %2415 = vmatpush1.msra.mxu0 0.0
    %2416 = vmatprep.subr.mxu0 0.0
    %2417 = vmatpush1.msra.mxu0 0.0
    %2418 = vmatprep.subr.mxu0 0.0
    %2419 = vmatpush1.msra.mxu0 0.0
    %2420 = vmatprep.subr.mxu0 0.0
    %2421 = vmatpush1.msra.mxu0 0.0
    %2422 = vmatprep.subr.mxu0 0.0
    %2423 = vmatpush1.msra.mxu0 0.0
    %2424 = vmatprep.subr.mxu0 0.0
    %2425 = vmatpush1.msra.mxu0 0.0
    %2426 = vmatprep.subr.mxu0 0.0
    %2427 = vmatpush1.msra.mxu0 0.0
    %2428 = vmatprep.subr.mxu0 0.0
    %2429 = vmatpush1.msra.mxu0 0.0
    %2430 = vmatprep.subr.mxu0 0.0
    %2431 = vmatpush1.msra.mxu0 0.0
    %2432 = vmatprep.subr.mxu0 0.0
    %2433 = vmatpush1.msra.mxu0 0.0
    %2434 = vmatprep.subr.mxu0 0.0
    %2435 = vmatpush1.msra.mxu0 0.0
    %2436 = vmatprep.subr.mxu0 0.0
    %2437 = vmatpush1.msra.mxu0 0.0
    %2438 = vmatprep.subr.mxu0 0.0
    %2439 = vmatpush1.msra.mxu0 0.0
    %2440 = vmatprep.subr.mxu0 0.0
    %2441 = vmatpush1.msra.mxu0 0.0
    %2442 = vmatprep.subr.mxu0 0.0
    %2443 = vmatpush1.msra.mxu0 0.0
    %2444 = vmatprep.subr.mxu0 0.0
    %2445 = vmatpush1.msra.mxu0 0.0
    %2446 = vmatprep.subr.mxu0 0.0
    %2447 = vmatpush1.msra.mxu0 0.0
    %2448 = vmatprep.subr.mxu0 0.0
    %2449 = vmatpush1.msra.mxu0 0.0
    %2450 = vmatprep.subr.mxu0 0.0
    %2451 = vmatpush1.msra.mxu0 0.0
    %2452 = vmatprep.subr.mxu0 0.0
    %2453 = vmatpush1.msra.mxu0 0.0
    %2454 = vmatprep.subr.mxu0 0.0
    %2455 = vmatpush1.msra.mxu0 0.0
    %2456 = vmatprep.subr.mxu0 0.0
    %2457 = vmatpush1.msra.mxu0 0.0
    %2458 = vmatprep.subr.mxu0 0.0
    %2459 = vmatpush1.msra.mxu0 0.0
    %2460 = vmatprep.subr.mxu0 0.0
    %2461 = vmatpush1.msra.mxu0 0.0
    %2462 = vmatprep.subr.mxu0 0.0
    %2463 = vmatpush1.msra.mxu0 0.0
    %2464 = vmatprep.subr.mxu0 0.0
    %2465 = vmatpush1.msra.mxu0 0.0
    %2466 = vmatprep.mubr.f32.mxu0 0.0
    %2467 = vmatmul.mubr.f32.gmra.mrb[0].mxu0 %v2397
    %v2468 = vpop.f32.mrb[0].mxu0
    %v2469 = vadd.f32 0.0, %v2468
    %v2470 = vpop.f32.mrb[0].mxu0
    %2471 = vmatprep.mubr.f32.mxu0 0.0
    %2472 = vmatmul.mubr.f32.gmra.mrb[0].mxu0 %v2400
    %v2473 = vpop.f32.mrb[0].mxu0
    %v2474 = vadd.f32 0.0, %v2473
    %v2475 = vpop.f32.mrb[0].mxu0
    %2476 = vdwg.mxu0
    %v2478 = vsel %vm69, %v2228, 0
    %v2481 = vsel %vm69, %v2229, 0
    %2483 = vmatprep.subr.mxu0 0.0
    %2484 = vmatpush1.msra.mxu0 %v2317
    %2485 = vmatprep.subr.mxu0 0.0
    %2486 = vmatpush1.msra.mxu0 %v2318
    %2487 = vmatprep.subr.mxu0 0.0
    %2488 = vmatpush1.msra.mxu0 0.0
    %2489 = vmatprep.subr.mxu0 0.0
    %2490 = vmatpush1.msra.mxu0 0.0
    %2491 = vmatprep.subr.mxu0 0.0
    %2492 = vmatpush1.msra.mxu0 0.0
    %2493 = vmatprep.subr.mxu0 0.0
    %2494 = vmatpush1.msra.mxu0 0.0
    %2495 = vmatprep.subr.mxu0 0.0
    %2496 = vmatpush1.msra.mxu0 0.0
    %2497 = vmatprep.subr.mxu0 0.0
    %2498 = vmatpush1.msra.mxu0 0.0
    %2499 = vmatprep.subr.mxu0 0.0
    %2500 = vmatpush1.msra.mxu0 0.0
    %2501 = vmatprep.subr.mxu0 0.0
    %2502 = vmatpush1.msra.mxu0 0.0
    %2503 = vmatprep.subr.mxu0 0.0
    %2504 = vmatpush1.msra.mxu0 0.0
    %2505 = vmatprep.subr.mxu0 0.0
    %2506 = vmatpush1.msra.mxu0 0.0
    %2507 = vmatprep.subr.mxu0 0.0
    %2508 = vmatpush1.msra.mxu0 0.0
    %2509 = vmatprep.subr.mxu0 0.0
    %2510 = vmatpush1.msra.mxu0 0.0
    %2511 = vmatprep.subr.mxu0 0.0
    %2512 = vmatpush1.msra.mxu0 0.0
    %2513 = vmatprep.subr.mxu0 0.0
    %2514 = vmatpush1.msra.mxu0 0.0
    %2515 = vmatprep.subr.mxu0 0.0
    %2516 = vmatpush1.msra.mxu0 0.0
    %2517 = vmatprep.subr.mxu0 0.0
    %2518 = vmatpush1.msra.mxu0 0.0
    %2519 = vmatprep.subr.mxu0 0.0
    %2520 = vmatpush1.msra.mxu0 0.0
    %2521 = vmatprep.subr.mxu0 0.0
    %2522 = vmatpush1.msra.mxu0 0.0
    %2523 = vmatprep.subr.mxu0 0.0
    %2524 = vmatpush1.msra.mxu0 0.0
    %2525 = vmatprep.subr.mxu0 0.0
    %2526 = vmatpush1.msra.mxu0 0.0
    %2527 = vmatprep.subr.mxu0 0.0
    %2528 = vmatpush1.msra.mxu0 0.0
    %2529 = vmatprep.subr.mxu0 0.0
    %2530 = vmatpush1.msra.mxu0 0.0
    %2531 = vmatprep.subr.mxu0 0.0
    %2532 = vmatpush1.msra.mxu0 0.0
    %2533 = vmatprep.subr.mxu0 0.0
    %2534 = vmatpush1.msra.mxu0 0.0
    %2535 = vmatprep.subr.mxu0 0.0
    %2536 = vmatpush1.msra.mxu0 0.0
    %2537 = vmatprep.subr.mxu0 0.0
    %2538 = vmatpush1.msra.mxu0 0.0
    %2539 = vmatprep.subr.mxu0 0.0
    %2540 = vmatpush1.msra.mxu0 0.0
    %2541 = vmatprep.subr.mxu0 0.0
    %2542 = vmatpush1.msra.mxu0 0.0
    %2543 = vmatprep.subr.mxu0 0.0
    %2544 = vmatpush1.msra.mxu0 0.0
    %2545 = vmatprep.subr.mxu0 0.0
    %2546 = vmatpush1.msra.mxu0 0.0
    %2547 = vmatprep.mubr.f32.mxu0 0.0
    %2548 = vmatmul.mubr.f32.gmra.mrb[0].mxu0 %v2478
    %v2549 = vpop.f32.mrb[0].mxu0
    %v2550 = vadd.f32 %v2469, %v2549
    %v2551 = vpop.f32.mrb[0].mxu0
    %2552 = vmatprep.mubr.f32.mxu0 0.0
    %2553 = vmatmul.mubr.f32.gmra.mrb[0].mxu0 %v2481
    %v2554 = vpop.f32.mrb[0].mxu0
    %v2555 = vadd.f32 %v2474, %v2554
    %v2556 = vpop.f32.mrb[0].mxu0
    %2557 = vdwg.mxu0
    %2558 = vrot.lane.b32.xlu0 %v161, 96
    %v2559 = vpop.permute.xlu0 %2558
    %2560 = vrot.lane.b32.xlu0 %v167, 96
    %v2561 = vpop.permute.xlu0 %2560
    %2562 = vrot.lane.b32.xlu0 %v163, 96
    %v2563 = vpop.permute.xlu0 %2562
    %2564 = vrot.lane.b32.xlu0 %v169, 96
    %v2565 = vpop.permute.xlu0 %2564
    %v2566 = vsel %vm448, %v2559, 0
    %v2568 = vsel %vm448, %v2561, 0
    %v2570 = vsel %vm448, %v2563, 0
    %v2572 = vsel %vm448, %v2565, 0
    %2574 = vmatprep.subr.mxu0 0.0
    %2575 = vmatpush1.xpose.msra.mxu0 %v2570
    %2576 = vmatprep.subr.mxu0 0.0
    %2577 = vmatpush1.xpose.msra.mxu0 %v2572
    %2578 = vmatprep.subr.mxu0 0.0
    %2579 = vmatpush1.xpose.msra.mxu0 0.0
    %2580 = vmatprep.subr.mxu0 0.0
    %2581 = vmatpush1.xpose.msra.mxu0 0.0
    %2582 = vmatprep.subr.mxu0 0.0
    %2583 = vmatpush1.xpose.msra.mxu0 0.0
    %2584 = vmatprep.subr.mxu0 0.0
    %2585 = vmatpush1.xpose.msra.mxu0 0.0
    %2586 = vmatprep.subr.mxu0 0.0
    %2587 = vmatpush1.xpose.msra.mxu0 0.0
    %2588 = vmatprep.subr.mxu0 0.0
    %2589 = vmatpush1.xpose.msra.mxu0 0.0
    %2590 = vmatprep.subr.mxu0 0.0
    %2591 = vmatpush1.xpose.msra.mxu0 0.0
    %2592 = vmatprep.subr.mxu0 0.0
    %2593 = vmatpush1.xpose.msra.mxu0 0.0
    %2594 = vmatprep.subr.mxu0 0.0
    %2595 = vmatpush1.xpose.msra.mxu0 0.0
    %2596 = vmatprep.subr.mxu0 0.0
    %2597 = vmatpush1.xpose.msra.mxu0 0.0
    %2598 = vmatprep.subr.mxu0 0.0
    %2599 = vmatpush1.xpose.msra.mxu0 0.0
    %2600 = vmatprep.subr.mxu0 0.0
    %2601 = vmatpush1.xpose.msra.mxu0 0.0
    %2602 = vmatprep.subr.mxu0 0.0
    %2603 = vmatpush1.xpose.msra.mxu0 0.0
    %2604 = vmatprep.subr.mxu0 0.0
    %2605 = vmatpush1.xpose.msra.mxu0 0.0
    %2606 = vmatprep.subr.mxu0 0.0
    %2607 = vmatpush1.xpose.msra.mxu0 0.0
    %2608 = vmatprep.subr.mxu0 0.0
    %2609 = vmatpush1.xpose.msra.mxu0 0.0
    %2610 = vmatprep.subr.mxu0 0.0
    %2611 = vmatpush1.xpose.msra.mxu0 0.0
    %2612 = vmatprep.subr.mxu0 0.0
    %2613 = vmatpush1.xpose.msra.mxu0 0.0
    %2614 = vmatprep.subr.mxu0 0.0
    %2615 = vmatpush1.xpose.msra.mxu0 0.0
    %2616 = vmatprep.subr.mxu0 0.0
    %2617 = vmatpush1.xpose.msra.mxu0 0.0
    %2618 = vmatprep.subr.mxu0 0.0
    %2619 = vmatpush1.xpose.msra.mxu0 0.0
    %2620 = vmatprep.subr.mxu0 0.0
    %2621 = vmatpush1.xpose.msra.mxu0 0.0
    %2622 = vmatprep.subr.mxu0 0.0
    %2623 = vmatpush1.xpose.msra.mxu0 0.0
    %2624 = vmatprep.subr.mxu0 0.0
    %2625 = vmatpush1.xpose.msra.mxu0 0.0
    %2626 = vmatprep.subr.mxu0 0.0
    %2627 = vmatpush1.xpose.msra.mxu0 0.0
    %2628 = vmatprep.subr.mxu0 0.0
    %2629 = vmatpush1.xpose.msra.mxu0 0.0
    %2630 = vmatprep.subr.mxu0 0.0
    %2631 = vmatpush1.xpose.msra.mxu0 0.0
    %2632 = vmatprep.subr.mxu0 0.0
    %2633 = vmatpush1.xpose.msra.mxu0 0.0
    %2634 = vmatprep.subr.mxu0 0.0
    %2635 = vmatpush1.xpose.msra.mxu0 0.0
    %2636 = vmatprep.subr.mxu0 0.0
    %2637 = vmatpush1.xpose.msra.mxu0 0.0
    %2638 = vmatprep.mubr.f32.mxu0 0.0
    %2639 = vmatmul.mubr.f32.gmra.mrb[0].mxu0 %v2566
    %v2640 = vpop.f32.mrb[0].mxu0
    %v2641 = vadd.f32 0.0, %v2640
    %v2642 = vpop.f32.mrb[0].mxu0
    %2643 = vmatprep.mubr.f32.mxu0 0.0
    %2644 = vmatmul.mubr.f32.gmra.mrb[0].mxu0 %v2568
    %v2645 = vpop.f32.mrb[0].mxu0
    %v2646 = vadd.f32 0.0, %v2645
    %v2647 = vpop.f32.mrb[0].mxu0
    %2648 = vdwg.mxu0
    %v2649 = vmul.f32 %v2641, 0.17677669
    %v2650 = vmul.f32 %v2646, 0.17677669
    %2651 = vrot.lane.b32.xlu0 %v353, 96
    %v2652 = vpop.permute.xlu0 %2651
    %2653 = vrot.lane.b32.xlu0 %v359, 96
    %v2654 = vpop.permute.xlu0 %2653
    %2655 = vrot.lane.b32.xlu0 %v355, 96
    %v2656 = vpop.permute.xlu0 %2655
    %2657 = vrot.lane.b32.xlu0 %v361, 96
    %v2658 = vpop.permute.xlu0 %2657
    %v2659 = vsel %vm448, %v2652, 0
    %v2661 = vsel %vm448, %v2654, 0
    %v2663 = vsel %vm448, %v2656, 0
    %v2665 = vsel %vm448, %v2658, 0
    %2667 = vmatprep.subr.mxu0 0.0
    %2668 = vmatpush1.xpose.msra.mxu0 %v2663
    %2669 = vmatprep.subr.mxu0 0.0
    %2670 = vmatpush1.xpose.msra.mxu0 %v2665
    %2671 = vmatprep.subr.mxu0 0.0
    %2672 = vmatpush1.xpose.msra.mxu0 0.0
    %2673 = vmatprep.subr.mxu0 0.0
    %2674 = vmatpush1.xpose.msra.mxu0 0.0
    %2675 = vmatprep.subr.mxu0 0.0
    %2676 = vmatpush1.xpose.msra.mxu0 0.0
    %2677 = vmatprep.subr.mxu0 0.0
    %2678 = vmatpush1.xpose.msra.mxu0 0.0
    %2679 = vmatprep.subr.mxu0 0.0
    %2680 = vmatpush1.xpose.msra.mxu0 0.0
    %2681 = vmatprep.subr.mxu0 0.0
    %2682 = vmatpush1.xpose.msra.mxu0 0.0
    %2683 = vmatprep.subr.mxu0 0.0
    %2684 = vmatpush1.xpose.msra.mxu0 0.0
    %2685 = vmatprep.subr.mxu0 0.0
    %2686 = vmatpush1.xpose.msra.mxu0 0.0
    %2687 = vmatprep.subr.mxu0 0.0
    %2688 = vmatpush1.xpose.msra.mxu0 0.0
    %2689 = vmatprep.subr.mxu0 0.0
    %2690 = vmatpush1.xpose.msra.mxu0 0.0
    %2691 = vmatprep.subr.mxu0 0.0
    %2692 = vmatpush1.xpose.msra.mxu0 0.0
    %2693 = vmatprep.subr.mxu0 0.0
    %2694 = vmatpush1.xpose.msra.mxu0 0.0
    %2695 = vmatprep.subr.mxu0 0.0
    %2696 = vmatpush1.xpose.msra.mxu0 0.0
    %2697 = vmatprep.subr.mxu0 0.0
    %2698 = vmatpush1.xpose.msra.mxu0 0.0
    %2699 = vmatprep.subr.mxu0 0.0
    %2700 = vmatpush1.xpose.msra.mxu0 0.0
    %2701 = vmatprep.subr.mxu0 0.0
    %2702 = vmatpush1.xpose.msra.mxu0 0.0
    %2703 = vmatprep.subr.mxu0 0.0
    %2704 = vmatpush1.xpose.msra.mxu0 0.0
    %2705 = vmatprep.subr.mxu0 0.0
    %2706 = vmatpush1.xpose.msra.mxu0 0.0
    %2707 = vmatprep.subr.mxu0 0.0
    %2708 = vmatpush1.xpose.msra.mxu0 0.0
    %2709 = vmatprep.subr.mxu0 0.0
    %2710 = vmatpush1.xpose.msra.mxu0 0.0
    %2711 = vmatprep.subr.mxu0 0.0
    %2712 = vmatpush1.xpose.msra.mxu0 0.0
    %2713 = vmatprep.subr.mxu0 0.0
    %2714 = vmatpush1.xpose.msra.mxu0 0.0
    %2715 = vmatprep.subr.mxu0 0.0
    %2716 = vmatpush1.xpose.msra.mxu0 0.0
    %2717 = vmatprep.subr.mxu0 0.0
    %2718 = vmatpush1.xpose.msra.mxu0 0.0
    %2719 = vmatprep.subr.mxu0 0.0
    %2720 = vmatpush1.xpose.msra.mxu0 0.0
    %2721 = vmatprep.subr.mxu0 0.0
    %2722 = vmatpush1.xpose.msra.mxu0 0.0
    %2723 = vmatprep.subr.mxu0 0.0
    %2724 = vmatpush1.xpose.msra.mxu0 0.0
    %2725 = vmatprep.subr.mxu0 0.0
    %2726 = vmatpush1.xpose.msra.mxu0 0.0
    %2727 = vmatprep.subr.mxu0 0.0
    %2728 = vmatpush1.xpose.msra.mxu0 0.0
    %2729 = vmatprep.subr.mxu0 0.0
    %2730 = vmatpush1.xpose.msra.mxu0 0.0
    %2731 = vmatprep.mubr.f32.mxu0 0.0
    %2732 = vmatmul.mubr.f32.gmra.mrb[0].mxu0 %v2659
    %v2733 = vpop.f32.mrb[0].mxu0
    %v2734 = vadd.f32 0.0, %v2733
    %v2735 = vpop.f32.mrb[0].mxu0
    %2736 = vmatprep.mubr.f32.mxu0 0.0
    %2737 = vmatmul.mubr.f32.gmra.mrb[0].mxu0 %v2661
    %v2738 = vpop.f32.mrb[0].mxu0
    %v2739 = vadd.f32 0.0, %v2738
    %v2740 = vpop.f32.mrb[0].mxu0
    %2741 = vdwg.mxu0
    %v2742 = vmul.f32 %v2734, 0.17677669
    %v2743 = vmul.f32 %v2739, 0.17677669
    %2744 = vmatprep.subr.mxu0 0.0
    %2745 = vmatpush1.xpose.msra.mxu0 %v2663
    %2746 = vmatprep.subr.mxu0 0.0
    %2747 = vmatpush1.xpose.msra.mxu0 %v2665
    %2748 = vmatprep.subr.mxu0 0.0
    %2749 = vmatpush1.xpose.msra.mxu0 0.0
    %2750 = vmatprep.subr.mxu0 0.0
    %2751 = vmatpush1.xpose.msra.mxu0 0.0
    %2752 = vmatprep.subr.mxu0 0.0
    %2753 = vmatpush1.xpose.msra.mxu0 0.0
    %2754 = vmatprep.subr.mxu0 0.0
    %2755 = vmatpush1.xpose.msra.mxu0 0.0
    %2756 = vmatprep.subr.mxu0 0.0
    %2757 = vmatpush1.xpose.msra.mxu0 0.0
    %2758 = vmatprep.subr.mxu0 0.0
    %2759 = vmatpush1.xpose.msra.mxu0 0.0
    %2760 = vmatprep.subr.mxu0 0.0
    %2761 = vmatpush1.xpose.msra.mxu0 0.0
    %2762 = vmatprep.subr.mxu0 0.0
    %2763 = vmatpush1.xpose.msra.mxu0 0.0
    %2764 = vmatprep.subr.mxu0 0.0
    %2765 = vmatpush1.xpose.msra.mxu0 0.0
    %2766 = vmatprep.subr.mxu0 0.0
    %2767 = vmatpush1.xpose.msra.mxu0 0.0
    %2768 = vmatprep.subr.mxu0 0.0
    %2769 = vmatpush1.xpose.msra.mxu0 0.0
    %2770 = vmatprep.subr.mxu0 0.0
    %2771 = vmatpush1.xpose.msra.mxu0 0.0
    %2772 = vmatprep.subr.mxu0 0.0
    %2773 = vmatpush1.xpose.msra.mxu0 0.0
    %2774 = vmatprep.subr.mxu0 0.0
    %2775 = vmatpush1.xpose.msra.mxu0 0.0
    %2776 = vmatprep.subr.mxu0 0.0
    %2777 = vmatpush1.xpose.msra.mxu0 0.0
    %2778 = vmatprep.subr.mxu0 0.0
    %2779 = vmatpush1.xpose.msra.mxu0 0.0
    %2780 = vmatprep.subr.mxu0 0.0
    %2781 = vmatpush1.xpose.msra.mxu0 0.0
    %2782 = vmatprep.subr.mxu0 0.0
    %2783 = vmatpush1.xpose.msra.mxu0 0.0
    %2784 = vmatprep.subr.mxu0 0.0
    %2785 = vmatpush1.xpose.msra.mxu0 0.0
    %2786 = vmatprep.subr.mxu0 0.0
    %2787 = vmatpush1.xpose.msra.mxu0 0.0
    %2788 = vmatprep.subr.mxu0 0.0
    %2789 = vmatpush1.xpose.msra.mxu0 0.0
    %2790 = vmatprep.subr.mxu0 0.0
    %2791 = vmatpush1.xpose.msra.mxu0 0.0
    %2792 = vmatprep.subr.mxu0 0.0
    %2793 = vmatpush1.xpose.msra.mxu0 0.0
    %2794 = vmatprep.subr.mxu0 0.0
    %2795 = vmatpush1.xpose.msra.mxu0 0.0
    %2796 = vmatprep.subr.mxu0 0.0
    %2797 = vmatpush1.xpose.msra.mxu0 0.0
    %2798 = vmatprep.subr.mxu0 0.0
    %2799 = vmatpush1.xpose.msra.mxu0 0.0
    %2800 = vmatprep.subr.mxu0 0.0
    %2801 = vmatpush1.xpose.msra.mxu0 0.0
    %2802 = vmatprep.subr.mxu0 0.0
    %2803 = vmatpush1.xpose.msra.mxu0 0.0
    %2804 = vmatprep.subr.mxu0 0.0
    %2805 = vmatpush1.xpose.msra.mxu0 0.0
    %2806 = vmatprep.subr.mxu0 0.0
    %2807 = vmatpush1.xpose.msra.mxu0 0.0
    %2808 = vmatprep.mubr.f32.mxu0 0.0
    %2809 = vmatmul.mubr.f32.gmra.mrb[0].mxu0 %v2566
    %v2810 = vpop.f32.mrb[0].mxu0
    %v2811 = vadd.f32 0.0, %v2810
    %v2812 = vpop.f32.mrb[0].mxu0
    %2813 = vmatprep.mubr.f32.mxu0 0.0
    %2814 = vmatmul.mubr.f32.gmra.mrb[0].mxu0 %v2568
    %v2815 = vpop.f32.mrb[0].mxu0
    %v2816 = vadd.f32 0.0, %v2815
    %v2817 = vpop.f32.mrb[0].mxu0
    %2818 = vdwg.mxu0
    %v2819 = vmul.f32 %v2811, 0.17677669
    %v2820 = vmul.f32 %v2816, 0.17677669
    %v2822 = vsel %vm69, %v2819, 0
    %v2825 = vsel %vm69, %v2820, 0
    %2827 = vmatprep.subr.mxu0 0.0
    %2828 = vmatpush1.msra.mxu0 %v2819
    %2829 = vmatprep.subr.mxu0 0.0
    %2830 = vmatpush1.msra.mxu0 %v2820
    %2831 = vmatprep.subr.mxu0 0.0
    %2832 = vmatpush1.msra.mxu0 0.0
    %2833 = vmatprep.subr.mxu0 0.0
    %2834 = vmatpush1.msra.mxu0 0.0
    %2835 = vmatprep.subr.mxu0 0.0
    %2836 = vmatpush1.msra.mxu0 0.0
    %2837 = vmatprep.subr.mxu0 0.0
    %2838 = vmatpush1.msra.mxu0 0.0
    %2839 = vmatprep.subr.mxu0 0.0
    %2840 = vmatpush1.msra.mxu0 0.0
    %2841 = vmatprep.subr.mxu0 0.0
    %2842 = vmatpush1.msra.mxu0 0.0
    %2843 = vmatprep.subr.mxu0 0.0
    %2844 = vmatpush1.msra.mxu0 0.0
    %2845 = vmatprep.subr.mxu0 0.0
    %2846 = vmatpush1.msra.mxu0 0.0
    %2847 = vmatprep.subr.mxu0 0.0
    %2848 = vmatpush1.msra.mxu0 0.0
    %2849 = vmatprep.subr.mxu0 0.0
    %2850 = vmatpush1.msra.mxu0 0.0
    %2851 = vmatprep.subr.mxu0 0.0
    %2852 = vmatpush1.msra.mxu0 0.0
    %2853 = vmatprep.subr.mxu0 0.0
    %2854 = vmatpush1.msra.mxu0 0.0
    %2855 = vmatprep.subr.mxu0 0.0
    %2856 = vmatpush1.msra.mxu0 0.0
    %2857 = vmatprep.subr.mxu0 0.0
    %2858 = vmatpush1.msra.mxu0 0.0
    %2859 = vmatprep.subr.mxu0 0.0
    %2860 = vmatpush1.msra.mxu0 0.0
    %2861 = vmatprep.subr.mxu0 0.0
    %2862 = vmatpush1.msra.mxu0 0.0
    %2863 = vmatprep.subr.mxu0 0.0
    %2864 = vmatpush1.msra.mxu0 0.0
    %2865 = vmatprep.subr.mxu0 0.0
    %2866 = vmatpush1.msra.mxu0 0.0
    %2867 = vmatprep.subr.mxu0 0.0
    %2868 = vmatpush1.msra.mxu0 0.0
    %2869 = vmatprep.subr.mxu0 0.0
    %2870 = vmatpush1.msra.mxu0 0.0
    %2871 = vmatprep.subr.mxu0 0.0
    %2872 = vmatpush1.msra.mxu0 0.0
    %2873 = vmatprep.subr.mxu0 0.0
    %2874 = vmatpush1.msra.mxu0 0.0
    %2875 = vmatprep.subr.mxu0 0.0
    %2876 = vmatpush1.msra.mxu0 0.0
    %2877 = vmatprep.subr.mxu0 0.0
    %2878 = vmatpush1.msra.mxu0 0.0
    %2879 = vmatprep.subr.mxu0 0.0
    %2880 = vmatpush1.msra.mxu0 0.0
    %2881 = vmatprep.subr.mxu0 0.0
    %2882 = vmatpush1.msra.mxu0 0.0
    %2883 = vmatprep.subr.mxu0 0.0
    %2884 = vmatpush1.msra.mxu0 0.0
    %2885 = vmatprep.subr.mxu0 0.0
    %2886 = vmatpush1.msra.mxu0 0.0
    %2887 = vmatprep.subr.mxu0 0.0
    %2888 = vmatpush1.msra.mxu0 0.0
    %2889 = vmatprep.subr.mxu0 0.0
    %2890 = vmatpush1.msra.mxu0 0.0
    %2891 = vmatprep.mubr.f32.mxu0 0.0
    %2892 = vmatmul.mubr.f32.gmra.mrb[0].mxu0 %v2822
    %v2893 = vpop.f32.mrb[0].mxu0
    %v2894 = vadd.f32 0.0, %v2893
    %v2895 = vpop.f32.mrb[0].mxu0
    %2896 = vmatprep.mubr.f32.mxu0 0.0
    %2897 = vmatmul.mubr.f32.gmra.mrb[0].mxu0 %v2825
    %v2898 = vpop.f32.mrb[0].mxu0
    %v2899 = vadd.f32 0.0, %v2898
    %v2900 = vpop.f32.mrb[0].mxu0
    %2901 = vdwg.mxu0
    %v2903 = vsel %vm69, %v2649, 0
    %v2906 = vsel %vm69, %v2650, 0
    %2908 = vmatprep.subr.mxu0 0.0
    %2909 = vmatpush1.msra.mxu0 %v2742
    %2910 = vmatprep.subr.mxu0 0.0
    %2911 = vmatpush1.msra.mxu0 %v2743
    %2912 = vmatprep.subr.mxu0 0.0
    %2913 = vmatpush1.msra.mxu0 0.0
    %2914 = vmatprep.subr.mxu0 0.0
    %2915 = vmatpush1.msra.mxu0 0.0
    %2916 = vmatprep.subr.mxu0 0.0
    %2917 = vmatpush1.msra.mxu0 0.0
    %2918 = vmatprep.subr.mxu0 0.0
    %2919 = vmatpush1.msra.mxu0 0.0
    %2920 = vmatprep.subr.mxu0 0.0
    %2921 = vmatpush1.msra.mxu0 0.0
    %2922 = vmatprep.subr.mxu0 0.0
    %2923 = vmatpush1.msra.mxu0 0.0
    %2924 = vmatprep.subr.mxu0 0.0
    %2925 = vmatpush1.msra.mxu0 0.0
    %2926 = vmatprep.subr.mxu0 0.0
    %2927 = vmatpush1.msra.mxu0 0.0
    %2928 = vmatprep.subr.mxu0 0.0
    %2929 = vmatpush1.msra.mxu0 0.0
    %2930 = vmatprep.subr.mxu0 0.0
    %2931 = vmatpush1.msra.mxu0 0.0
    %2932 = vmatprep.subr.mxu0 0.0
    %2933 = vmatpush1.msra.mxu0 0.0
    %2934 = vmatprep.subr.mxu0 0.0
    %2935 = vmatpush1.msra.mxu0 0.0
    %2936 = vmatprep.subr.mxu0 0.0
    %2937 = vmatpush1.msra.mxu0 0.0
    %2938 = vmatprep.subr.mxu0 0.0
    %2939 = vmatpush1.msra.mxu0 0.0
    %2940 = vmatprep.subr.mxu0 0.0
    %2941 = vmatpush1.msra.mxu0 0.0
    %2942 = vmatprep.subr.mxu0 0.0
    %2943 = vmatpush1.msra.mxu0 0.0
    %2944 = vmatprep.subr.mxu0 0.0
    %2945 = vmatpush1.msra.mxu0 0.0
    %2946 = vmatprep.subr.mxu0 0.0
    %2947 = vmatpush1.msra.mxu0 0.0
    %2948 = vmatprep.subr.mxu0 0.0
    %2949 = vmatpush1.msra.mxu0 0.0
    %2950 = vmatprep.subr.mxu0 0.0
    %2951 = vmatpush1.msra.mxu0 0.0
    %2952 = vmatprep.subr.mxu0 0.0
    %2953 = vmatpush1.msra.mxu0 0.0
    %2954 = vmatprep.subr.mxu0 0.0
    %2955 = vmatpush1.msra.mxu0 0.0
    %2956 = vmatprep.subr.mxu0 0.0
    %2957 = vmatpush1.msra.mxu0 0.0
    %2958 = vmatprep.subr.mxu0 0.0
    %2959 = vmatpush1.msra.mxu0 0.0
    %2960 = vmatprep.subr.mxu0 0.0
    %2961 = vmatpush1.msra.mxu0 0.0
    %2962 = vmatprep.subr.mxu0 0.0
    %2963 = vmatpush1.msra.mxu0 0.0
    %2964 = vmatprep.subr.mxu0 0.0
    %2965 = vmatpush1.msra.mxu0 0.0
    %2966 = vmatprep.subr.mxu0 0.0
    %2967 = vmatpush1.msra.mxu0 0.0
    %2968 = vmatprep.subr.mxu0 0.0
    %2969 = vmatpush1.msra.mxu0 0.0
    %2970 = vmatprep.subr.mxu0 0.0
    %2971 = vmatpush1.msra.mxu0 0.0
    %2972 = vmatprep.mubr.f32.mxu0 0.0
    %2973 = vmatmul.mubr.f32.gmra.mrb[0].mxu0 %v2903
    %v2974 = vpop.f32.mrb[0].mxu0
    %v2975 = vadd.f32 %v2894, %v2974
    %v2976 = vpop.f32.mrb[0].mxu0
    %2977 = vmatprep.mubr.f32.mxu0 0.0
    %2978 = vmatmul.mubr.f32.gmra.mrb[0].mxu0 %v2906
    %v2979 = vpop.f32.mrb[0].mxu0
    %v2980 = vadd.f32 %v2899, %v2979
    %v2981 = vpop.f32.mrb[0].mxu0
    %2982 = vdwg.mxu0
    %2983 = vrot.lane.b32.xlu0 %v161, 64
    %v2984 = vpop.permute.xlu0 %2983
    %2985 = vrot.lane.b32.xlu0 %v167, 64
    %v2986 = vpop.permute.xlu0 %2985
    %2987 = vrot.lane.b32.xlu0 %v163, 64
    %v2988 = vpop.permute.xlu0 %2987
    %2989 = vrot.lane.b32.xlu0 %v169, 64
    %v2990 = vpop.permute.xlu0 %2989
    %v2991 = vsel %vm448, %v2984, 0
    %v2993 = vsel %vm448, %v2986, 0
    %v2995 = vsel %vm448, %v2988, 0
    %v2997 = vsel %vm448, %v2990, 0
    %2999 = vmatprep.subr.mxu0 0.0
    %3000 = vmatpush1.xpose.msra.mxu0 %v2995
    %3001 = vmatprep.subr.mxu0 0.0
    %3002 = vmatpush1.xpose.msra.mxu0 %v2997
    %3003 = vmatprep.subr.mxu0 0.0
    %3004 = vmatpush1.xpose.msra.mxu0 0.0
    %3005 = vmatprep.subr.mxu0 0.0
    %3006 = vmatpush1.xpose.msra.mxu0 0.0
    %3007 = vmatprep.subr.mxu0 0.0
    %3008 = vmatpush1.xpose.msra.mxu0 0.0
    %3009 = vmatprep.subr.mxu0 0.0
    %3010 = vmatpush1.xpose.msra.mxu0 0.0
    %3011 = vmatprep.subr.mxu0 0.0
    %3012 = vmatpush1.xpose.msra.mxu0 0.0
    %3013 = vmatprep.subr.mxu0 0.0
    %3014 = vmatpush1.xpose.msra.mxu0 0.0
    %3015 = vmatprep.subr.mxu0 0.0
    %3016 = vmatpush1.xpose.msra.mxu0 0.0
    %3017 = vmatprep.subr.mxu0 0.0
    %3018 = vmatpush1.xpose.msra.mxu0 0.0
    %3019 = vmatprep.subr.mxu0 0.0
    %3020 = vmatpush1.xpose.msra.mxu0 0.0
    %3021 = vmatprep.subr.mxu0 0.0
    %3022 = vmatpush1.xpose.msra.mxu0 0.0
    %3023 = vmatprep.subr.mxu0 0.0
    %3024 = vmatpush1.xpose.msra.mxu0 0.0
    %3025 = vmatprep.subr.mxu0 0.0
    %3026 = vmatpush1.xpose.msra.mxu0 0.0
    %3027 = vmatprep.subr.mxu0 0.0
    %3028 = vmatpush1.xpose.msra.mxu0 0.0
    %3029 = vmatprep.subr.mxu0 0.0
    %3030 = vmatpush1.xpose.msra.mxu0 0.0
    %3031 = vmatprep.subr.mxu0 0.0
    %3032 = vmatpush1.xpose.msra.mxu0 0.0
    %3033 = vmatprep.subr.mxu0 0.0
    %3034 = vmatpush1.xpose.msra.mxu0 0.0
    %3035 = vmatprep.subr.mxu0 0.0
    %3036 = vmatpush1.xpose.msra.mxu0 0.0
    %3037 = vmatprep.subr.mxu0 0.0
    %3038 = vmatpush1.xpose.msra.mxu0 0.0
    %3039 = vmatprep.subr.mxu0 0.0
    %3040 = vmatpush1.xpose.msra.mxu0 0.0
    %3041 = vmatprep.subr.mxu0 0.0
    %3042 = vmatpush1.xpose.msra.mxu0 0.0
    %3043 = vmatprep.subr.mxu0 0.0
    %3044 = vmatpush1.xpose.msra.mxu0 0.0
    %3045 = vmatprep.subr.mxu0 0.0
    %3046 = vmatpush1.xpose.msra.mxu0 0.0
    %3047 = vmatprep.subr.mxu0 0.0
    %3048 = vmatpush1.xpose.msra.mxu0 0.0
    %3049 = vmatprep.subr.mxu0 0.0
    %3050 = vmatpush1.xpose.msra.mxu0 0.0
    %3051 = vmatprep.subr.mxu0 0.0
    %3052 = vmatpush1.xpose.msra.mxu0 0.0
    %3053 = vmatprep.subr.mxu0 0.0
    %3054 = vmatpush1.xpose.msra.mxu0 0.0
    %3055 = vmatprep.subr.mxu0 0.0
    %3056 = vmatpush1.xpose.msra.mxu0 0.0
    %3057 = vmatprep.subr.mxu0 0.0
    %3058 = vmatpush1.xpose.msra.mxu0 0.0
    %3059 = vmatprep.subr.mxu0 0.0
    %3060 = vmatpush1.xpose.msra.mxu0 0.0
    %3061 = vmatprep.subr.mxu0 0.0
    %3062 = vmatpush1.xpose.msra.mxu0 0.0
    %3063 = vmatprep.mubr.f32.mxu0 0.0
    %3064 = vmatmul.mubr.f32.gmra.mrb[0].mxu0 %v2991
    %v3065 = vpop.f32.mrb[0].mxu0
    %v3066 = vadd.f32 0.0, %v3065
    %v3067 = vpop.f32.mrb[0].mxu0
    %3068 = vmatprep.mubr.f32.mxu0 0.0
    %3069 = vmatmul.mubr.f32.gmra.mrb[0].mxu0 %v2993
    %v3070 = vpop.f32.mrb[0].mxu0
    %v3071 = vadd.f32 0.0, %v3070
    %v3072 = vpop.f32.mrb[0].mxu0
    %3073 = vdwg.mxu0
    %v3074 = vmul.f32 %v3066, 0.17677669
    %v3075 = vmul.f32 %v3071, 0.17677669
    %3076 = vrot.lane.b32.xlu0 %v353, 64
    %v3077 = vpop.permute.xlu0 %3076
    %3078 = vrot.lane.b32.xlu0 %v359, 64
    %v3079 = vpop.permute.xlu0 %3078
    %3080 = vrot.lane.b32.xlu0 %v355, 64
    %v3081 = vpop.permute.xlu0 %3080
    %3082 = vrot.lane.b32.xlu0 %v361, 64
    %v3083 = vpop.permute.xlu0 %3082
    %v3084 = vsel %vm448, %v3077, 0
    %v3086 = vsel %vm448, %v3079, 0
    %v3088 = vsel %vm448, %v3081, 0
    %v3090 = vsel %vm448, %v3083, 0
    %3092 = vmatprep.subr.mxu0 0.0
    %3093 = vmatpush1.xpose.msra.mxu0 %v3088
    %3094 = vmatprep.subr.mxu0 0.0
    %3095 = vmatpush1.xpose.msra.mxu0 %v3090
    %3096 = vmatprep.subr.mxu0 0.0
    %3097 = vmatpush1.xpose.msra.mxu0 0.0
    %3098 = vmatprep.subr.mxu0 0.0
    %3099 = vmatpush1.xpose.msra.mxu0 0.0
    %3100 = vmatprep.subr.mxu0 0.0
    %3101 = vmatpush1.xpose.msra.mxu0 0.0
    %3102 = vmatprep.subr.mxu0 0.0
    %3103 = vmatpush1.xpose.msra.mxu0 0.0
    %3104 = vmatprep.subr.mxu0 0.0
    %3105 = vmatpush1.xpose.msra.mxu0 0.0
    %3106 = vmatprep.subr.mxu0 0.0
    %3107 = vmatpush1.xpose.msra.mxu0 0.0
    %3108 = vmatprep.subr.mxu0 0.0
    %3109 = vmatpush1.xpose.msra.mxu0 0.0
    %3110 = vmatprep.subr.mxu0 0.0
    %3111 = vmatpush1.xpose.msra.mxu0 0.0
    %3112 = vmatprep.subr.mxu0 0.0
    %3113 = vmatpush1.xpose.msra.mxu0 0.0
    %3114 = vmatprep.subr.mxu0 0.0
    %3115 = vmatpush1.xpose.msra.mxu0 0.0
    %3116 = vmatprep.subr.mxu0 0.0
    %3117 = vmatpush1.xpose.msra.mxu0 0.0
    %3118 = vmatprep.subr.mxu0 0.0
    %3119 = vmatpush1.xpose.msra.mxu0 0.0
    %3120 = vmatprep.subr.mxu0 0.0
    %3121 = vmatpush1.xpose.msra.mxu0 0.0
    %3122 = vmatprep.subr.mxu0 0.0
    %3123 = vmatpush1.xpose.msra.mxu0 0.0
    %3124 = vmatprep.subr.mxu0 0.0
    %3125 = vmatpush1.xpose.msra.mxu0 0.0
    %3126 = vmatprep.subr.mxu0 0.0
    %3127 = vmatpush1.xpose.msra.mxu0 0.0
    %3128 = vmatprep.subr.mxu0 0.0
    %3129 = vmatpush1.xpose.msra.mxu0 0.0
    %3130 = vmatprep.subr.mxu0 0.0
    %3131 = vmatpush1.xpose.msra.mxu0 0.0
    %3132 = vmatprep.subr.mxu0 0.0
    %3133 = vmatpush1.xpose.msra.mxu0 0.0
    %3134 = vmatprep.subr.mxu0 0.0
    %3135 = vmatpush1.xpose.msra.mxu0 0.0
    %3136 = vmatprep.subr.mxu0 0.0
    %3137 = vmatpush1.xpose.msra.mxu0 0.0
    %3138 = vmatprep.subr.mxu0 0.0
    %3139 = vmatpush1.xpose.msra.mxu0 0.0
    %3140 = vmatprep.subr.mxu0 0.0
    %3141 = vmatpush1.xpose.msra.mxu0 0.0
    %3142 = vmatprep.subr.mxu0 0.0
    %3143 = vmatpush1.xpose.msra.mxu0 0.0
    %3144 = vmatprep.subr.mxu0 0.0
    %3145 = vmatpush1.xpose.msra.mxu0 0.0
    %3146 = vmatprep.subr.mxu0 0.0
    %3147 = vmatpush1.xpose.msra.mxu0 0.0
    %3148 = vmatprep.subr.mxu0 0.0
    %3149 = vmatpush1.xpose.msra.mxu0 0.0
    %3150 = vmatprep.subr.mxu0 0.0
    %3151 = vmatpush1.xpose.msra.mxu0 0.0
    %3152 = vmatprep.subr.mxu0 0.0
    %3153 = vmatpush1.xpose.msra.mxu0 0.0
    %3154 = vmatprep.subr.mxu0 0.0
    %3155 = vmatpush1.xpose.msra.mxu0 0.0
    %3156 = vmatprep.mubr.f32.mxu0 0.0
    %3157 = vmatmul.mubr.f32.gmra.mrb[0].mxu0 %v3084
    %v3158 = vpop.f32.mrb[0].mxu0
    %v3159 = vadd.f32 0.0, %v3158
    %v3160 = vpop.f32.mrb[0].mxu0
    %3161 = vmatprep.mubr.f32.mxu0 0.0
    %3162 = vmatmul.mubr.f32.gmra.mrb[0].mxu0 %v3086
    %v3163 = vpop.f32.mrb[0].mxu0
    %v3164 = vadd.f32 0.0, %v3163
    %v3165 = vpop.f32.mrb[0].mxu0
    %3166 = vdwg.mxu0
    %v3167 = vmul.f32 %v3159, 0.17677669
    %v3168 = vmul.f32 %v3164, 0.17677669
    %3169 = vmatprep.subr.mxu0 0.0
    %3170 = vmatpush1.xpose.msra.mxu0 %v3088
    %3171 = vmatprep.subr.mxu0 0.0
    %3172 = vmatpush1.xpose.msra.mxu0 %v3090
    %3173 = vmatprep.subr.mxu0 0.0
    %3174 = vmatpush1.xpose.msra.mxu0 0.0
    %3175 = vmatprep.subr.mxu0 0.0
    %3176 = vmatpush1.xpose.msra.mxu0 0.0
    %3177 = vmatprep.subr.mxu0 0.0
    %3178 = vmatpush1.xpose.msra.mxu0 0.0
    %3179 = vmatprep.subr.mxu0 0.0
    %3180 = vmatpush1.xpose.msra.mxu0 0.0
    %3181 = vmatprep.subr.mxu0 0.0
    %3182 = vmatpush1.xpose.msra.mxu0 0.0
    %3183 = vmatprep.subr.mxu0 0.0
    %3184 = vmatpush1.xpose.msra.mxu0 0.0
    %3185 = vmatprep.subr.mxu0 0.0
    %3186 = vmatpush1.xpose.msra.mxu0 0.0
    %3187 = vmatprep.subr.mxu0 0.0
    %3188 = vmatpush1.xpose.msra.mxu0 0.0
    %3189 = vmatprep.subr.mxu0 0.0
    %3190 = vmatpush1.xpose.msra.mxu0 0.0
    %3191 = vmatprep.subr.mxu0 0.0
    %3192 = vmatpush1.xpose.msra.mxu0 0.0
    %3193 = vmatprep.subr.mxu0 0.0
    %3194 = vmatpush1.xpose.msra.mxu0 0.0
    %3195 = vmatprep.subr.mxu0 0.0
    %3196 = vmatpush1.xpose.msra.mxu0 0.0
    %3197 = vmatprep.subr.mxu0 0.0
    %3198 = vmatpush1.xpose.msra.mxu0 0.0
    %3199 = vmatprep.subr.mxu0 0.0
    %3200 = vmatpush1.xpose.msra.mxu0 0.0
    %3201 = vmatprep.subr.mxu0 0.0
    %3202 = vmatpush1.xpose.msra.mxu0 0.0
    %3203 = vmatprep.subr.mxu0 0.0
    %3204 = vmatpush1.xpose.msra.mxu0 0.0
    %3205 = vmatprep.subr.mxu0 0.0
    %3206 = vmatpush1.xpose.msra.mxu0 0.0
    %3207 = vmatprep.subr.mxu0 0.0
    %3208 = vmatpush1.xpose.msra.mxu0 0.0
    %3209 = vmatprep.subr.mxu0 0.0
    %3210 = vmatpush1.xpose.msra.mxu0 0.0
    %3211 = vmatprep.subr.mxu0 0.0
    %3212 = vmatpush1.xpose.msra.mxu0 0.0
    %3213 = vmatprep.subr.mxu0 0.0
    %3214 = vmatpush1.xpose.msra.mxu0 0.0
    %3215 = vmatprep.subr.mxu0 0.0
    %3216 = vmatpush1.xpose.msra.mxu0 0.0
    %3217 = vmatprep.subr.mxu0 0.0
    %3218 = vmatpush1.xpose.msra.mxu0 0.0
    %3219 = vmatprep.subr.mxu0 0.0
    %3220 = vmatpush1.xpose.msra.mxu0 0.0
    %3221 = vmatprep.subr.mxu0 0.0
    %3222 = vmatpush1.xpose.msra.mxu0 0.0
    %3223 = vmatprep.subr.mxu0 0.0
    %3224 = vmatpush1.xpose.msra.mxu0 0.0
    %3225 = vmatprep.subr.mxu0 0.0
    %3226 = vmatpush1.xpose.msra.mxu0 0.0
    %3227 = vmatprep.subr.mxu0 0.0
    %3228 = vmatpush1.xpose.msra.mxu0 0.0
    %3229 = vmatprep.subr.mxu0 0.0
    %3230 = vmatpush1.xpose.msra.mxu0 0.0
    %3231 = vmatprep.subr.mxu0 0.0
    %3232 = vmatpush1.xpose.msra.mxu0 0.0
    %3233 = vmatprep.mubr.f32.mxu0 0.0
    %3234 = vmatmul.mubr.f32.gmra.mrb[0].mxu0 %v2991
    %v3235 = vpop.f32.mrb[0].mxu0
    %v3236 = vadd.f32 0.0, %v3235
    %v3237 = vpop.f32.mrb[0].mxu0
    %3238 = vmatprep.mubr.f32.mxu0 0.0
    %3239 = vmatmul.mubr.f32.gmra.mrb[0].mxu0 %v2993
    %v3240 = vpop.f32.mrb[0].mxu0
    %v3241 = vadd.f32 0.0, %v3240
    %v3242 = vpop.f32.mrb[0].mxu0
    %3243 = vdwg.mxu0
    %v3244 = vmul.f32 %v3236, 0.17677669
    %v3245 = vmul.f32 %v3241, 0.17677669
    %v3247 = vsel %vm69, %v3244, 0
    %v3250 = vsel %vm69, %v3245, 0
    %3252 = vmatprep.subr.mxu0 0.0
    %3253 = vmatpush1.msra.mxu0 %v3244
    %3254 = vmatprep.subr.mxu0 0.0
    %3255 = vmatpush1.msra.mxu0 %v3245
    %3256 = vmatprep.subr.mxu0 0.0
    %3257 = vmatpush1.msra.mxu0 0.0
    %3258 = vmatprep.subr.mxu0 0.0
    %3259 = vmatpush1.msra.mxu0 0.0
    %3260 = vmatprep.subr.mxu0 0.0
    %3261 = vmatpush1.msra.mxu0 0.0
    %3262 = vmatprep.subr.mxu0 0.0
    %3263 = vmatpush1.msra.mxu0 0.0
    %3264 = vmatprep.subr.mxu0 0.0
    %3265 = vmatpush1.msra.mxu0 0.0
    %3266 = vmatprep.subr.mxu0 0.0
    %3267 = vmatpush1.msra.mxu0 0.0
    %3268 = vmatprep.subr.mxu0 0.0
    %3269 = vmatpush1.msra.mxu0 0.0
    %3270 = vmatprep.subr.mxu0 0.0
    %3271 = vmatpush1.msra.mxu0 0.0
    %3272 = vmatprep.subr.mxu0 0.0
    %3273 = vmatpush1.msra.mxu0 0.0
    %3274 = vmatprep.subr.mxu0 0.0
    %3275 = vmatpush1.msra.mxu0 0.0
    %3276 = vmatprep.subr.mxu0 0.0
    %3277 = vmatpush1.msra.mxu0 0.0
    %3278 = vmatprep.subr.mxu0 0.0
    %3279 = vmatpush1.msra.mxu0 0.0
    %3280 = vmatprep.subr.mxu0 0.0
    %3281 = vmatpush1.msra.mxu0 0.0
    %3282 = vmatprep.subr.mxu0 0.0
    %3283 = vmatpush1.msra.mxu0 0.0
    %3284 = vmatprep.subr.mxu0 0.0
    %3285 = vmatpush1.msra.mxu0 0.0
    %3286 = vmatprep.subr.mxu0 0.0
    %3287 = vmatpush1.msra.mxu0 0.0
    %3288 = vmatprep.subr.mxu0 0.0
    %3289 = vmatpush1.msra.mxu0 0.0
    %3290 = vmatprep.subr.mxu0 0.0
    %3291 = vmatpush1.msra.mxu0 0.0
    %3292 = vmatprep.subr.mxu0 0.0
    %3293 = vmatpush1.msra.mxu0 0.0
    %3294 = vmatprep.subr.mxu0 0.0
    %3295 = vmatpush1.msra.mxu0 0.0
    %3296 = vmatprep.subr.mxu0 0.0
    %3297 = vmatpush1.msra.mxu0 0.0
    %3298 = vmatprep.subr.mxu0 0.0
    %3299 = vmatpush1.msra.mxu0 0.0
    %3300 = vmatprep.subr.mxu0 0.0
    %3301 = vmatpush1.msra.mxu0 0.0
    %3302 = vmatprep.subr.mxu0 0.0
    %3303 = vmatpush1.msra.mxu0 0.0
    %3304 = vmatprep.subr.mxu0 0.0
    %3305 = vmatpush1.msra.mxu0 0.0
    %3306 = vmatprep.subr.mxu0 0.0
    %3307 = vmatpush1.msra.mxu0 0.0
    %3308 = vmatprep.subr.mxu0 0.0
    %3309 = vmatpush1.msra.mxu0 0.0
    %3310 = vmatprep.subr.mxu0 0.0
    %3311 = vmatpush1.msra.mxu0 0.0
    %3312 = vmatprep.subr.mxu0 0.0
    %3313 = vmatpush1.msra.mxu0 0.0
    %3314 = vmatprep.subr.mxu0 0.0
    %3315 = vmatpush1.msra.mxu0 0.0
    %3316 = vmatprep.mubr.f32.mxu0 0.0
    %3317 = vmatmul.mubr.f32.gmra.mrb[0].mxu0 %v3247
    %v3318 = vpop.f32.mrb[0].mxu0
    %v3319 = vadd.f32 0.0, %v3318
    %v3320 = vpop.f32.mrb[0].mxu0
    %3321 = vmatprep.mubr.f32.mxu0 0.0
    %3322 = vmatmul.mubr.f32.gmra.mrb[0].mxu0 %v3250
    %v3323 = vpop.f32.mrb[0].mxu0
    %v3324 = vadd.f32 0.0, %v3323
    %v3325 = vpop.f32.mrb[0].mxu0
    %3326 = vdwg.mxu0
    %v3328 = vsel %vm69, %v3074, 0
    %v3331 = vsel %vm69, %v3075, 0
    %3333 = vmatprep.subr.mxu0 0.0
    %3334 = vmatpush1.msra.mxu0 %v3167
    %3335 = vmatprep.subr.mxu0 0.0
    %3336 = vmatpush1.msra.mxu0 %v3168
    %3337 = vmatprep.subr.mxu0 0.0
    %3338 = vmatpush1.msra.mxu0 0.0
    %3339 = vmatprep.subr.mxu0 0.0
    %3340 = vmatpush1.msra.mxu0 0.0
    %3341 = vmatprep.subr.mxu0 0.0
    %3342 = vmatpush1.msra.mxu0 0.0
    %3343 = vmatprep.subr.mxu0 0.0
    %3344 = vmatpush1.msra.mxu0 0.0
    %3345 = vmatprep.subr.mxu0 0.0
    %3346 = vmatpush1.msra.mxu0 0.0
    %3347 = vmatprep.subr.mxu0 0.0
    %3348 = vmatpush1.msra.mxu0 0.0
    %3349 = vmatprep.subr.mxu0 0.0
    %3350 = vmatpush1.msra.mxu0 0.0
    %3351 = vmatprep.subr.mxu0 0.0
    %3352 = vmatpush1.msra.mxu0 0.0
    %3353 = vmatprep.subr.mxu0 0.0
    %3354 = vmatpush1.msra.mxu0 0.0
    %3355 = vmatprep.subr.mxu0 0.0
    %3356 = vmatpush1.msra.mxu0 0.0
    %3357 = vmatprep.subr.mxu0 0.0
    %3358 = vmatpush1.msra.mxu0 0.0
    %3359 = vmatprep.subr.mxu0 0.0
    %3360 = vmatpush1.msra.mxu0 0.0
    %3361 = vmatprep.subr.mxu0 0.0
    %3362 = vmatpush1.msra.mxu0 0.0
    %3363 = vmatprep.subr.mxu0 0.0
    %3364 = vmatpush1.msra.mxu0 0.0
    %3365 = vmatprep.subr.mxu0 0.0
    %3366 = vmatpush1.msra.mxu0 0.0
    %3367 = vmatprep.subr.mxu0 0.0
    %3368 = vmatpush1.msra.mxu0 0.0
    %3369 = vmatprep.subr.mxu0 0.0
    %3370 = vmatpush1.msra.mxu0 0.0
    %3371 = vmatprep.subr.mxu0 0.0
    %3372 = vmatpush1.msra.mxu0 0.0
    %3373 = vmatprep.subr.mxu0 0.0
    %3374 = vmatpush1.msra.mxu0 0.0
    %3375 = vmatprep.subr.mxu0 0.0
    %3376 = vmatpush1.msra.mxu0 0.0
    %3377 = vmatprep.subr.mxu0 0.0
    %3378 = vmatpush1.msra.mxu0 0.0
    %3379 = vmatprep.subr.mxu0 0.0
    %3380 = vmatpush1.msra.mxu0 0.0
    %3381 = vmatprep.subr.mxu0 0.0
    %3382 = vmatpush1.msra.mxu0 0.0
    %3383 = vmatprep.subr.mxu0 0.0
    %3384 = vmatpush1.msra.mxu0 0.0
    %3385 = vmatprep.subr.mxu0 0.0
    %3386 = vmatpush1.msra.mxu0 0.0
    %3387 = vmatprep.subr.mxu0 0.0
    %3388 = vmatpush1.msra.mxu0 0.0
    %3389 = vmatprep.subr.mxu0 0.0
    %3390 = vmatpush1.msra.mxu0 0.0
    %3391 = vmatprep.subr.mxu0 0.0
    %3392 = vmatpush1.msra.mxu0 0.0
    %3393 = vmatprep.subr.mxu0 0.0
    %3394 = vmatpush1.msra.mxu0 0.0
    %3395 = vmatprep.subr.mxu0 0.0
    %3396 = vmatpush1.msra.mxu0 0.0
    %3397 = vmatprep.mubr.f32.mxu0 0.0
    %3398 = vmatmul.mubr.f32.gmra.mrb[0].mxu0 %v3328
    %v3399 = vpop.f32.mrb[0].mxu0
    %v3400 = vadd.f32 %v3319, %v3399
    %v3401 = vpop.f32.mrb[0].mxu0
    %3402 = vmatprep.mubr.f32.mxu0 0.0
    %3403 = vmatmul.mubr.f32.gmra.mrb[0].mxu0 %v3331
    %v3404 = vpop.f32.mrb[0].mxu0
    %v3405 = vadd.f32 %v3324, %v3404
    %v3406 = vpop.f32.mrb[0].mxu0
    %3407 = vdwg.mxu0
    %3408 = vrot.lane.b32.xlu0 %v161, 32
    %v3409 = vpop.permute.xlu0 %3408
    %3410 = vrot.lane.b32.xlu0 %v167, 32
    %v3411 = vpop.permute.xlu0 %3410
    %3412 = vrot.lane.b32.xlu0 %v163, 32
    %v3413 = vpop.permute.xlu0 %3412
    %3414 = vrot.lane.b32.xlu0 %v169, 32
    %v3415 = vpop.permute.xlu0 %3414
    %v3416 = vsel %vm448, %v3409, 0
    %v3418 = vsel %vm448, %v3411, 0
    %v3420 = vsel %vm448, %v3413, 0
    %v3422 = vsel %vm448, %v3415, 0
    %3424 = vmatprep.subr.mxu0 0.0
    %3425 = vmatpush1.xpose.msra.mxu0 %v3420
    %3426 = vmatprep.subr.mxu0 0.0
    %3427 = vmatpush1.xpose.msra.mxu0 %v3422
    %3428 = vmatprep.subr.mxu0 0.0
    %3429 = vmatpush1.xpose.msra.mxu0 0.0
    %3430 = vmatprep.subr.mxu0 0.0
    %3431 = vmatpush1.xpose.msra.mxu0 0.0
    %3432 = vmatprep.subr.mxu0 0.0
    %3433 = vmatpush1.xpose.msra.mxu0 0.0
    %3434 = vmatprep.subr.mxu0 0.0
    %3435 = vmatpush1.xpose.msra.mxu0 0.0
    %3436 = vmatprep.subr.mxu0 0.0
    %3437 = vmatpush1.xpose.msra.mxu0 0.0
    %3438 = vmatprep.subr.mxu0 0.0
    %3439 = vmatpush1.xpose.msra.mxu0 0.0
    %3440 = vmatprep.subr.mxu0 0.0
    %3441 = vmatpush1.xpose.msra.mxu0 0.0
    %3442 = vmatprep.subr.mxu0 0.0
    %3443 = vmatpush1.xpose.msra.mxu0 0.0
    %3444 = vmatprep.subr.mxu0 0.0
    %3445 = vmatpush1.xpose.msra.mxu0 0.0
    %3446 = vmatprep.subr.mxu0 0.0
    %3447 = vmatpush1.xpose.msra.mxu0 0.0
    %3448 = vmatprep.subr.mxu0 0.0
    %3449 = vmatpush1.xpose.msra.mxu0 0.0
    %3450 = vmatprep.subr.mxu0 0.0
    %3451 = vmatpush1.xpose.msra.mxu0 0.0
    %3452 = vmatprep.subr.mxu0 0.0
    %3453 = vmatpush1.xpose.msra.mxu0 0.0
    %3454 = vmatprep.subr.mxu0 0.0
    %3455 = vmatpush1.xpose.msra.mxu0 0.0
    %3456 = vmatprep.subr.mxu0 0.0
    %3457 = vmatpush1.xpose.msra.mxu0 0.0
    %3458 = vmatprep.subr.mxu0 0.0
    %3459 = vmatpush1.xpose.msra.mxu0 0.0
    %3460 = vmatprep.subr.mxu0 0.0
    %3461 = vmatpush1.xpose.msra.mxu0 0.0
    %3462 = vmatprep.subr.mxu0 0.0
    %3463 = vmatpush1.xpose.msra.mxu0 0.0
    %3464 = vmatprep.subr.mxu0 0.0
    %3465 = vmatpush1.xpose.msra.mxu0 0.0
    %3466 = vmatprep.subr.mxu0 0.0
    %3467 = vmatpush1.xpose.msra.mxu0 0.0
    %3468 = vmatprep.subr.mxu0 0.0
    %3469 = vmatpush1.xpose.msra.mxu0 0.0
    %3470 = vmatprep.subr.mxu0 0.0
    %3471 = vmatpush1.xpose.msra.mxu0 0.0
    %3472 = vmatprep.subr.mxu0 0.0
    %3473 = vmatpush1.xpose.msra.mxu0 0.0
    %3474 = vmatprep.subr.mxu0 0.0
    %3475 = vmatpush1.xpose.msra.mxu0 0.0
    %3476 = vmatprep.subr.mxu0 0.0
    %3477 = vmatpush1.xpose.msra.mxu0 0.0
    %3478 = vmatprep.subr.mxu0 0.0
    %3479 = vmatpush1.xpose.msra.mxu0 0.0
    %3480 = vmatprep.subr.mxu0 0.0
    %3481 = vmatpush1.xpose.msra.mxu0 0.0
    %3482 = vmatprep.subr.mxu0 0.0
    %3483 = vmatpush1.xpose.msra.mxu0 0.0
    %3484 = vmatprep.subr.mxu0 0.0
    %3485 = vmatpush1.xpose.msra.mxu0 0.0
    %3486 = vmatprep.subr.mxu0 0.0
    %3487 = vmatpush1.xpose.msra.mxu0 0.0
    %3488 = vmatprep.mubr.f32.mxu0 0.0
    %3489 = vmatmul.mubr.f32.gmra.mrb[0].mxu0 %v3416
    %v3490 = vpop.f32.mrb[0].mxu0
    %v3491 = vadd.f32 0.0, %v3490
    %v3492 = vpop.f32.mrb[0].mxu0
    %3493 = vmatprep.mubr.f32.mxu0 0.0
    %3494 = vmatmul.mubr.f32.gmra.mrb[0].mxu0 %v3418
    %v3495 = vpop.f32.mrb[0].mxu0
    %v3496 = vadd.f32 0.0, %v3495
    %v3497 = vpop.f32.mrb[0].mxu0
    %3498 = vdwg.mxu0
    %v3499 = vmul.f32 %v3491, 0.17677669
    %v3500 = vmul.f32 %v3496, 0.17677669
    %3501 = vrot.lane.b32.xlu0 %v353, 32
    %v3502 = vpop.permute.xlu0 %3501
    %3503 = vrot.lane.b32.xlu0 %v359, 32
    %v3504 = vpop.permute.xlu0 %3503
    %3505 = vrot.lane.b32.xlu0 %v355, 32
    %v3506 = vpop.permute.xlu0 %3505
    %3507 = vrot.lane.b32.xlu0 %v361, 32
    %v3508 = vpop.permute.xlu0 %3507
    %v3509 = vsel %vm448, %v3502, 0
    %v3511 = vsel %vm448, %v3504, 0
    %v3513 = vsel %vm448, %v3506, 0
    %v3515 = vsel %vm448, %v3508, 0
    %3517 = vmatprep.subr.mxu0 0.0
    %3518 = vmatpush1.xpose.msra.mxu0 %v3513
    %3519 = vmatprep.subr.mxu0 0.0
    %3520 = vmatpush1.xpose.msra.mxu0 %v3515
    %3521 = vmatprep.subr.mxu0 0.0
    %3522 = vmatpush1.xpose.msra.mxu0 0.0
    %3523 = vmatprep.subr.mxu0 0.0
    %3524 = vmatpush1.xpose.msra.mxu0 0.0
    %3525 = vmatprep.subr.mxu0 0.0
    %3526 = vmatpush1.xpose.msra.mxu0 0.0
    %3527 = vmatprep.subr.mxu0 0.0
    %3528 = vmatpush1.xpose.msra.mxu0 0.0
    %3529 = vmatprep.subr.mxu0 0.0
    %3530 = vmatpush1.xpose.msra.mxu0 0.0
    %3531 = vmatprep.subr.mxu0 0.0
    %3532 = vmatpush1.xpose.msra.mxu0 0.0
    %3533 = vmatprep.subr.mxu0 0.0
    %3534 = vmatpush1.xpose.msra.mxu0 0.0
    %3535 = vmatprep.subr.mxu0 0.0
    %3536 = vmatpush1.xpose.msra.mxu0 0.0
    %3537 = vmatprep.subr.mxu0 0.0
    %3538 = vmatpush1.xpose.msra.mxu0 0.0
    %3539 = vmatprep.subr.mxu0 0.0
    %3540 = vmatpush1.xpose.msra.mxu0 0.0
    %3541 = vmatprep.subr.mxu0 0.0
    %3542 = vmatpush1.xpose.msra.mxu0 0.0
    %3543 = vmatprep.subr.mxu0 0.0
    %3544 = vmatpush1.xpose.msra.mxu0 0.0
    %3545 = vmatprep.subr.mxu0 0.0
    %3546 = vmatpush1.xpose.msra.mxu0 0.0
    %3547 = vmatprep.subr.mxu0 0.0
    %3548 = vmatpush1.xpose.msra.mxu0 0.0
    %3549 = vmatprep.subr.mxu0 0.0
    %3550 = vmatpush1.xpose.msra.mxu0 0.0
    %3551 = vmatprep.subr.mxu0 0.0
    %3552 = vmatpush1.xpose.msra.mxu0 0.0
    %3553 = vmatprep.subr.mxu0 0.0
    %3554 = vmatpush1.xpose.msra.mxu0 0.0
    %3555 = vmatprep.subr.mxu0 0.0
    %3556 = vmatpush1.xpose.msra.mxu0 0.0
    %3557 = vmatprep.subr.mxu0 0.0
    %3558 = vmatpush1.xpose.msra.mxu0 0.0
    %3559 = vmatprep.subr.mxu0 0.0
    %3560 = vmatpush1.xpose.msra.mxu0 0.0
    %3561 = vmatprep.subr.mxu0 0.0
    %3562 = vmatpush1.xpose.msra.mxu0 0.0
    %3563 = vmatprep.subr.mxu0 0.0
    %3564 = vmatpush1.xpose.msra.mxu0 0.0
    %3565 = vmatprep.subr.mxu0 0.0
    %3566 = vmatpush1.xpose.msra.mxu0 0.0
    %3567 = vmatprep.subr.mxu0 0.0
    %3568 = vmatpush1.xpose.msra.mxu0 0.0
    %3569 = vmatprep.subr.mxu0 0.0
    %3570 = vmatpush1.xpose.msra.mxu0 0.0
    %3571 = vmatprep.subr.mxu0 0.0
    %3572 = vmatpush1.xpose.msra.mxu0 0.0
    %3573 = vmatprep.subr.mxu0 0.0
    %3574 = vmatpush1.xpose.msra.mxu0 0.0
    %3575 = vmatprep.subr.mxu0 0.0
    %3576 = vmatpush1.xpose.msra.mxu0 0.0
    %3577 = vmatprep.subr.mxu0 0.0
    %3578 = vmatpush1.xpose.msra.mxu0 0.0
    %3579 = vmatprep.subr.mxu0 0.0
    %3580 = vmatpush1.xpose.msra.mxu0 0.0
    %3581 = vmatprep.mubr.f32.mxu0 0.0
    %3582 = vmatmul.mubr.f32.gmra.mrb[0].mxu0 %v3509
    %v3583 = vpop.f32.mrb[0].mxu0
    %v3584 = vadd.f32 0.0, %v3583
    %v3585 = vpop.f32.mrb[0].mxu0
    %3586 = vmatprep.mubr.f32.mxu0 0.0
    %3587 = vmatmul.mubr.f32.gmra.mrb[0].mxu0 %v3511
    %v3588 = vpop.f32.mrb[0].mxu0
    %v3589 = vadd.f32 0.0, %v3588
    %v3590 = vpop.f32.mrb[0].mxu0
    %3591 = vdwg.mxu0
    %v3592 = vmul.f32 %v3584, 0.17677669
    %v3593 = vmul.f32 %v3589, 0.17677669
    %3594 = vmatprep.subr.mxu0 0.0
    %3595 = vmatpush1.xpose.msra.mxu0 %v3513
    %3596 = vmatprep.subr.mxu0 0.0
    %3597 = vmatpush1.xpose.msra.mxu0 %v3515
    %3598 = vmatprep.subr.mxu0 0.0
    %3599 = vmatpush1.xpose.msra.mxu0 0.0
    %3600 = vmatprep.subr.mxu0 0.0
    %3601 = vmatpush1.xpose.msra.mxu0 0.0
    %3602 = vmatprep.subr.mxu0 0.0
    %3603 = vmatpush1.xpose.msra.mxu0 0.0
    %3604 = vmatprep.subr.mxu0 0.0
    %3605 = vmatpush1.xpose.msra.mxu0 0.0
    %3606 = vmatprep.subr.mxu0 0.0
    %3607 = vmatpush1.xpose.msra.mxu0 0.0
    %3608 = vmatprep.subr.mxu0 0.0
    %3609 = vmatpush1.xpose.msra.mxu0 0.0
    %3610 = vmatprep.subr.mxu0 0.0
    %3611 = vmatpush1.xpose.msra.mxu0 0.0
    %3612 = vmatprep.subr.mxu0 0.0
    %3613 = vmatpush1.xpose.msra.mxu0 0.0
    %3614 = vmatprep.subr.mxu0 0.0
    %3615 = vmatpush1.xpose.msra.mxu0 0.0
    %3616 = vmatprep.subr.mxu0 0.0
    %3617 = vmatpush1.xpose.msra.mxu0 0.0
    %3618 = vmatprep.subr.mxu0 0.0
    %3619 = vmatpush1.xpose.msra.mxu0 0.0
    %3620 = vmatprep.subr.mxu0 0.0
    %3621 = vmatpush1.xpose.msra.mxu0 0.0
    %3622 = vmatprep.subr.mxu0 0.0
    %3623 = vmatpush1.xpose.msra.mxu0 0.0
    %3624 = vmatprep.subr.mxu0 0.0
    %3625 = vmatpush1.xpose.msra.mxu0 0.0
    %3626 = vmatprep.subr.mxu0 0.0
    %3627 = vmatpush1.xpose.msra.mxu0 0.0
    %3628 = vmatprep.subr.mxu0 0.0
    %3629 = vmatpush1.xpose.msra.mxu0 0.0
    %3630 = vmatprep.subr.mxu0 0.0
    %3631 = vmatpush1.xpose.msra.mxu0 0.0
    %3632 = vmatprep.subr.mxu0 0.0
    %3633 = vmatpush1.xpose.msra.mxu0 0.0
    %3634 = vmatprep.subr.mxu0 0.0
    %3635 = vmatpush1.xpose.msra.mxu0 0.0
    %3636 = vmatprep.subr.mxu0 0.0
    %3637 = vmatpush1.xpose.msra.mxu0 0.0
    %3638 = vmatprep.subr.mxu0 0.0
    %3639 = vmatpush1.xpose.msra.mxu0 0.0
    %3640 = vmatprep.subr.mxu0 0.0
    %3641 = vmatpush1.xpose.msra.mxu0 0.0
    %3642 = vmatprep.subr.mxu0 0.0
    %3643 = vmatpush1.xpose.msra.mxu0 0.0
    %3644 = vmatprep.subr.mxu0 0.0
    %3645 = vmatpush1.xpose.msra.mxu0 0.0
    %3646 = vmatprep.subr.mxu0 0.0
    %3647 = vmatpush1.xpose.msra.mxu0 0.0
    %3648 = vmatprep.subr.mxu0 0.0
    %3649 = vmatpush1.xpose.msra.mxu0 0.0
    %3650 = vmatprep.subr.mxu0 0.0
    %3651 = vmatpush1.xpose.msra.mxu0 0.0
    %3652 = vmatprep.subr.mxu0 0.0
    %3653 = vmatpush1.xpose.msra.mxu0 0.0
    %3654 = vmatprep.subr.mxu0 0.0
    %3655 = vmatpush1.xpose.msra.mxu0 0.0
    %3656 = vmatprep.subr.mxu0 0.0
    %3657 = vmatpush1.xpose.msra.mxu0 0.0
    %3658 = vmatprep.mubr.f32.mxu0 0.0
    %3659 = vmatmul.mubr.f32.gmra.mrb[0].mxu0 %v3416
    %v3660 = vpop.f32.mrb[0].mxu0
    %v3661 = vadd.f32 0.0, %v3660
    %v3662 = vpop.f32.mrb[0].mxu0
    %3663 = vmatprep.mubr.f32.mxu0 0.0
    %3664 = vmatmul.mubr.f32.gmra.mrb[0].mxu0 %v3418
    %v3665 = vpop.f32.mrb[0].mxu0
    %v3666 = vadd.f32 0.0, %v3665
    %v3667 = vpop.f32.mrb[0].mxu0
    %3668 = vdwg.mxu0
    %v3669 = vmul.f32 %v3661, 0.17677669
    %v3670 = vmul.f32 %v3666, 0.17677669
    %v3672 = vsel %vm69, %v3669, 0
    %v3675 = vsel %vm69, %v3670, 0
    %3677 = vmatprep.subr.mxu0 0.0
    %3678 = vmatpush1.msra.mxu0 %v3669
    %3679 = vmatprep.subr.mxu0 0.0
    %3680 = vmatpush1.msra.mxu0 %v3670
    %3681 = vmatprep.subr.mxu0 0.0
    %3682 = vmatpush1.msra.mxu0 0.0
    %3683 = vmatprep.subr.mxu0 0.0
    %3684 = vmatpush1.msra.mxu0 0.0
    %3685 = vmatprep.subr.mxu0 0.0
    %3686 = vmatpush1.msra.mxu0 0.0
    %3687 = vmatprep.subr.mxu0 0.0
    %3688 = vmatpush1.msra.mxu0 0.0
    %3689 = vmatprep.subr.mxu0 0.0
    %3690 = vmatpush1.msra.mxu0 0.0
    %3691 = vmatprep.subr.mxu0 0.0
    %3692 = vmatpush1.msra.mxu0 0.0
    %3693 = vmatprep.subr.mxu0 0.0
    %3694 = vmatpush1.msra.mxu0 0.0
    %3695 = vmatprep.subr.mxu0 0.0
    %3696 = vmatpush1.msra.mxu0 0.0
    %3697 = vmatprep.subr.mxu0 0.0
    %3698 = vmatpush1.msra.mxu0 0.0
    %3699 = vmatprep.subr.mxu0 0.0
    %3700 = vmatpush1.msra.mxu0 0.0
    %3701 = vmatprep.subr.mxu0 0.0
    %3702 = vmatpush1.msra.mxu0 0.0
    %3703 = vmatprep.subr.mxu0 0.0
    %3704 = vmatpush1.msra.mxu0 0.0
    %3705 = vmatprep.subr.mxu0 0.0
    %3706 = vmatpush1.msra.mxu0 0.0
    %3707 = vmatprep.subr.mxu0 0.0
    %3708 = vmatpush1.msra.mxu0 0.0
    %3709 = vmatprep.subr.mxu0 0.0
    %3710 = vmatpush1.msra.mxu0 0.0
    %3711 = vmatprep.subr.mxu0 0.0
    %3712 = vmatpush1.msra.mxu0 0.0
    %3713 = vmatprep.subr.mxu0 0.0
    %3714 = vmatpush1.msra.mxu0 0.0
    %3715 = vmatprep.subr.mxu0 0.0
    %3716 = vmatpush1.msra.mxu0 0.0
    %3717 = vmatprep.subr.mxu0 0.0
    %3718 = vmatpush1.msra.mxu0 0.0
    %3719 = vmatprep.subr.mxu0 0.0
    %3720 = vmatpush1.msra.mxu0 0.0
    %3721 = vmatprep.subr.mxu0 0.0
    %3722 = vmatpush1.msra.mxu0 0.0
    %3723 = vmatprep.subr.mxu0 0.0
    %3724 = vmatpush1.msra.mxu0 0.0
    %3725 = vmatprep.subr.mxu0 0.0
    %3726 = vmatpush1.msra.mxu0 0.0
    %3727 = vmatprep.subr.mxu0 0.0
    %3728 = vmatpush1.msra.mxu0 0.0
    %3729 = vmatprep.subr.mxu0 0.0
    %3730 = vmatpush1.msra.mxu0 0.0
    %3731 = vmatprep.subr.mxu0 0.0
    %3732 = vmatpush1.msra.mxu0 0.0
    %3733 = vmatprep.subr.mxu0 0.0
    %3734 = vmatpush1.msra.mxu0 0.0
    %3735 = vmatprep.subr.mxu0 0.0
    %3736 = vmatpush1.msra.mxu0 0.0
    %3737 = vmatprep.subr.mxu0 0.0
    %3738 = vmatpush1.msra.mxu0 0.0
    %3739 = vmatprep.subr.mxu0 0.0
    %3740 = vmatpush1.msra.mxu0 0.0
    %3741 = vmatprep.mubr.f32.mxu0 0.0
    %3742 = vmatmul.mubr.f32.gmra.mrb[0].mxu0 %v3672
    %v3743 = vpop.f32.mrb[0].mxu0
    %v3744 = vadd.f32 0.0, %v3743
    %v3745 = vpop.f32.mrb[0].mxu0
    %3746 = vmatprep.mubr.f32.mxu0 0.0
    %3747 = vmatmul.mubr.f32.gmra.mrb[0].mxu0 %v3675
    %v3748 = vpop.f32.mrb[0].mxu0
    %v3749 = vadd.f32 0.0, %v3748
    %v3750 = vpop.f32.mrb[0].mxu0
    %3751 = vdwg.mxu0
    %v3753 = vsel %vm69, %v3499, 0
    %v3756 = vsel %vm69, %v3500, 0
    %3758 = vmatprep.subr.mxu0 0.0
    %3759 = vmatpush1.msra.mxu0 %v3592
    %3760 = vmatprep.subr.mxu0 0.0
    %3761 = vmatpush1.msra.mxu0 %v3593
    %3762 = vmatprep.subr.mxu0 0.0
    %3763 = vmatpush1.msra.mxu0 0.0
    %3764 = vmatprep.subr.mxu0 0.0
    %3765 = vmatpush1.msra.mxu0 0.0
    %3766 = vmatprep.subr.mxu0 0.0
    %3767 = vmatpush1.msra.mxu0 0.0
    %3768 = vmatprep.subr.mxu0 0.0
    %3769 = vmatpush1.msra.mxu0 0.0
    %3770 = vmatprep.subr.mxu0 0.0
    %3771 = vmatpush1.msra.mxu0 0.0
    %3772 = vmatprep.subr.mxu0 0.0
    %3773 = vmatpush1.msra.mxu0 0.0
    %3774 = vmatprep.subr.mxu0 0.0
    %3775 = vmatpush1.msra.mxu0 0.0
    %3776 = vmatprep.subr.mxu0 0.0
    %3777 = vmatpush1.msra.mxu0 0.0
    %3778 = vmatprep.subr.mxu0 0.0
    %3779 = vmatpush1.msra.mxu0 0.0
    %3780 = vmatprep.subr.mxu0 0.0
    %3781 = vmatpush1.msra.mxu0 0.0
    %3782 = vmatprep.subr.mxu0 0.0
    %3783 = vmatpush1.msra.mxu0 0.0
    %3784 = vmatprep.subr.mxu0 0.0
    %3785 = vmatpush1.msra.mxu0 0.0
    %3786 = vmatprep.subr.mxu0 0.0
    %3787 = vmatpush1.msra.mxu0 0.0
    %3788 = vmatprep.subr.mxu0 0.0
    %3789 = vmatpush1.msra.mxu0 0.0
    %3790 = vmatprep.subr.mxu0 0.0
    %3791 = vmatpush1.msra.mxu0 0.0
    %3792 = vmatprep.subr.mxu0 0.0
    %3793 = vmatpush1.msra.mxu0 0.0
    %3794 = vmatprep.subr.mxu0 0.0
    %3795 = vmatpush1.msra.mxu0 0.0
    %3796 = vmatprep.subr.mxu0 0.0
    %3797 = vmatpush1.msra.mxu0 0.0
    %3798 = vmatprep.subr.mxu0 0.0
    %3799 = vmatpush1.msra.mxu0 0.0
    %3800 = vmatprep.subr.mxu0 0.0
    %3801 = vmatpush1.msra.mxu0 0.0
    %3802 = vmatprep.subr.mxu0 0.0
    %3803 = vmatpush1.msra.mxu0 0.0
    %3804 = vmatprep.subr.mxu0 0.0
    %3805 = vmatpush1.msra.mxu0 0.0
    %3806 = vmatprep.subr.mxu0 0.0
    %3807 = vmatpush1.msra.mxu0 0.0
    %3808 = vmatprep.subr.mxu0 0.0
    %3809 = vmatpush1.msra.mxu0 0.0
    %3810 = vmatprep.subr.mxu0 0.0
    %3811 = vmatpush1.msra.mxu0 0.0
    %3812 = vmatprep.subr.mxu0 0.0
    %3813 = vmatpush1.msra.mxu0 0.0
    %3814 = vmatprep.subr.mxu0 0.0
    %3815 = vmatpush1.msra.mxu0 0.0
    %3816 = vmatprep.subr.mxu0 0.0
    %3817 = vmatpush1.msra.mxu0 0.0
    %3818 = vmatprep.subr.mxu0 0.0
    %3819 = vmatpush1.msra.mxu0 0.0
    %3820 = vmatprep.subr.mxu0 0.0
    %3821 = vmatpush1.msra.mxu0 0.0
    %3822 = vmatprep.mubr.f32.mxu0 0.0
    %3823 = vmatmul.mubr.f32.gmra.mrb[0].mxu0 %v3753
    %v3824 = vpop.f32.mrb[0].mxu0
    %v3825 = vadd.f32 %v3744, %v3824
    %v3826 = vpop.f32.mrb[0].mxu0
    %3827 = vmatprep.mubr.f32.mxu0 0.0
    %3828 = vmatmul.mubr.f32.gmra.mrb[0].mxu0 %v3756
    %v3829 = vpop.f32.mrb[0].mxu0
    %v3830 = vadd.f32 %v3749, %v3829
    %v3831 = vpop.f32.mrb[0].mxu0
    %3832 = vdwg.mxu0
    %v3833 = vsel %vm69, %v858, -inf
    %3834 = vmax.xlane.f32.xlu0 %v3833
    %v3835 = vpop.xlane.xlu0 %3834
    %v3836 = vsel %vm69, %v863, -inf
    %3837 = vmax.xlane.f32.xlu0 %v3836
    %v3838 = vpop.xlane.xlu0 %3837
    %v3839 = vsel %vm69, %v1283, -inf
    %3840 = vmax.xlane.f32.xlu0 %v3839
    %v3841 = vpop.xlane.xlu0 %3840
    %v3842 = vsel %vm69, %v1288, -inf
    %3843 = vmax.xlane.f32.xlu0 %v3842
    %v3844 = vpop.xlane.xlu0 %3843
    %v3845 = vsel %vm69, %v1708, -inf
    %3846 = vmax.xlane.f32.xlu0 %v3845
    %v3847 = vpop.xlane.xlu0 %3846
    %v3848 = vsel %vm69, %v1713, -inf
    %3849 = vmax.xlane.f32.xlu0 %v3848
    %v3850 = vpop.xlane.xlu0 %3849
    %v3851 = vsel %vm69, %v2133, -inf
    %3852 = vmax.xlane.f32.xlu0 %v3851
    %v3853 = vpop.xlane.xlu0 %3852
    %v3854 = vsel %vm69, %v2138, -inf
    %3855 = vmax.xlane.f32.xlu0 %v3854
    %v3856 = vpop.xlane.xlu0 %3855
    %v3857 = vsel %vm69, %v2550, -inf
    %3858 = vmax.xlane.f32.xlu0 %v3857
    %v3859 = vpop.xlane.xlu0 %3858
    %v3860 = vsel %vm69, %v2555, -inf
    %3861 = vmax.xlane.f32.xlu0 %v3860
    %v3862 = vpop.xlane.xlu0 %3861
    %v3863 = vsel %vm69, %v2975, -inf
    %3864 = vmax.xlane.f32.xlu0 %v3863
    %v3865 = vpop.xlane.xlu0 %3864
    %v3866 = vsel %vm69, %v2980, -inf
    %3867 = vmax.xlane.f32.xlu0 %v3866
    %v3868 = vpop.xlane.xlu0 %3867
    %v3869 = vsel %vm69, %v3400, -inf
    %3870 = vmax.xlane.f32.xlu0 %v3869
    %v3871 = vpop.xlane.xlu0 %3870
    %v3872 = vsel %vm69, %v3405, -inf
    %3873 = vmax.xlane.f32.xlu0 %v3872
    %v3874 = vpop.xlane.xlu0 %3873
    %v3875 = vsel %vm69, %v3825, -inf
    %3876 = vmax.xlane.f32.xlu0 %v3875
    %v3877 = vpop.xlane.xlu0 %3876
    %v3878 = vsel %vm69, %v3830, -inf
    %3879 = vmax.xlane.f32.xlu0 %v3878
    %v3880 = vpop.xlane.xlu0 %3879
    %v3881 = vsub.f32 %v858, %v3835
    %v3882 = vsub.f32 %v863, %v3838
    %v3883 = vsub.f32 %v1283, %v3841
    %v3884 = vsub.f32 %v1288, %v3844
    %v3885 = vsub.f32 %v1708, %v3847
    %v3886 = vsub.f32 %v1713, %v3850
    %v3887 = vsub.f32 %v2133, %v3853
    %v3888 = vsub.f32 %v2138, %v3856
    %v3889 = vsub.f32 %v2550, %v3859
    %v3890 = vsub.f32 %v2555, %v3862
    %v3891 = vsub.f32 %v2975, %v3865
    %v3892 = vsub.f32 %v2980, %v3868
    %v3893 = vsub.f32 %v3400, %v3871
    %v3894 = vsub.f32 %v3405, %v3874
    %v3895 = vsub.f32 %v3825, %v3877
    %v3896 = vsub.f32 %v3830, %v3880
    %v3897 = vmul.f32 %v3881, 1.442695
    %v3898 = vpow.pop %v3897
    %v3899 = vmul.f32 %v3882, 1.442695
    %v3900 = vpow.pop %v3899
    %v3901 = vmul.f32 %v3883, 1.442695
    %v3902 = vpow.pop %v3901
    %v3903 = vmul.f32 %v3884, 1.442695
    %v3904 = vpow.pop %v3903
    %v3905 = vmul.f32 %v3885, 1.442695
    %v3906 = vpow.pop %v3905
    %v3907 = vmul.f32 %v3886, 1.442695
    %v3908 = vpow.pop %v3907
    %v3909 = vmul.f32 %v3887, 1.442695
    %v3910 = vpow.pop %v3909
    %v3911 = vmul.f32 %v3888, 1.442695
    %v3912 = vpow.pop %v3911
    %v3913 = vmul.f32 %v3889, 1.442695
    %v3914 = vpow.pop %v3913
    %v3915 = vmul.f32 %v3890, 1.442695
    %v3916 = vpow.pop %v3915
    %v3917 = vmul.f32 %v3891, 1.442695
    %v3918 = vpow.pop %v3917
    %v3919 = vmul.f32 %v3892, 1.442695
    %v3920 = vpow.pop %v3919
    %v3921 = vmul.f32 %v3893, 1.442695
    %v3922 = vpow.pop %v3921
    %v3923 = vmul.f32 %v3894, 1.442695
    %v3924 = vpow.pop %v3923
    %v3925 = vmul.f32 %v3895, 1.442695
    %v3926 = vpow.pop %v3925
    %v3927 = vmul.f32 %v3896, 1.442695
    %v3928 = vpow.pop %v3927
    %v3929 = vsel %vm69, %v3898, 0.0
    %3930 = vadd.xlane.f32.xlu0 %v3929
    %v3931 = vpop.xlane.xlu0 %3930
    %v3932 = vsel %vm69, %v3900, 0.0
    %3933 = vadd.xlane.f32.xlu0 %v3932
    %v3934 = vpop.xlane.xlu0 %3933
    %v3935 = vsel %vm69, %v3902, 0.0
    %3936 = vadd.xlane.f32.xlu0 %v3935
    %v3937 = vpop.xlane.xlu0 %3936
    %v3938 = vsel %vm69, %v3904, 0.0
    %3939 = vadd.xlane.f32.xlu0 %v3938
    %v3940 = vpop.xlane.xlu0 %3939
    %v3941 = vsel %vm69, %v3906, 0.0
    %3942 = vadd.xlane.f32.xlu0 %v3941
    %v3943 = vpop.xlane.xlu0 %3942
    %v3944 = vsel %vm69, %v3908, 0.0
    %3945 = vadd.xlane.f32.xlu0 %v3944
    %v3946 = vpop.xlane.xlu0 %3945
    %v3947 = vsel %vm69, %v3910, 0.0
    %3948 = vadd.xlane.f32.xlu0 %v3947
    %v3949 = vpop.xlane.xlu0 %3948
    %v3950 = vsel %vm69, %v3912, 0.0
    %3951 = vadd.xlane.f32.xlu0 %v3950
    %v3952 = vpop.xlane.xlu0 %3951
    %v3953 = vsel %vm69, %v3914, 0.0
    %3954 = vadd.xlane.f32.xlu0 %v3953
    %v3955 = vpop.xlane.xlu0 %3954
    %v3956 = vsel %vm69, %v3916, 0.0
    %3957 = vadd.xlane.f32.xlu0 %v3956
    %v3958 = vpop.xlane.xlu0 %3957
    %v3959 = vsel %vm69, %v3918, 0.0
    %3960 = vadd.xlane.f32.xlu0 %v3959
    %v3961 = vpop.xlane.xlu0 %3960
    %v3962 = vsel %vm69, %v3920, 0.0
    %3963 = vadd.xlane.f32.xlu0 %v3962
    %v3964 = vpop.xlane.xlu0 %3963
    %v3965 = vsel %vm69, %v3922, 0.0
    %3966 = vadd.xlane.f32.xlu0 %v3965
    %v3967 = vpop.xlane.xlu0 %3966
    %v3968 = vsel %vm69, %v3924, 0.0
    %3969 = vadd.xlane.f32.xlu0 %v3968
    %v3970 = vpop.xlane.xlu0 %3969
    %v3971 = vsel %vm69, %v3926, 0.0
    %3972 = vadd.xlane.f32.xlu0 %v3971
    %v3973 = vpop.xlane.xlu0 %3972
    %v3974 = vsel %vm69, %v3928, 0.0
    %3975 = vadd.xlane.f32.xlu0 %v3974
    %v3976 = vpop.xlane.xlu0 %3975
    %v3977 = vrcp.pop %v3931
    %v3978 = vrcp.pop %v3934
    %v3979 = vrcp.pop %v3937
    %v3980 = vrcp.pop %v3940
    %v3981 = vrcp.pop %v3943
    %v3982 = vrcp.pop %v3946
    %v3983 = vrcp.pop %v3949
    %v3984 = vrcp.pop %v3952
    %v3985 = vrcp.pop %v3955
    %v3986 = vrcp.pop %v3958
    %v3987 = vrcp.pop %v3961
    %v3988 = vrcp.pop %v3964
    %v3989 = vrcp.pop %v3967
    %v3990 = vrcp.pop %v3970
    %v3991 = vrcp.pop %v3973
    %v3992 = vrcp.pop %v3976
    %v3993 = vmul.f32 %v3898, %v3977
    %v3994 = vmul.f32 %v3900, %v3978
    %v3995 = vmul.f32 %v3902, %v3979
    %v3996 = vmul.f32 %v3904, %v3980
    %v3997 = vmul.f32 %v3906, %v3981
    %v3998 = vmul.f32 %v3908, %v3982
    %v3999 = vmul.f32 %v3910, %v3983
    %v4000 = vmul.f32 %v3912, %v3984
    %v4001 = vmul.f32 %v3914, %v3985
    %v4002 = vmul.f32 %v3916, %v3986
    %v4003 = vmul.f32 %v3918, %v3987
    %v4004 = vmul.f32 %v3920, %v3988
    %v4005 = vmul.f32 %v3922, %v3989
    %v4006 = vmul.f32 %v3924, %v3990
    %v4007 = vmul.f32 %v3926, %v3991
    %v4008 = vmul.f32 %v3928, %v3992
    %v4010 = vsel %vm69, %v3993, 0
    %v4013 = vsel %vm69, %v3994, 0
    %4015 = vmatprep.subr.mxu0 0.0
    %4016 = vmatpush1.msra.mxu0 %v430
    %4017 = vmatprep.subr.mxu0 0.0
    %4018 = vmatpush1.msra.mxu0 %v435
    %4019 = vmatprep.subr.mxu0 0.0
    %4020 = vmatpush1.msra.mxu0 0.0
    %4021 = vmatprep.subr.mxu0 0.0
    %4022 = vmatpush1.msra.mxu0 0.0
    %4023 = vmatprep.subr.mxu0 0.0
    %4024 = vmatpush1.msra.mxu0 0.0
    %4025 = vmatprep.subr.mxu0 0.0
    %4026 = vmatpush1.msra.mxu0 0.0
    %4027 = vmatprep.subr.mxu0 0.0
    %4028 = vmatpush1.msra.mxu0 0.0
    %4029 = vmatprep.subr.mxu0 0.0
    %4030 = vmatpush1.msra.mxu0 0.0
    %4031 = vmatprep.subr.mxu0 0.0
    %4032 = vmatpush1.msra.mxu0 0.0
    %4033 = vmatprep.subr.mxu0 0.0
    %4034 = vmatpush1.msra.mxu0 0.0
    %4035 = vmatprep.subr.mxu0 0.0
    %4036 = vmatpush1.msra.mxu0 0.0
    %4037 = vmatprep.subr.mxu0 0.0
    %4038 = vmatpush1.msra.mxu0 0.0
    %4039 = vmatprep.subr.mxu0 0.0
    %4040 = vmatpush1.msra.mxu0 0.0
    %4041 = vmatprep.subr.mxu0 0.0
    %4042 = vmatpush1.msra.mxu0 0.0
    %4043 = vmatprep.subr.mxu0 0.0
    %4044 = vmatpush1.msra.mxu0 0.0
    %4045 = vmatprep.subr.mxu0 0.0
    %4046 = vmatpush1.msra.mxu0 0.0
    %4047 = vmatprep.subr.mxu0 0.0
    %4048 = vmatpush1.msra.mxu0 0.0
    %4049 = vmatprep.subr.mxu0 0.0
    %4050 = vmatpush1.msra.mxu0 0.0
    %4051 = vmatprep.subr.mxu0 0.0
    %4052 = vmatpush1.msra.mxu0 0.0
    %4053 = vmatprep.subr.mxu0 0.0
    %4054 = vmatpush1.msra.mxu0 0.0
    %4055 = vmatprep.subr.mxu0 0.0
    %4056 = vmatpush1.msra.mxu0 0.0
    %4057 = vmatprep.subr.mxu0 0.0
    %4058 = vmatpush1.msra.mxu0 0.0
    %4059 = vmatprep.subr.mxu0 0.0
    %4060 = vmatpush1.msra.mxu0 0.0
    %4061 = vmatprep.subr.mxu0 0.0
    %4062 = vmatpush1.msra.mxu0 0.0
    %4063 = vmatprep.subr.mxu0 0.0
    %4064 = vmatpush1.msra.mxu0 0.0
    %4065 = vmatprep.subr.mxu0 0.0
    %4066 = vmatpush1.msra.mxu0 0.0
    %4067 = vmatprep.subr.mxu0 0.0
    %4068 = vmatpush1.msra.mxu0 0.0
    %4069 = vmatprep.subr.mxu0 0.0
    %4070 = vmatpush1.msra.mxu0 0.0
    %4071 = vmatprep.subr.mxu0 0.0
    %4072 = vmatpush1.msra.mxu0 0.0
    %4073 = vmatprep.subr.mxu0 0.0
    %4074 = vmatpush1.msra.mxu0 0.0
    %4075 = vmatprep.subr.mxu0 0.0
    %4076 = vmatpush1.msra.mxu0 0.0
    %4077 = vmatprep.subr.mxu0 0.0
    %4078 = vmatpush1.msra.mxu0 0.0
    %4079 = vmatprep.mubr.f32.mxu0 0.0
    %4080 = vmatmul.mubr.f32.gmra.mrb[0].mxu0 %v4010
    %v4081 = vpop.f32.mrb[0].mxu0
    %v4082 = vadd.f32 0.0, %v4081
    %v4083 = vpop.f32.mrb[0].mxu0
    %4084 = vmatprep.mubr.f32.mxu0 0.0
    %4085 = vmatmul.mubr.f32.gmra.mrb[0].mxu0 %v4013
    %v4086 = vpop.f32.mrb[0].mxu0
    %v4087 = vadd.f32 0.0, %v4086
    %v4088 = vpop.f32.mrb[0].mxu0
    %4089 = vdwg.mxu0
    %4090 = vxpose.xlu0.b32.start [1/16] %v3993, 128
    %4091 = vxpose.xlu0.b32.cont [2/16] %v3994, 128
    %4092 = vxpose.xlu0.b32.cont [3/16] 0.0, 128
    %4093 = vxpose.xlu0.b32.cont [4/16] 0.0, 128
    %4094 = vxpose.xlu0.b32.cont [5/16] 0.0, 128
    %4095 = vxpose.xlu0.b32.cont [6/16] 0.0, 128
    %4096 = vxpose.xlu0.b32.cont [7/16] 0.0, 128
    %4097 = vxpose.xlu0.b32.cont [8/16] 0.0, 128
    %4098 = vxpose.xlu0.b32.cont [9/16] 0.0, 128
    %4099 = vxpose.xlu0.b32.cont [10/16] 0.0, 128
    %4100 = vxpose.xlu0.b32.cont [11/16] 0.0, 128
    %4101 = vxpose.xlu0.b32.cont [12/16] 0.0, 128
    %4102 = vxpose.xlu0.b32.cont [13/16] 0.0, 128
    %4103 = vxpose.xlu0.b32.cont [14/16] 0.0, 128
    %4104 = vxpose.xlu0.b32.cont [15/16] 0.0, 128
    %4105 = vxpose.xlu0.b32.end [16/16] 0.0, 128
    %v4106 = vpop.trf.xlu0
    %v4107 = vpop.trf.xlu0
    %v4108 = vpop.trf.xlu0
    %v4109 = vpop.trf.xlu0
    %v4110 = vpop.trf.xlu0
    %v4111 = vpop.trf.xlu0
    %v4112 = vpop.trf.xlu0
    %v4113 = vpop.trf.xlu0
    %v4114 = vpop.trf.xlu0
    %v4115 = vpop.trf.xlu0
    %v4116 = vpop.trf.xlu0
    %v4117 = vpop.trf.xlu0
    %v4118 = vpop.trf.xlu0
    %v4119 = vpop.trf.xlu0
    %v4120 = vpop.trf.xlu0
    %v4121 = vpop.trf.xlu0
    %v4123 = vsel %vm69, %v4106, 0
    %v4126 = vsel %vm69, %v4107, 0
    %4128 = vmatprep.subr.mxu0 0.0
    %4129 = vmatpush1.msra.mxu0 %v238
    %4130 = vmatprep.subr.mxu0 0.0
    %4131 = vmatpush1.msra.mxu0 %v243
    %4132 = vmatprep.subr.mxu0 0.0
    %4133 = vmatpush1.msra.mxu0 0.0
    %4134 = vmatprep.subr.mxu0 0.0
    %4135 = vmatpush1.msra.mxu0 0.0
    %4136 = vmatprep.subr.mxu0 0.0
    %4137 = vmatpush1.msra.mxu0 0.0
    %4138 = vmatprep.subr.mxu0 0.0
    %4139 = vmatpush1.msra.mxu0 0.0
    %4140 = vmatprep.subr.mxu0 0.0
    %4141 = vmatpush1.msra.mxu0 0.0
    %4142 = vmatprep.subr.mxu0 0.0
    %4143 = vmatpush1.msra.mxu0 0.0
    %4144 = vmatprep.subr.mxu0 0.0
    %4145 = vmatpush1.msra.mxu0 0.0
    %4146 = vmatprep.subr.mxu0 0.0
    %4147 = vmatpush1.msra.mxu0 0.0
    %4148 = vmatprep.subr.mxu0 0.0
    %4149 = vmatpush1.msra.mxu0 0.0
    %4150 = vmatprep.subr.mxu0 0.0
    %4151 = vmatpush1.msra.mxu0 0.0
    %4152 = vmatprep.subr.mxu0 0.0
    %4153 = vmatpush1.msra.mxu0 0.0
    %4154 = vmatprep.subr.mxu0 0.0
    %4155 = vmatpush1.msra.mxu0 0.0
    %4156 = vmatprep.subr.mxu0 0.0
    %4157 = vmatpush1.msra.mxu0 0.0
    %4158 = vmatprep.subr.mxu0 0.0
    %4159 = vmatpush1.msra.mxu0 0.0
    %4160 = vmatprep.subr.mxu0 0.0
    %4161 = vmatpush1.msra.mxu0 0.0
    %4162 = vmatprep.subr.mxu0 0.0
    %4163 = vmatpush1.msra.mxu0 0.0
    %4164 = vmatprep.subr.mxu0 0.0
    %4165 = vmatpush1.msra.mxu0 0.0
    %4166 = vmatprep.subr.mxu0 0.0
    %4167 = vmatpush1.msra.mxu0 0.0
    %4168 = vmatprep.subr.mxu0 0.0
    %4169 = vmatpush1.msra.mxu0 0.0
    %4170 = vmatprep.subr.mxu0 0.0
    %4171 = vmatpush1.msra.mxu0 0.0
    %4172 = vmatprep.subr.mxu0 0.0
    %4173 = vmatpush1.msra.mxu0 0.0
    %4174 = vmatprep.subr.mxu0 0.0
    %4175 = vmatpush1.msra.mxu0 0.0
    %4176 = vmatprep.subr.mxu0 0.0
    %4177 = vmatpush1.msra.mxu0 0.0
    %4178 = vmatprep.subr.mxu0 0.0
    %4179 = vmatpush1.msra.mxu0 0.0
    %4180 = vmatprep.subr.mxu0 0.0
    %4181 = vmatpush1.msra.mxu0 0.0
    %4182 = vmatprep.subr.mxu0 0.0
    %4183 = vmatpush1.msra.mxu0 0.0
    %4184 = vmatprep.subr.mxu0 0.0
    %4185 = vmatpush1.msra.mxu0 0.0
    %4186 = vmatprep.subr.mxu0 0.0
    %4187 = vmatpush1.msra.mxu0 0.0
    %4188 = vmatprep.subr.mxu0 0.0
    %4189 = vmatpush1.msra.mxu0 0.0
    %4190 = vmatprep.subr.mxu0 0.0
    %4191 = vmatpush1.msra.mxu0 0.0
    %4192 = vmatprep.mubr.f32.mxu0 0.0
    %4193 = vmatmul.mubr.f32.gmra.mrb[0].mxu0 %v4123
    %v4194 = vpop.f32.mrb[0].mxu0
    %v4195 = vadd.f32 0.0, %v4194
    %v4196 = vpop.f32.mrb[0].mxu0
    %4197 = vmatprep.mubr.f32.mxu0 0.0
    %4198 = vmatmul.mubr.f32.gmra.mrb[0].mxu0 %v4126
    %v4199 = vpop.f32.mrb[0].mxu0
    %v4200 = vadd.f32 0.0, %v4199
    %v4201 = vpop.f32.mrb[0].mxu0
    %4202 = vdwg.mxu0
    %4205 = vrot.lane.b32.xlu0 %v430, 96
    %v4206 = vpop.permute.xlu0 %4205
    %4207 = vrot.lane.b32.xlu0 %v435, 96
    %v4208 = vpop.permute.xlu0 %4207
    %v4212 = vsel %vm69, %v3995, 0
    %v4215 = vsel %vm69, %v3996, 0
    %4217 = vmatprep.subr.mxu0 0.0
    %4218 = vmatpush1.msra.mxu0 %v4206
    %4219 = vmatprep.subr.mxu0 0.0
    %4220 = vmatpush1.msra.mxu0 %v4208
    %4221 = vmatprep.subr.mxu0 0.0
    %4222 = vmatpush1.msra.mxu0 0.0
    %4223 = vmatprep.subr.mxu0 0.0
    %4224 = vmatpush1.msra.mxu0 0.0
    %4225 = vmatprep.subr.mxu0 0.0
    %4226 = vmatpush1.msra.mxu0 0.0
    %4227 = vmatprep.subr.mxu0 0.0
    %4228 = vmatpush1.msra.mxu0 0.0
    %4229 = vmatprep.subr.mxu0 0.0
    %4230 = vmatpush1.msra.mxu0 0.0
    %4231 = vmatprep.subr.mxu0 0.0
    %4232 = vmatpush1.msra.mxu0 0.0
    %4233 = vmatprep.subr.mxu0 0.0
    %4234 = vmatpush1.msra.mxu0 0.0
    %4235 = vmatprep.subr.mxu0 0.0
    %4236 = vmatpush1.msra.mxu0 0.0
    %4237 = vmatprep.subr.mxu0 0.0
    %4238 = vmatpush1.msra.mxu0 0.0
    %4239 = vmatprep.subr.mxu0 0.0
    %4240 = vmatpush1.msra.mxu0 0.0
    %4241 = vmatprep.subr.mxu0 0.0
    %4242 = vmatpush1.msra.mxu0 0.0
    %4243 = vmatprep.subr.mxu0 0.0
    %4244 = vmatpush1.msra.mxu0 0.0
    %4245 = vmatprep.subr.mxu0 0.0
    %4246 = vmatpush1.msra.mxu0 0.0
    %4247 = vmatprep.subr.mxu0 0.0
    %4248 = vmatpush1.msra.mxu0 0.0
    %4249 = vmatprep.subr.mxu0 0.0
    %4250 = vmatpush1.msra.mxu0 0.0
    %4251 = vmatprep.subr.mxu0 0.0
    %4252 = vmatpush1.msra.mxu0 0.0
    %4253 = vmatprep.subr.mxu0 0.0
    %4254 = vmatpush1.msra.mxu0 0.0
    %4255 = vmatprep.subr.mxu0 0.0
    %4256 = vmatpush1.msra.mxu0 0.0
    %4257 = vmatprep.subr.mxu0 0.0
    %4258 = vmatpush1.msra.mxu0 0.0
    %4259 = vmatprep.subr.mxu0 0.0
    %4260 = vmatpush1.msra.mxu0 0.0
    %4261 = vmatprep.subr.mxu0 0.0
    %4262 = vmatpush1.msra.mxu0 0.0
    %4263 = vmatprep.subr.mxu0 0.0
    %4264 = vmatpush1.msra.mxu0 0.0
    %4265 = vmatprep.subr.mxu0 0.0
    %4266 = vmatpush1.msra.mxu0 0.0
    %4267 = vmatprep.subr.mxu0 0.0
    %4268 = vmatpush1.msra.mxu0 0.0
    %4269 = vmatprep.subr.mxu0 0.0
    %4270 = vmatpush1.msra.mxu0 0.0
    %4271 = vmatprep.subr.mxu0 0.0
    %4272 = vmatpush1.msra.mxu0 0.0
    %4273 = vmatprep.subr.mxu0 0.0
    %4274 = vmatpush1.msra.mxu0 0.0
    %4275 = vmatprep.subr.mxu0 0.0
    %4276 = vmatpush1.msra.mxu0 0.0
    %4277 = vmatprep.subr.mxu0 0.0
    %4278 = vmatpush1.msra.mxu0 0.0
    %4279 = vmatprep.subr.mxu0 0.0
    %4280 = vmatpush1.msra.mxu0 0.0
    %4281 = vmatprep.mubr.f32.mxu0 0.0
    %4282 = vmatmul.mubr.f32.gmra.mrb[0].mxu0 %v4212
    %v4283 = vpop.f32.mrb[0].mxu0
    %v4284 = vadd.f32 0.0, %v4283
    %v4285 = vpop.f32.mrb[0].mxu0
    %4286 = vmatprep.mubr.f32.mxu0 0.0
    %4287 = vmatmul.mubr.f32.gmra.mrb[0].mxu0 %v4215
    %v4288 = vpop.f32.mrb[0].mxu0
    %v4289 = vadd.f32 0.0, %v4288
    %v4290 = vpop.f32.mrb[0].mxu0
    %4291 = vdwg.mxu0
    %4292 = vxpose.xlu0.b32.start [1/16] %v3995, 128
    %4293 = vxpose.xlu0.b32.cont [2/16] %v3996, 128
    %4294 = vxpose.xlu0.b32.cont [3/16] 0.0, 128
    %4295 = vxpose.xlu0.b32.cont [4/16] 0.0, 128
    %4296 = vxpose.xlu0.b32.cont [5/16] 0.0, 128
    %4297 = vxpose.xlu0.b32.cont [6/16] 0.0, 128
    %4298 = vxpose.xlu0.b32.cont [7/16] 0.0, 128
    %4299 = vxpose.xlu0.b32.cont [8/16] 0.0, 128
    %4300 = vxpose.xlu0.b32.cont [9/16] 0.0, 128
    %4301 = vxpose.xlu0.b32.cont [10/16] 0.0, 128
    %4302 = vxpose.xlu0.b32.cont [11/16] 0.0, 128
    %4303 = vxpose.xlu0.b32.cont [12/16] 0.0, 128
    %4304 = vxpose.xlu0.b32.cont [13/16] 0.0, 128
    %4305 = vxpose.xlu0.b32.cont [14/16] 0.0, 128
    %4306 = vxpose.xlu0.b32.cont [15/16] 0.0, 128
    %4307 = vxpose.xlu0.b32.end [16/16] 0.0, 128
    %v4308 = vpop.trf.xlu0
    %v4309 = vpop.trf.xlu0
    %v4310 = vpop.trf.xlu0
    %v4311 = vpop.trf.xlu0
    %v4312 = vpop.trf.xlu0
    %v4313 = vpop.trf.xlu0
    %v4314 = vpop.trf.xlu0
    %v4315 = vpop.trf.xlu0
    %v4316 = vpop.trf.xlu0
    %v4317 = vpop.trf.xlu0
    %v4318 = vpop.trf.xlu0
    %v4319 = vpop.trf.xlu0
    %v4320 = vpop.trf.xlu0
    %v4321 = vpop.trf.xlu0
    %v4322 = vpop.trf.xlu0
    %v4323 = vpop.trf.xlu0
    %4326 = vrot.lane.b32.xlu0 %v238, 96
    %v4327 = vpop.permute.xlu0 %4326
    %4328 = vrot.lane.b32.xlu0 %v243, 96
    %v4329 = vpop.permute.xlu0 %4328
    %v4333 = vsel %vm69, %v4308, 0
    %v4336 = vsel %vm69, %v4309, 0
    %4338 = vmatprep.subr.mxu0 0.0
    %4339 = vmatpush1.msra.mxu0 %v4327
    %4340 = vmatprep.subr.mxu0 0.0
    %4341 = vmatpush1.msra.mxu0 %v4329
    %4342 = vmatprep.subr.mxu0 0.0
    %4343 = vmatpush1.msra.mxu0 0.0
    %4344 = vmatprep.subr.mxu0 0.0
    %4345 = vmatpush1.msra.mxu0 0.0
    %4346 = vmatprep.subr.mxu0 0.0
    %4347 = vmatpush1.msra.mxu0 0.0
    %4348 = vmatprep.subr.mxu0 0.0
    %4349 = vmatpush1.msra.mxu0 0.0
    %4350 = vmatprep.subr.mxu0 0.0
    %4351 = vmatpush1.msra.mxu0 0.0
    %4352 = vmatprep.subr.mxu0 0.0
    %4353 = vmatpush1.msra.mxu0 0.0
    %4354 = vmatprep.subr.mxu0 0.0
    %4355 = vmatpush1.msra.mxu0 0.0
    %4356 = vmatprep.subr.mxu0 0.0
    %4357 = vmatpush1.msra.mxu0 0.0
    %4358 = vmatprep.subr.mxu0 0.0
    %4359 = vmatpush1.msra.mxu0 0.0
    %4360 = vmatprep.subr.mxu0 0.0
    %4361 = vmatpush1.msra.mxu0 0.0
    %4362 = vmatprep.subr.mxu0 0.0
    %4363 = vmatpush1.msra.mxu0 0.0
    %4364 = vmatprep.subr.mxu0 0.0
    %4365 = vmatpush1.msra.mxu0 0.0
    %4366 = vmatprep.subr.mxu0 0.0
    %4367 = vmatpush1.msra.mxu0 0.0
    %4368 = vmatprep.subr.mxu0 0.0
    %4369 = vmatpush1.msra.mxu0 0.0
    %4370 = vmatprep.subr.mxu0 0.0
    %4371 = vmatpush1.msra.mxu0 0.0
    %4372 = vmatprep.subr.mxu0 0.0
    %4373 = vmatpush1.msra.mxu0 0.0
    %4374 = vmatprep.subr.mxu0 0.0
    %4375 = vmatpush1.msra.mxu0 0.0
    %4376 = vmatprep.subr.mxu0 0.0
    %4377 = vmatpush1.msra.mxu0 0.0
    %4378 = vmatprep.subr.mxu0 0.0
    %4379 = vmatpush1.msra.mxu0 0.0
    %4380 = vmatprep.subr.mxu0 0.0
    %4381 = vmatpush1.msra.mxu0 0.0
    %4382 = vmatprep.subr.mxu0 0.0
    %4383 = vmatpush1.msra.mxu0 0.0
    %4384 = vmatprep.subr.mxu0 0.0
    %4385 = vmatpush1.msra.mxu0 0.0
    %4386 = vmatprep.subr.mxu0 0.0
    %4387 = vmatpush1.msra.mxu0 0.0
    %4388 = vmatprep.subr.mxu0 0.0
    %4389 = vmatpush1.msra.mxu0 0.0
    %4390 = vmatprep.subr.mxu0 0.0
    %4391 = vmatpush1.msra.mxu0 0.0
    %4392 = vmatprep.subr.mxu0 0.0
    %4393 = vmatpush1.msra.mxu0 0.0
    %4394 = vmatprep.subr.mxu0 0.0
    %4395 = vmatpush1.msra.mxu0 0.0
    %4396 = vmatprep.subr.mxu0 0.0
    %4397 = vmatpush1.msra.mxu0 0.0
    %4398 = vmatprep.subr.mxu0 0.0
    %4399 = vmatpush1.msra.mxu0 0.0
    %4400 = vmatprep.subr.mxu0 0.0
    %4401 = vmatpush1.msra.mxu0 0.0
    %4402 = vmatprep.mubr.f32.mxu0 0.0
    %4403 = vmatmul.mubr.f32.gmra.mrb[0].mxu0 %v4333
    %v4404 = vpop.f32.mrb[0].mxu0
    %v4405 = vadd.f32 0.0, %v4404
    %v4406 = vpop.f32.mrb[0].mxu0
    %4407 = vmatprep.mubr.f32.mxu0 0.0
    %4408 = vmatmul.mubr.f32.gmra.mrb[0].mxu0 %v4336
    %v4409 = vpop.f32.mrb[0].mxu0
    %v4410 = vadd.f32 0.0, %v4409
    %v4411 = vpop.f32.mrb[0].mxu0
    %4412 = vdwg.mxu0
    %4413 = vrot.lane.b32.xlu0 %v430, 64
    %v4414 = vpop.permute.xlu0 %4413
    %4415 = vrot.lane.b32.xlu0 %v435, 64
    %v4416 = vpop.permute.xlu0 %4415
    %v4420 = vsel %vm69, %v3997, 0
    %v4423 = vsel %vm69, %v3998, 0
    %4425 = vmatprep.subr.mxu0 0.0
    %4426 = vmatpush1.msra.mxu0 %v4414
    %4427 = vmatprep.subr.mxu0 0.0
    %4428 = vmatpush1.msra.mxu0 %v4416
    %4429 = vmatprep.subr.mxu0 0.0
    %4430 = vmatpush1.msra.mxu0 0.0
    %4431 = vmatprep.subr.mxu0 0.0
    %4432 = vmatpush1.msra.mxu0 0.0
    %4433 = vmatprep.subr.mxu0 0.0
    %4434 = vmatpush1.msra.mxu0 0.0
    %4435 = vmatprep.subr.mxu0 0.0
    %4436 = vmatpush1.msra.mxu0 0.0
    %4437 = vmatprep.subr.mxu0 0.0
    %4438 = vmatpush1.msra.mxu0 0.0
    %4439 = vmatprep.subr.mxu0 0.0
    %4440 = vmatpush1.msra.mxu0 0.0
    %4441 = vmatprep.subr.mxu0 0.0
    %4442 = vmatpush1.msra.mxu0 0.0
    %4443 = vmatprep.subr.mxu0 0.0
    %4444 = vmatpush1.msra.mxu0 0.0
    %4445 = vmatprep.subr.mxu0 0.0
    %4446 = vmatpush1.msra.mxu0 0.0
    %4447 = vmatprep.subr.mxu0 0.0
    %4448 = vmatpush1.msra.mxu0 0.0
    %4449 = vmatprep.subr.mxu0 0.0
    %4450 = vmatpush1.msra.mxu0 0.0
    %4451 = vmatprep.subr.mxu0 0.0
    %4452 = vmatpush1.msra.mxu0 0.0
    %4453 = vmatprep.subr.mxu0 0.0
    %4454 = vmatpush1.msra.mxu0 0.0
    %4455 = vmatprep.subr.mxu0 0.0
    %4456 = vmatpush1.msra.mxu0 0.0
    %4457 = vmatprep.subr.mxu0 0.0
    %4458 = vmatpush1.msra.mxu0 0.0
    %4459 = vmatprep.subr.mxu0 0.0
    %4460 = vmatpush1.msra.mxu0 0.0
    %4461 = vmatprep.subr.mxu0 0.0
    %4462 = vmatpush1.msra.mxu0 0.0
    %4463 = vmatprep.subr.mxu0 0.0
    %4464 = vmatpush1.msra.mxu0 0.0
    %4465 = vmatprep.subr.mxu0 0.0
    %4466 = vmatpush1.msra.mxu0 0.0
    %4467 = vmatprep.subr.mxu0 0.0
    %4468 = vmatpush1.msra.mxu0 0.0
    %4469 = vmatprep.subr.mxu0 0.0
    %4470 = vmatpush1.msra.mxu0 0.0
    %4471 = vmatprep.subr.mxu0 0.0
    %4472 = vmatpush1.msra.mxu0 0.0
    %4473 = vmatprep.subr.mxu0 0.0
    %4474 = vmatpush1.msra.mxu0 0.0
    %4475 = vmatprep.subr.mxu0 0.0
    %4476 = vmatpush1.msra.mxu0 0.0
    %4477 = vmatprep.subr.mxu0 0.0
    %4478 = vmatpush1.msra.mxu0 0.0
    %4479 = vmatprep.subr.mxu0 0.0
    %4480 = vmatpush1.msra.mxu0 0.0
    %4481 = vmatprep.subr.mxu0 0.0
    %4482 = vmatpush1.msra.mxu0 0.0
    %4483 = vmatprep.subr.mxu0 0.0
    %4484 = vmatpush1.msra.mxu0 0.0
    %4485 = vmatprep.subr.mxu0 0.0
    %4486 = vmatpush1.msra.mxu0 0.0
    %4487 = vmatprep.subr.mxu0 0.0
    %4488 = vmatpush1.msra.mxu0 0.0
    %4489 = vmatprep.mubr.f32.mxu0 0.0
    %4490 = vmatmul.mubr.f32.gmra.mrb[0].mxu0 %v4420
    %v4491 = vpop.f32.mrb[0].mxu0
    %v4492 = vadd.f32 0.0, %v4491
    %v4493 = vpop.f32.mrb[0].mxu0
    %4494 = vmatprep.mubr.f32.mxu0 0.0
    %4495 = vmatmul.mubr.f32.gmra.mrb[0].mxu0 %v4423
    %v4496 = vpop.f32.mrb[0].mxu0
    %v4497 = vadd.f32 0.0, %v4496
    %v4498 = vpop.f32.mrb[0].mxu0
    %4499 = vdwg.mxu0
    %4500 = vxpose.xlu0.b32.start [1/16] %v3997, 128
    %4501 = vxpose.xlu0.b32.cont [2/16] %v3998, 128
    %4502 = vxpose.xlu0.b32.cont [3/16] 0.0, 128
    %4503 = vxpose.xlu0.b32.cont [4/16] 0.0, 128
    %4504 = vxpose.xlu0.b32.cont [5/16] 0.0, 128
    %4505 = vxpose.xlu0.b32.cont [6/16] 0.0, 128
    %4506 = vxpose.xlu0.b32.cont [7/16] 0.0, 128
    %4507 = vxpose.xlu0.b32.cont [8/16] 0.0, 128
    %4508 = vxpose.xlu0.b32.cont [9/16] 0.0, 128
    %4509 = vxpose.xlu0.b32.cont [10/16] 0.0, 128
    %4510 = vxpose.xlu0.b32.cont [11/16] 0.0, 128
    %4511 = vxpose.xlu0.b32.cont [12/16] 0.0, 128
    %4512 = vxpose.xlu0.b32.cont [13/16] 0.0, 128
    %4513 = vxpose.xlu0.b32.cont [14/16] 0.0, 128
    %4514 = vxpose.xlu0.b32.cont [15/16] 0.0, 128
    %4515 = vxpose.xlu0.b32.end [16/16] 0.0, 128
    %v4516 = vpop.trf.xlu0
    %v4517 = vpop.trf.xlu0
    %v4518 = vpop.trf.xlu0
    %v4519 = vpop.trf.xlu0
    %v4520 = vpop.trf.xlu0
    %v4521 = vpop.trf.xlu0
    %v4522 = vpop.trf.xlu0
    %v4523 = vpop.trf.xlu0
    %v4524 = vpop.trf.xlu0
    %v4525 = vpop.trf.xlu0
    %v4526 = vpop.trf.xlu0
    %v4527 = vpop.trf.xlu0
    %v4528 = vpop.trf.xlu0
    %v4529 = vpop.trf.xlu0
    %v4530 = vpop.trf.xlu0
    %v4531 = vpop.trf.xlu0
    %4532 = vrot.lane.b32.xlu0 %v238, 64
    %v4533 = vpop.permute.xlu0 %4532
    %4534 = vrot.lane.b32.xlu0 %v243, 64
    %v4535 = vpop.permute.xlu0 %4534
    %v4539 = vsel %vm69, %v4516, 0
    %v4542 = vsel %vm69, %v4517, 0
    %4544 = vmatprep.subr.mxu0 0.0
    %4545 = vmatpush1.msra.mxu0 %v4533
    %4546 = vmatprep.subr.mxu0 0.0
    %4547 = vmatpush1.msra.mxu0 %v4535
    %4548 = vmatprep.subr.mxu0 0.0
    %4549 = vmatpush1.msra.mxu0 0.0
    %4550 = vmatprep.subr.mxu0 0.0
    %4551 = vmatpush1.msra.mxu0 0.0
    %4552 = vmatprep.subr.mxu0 0.0
    %4553 = vmatpush1.msra.mxu0 0.0
    %4554 = vmatprep.subr.mxu0 0.0
    %4555 = vmatpush1.msra.mxu0 0.0
    %4556 = vmatprep.subr.mxu0 0.0
    %4557 = vmatpush1.msra.mxu0 0.0
    %4558 = vmatprep.subr.mxu0 0.0
    %4559 = vmatpush1.msra.mxu0 0.0
    %4560 = vmatprep.subr.mxu0 0.0
    %4561 = vmatpush1.msra.mxu0 0.0
    %4562 = vmatprep.subr.mxu0 0.0
    %4563 = vmatpush1.msra.mxu0 0.0
    %4564 = vmatprep.subr.mxu0 0.0
    %4565 = vmatpush1.msra.mxu0 0.0
    %4566 = vmatprep.subr.mxu0 0.0
    %4567 = vmatpush1.msra.mxu0 0.0
    %4568 = vmatprep.subr.mxu0 0.0
    %4569 = vmatpush1.msra.mxu0 0.0
    %4570 = vmatprep.subr.mxu0 0.0
    %4571 = vmatpush1.msra.mxu0 0.0
    %4572 = vmatprep.subr.mxu0 0.0
    %4573 = vmatpush1.msra.mxu0 0.0
    %4574 = vmatprep.subr.mxu0 0.0
    %4575 = vmatpush1.msra.mxu0 0.0
    %4576 = vmatprep.subr.mxu0 0.0
    %4577 = vmatpush1.msra.mxu0 0.0
    %4578 = vmatprep.subr.mxu0 0.0
    %4579 = vmatpush1.msra.mxu0 0.0
    %4580 = vmatprep.subr.mxu0 0.0
    %4581 = vmatpush1.msra.mxu0 0.0
    %4582 = vmatprep.subr.mxu0 0.0
    %4583 = vmatpush1.msra.mxu0 0.0
    %4584 = vmatprep.subr.mxu0 0.0
    %4585 = vmatpush1.msra.mxu0 0.0
    %4586 = vmatprep.subr.mxu0 0.0
    %4587 = vmatpush1.msra.mxu0 0.0
    %4588 = vmatprep.subr.mxu0 0.0
    %4589 = vmatpush1.msra.mxu0 0.0
    %4590 = vmatprep.subr.mxu0 0.0
    %4591 = vmatpush1.msra.mxu0 0.0
    %4592 = vmatprep.subr.mxu0 0.0
    %4593 = vmatpush1.msra.mxu0 0.0
    %4594 = vmatprep.subr.mxu0 0.0
    %4595 = vmatpush1.msra.mxu0 0.0
    %4596 = vmatprep.subr.mxu0 0.0
    %4597 = vmatpush1.msra.mxu0 0.0
    %4598 = vmatprep.subr.mxu0 0.0
    %4599 = vmatpush1.msra.mxu0 0.0
    %4600 = vmatprep.subr.mxu0 0.0
    %4601 = vmatpush1.msra.mxu0 0.0
    %4602 = vmatprep.subr.mxu0 0.0
    %4603 = vmatpush1.msra.mxu0 0.0
    %4604 = vmatprep.subr.mxu0 0.0
    %4605 = vmatpush1.msra.mxu0 0.0
    %4606 = vmatprep.subr.mxu0 0.0
    %4607 = vmatpush1.msra.mxu0 0.0
    %4608 = vmatprep.mubr.f32.mxu0 0.0
    %4609 = vmatmul.mubr.f32.gmra.mrb[0].mxu0 %v4539
    %v4610 = vpop.f32.mrb[0].mxu0
    %v4611 = vadd.f32 0.0, %v4610
    %v4612 = vpop.f32.mrb[0].mxu0
    %4613 = vmatprep.mubr.f32.mxu0 0.0
    %4614 = vmatmul.mubr.f32.gmra.mrb[0].mxu0 %v4542
    %v4615 = vpop.f32.mrb[0].mxu0
    %v4616 = vadd.f32 0.0, %v4615
    %v4617 = vpop.f32.mrb[0].mxu0
    %4618 = vdwg.mxu0
    %4619 = vrot.lane.b32.xlu0 %v430, 32
    %v4620 = vpop.permute.xlu0 %4619
    %4621 = vrot.lane.b32.xlu0 %v435, 32
    %v4622 = vpop.permute.xlu0 %4621
    %v4626 = vsel %vm69, %v3999, 0
    %v4629 = vsel %vm69, %v4000, 0
    %4631 = vmatprep.subr.mxu0 0.0
    %4632 = vmatpush1.msra.mxu0 %v4620
    %4633 = vmatprep.subr.mxu0 0.0
    %4634 = vmatpush1.msra.mxu0 %v4622
    %4635 = vmatprep.subr.mxu0 0.0
    %4636 = vmatpush1.msra.mxu0 0.0
    %4637 = vmatprep.subr.mxu0 0.0
    %4638 = vmatpush1.msra.mxu0 0.0
    %4639 = vmatprep.subr.mxu0 0.0
    %4640 = vmatpush1.msra.mxu0 0.0
    %4641 = vmatprep.subr.mxu0 0.0
    %4642 = vmatpush1.msra.mxu0 0.0
    %4643 = vmatprep.subr.mxu0 0.0
    %4644 = vmatpush1.msra.mxu0 0.0
    %4645 = vmatprep.subr.mxu0 0.0
    %4646 = vmatpush1.msra.mxu0 0.0
    %4647 = vmatprep.subr.mxu0 0.0
    %4648 = vmatpush1.msra.mxu0 0.0
    %4649 = vmatprep.subr.mxu0 0.0
    %4650 = vmatpush1.msra.mxu0 0.0
    %4651 = vmatprep.subr.mxu0 0.0
    %4652 = vmatpush1.msra.mxu0 0.0
    %4653 = vmatprep.subr.mxu0 0.0
    %4654 = vmatpush1.msra.mxu0 0.0
    %4655 = vmatprep.subr.mxu0 0.0
    %4656 = vmatpush1.msra.mxu0 0.0
    %4657 = vmatprep.subr.mxu0 0.0
    %4658 = vmatpush1.msra.mxu0 0.0
    %4659 = vmatprep.subr.mxu0 0.0
    %4660 = vmatpush1.msra.mxu0 0.0
    %4661 = vmatprep.subr.mxu0 0.0
    %4662 = vmatpush1.msra.mxu0 0.0
    %4663 = vmatprep.subr.mxu0 0.0
    %4664 = vmatpush1.msra.mxu0 0.0
    %4665 = vmatprep.subr.mxu0 0.0
    %4666 = vmatpush1.msra.mxu0 0.0
    %4667 = vmatprep.subr.mxu0 0.0
    %4668 = vmatpush1.msra.mxu0 0.0
    %4669 = vmatprep.subr.mxu0 0.0
    %4670 = vmatpush1.msra.mxu0 0.0
    %4671 = vmatprep.subr.mxu0 0.0
    %4672 = vmatpush1.msra.mxu0 0.0
    %4673 = vmatprep.subr.mxu0 0.0
    %4674 = vmatpush1.msra.mxu0 0.0
    %4675 = vmatprep.subr.mxu0 0.0
    %4676 = vmatpush1.msra.mxu0 0.0
    %4677 = vmatprep.subr.mxu0 0.0
    %4678 = vmatpush1.msra.mxu0 0.0
    %4679 = vmatprep.subr.mxu0 0.0
    %4680 = vmatpush1.msra.mxu0 0.0
    %4681 = vmatprep.subr.mxu0 0.0
    %4682 = vmatpush1.msra.mxu0 0.0
    %4683 = vmatprep.subr.mxu0 0.0
    %4684 = vmatpush1.msra.mxu0 0.0
    %4685 = vmatprep.subr.mxu0 0.0
    %4686 = vmatpush1.msra.mxu0 0.0
    %4687 = vmatprep.subr.mxu0 0.0
    %4688 = vmatpush1.msra.mxu0 0.0
    %4689 = vmatprep.subr.mxu0 0.0
    %4690 = vmatpush1.msra.mxu0 0.0
    %4691 = vmatprep.subr.mxu0 0.0
    %4692 = vmatpush1.msra.mxu0 0.0
    %4693 = vmatprep.subr.mxu0 0.0
    %4694 = vmatpush1.msra.mxu0 0.0
    %4695 = vmatprep.mubr.f32.mxu0 0.0
    %4696 = vmatmul.mubr.f32.gmra.mrb[0].mxu0 %v4626
    %v4697 = vpop.f32.mrb[0].mxu0
    %v4698 = vadd.f32 0.0, %v4697
    %v4699 = vpop.f32.mrb[0].mxu0
    %4700 = vmatprep.mubr.f32.mxu0 0.0
    %4701 = vmatmul.mubr.f32.gmra.mrb[0].mxu0 %v4629
    %v4702 = vpop.f32.mrb[0].mxu0
    %v4703 = vadd.f32 0.0, %v4702
    %v4704 = vpop.f32.mrb[0].mxu0
    %4705 = vdwg.mxu0
    %4706 = vxpose.xlu0.b32.start [1/16] %v3999, 128
    %4707 = vxpose.xlu0.b32.cont [2/16] %v4000, 128
    %4708 = vxpose.xlu0.b32.cont [3/16] 0.0, 128
    %4709 = vxpose.xlu0.b32.cont [4/16] 0.0, 128
    %4710 = vxpose.xlu0.b32.cont [5/16] 0.0, 128
    %4711 = vxpose.xlu0.b32.cont [6/16] 0.0, 128
    %4712 = vxpose.xlu0.b32.cont [7/16] 0.0, 128
    %4713 = vxpose.xlu0.b32.cont [8/16] 0.0, 128
    %4714 = vxpose.xlu0.b32.cont [9/16] 0.0, 128
    %4715 = vxpose.xlu0.b32.cont [10/16] 0.0, 128
    %4716 = vxpose.xlu0.b32.cont [11/16] 0.0, 128
    %4717 = vxpose.xlu0.b32.cont [12/16] 0.0, 128
    %4718 = vxpose.xlu0.b32.cont [13/16] 0.0, 128
    %4719 = vxpose.xlu0.b32.cont [14/16] 0.0, 128
    %4720 = vxpose.xlu0.b32.cont [15/16] 0.0, 128
    %4721 = vxpose.xlu0.b32.end [16/16] 0.0, 128
    %v4722 = vpop.trf.xlu0
    %v4723 = vpop.trf.xlu0
    %v4724 = vpop.trf.xlu0
    %v4725 = vpop.trf.xlu0
    %v4726 = vpop.trf.xlu0
    %v4727 = vpop.trf.xlu0
    %v4728 = vpop.trf.xlu0
    %v4729 = vpop.trf.xlu0
    %v4730 = vpop.trf.xlu0
    %v4731 = vpop.trf.xlu0
    %v4732 = vpop.trf.xlu0
    %v4733 = vpop.trf.xlu0
    %v4734 = vpop.trf.xlu0
    %v4735 = vpop.trf.xlu0
    %v4736 = vpop.trf.xlu0
    %v4737 = vpop.trf.xlu0
    %4738 = vrot.lane.b32.xlu0 %v238, 32
    %v4739 = vpop.permute.xlu0 %4738
    %4740 = vrot.lane.b32.xlu0 %v243, 32
    %v4741 = vpop.permute.xlu0 %4740
    %v4745 = vsel %vm69, %v4722, 0
    %v4748 = vsel %vm69, %v4723, 0
    %4750 = vmatprep.subr.mxu0 0.0
    %4751 = vmatpush1.msra.mxu0 %v4739
    %4752 = vmatprep.subr.mxu0 0.0
    %4753 = vmatpush1.msra.mxu0 %v4741
    %4754 = vmatprep.subr.mxu0 0.0
    %4755 = vmatpush1.msra.mxu0 0.0
    %4756 = vmatprep.subr.mxu0 0.0
    %4757 = vmatpush1.msra.mxu0 0.0
    %4758 = vmatprep.subr.mxu0 0.0
    %4759 = vmatpush1.msra.mxu0 0.0
    %4760 = vmatprep.subr.mxu0 0.0
    %4761 = vmatpush1.msra.mxu0 0.0
    %4762 = vmatprep.subr.mxu0 0.0
    %4763 = vmatpush1.msra.mxu0 0.0
    %4764 = vmatprep.subr.mxu0 0.0
    %4765 = vmatpush1.msra.mxu0 0.0
    %4766 = vmatprep.subr.mxu0 0.0
    %4767 = vmatpush1.msra.mxu0 0.0
    %4768 = vmatprep.subr.mxu0 0.0
    %4769 = vmatpush1.msra.mxu0 0.0
    %4770 = vmatprep.subr.mxu0 0.0
    %4771 = vmatpush1.msra.mxu0 0.0
    %4772 = vmatprep.subr.mxu0 0.0
    %4773 = vmatpush1.msra.mxu0 0.0
    %4774 = vmatprep.subr.mxu0 0.0
    %4775 = vmatpush1.msra.mxu0 0.0
    %4776 = vmatprep.subr.mxu0 0.0
    %4777 = vmatpush1.msra.mxu0 0.0
    %4778 = vmatprep.subr.mxu0 0.0
    %4779 = vmatpush1.msra.mxu0 0.0
    %4780 = vmatprep.subr.mxu0 0.0
    %4781 = vmatpush1.msra.mxu0 0.0
    %4782 = vmatprep.subr.mxu0 0.0
    %4783 = vmatpush1.msra.mxu0 0.0
    %4784 = vmatprep.subr.mxu0 0.0
    %4785 = vmatpush1.msra.mxu0 0.0
    %4786 = vmatprep.subr.mxu0 0.0
    %4787 = vmatpush1.msra.mxu0 0.0
    %4788 = vmatprep.subr.mxu0 0.0
    %4789 = vmatpush1.msra.mxu0 0.0
    %4790 = vmatprep.subr.mxu0 0.0
    %4791 = vmatpush1.msra.mxu0 0.0
    %4792 = vmatprep.subr.mxu0 0.0
    %4793 = vmatpush1.msra.mxu0 0.0
    %4794 = vmatprep.subr.mxu0 0.0
    %4795 = vmatpush1.msra.mxu0 0.0
    %4796 = vmatprep.subr.mxu0 0.0
    %4797 = vmatpush1.msra.mxu0 0.0
    %4798 = vmatprep.subr.mxu0 0.0
    %4799 = vmatpush1.msra.mxu0 0.0
    %4800 = vmatprep.subr.mxu0 0.0
    %4801 = vmatpush1.msra.mxu0 0.0
    %4802 = vmatprep.subr.mxu0 0.0
    %4803 = vmatpush1.msra.mxu0 0.0
    %4804 = vmatprep.subr.mxu0 0.0
    %4805 = vmatpush1.msra.mxu0 0.0
    %4806 = vmatprep.subr.mxu0 0.0
    %4807 = vmatpush1.msra.mxu0 0.0
    %4808 = vmatprep.subr.mxu0 0.0
    %4809 = vmatpush1.msra.mxu0 0.0
    %4810 = vmatprep.subr.mxu0 0.0
    %4811 = vmatpush1.msra.mxu0 0.0
    %4812 = vmatprep.subr.mxu0 0.0
    %4813 = vmatpush1.msra.mxu0 0.0
    %4814 = vmatprep.mubr.f32.mxu0 0.0
    %4815 = vmatmul.mubr.f32.gmra.mrb[0].mxu0 %v4745
    %v4816 = vpop.f32.mrb[0].mxu0
    %v4817 = vadd.f32 0.0, %v4816
    %v4818 = vpop.f32.mrb[0].mxu0
    %4819 = vmatprep.mubr.f32.mxu0 0.0
    %4820 = vmatmul.mubr.f32.gmra.mrb[0].mxu0 %v4748
    %v4821 = vpop.f32.mrb[0].mxu0
    %v4822 = vadd.f32 0.0, %v4821
    %v4823 = vpop.f32.mrb[0].mxu0
    %4824 = vdwg.mxu0
    %4827 = vrot.lane.b32.xlu0 %v4284, 32
    %v4828 = vpop.permute.xlu0 %4827
    %4829 = vrot.lane.b32.xlu0 %v4289, 32
    %v4830 = vpop.permute.xlu0 %4829
    %4835 = vrot.lane.b32.xlu0 %v4492, 64
    %v4836 = vpop.permute.xlu0 %4835
    %4837 = vrot.lane.b32.xlu0 %v4497, 64
    %v4838 = vpop.permute.xlu0 %4837
    %4843 = vrot.lane.b32.xlu0 %v4698, 96
    %v4844 = vpop.permute.xlu0 %4843
    %4845 = vrot.lane.b32.xlu0 %v4703, 96
    %v4846 = vpop.permute.xlu0 %4845
    %v4849 = vsel %vm448, %v4082, %v4828
    %v4850 = vsel %vm448, %v4087, %v4830
    %vm4851 = vcmask 523264
    %v4852 = vsel %vm4851, %v4849, %v4836
    %v4853 = vsel %vm4851, %v4850, %v4838
    %vm4854 = vcmask 785408
    %v4855 = vsel %vm4854, %v4852, %v4844
    %v4856 = vsel %vm4854, %v4853, %v4846
    %4859 = vrot.lane.b32.xlu0 %v4405, 32
    %v4860 = vpop.permute.xlu0 %4859
    %4861 = vrot.lane.b32.xlu0 %v4410, 32
    %v4862 = vpop.permute.xlu0 %4861
    %4867 = vrot.lane.b32.xlu0 %v4611, 64
    %v4868 = vpop.permute.xlu0 %4867
    %4869 = vrot.lane.b32.xlu0 %v4616, 64
    %v4870 = vpop.permute.xlu0 %4869
    %4875 = vrot.lane.b32.xlu0 %v4817, 96
    %v4876 = vpop.permute.xlu0 %4875
    %4877 = vrot.lane.b32.xlu0 %v4822, 96
    %v4878 = vpop.permute.xlu0 %4877
    %v4881 = vsel %vm448, %v4195, %v4860
    %v4882 = vsel %vm448, %v4200, %v4862
    %v4883 = vsel %vm4851, %v4881, %v4868
    %v4884 = vsel %vm4851, %v4882, %v4870
    %v4885 = vsel %vm4854, %v4883, %v4876
    %v4886 = vsel %vm4854, %v4884, %v4878
    %v4888 = vsel %vm69, %v4001, 0
    %v4891 = vsel %vm69, %v4002, 0
    %4893 = vmatprep.subr.mxu0 0.0
    %4894 = vmatpush1.msra.mxu0 %v440
    %4895 = vmatprep.subr.mxu0 0.0
    %4896 = vmatpush1.msra.mxu0 %v445
    %4897 = vmatprep.subr.mxu0 0.0
    %4898 = vmatpush1.msra.mxu0 0.0
    %4899 = vmatprep.subr.mxu0 0.0
    %4900 = vmatpush1.msra.mxu0 0.0
    %4901 = vmatprep.subr.mxu0 0.0
    %4902 = vmatpush1.msra.mxu0 0.0
    %4903 = vmatprep.subr.mxu0 0.0
    %4904 = vmatpush1.msra.mxu0 0.0
    %4905 = vmatprep.subr.mxu0 0.0
    %4906 = vmatpush1.msra.mxu0 0.0
    %4907 = vmatprep.subr.mxu0 0.0
    %4908 = vmatpush1.msra.mxu0 0.0
    %4909 = vmatprep.subr.mxu0 0.0
    %4910 = vmatpush1.msra.mxu0 0.0
    %4911 = vmatprep.subr.mxu0 0.0
    %4912 = vmatpush1.msra.mxu0 0.0
    %4913 = vmatprep.subr.mxu0 0.0
    %4914 = vmatpush1.msra.mxu0 0.0
    %4915 = vmatprep.subr.mxu0 0.0
    %4916 = vmatpush1.msra.mxu0 0.0
    %4917 = vmatprep.subr.mxu0 0.0
    %4918 = vmatpush1.msra.mxu0 0.0
    %4919 = vmatprep.subr.mxu0 0.0
    %4920 = vmatpush1.msra.mxu0 0.0
    %4921 = vmatprep.subr.mxu0 0.0
    %4922 = vmatpush1.msra.mxu0 0.0
    %4923 = vmatprep.subr.mxu0 0.0
    %4924 = vmatpush1.msra.mxu0 0.0
    %4925 = vmatprep.subr.mxu0 0.0
    %4926 = vmatpush1.msra.mxu0 0.0
    %4927 = vmatprep.subr.mxu0 0.0
    %4928 = vmatpush1.msra.mxu0 0.0
    %4929 = vmatprep.subr.mxu0 0.0
    %4930 = vmatpush1.msra.mxu0 0.0
    %4931 = vmatprep.subr.mxu0 0.0
    %4932 = vmatpush1.msra.mxu0 0.0
    %4933 = vmatprep.subr.mxu0 0.0
    %4934 = vmatpush1.msra.mxu0 0.0
    %4935 = vmatprep.subr.mxu0 0.0
    %4936 = vmatpush1.msra.mxu0 0.0
    %4937 = vmatprep.subr.mxu0 0.0
    %4938 = vmatpush1.msra.mxu0 0.0
    %4939 = vmatprep.subr.mxu0 0.0
    %4940 = vmatpush1.msra.mxu0 0.0
    %4941 = vmatprep.subr.mxu0 0.0
    %4942 = vmatpush1.msra.mxu0 0.0
    %4943 = vmatprep.subr.mxu0 0.0
    %4944 = vmatpush1.msra.mxu0 0.0
    %4945 = vmatprep.subr.mxu0 0.0
    %4946 = vmatpush1.msra.mxu0 0.0
    %4947 = vmatprep.subr.mxu0 0.0
    %4948 = vmatpush1.msra.mxu0 0.0
    %4949 = vmatprep.subr.mxu0 0.0
    %4950 = vmatpush1.msra.mxu0 0.0
    %4951 = vmatprep.subr.mxu0 0.0
    %4952 = vmatpush1.msra.mxu0 0.0
    %4953 = vmatprep.subr.mxu0 0.0
    %4954 = vmatpush1.msra.mxu0 0.0
    %4955 = vmatprep.subr.mxu0 0.0
    %4956 = vmatpush1.msra.mxu0 0.0
    %4957 = vmatprep.mubr.f32.mxu0 0.0
    %4958 = vmatmul.mubr.f32.gmra.mrb[0].mxu0 %v4888
    %v4959 = vpop.f32.mrb[0].mxu0
    %v4960 = vadd.f32 0.0, %v4959
    %v4961 = vpop.f32.mrb[0].mxu0
    %4962 = vmatprep.mubr.f32.mxu0 0.0
    %4963 = vmatmul.mubr.f32.gmra.mrb[0].mxu0 %v4891
    %v4964 = vpop.f32.mrb[0].mxu0
    %v4965 = vadd.f32 0.0, %v4964
    %v4966 = vpop.f32.mrb[0].mxu0
    %4967 = vdwg.mxu0
    %4968 = vxpose.xlu0.b32.start [1/16] %v4001, 128
    %4969 = vxpose.xlu0.b32.cont [2/16] %v4002, 128
    %4970 = vxpose.xlu0.b32.cont [3/16] 0.0, 128
    %4971 = vxpose.xlu0.b32.cont [4/16] 0.0, 128
    %4972 = vxpose.xlu0.b32.cont [5/16] 0.0, 128
    %4973 = vxpose.xlu0.b32.cont [6/16] 0.0, 128
    %4974 = vxpose.xlu0.b32.cont [7/16] 0.0, 128
    %4975 = vxpose.xlu0.b32.cont [8/16] 0.0, 128
    %4976 = vxpose.xlu0.b32.cont [9/16] 0.0, 128
    %4977 = vxpose.xlu0.b32.cont [10/16] 0.0, 128
    %4978 = vxpose.xlu0.b32.cont [11/16] 0.0, 128
    %4979 = vxpose.xlu0.b32.cont [12/16] 0.0, 128
    %4980 = vxpose.xlu0.b32.cont [13/16] 0.0, 128
    %4981 = vxpose.xlu0.b32.cont [14/16] 0.0, 128
    %4982 = vxpose.xlu0.b32.cont [15/16] 0.0, 128
    %4983 = vxpose.xlu0.b32.end [16/16] 0.0, 128
    %v4984 = vpop.trf.xlu0
    %v4985 = vpop.trf.xlu0
    %v4986 = vpop.trf.xlu0
    %v4987 = vpop.trf.xlu0
    %v4988 = vpop.trf.xlu0
    %v4989 = vpop.trf.xlu0
    %v4990 = vpop.trf.xlu0
    %v4991 = vpop.trf.xlu0
    %v4992 = vpop.trf.xlu0
    %v4993 = vpop.trf.xlu0
    %v4994 = vpop.trf.xlu0
    %v4995 = vpop.trf.xlu0
    %v4996 = vpop.trf.xlu0
    %v4997 = vpop.trf.xlu0
    %v4998 = vpop.trf.xlu0
    %v4999 = vpop.trf.xlu0
    %v5001 = vsel %vm69, %v4984, 0
    %v5004 = vsel %vm69, %v4985, 0
    %5006 = vmatprep.subr.mxu0 0.0
    %5007 = vmatpush1.msra.mxu0 %v248
    %5008 = vmatprep.subr.mxu0 0.0
    %5009 = vmatpush1.msra.mxu0 %v253
    %5010 = vmatprep.subr.mxu0 0.0
    %5011 = vmatpush1.msra.mxu0 0.0
    %5012 = vmatprep.subr.mxu0 0.0
    %5013 = vmatpush1.msra.mxu0 0.0
    %5014 = vmatprep.subr.mxu0 0.0
    %5015 = vmatpush1.msra.mxu0 0.0
    %5016 = vmatprep.subr.mxu0 0.0
    %5017 = vmatpush1.msra.mxu0 0.0
    %5018 = vmatprep.subr.mxu0 0.0
    %5019 = vmatpush1.msra.mxu0 0.0
    %5020 = vmatprep.subr.mxu0 0.0
    %5021 = vmatpush1.msra.mxu0 0.0
    %5022 = vmatprep.subr.mxu0 0.0
    %5023 = vmatpush1.msra.mxu0 0.0
    %5024 = vmatprep.subr.mxu0 0.0
    %5025 = vmatpush1.msra.mxu0 0.0
    %5026 = vmatprep.subr.mxu0 0.0
    %5027 = vmatpush1.msra.mxu0 0.0
    %5028 = vmatprep.subr.mxu0 0.0
    %5029 = vmatpush1.msra.mxu0 0.0
    %5030 = vmatprep.subr.mxu0 0.0
    %5031 = vmatpush1.msra.mxu0 0.0
    %5032 = vmatprep.subr.mxu0 0.0
    %5033 = vmatpush1.msra.mxu0 0.0
    %5034 = vmatprep.subr.mxu0 0.0
    %5035 = vmatpush1.msra.mxu0 0.0
    %5036 = vmatprep.subr.mxu0 0.0
    %5037 = vmatpush1.msra.mxu0 0.0
    %5038 = vmatprep.subr.mxu0 0.0
    %5039 = vmatpush1.msra.mxu0 0.0
    %5040 = vmatprep.subr.mxu0 0.0
    %5041 = vmatpush1.msra.mxu0 0.0
    %5042 = vmatprep.subr.mxu0 0.0
    %5043 = vmatpush1.msra.mxu0 0.0
    %5044 = vmatprep.subr.mxu0 0.0
    %5045 = vmatpush1.msra.mxu0 0.0
    %5046 = vmatprep.subr.mxu0 0.0
    %5047 = vmatpush1.msra.mxu0 0.0
    %5048 = vmatprep.subr.mxu0 0.0
    %5049 = vmatpush1.msra.mxu0 0.0
    %5050 = vmatprep.subr.mxu0 0.0
    %5051 = vmatpush1.msra.mxu0 0.0
    %5052 = vmatprep.subr.mxu0 0.0
    %5053 = vmatpush1.msra.mxu0 0.0
    %5054 = vmatprep.subr.mxu0 0.0
    %5055 = vmatpush1.msra.mxu0 0.0
    %5056 = vmatprep.subr.mxu0 0.0
    %5057 = vmatpush1.msra.mxu0 0.0
    %5058 = vmatprep.subr.mxu0 0.0
    %5059 = vmatpush1.msra.mxu0 0.0
    %5060 = vmatprep.subr.mxu0 0.0
    %5061 = vmatpush1.msra.mxu0 0.0
    %5062 = vmatprep.subr.mxu0 0.0
    %5063 = vmatpush1.msra.mxu0 0.0
    %5064 = vmatprep.subr.mxu0 0.0
    %5065 = vmatpush1.msra.mxu0 0.0
    %5066 = vmatprep.subr.mxu0 0.0
    %5067 = vmatpush1.msra.mxu0 0.0
    %5068 = vmatprep.subr.mxu0 0.0
    %5069 = vmatpush1.msra.mxu0 0.0
    %5070 = vmatprep.mubr.f32.mxu0 0.0
    %5071 = vmatmul.mubr.f32.gmra.mrb[0].mxu0 %v5001
    %v5072 = vpop.f32.mrb[0].mxu0
    %v5073 = vadd.f32 0.0, %v5072
    %v5074 = vpop.f32.mrb[0].mxu0
    %5075 = vmatprep.mubr.f32.mxu0 0.0
    %5076 = vmatmul.mubr.f32.gmra.mrb[0].mxu0 %v5004
    %v5077 = vpop.f32.mrb[0].mxu0
    %v5078 = vadd.f32 0.0, %v5077
    %v5079 = vpop.f32.mrb[0].mxu0
    %5080 = vdwg.mxu0
    %5083 = vrot.lane.b32.xlu0 %v440, 96
    %v5084 = vpop.permute.xlu0 %5083
    %5085 = vrot.lane.b32.xlu0 %v445, 96
    %v5086 = vpop.permute.xlu0 %5085
    %v5090 = vsel %vm69, %v4003, 0
    %v5093 = vsel %vm69, %v4004, 0
    %5095 = vmatprep.subr.mxu0 0.0
    %5096 = vmatpush1.msra.mxu0 %v5084
    %5097 = vmatprep.subr.mxu0 0.0
    %5098 = vmatpush1.msra.mxu0 %v5086
    %5099 = vmatprep.subr.mxu0 0.0
    %5100 = vmatpush1.msra.mxu0 0.0
    %5101 = vmatprep.subr.mxu0 0.0
    %5102 = vmatpush1.msra.mxu0 0.0
    %5103 = vmatprep.subr.mxu0 0.0
    %5104 = vmatpush1.msra.mxu0 0.0
    %5105 = vmatprep.subr.mxu0 0.0
    %5106 = vmatpush1.msra.mxu0 0.0
    %5107 = vmatprep.subr.mxu0 0.0
    %5108 = vmatpush1.msra.mxu0 0.0
    %5109 = vmatprep.subr.mxu0 0.0
    %5110 = vmatpush1.msra.mxu0 0.0
    %5111 = vmatprep.subr.mxu0 0.0
    %5112 = vmatpush1.msra.mxu0 0.0
    %5113 = vmatprep.subr.mxu0 0.0
    %5114 = vmatpush1.msra.mxu0 0.0
    %5115 = vmatprep.subr.mxu0 0.0
    %5116 = vmatpush1.msra.mxu0 0.0
    %5117 = vmatprep.subr.mxu0 0.0
    %5118 = vmatpush1.msra.mxu0 0.0
    %5119 = vmatprep.subr.mxu0 0.0
    %5120 = vmatpush1.msra.mxu0 0.0
    %5121 = vmatprep.subr.mxu0 0.0
    %5122 = vmatpush1.msra.mxu0 0.0
    %5123 = vmatprep.subr.mxu0 0.0
    %5124 = vmatpush1.msra.mxu0 0.0
    %5125 = vmatprep.subr.mxu0 0.0
    %5126 = vmatpush1.msra.mxu0 0.0
    %5127 = vmatprep.subr.mxu0 0.0
    %5128 = vmatpush1.msra.mxu0 0.0
    %5129 = vmatprep.subr.mxu0 0.0
    %5130 = vmatpush1.msra.mxu0 0.0
    %5131 = vmatprep.subr.mxu0 0.0
    %5132 = vmatpush1.msra.mxu0 0.0
    %5133 = vmatprep.subr.mxu0 0.0
    %5134 = vmatpush1.msra.mxu0 0.0
    %5135 = vmatprep.subr.mxu0 0.0
    %5136 = vmatpush1.msra.mxu0 0.0
    %5137 = vmatprep.subr.mxu0 0.0
    %5138 = vmatpush1.msra.mxu0 0.0
    %5139 = vmatprep.subr.mxu0 0.0
    %5140 = vmatpush1.msra.mxu0 0.0
    %5141 = vmatprep.subr.mxu0 0.0
    %5142 = vmatpush1.msra.mxu0 0.0
    %5143 = vmatprep.subr.mxu0 0.0
    %5144 = vmatpush1.msra.mxu0 0.0
    %5145 = vmatprep.subr.mxu0 0.0
    %5146 = vmatpush1.msra.mxu0 0.0
    %5147 = vmatprep.subr.mxu0 0.0
    %5148 = vmatpush1.msra.mxu0 0.0
    %5149 = vmatprep.subr.mxu0 0.0
    %5150 = vmatpush1.msra.mxu0 0.0
    %5151 = vmatprep.subr.mxu0 0.0
    %5152 = vmatpush1.msra.mxu0 0.0
    %5153 = vmatprep.subr.mxu0 0.0
    %5154 = vmatpush1.msra.mxu0 0.0
    %5155 = vmatprep.subr.mxu0 0.0
    %5156 = vmatpush1.msra.mxu0 0.0
    %5157 = vmatprep.subr.mxu0 0.0
    %5158 = vmatpush1.msra.mxu0 0.0
    %5159 = vmatprep.mubr.f32.mxu0 0.0
    %5160 = vmatmul.mubr.f32.gmra.mrb[0].mxu0 %v5090
    %v5161 = vpop.f32.mrb[0].mxu0
    %v5162 = vadd.f32 0.0, %v5161
    %v5163 = vpop.f32.mrb[0].mxu0
    %5164 = vmatprep.mubr.f32.mxu0 0.0
    %5165 = vmatmul.mubr.f32.gmra.mrb[0].mxu0 %v5093
    %v5166 = vpop.f32.mrb[0].mxu0
    %v5167 = vadd.f32 0.0, %v5166
    %v5168 = vpop.f32.mrb[0].mxu0
    %5169 = vdwg.mxu0
    %5170 = vxpose.xlu0.b32.start [1/16] %v4003, 128
    %5171 = vxpose.xlu0.b32.cont [2/16] %v4004, 128
    %5172 = vxpose.xlu0.b32.cont [3/16] 0.0, 128
    %5173 = vxpose.xlu0.b32.cont [4/16] 0.0, 128
    %5174 = vxpose.xlu0.b32.cont [5/16] 0.0, 128
    %5175 = vxpose.xlu0.b32.cont [6/16] 0.0, 128
    %5176 = vxpose.xlu0.b32.cont [7/16] 0.0, 128
    %5177 = vxpose.xlu0.b32.cont [8/16] 0.0, 128
    %5178 = vxpose.xlu0.b32.cont [9/16] 0.0, 128
    %5179 = vxpose.xlu0.b32.cont [10/16] 0.0, 128
    %5180 = vxpose.xlu0.b32.cont [11/16] 0.0, 128
    %5181 = vxpose.xlu0.b32.cont [12/16] 0.0, 128
    %5182 = vxpose.xlu0.b32.cont [13/16] 0.0, 128
    %5183 = vxpose.xlu0.b32.cont [14/16] 0.0, 128
    %5184 = vxpose.xlu0.b32.cont [15/16] 0.0, 128
    %5185 = vxpose.xlu0.b32.end [16/16] 0.0, 128
    %v5186 = vpop.trf.xlu0
    %v5187 = vpop.trf.xlu0
    %v5188 = vpop.trf.xlu0
    %v5189 = vpop.trf.xlu0
    %v5190 = vpop.trf.xlu0
    %v5191 = vpop.trf.xlu0
    %v5192 = vpop.trf.xlu0
    %v5193 = vpop.trf.xlu0
    %v5194 = vpop.trf.xlu0
    %v5195 = vpop.trf.xlu0
    %v5196 = vpop.trf.xlu0
    %v5197 = vpop.trf.xlu0
    %v5198 = vpop.trf.xlu0
    %v5199 = vpop.trf.xlu0
    %v5200 = vpop.trf.xlu0
    %v5201 = vpop.trf.xlu0
    %5204 = vrot.lane.b32.xlu0 %v248, 96
    %v5205 = vpop.permute.xlu0 %5204
    %5206 = vrot.lane.b32.xlu0 %v253, 96
    %v5207 = vpop.permute.xlu0 %5206
    %v5211 = vsel %vm69, %v5186, 0
    %v5214 = vsel %vm69, %v5187, 0
    %5216 = vmatprep.subr.mxu0 0.0
    %5217 = vmatpush1.msra.mxu0 %v5205
    %5218 = vmatprep.subr.mxu0 0.0
    %5219 = vmatpush1.msra.mxu0 %v5207
    %5220 = vmatprep.subr.mxu0 0.0
    %5221 = vmatpush1.msra.mxu0 0.0
    %5222 = vmatprep.subr.mxu0 0.0
    %5223 = vmatpush1.msra.mxu0 0.0
    %5224 = vmatprep.subr.mxu0 0.0
    %5225 = vmatpush1.msra.mxu0 0.0
    %5226 = vmatprep.subr.mxu0 0.0
    %5227 = vmatpush1.msra.mxu0 0.0
    %5228 = vmatprep.subr.mxu0 0.0
    %5229 = vmatpush1.msra.mxu0 0.0
    %5230 = vmatprep.subr.mxu0 0.0
    %5231 = vmatpush1.msra.mxu0 0.0
    %5232 = vmatprep.subr.mxu0 0.0
    %5233 = vmatpush1.msra.mxu0 0.0
    %5234 = vmatprep.subr.mxu0 0.0
    %5235 = vmatpush1.msra.mxu0 0.0
    %5236 = vmatprep.subr.mxu0 0.0
    %5237 = vmatpush1.msra.mxu0 0.0
    %5238 = vmatprep.subr.mxu0 0.0
    %5239 = vmatpush1.msra.mxu0 0.0
    %5240 = vmatprep.subr.mxu0 0.0
    %5241 = vmatpush1.msra.mxu0 0.0
    %5242 = vmatprep.subr.mxu0 0.0
    %5243 = vmatpush1.msra.mxu0 0.0
    %5244 = vmatprep.subr.mxu0 0.0
    %5245 = vmatpush1.msra.mxu0 0.0
    %5246 = vmatprep.subr.mxu0 0.0
    %5247 = vmatpush1.msra.mxu0 0.0
    %5248 = vmatprep.subr.mxu0 0.0
    %5249 = vmatpush1.msra.mxu0 0.0
    %5250 = vmatprep.subr.mxu0 0.0
    %5251 = vmatpush1.msra.mxu0 0.0
    %5252 = vmatprep.subr.mxu0 0.0
    %5253 = vmatpush1.msra.mxu0 0.0
    %5254 = vmatprep.subr.mxu0 0.0
    %5255 = vmatpush1.msra.mxu0 0.0
    %5256 = vmatprep.subr.mxu0 0.0
    %5257 = vmatpush1.msra.mxu0 0.0
    %5258 = vmatprep.subr.mxu0 0.0
    %5259 = vmatpush1.msra.mxu0 0.0
    %5260 = vmatprep.subr.mxu0 0.0
    %5261 = vmatpush1.msra.mxu0 0.0
    %5262 = vmatprep.subr.mxu0 0.0
    %5263 = vmatpush1.msra.mxu0 0.0
    %5264 = vmatprep.subr.mxu0 0.0
    %5265 = vmatpush1.msra.mxu0 0.0
    %5266 = vmatprep.subr.mxu0 0.0
    %5267 = vmatpush1.msra.mxu0 0.0
    %5268 = vmatprep.subr.mxu0 0.0
    %5269 = vmatpush1.msra.mxu0 0.0
    %5270 = vmatprep.subr.mxu0 0.0
    %5271 = vmatpush1.msra.mxu0 0.0
    %5272 = vmatprep.subr.mxu0 0.0
    %5273 = vmatpush1.msra.mxu0 0.0
    %5274 = vmatprep.subr.mxu0 0.0
    %5275 = vmatpush1.msra.mxu0 0.0
    %5276 = vmatprep.subr.mxu0 0.0
    %5277 = vmatpush1.msra.mxu0 0.0
    %5278 = vmatprep.subr.mxu0 0.0
    %5279 = vmatpush1.msra.mxu0 0.0
    %5280 = vmatprep.mubr.f32.mxu0 0.0
    %5281 = vmatmul.mubr.f32.gmra.mrb[0].mxu0 %v5211
    %v5282 = vpop.f32.mrb[0].mxu0
    %v5283 = vadd.f32 0.0, %v5282
    %v5284 = vpop.f32.mrb[0].mxu0
    %5285 = vmatprep.mubr.f32.mxu0 0.0
    %5286 = vmatmul.mubr.f32.gmra.mrb[0].mxu0 %v5214
    %v5287 = vpop.f32.mrb[0].mxu0
    %v5288 = vadd.f32 0.0, %v5287
    %v5289 = vpop.f32.mrb[0].mxu0
    %5290 = vdwg.mxu0
    %5291 = vrot.lane.b32.xlu0 %v440, 64
    %v5292 = vpop.permute.xlu0 %5291
    %5293 = vrot.lane.b32.xlu0 %v445, 64
    %v5294 = vpop.permute.xlu0 %5293
    %v5298 = vsel %vm69, %v4005, 0
    %v5301 = vsel %vm69, %v4006, 0
    %5303 = vmatprep.subr.mxu0 0.0
    %5304 = vmatpush1.msra.mxu0 %v5292
    %5305 = vmatprep.subr.mxu0 0.0
    %5306 = vmatpush1.msra.mxu0 %v5294
    %5307 = vmatprep.subr.mxu0 0.0
    %5308 = vmatpush1.msra.mxu0 0.0
    %5309 = vmatprep.subr.mxu0 0.0
    %5310 = vmatpush1.msra.mxu0 0.0
    %5311 = vmatprep.subr.mxu0 0.0
    %5312 = vmatpush1.msra.mxu0 0.0
    %5313 = vmatprep.subr.mxu0 0.0
    %5314 = vmatpush1.msra.mxu0 0.0
    %5315 = vmatprep.subr.mxu0 0.0
    %5316 = vmatpush1.msra.mxu0 0.0
    %5317 = vmatprep.subr.mxu0 0.0
    %5318 = vmatpush1.msra.mxu0 0.0
    %5319 = vmatprep.subr.mxu0 0.0
    %5320 = vmatpush1.msra.mxu0 0.0
    %5321 = vmatprep.subr.mxu0 0.0
    %5322 = vmatpush1.msra.mxu0 0.0
    %5323 = vmatprep.subr.mxu0 0.0
    %5324 = vmatpush1.msra.mxu0 0.0
    %5325 = vmatprep.subr.mxu0 0.0
    %5326 = vmatpush1.msra.mxu0 0.0
    %5327 = vmatprep.subr.mxu0 0.0
    %5328 = vmatpush1.msra.mxu0 0.0
    %5329 = vmatprep.subr.mxu0 0.0
    %5330 = vmatpush1.msra.mxu0 0.0
    %5331 = vmatprep.subr.mxu0 0.0
    %5332 = vmatpush1.msra.mxu0 0.0
    %5333 = vmatprep.subr.mxu0 0.0
    %5334 = vmatpush1.msra.mxu0 0.0
    %5335 = vmatprep.subr.mxu0 0.0
    %5336 = vmatpush1.msra.mxu0 0.0
    %5337 = vmatprep.subr.mxu0 0.0
    %5338 = vmatpush1.msra.mxu0 0.0
    %5339 = vmatprep.subr.mxu0 0.0
    %5340 = vmatpush1.msra.mxu0 0.0
    %5341 = vmatprep.subr.mxu0 0.0
    %5342 = vmatpush1.msra.mxu0 0.0
    %5343 = vmatprep.subr.mxu0 0.0
    %5344 = vmatpush1.msra.mxu0 0.0
    %5345 = vmatprep.subr.mxu0 0.0
    %5346 = vmatpush1.msra.mxu0 0.0
    %5347 = vmatprep.subr.mxu0 0.0
    %5348 = vmatpush1.msra.mxu0 0.0
    %5349 = vmatprep.subr.mxu0 0.0
    %5350 = vmatpush1.msra.mxu0 0.0
    %5351 = vmatprep.subr.mxu0 0.0
    %5352 = vmatpush1.msra.mxu0 0.0
    %5353 = vmatprep.subr.mxu0 0.0
    %5354 = vmatpush1.msra.mxu0 0.0
    %5355 = vmatprep.subr.mxu0 0.0
    %5356 = vmatpush1.msra.mxu0 0.0
    %5357 = vmatprep.subr.mxu0 0.0
    %5358 = vmatpush1.msra.mxu0 0.0
    %5359 = vmatprep.subr.mxu0 0.0
    %5360 = vmatpush1.msra.mxu0 0.0
    %5361 = vmatprep.subr.mxu0 0.0
    %5362 = vmatpush1.msra.mxu0 0.0
    %5363 = vmatprep.subr.mxu0 0.0
    %5364 = vmatpush1.msra.mxu0 0.0
    %5365 = vmatprep.subr.mxu0 0.0
    %5366 = vmatpush1.msra.mxu0 0.0
    %5367 = vmatprep.mubr.f32.mxu0 0.0
    %5368 = vmatmul.mubr.f32.gmra.mrb[0].mxu0 %v5298
    %v5369 = vpop.f32.mrb[0].mxu0
    %v5370 = vadd.f32 0.0, %v5369
    %v5371 = vpop.f32.mrb[0].mxu0
    %5372 = vmatprep.mubr.f32.mxu0 0.0
    %5373 = vmatmul.mubr.f32.gmra.mrb[0].mxu0 %v5301
    %v5374 = vpop.f32.mrb[0].mxu0
    %v5375 = vadd.f32 0.0, %v5374
    %v5376 = vpop.f32.mrb[0].mxu0
    %5377 = vdwg.mxu0
    %5378 = vxpose.xlu0.b32.start [1/16] %v4005, 128
    %5379 = vxpose.xlu0.b32.cont [2/16] %v4006, 128
    %5380 = vxpose.xlu0.b32.cont [3/16] 0.0, 128
    %5381 = vxpose.xlu0.b32.cont [4/16] 0.0, 128
    %5382 = vxpose.xlu0.b32.cont [5/16] 0.0, 128
    %5383 = vxpose.xlu0.b32.cont [6/16] 0.0, 128
    %5384 = vxpose.xlu0.b32.cont [7/16] 0.0, 128
    %5385 = vxpose.xlu0.b32.cont [8/16] 0.0, 128
    %5386 = vxpose.xlu0.b32.cont [9/16] 0.0, 128
    %5387 = vxpose.xlu0.b32.cont [10/16] 0.0, 128
    %5388 = vxpose.xlu0.b32.cont [11/16] 0.0, 128
    %5389 = vxpose.xlu0.b32.cont [12/16] 0.0, 128
    %5390 = vxpose.xlu0.b32.cont [13/16] 0.0, 128
    %5391 = vxpose.xlu0.b32.cont [14/16] 0.0, 128
    %5392 = vxpose.xlu0.b32.cont [15/16] 0.0, 128
    %5393 = vxpose.xlu0.b32.end [16/16] 0.0, 128
    %v5394 = vpop.trf.xlu0
    %v5395 = vpop.trf.xlu0
    %v5396 = vpop.trf.xlu0
    %v5397 = vpop.trf.xlu0
    %v5398 = vpop.trf.xlu0
    %v5399 = vpop.trf.xlu0
    %v5400 = vpop.trf.xlu0
    %v5401 = vpop.trf.xlu0
    %v5402 = vpop.trf.xlu0
    %v5403 = vpop.trf.xlu0
    %v5404 = vpop.trf.xlu0
    %v5405 = vpop.trf.xlu0
    %v5406 = vpop.trf.xlu0
    %v5407 = vpop.trf.xlu0
    %v5408 = vpop.trf.xlu0
    %v5409 = vpop.trf.xlu0
    %5410 = vrot.lane.b32.xlu0 %v248, 64
    %v5411 = vpop.permute.xlu0 %5410
    %5412 = vrot.lane.b32.xlu0 %v253, 64
    %v5413 = vpop.permute.xlu0 %5412
    %v5417 = vsel %vm69, %v5394, 0
    %v5420 = vsel %vm69, %v5395, 0
    %5422 = vmatprep.subr.mxu0 0.0
    %5423 = vmatpush1.msra.mxu0 %v5411
    %5424 = vmatprep.subr.mxu0 0.0
    %5425 = vmatpush1.msra.mxu0 %v5413
    %5426 = vmatprep.subr.mxu0 0.0
    %5427 = vmatpush1.msra.mxu0 0.0
    %5428 = vmatprep.subr.mxu0 0.0
    %5429 = vmatpush1.msra.mxu0 0.0
    %5430 = vmatprep.subr.mxu0 0.0
    %5431 = vmatpush1.msra.mxu0 0.0
    %5432 = vmatprep.subr.mxu0 0.0
    %5433 = vmatpush1.msra.mxu0 0.0
    %5434 = vmatprep.subr.mxu0 0.0
    %5435 = vmatpush1.msra.mxu0 0.0
    %5436 = vmatprep.subr.mxu0 0.0
    %5437 = vmatpush1.msra.mxu0 0.0
    %5438 = vmatprep.subr.mxu0 0.0
    %5439 = vmatpush1.msra.mxu0 0.0
    %5440 = vmatprep.subr.mxu0 0.0
    %5441 = vmatpush1.msra.mxu0 0.0
    %5442 = vmatprep.subr.mxu0 0.0
    %5443 = vmatpush1.msra.mxu0 0.0
    %5444 = vmatprep.subr.mxu0 0.0
    %5445 = vmatpush1.msra.mxu0 0.0
    %5446 = vmatprep.subr.mxu0 0.0
    %5447 = vmatpush1.msra.mxu0 0.0
    %5448 = vmatprep.subr.mxu0 0.0
    %5449 = vmatpush1.msra.mxu0 0.0
    %5450 = vmatprep.subr.mxu0 0.0
    %5451 = vmatpush1.msra.mxu0 0.0
    %5452 = vmatprep.subr.mxu0 0.0
    %5453 = vmatpush1.msra.mxu0 0.0
    %5454 = vmatprep.subr.mxu0 0.0
    %5455 = vmatpush1.msra.mxu0 0.0
    %5456 = vmatprep.subr.mxu0 0.0
    %5457 = vmatpush1.msra.mxu0 0.0
    %5458 = vmatprep.subr.mxu0 0.0
    %5459 = vmatpush1.msra.mxu0 0.0
    %5460 = vmatprep.subr.mxu0 0.0
    %5461 = vmatpush1.msra.mxu0 0.0
    %5462 = vmatprep.subr.mxu0 0.0
    %5463 = vmatpush1.msra.mxu0 0.0
    %5464 = vmatprep.subr.mxu0 0.0
    %5465 = vmatpush1.msra.mxu0 0.0
    %5466 = vmatprep.subr.mxu0 0.0
    %5467 = vmatpush1.msra.mxu0 0.0
    %5468 = vmatprep.subr.mxu0 0.0
    %5469 = vmatpush1.msra.mxu0 0.0
    %5470 = vmatprep.subr.mxu0 0.0
    %5471 = vmatpush1.msra.mxu0 0.0
    %5472 = vmatprep.subr.mxu0 0.0
    %5473 = vmatpush1.msra.mxu0 0.0
    %5474 = vmatprep.subr.mxu0 0.0
    %5475 = vmatpush1.msra.mxu0 0.0
    %5476 = vmatprep.subr.mxu0 0.0
    %5477 = vmatpush1.msra.mxu0 0.0
    %5478 = vmatprep.subr.mxu0 0.0
    %5479 = vmatpush1.msra.mxu0 0.0
    %5480 = vmatprep.subr.mxu0 0.0
    %5481 = vmatpush1.msra.mxu0 0.0
    %5482 = vmatprep.subr.mxu0 0.0
    %5483 = vmatpush1.msra.mxu0 0.0
    %5484 = vmatprep.subr.mxu0 0.0
    %5485 = vmatpush1.msra.mxu0 0.0
    %5486 = vmatprep.mubr.f32.mxu0 0.0
    %5487 = vmatmul.mubr.f32.gmra.mrb[0].mxu0 %v5417
    %v5488 = vpop.f32.mrb[0].mxu0
    %v5489 = vadd.f32 0.0, %v5488
    %v5490 = vpop.f32.mrb[0].mxu0
    %5491 = vmatprep.mubr.f32.mxu0 0.0
    %5492 = vmatmul.mubr.f32.gmra.mrb[0].mxu0 %v5420
    %v5493 = vpop.f32.mrb[0].mxu0
    %v5494 = vadd.f32 0.0, %v5493
    %v5495 = vpop.f32.mrb[0].mxu0
    %5496 = vdwg.mxu0
    %5497 = vrot.lane.b32.xlu0 %v440, 32
    %v5498 = vpop.permute.xlu0 %5497
    %5499 = vrot.lane.b32.xlu0 %v445, 32
    %v5500 = vpop.permute.xlu0 %5499
    %v5504 = vsel %vm69, %v4007, 0
    %v5507 = vsel %vm69, %v4008, 0
    %5509 = vmatprep.subr.mxu0 0.0
    %5510 = vmatpush1.msra.mxu0 %v5498
    %5511 = vmatprep.subr.mxu0 0.0
    %5512 = vmatpush1.msra.mxu0 %v5500
    %5513 = vmatprep.subr.mxu0 0.0
    %5514 = vmatpush1.msra.mxu0 0.0
    %5515 = vmatprep.subr.mxu0 0.0
    %5516 = vmatpush1.msra.mxu0 0.0
    %5517 = vmatprep.subr.mxu0 0.0
    %5518 = vmatpush1.msra.mxu0 0.0
    %5519 = vmatprep.subr.mxu0 0.0
    %5520 = vmatpush1.msra.mxu0 0.0
    %5521 = vmatprep.subr.mxu0 0.0
    %5522 = vmatpush1.msra.mxu0 0.0
    %5523 = vmatprep.subr.mxu0 0.0
    %5524 = vmatpush1.msra.mxu0 0.0
    %5525 = vmatprep.subr.mxu0 0.0
    %5526 = vmatpush1.msra.mxu0 0.0
    %5527 = vmatprep.subr.mxu0 0.0
    %5528 = vmatpush1.msra.mxu0 0.0
    %5529 = vmatprep.subr.mxu0 0.0
    %5530 = vmatpush1.msra.mxu0 0.0
    %5531 = vmatprep.subr.mxu0 0.0
    %5532 = vmatpush1.msra.mxu0 0.0
    %5533 = vmatprep.subr.mxu0 0.0
    %5534 = vmatpush1.msra.mxu0 0.0
    %5535 = vmatprep.subr.mxu0 0.0
    %5536 = vmatpush1.msra.mxu0 0.0
    %5537 = vmatprep.subr.mxu0 0.0
    %5538 = vmatpush1.msra.mxu0 0.0
    %5539 = vmatprep.subr.mxu0 0.0
    %5540 = vmatpush1.msra.mxu0 0.0
    %5541 = vmatprep.subr.mxu0 0.0
    %5542 = vmatpush1.msra.mxu0 0.0
    %5543 = vmatprep.subr.mxu0 0.0
    %5544 = vmatpush1.msra.mxu0 0.0
    %5545 = vmatprep.subr.mxu0 0.0
    %5546 = vmatpush1.msra.mxu0 0.0
    %5547 = vmatprep.subr.mxu0 0.0
    %5548 = vmatpush1.msra.mxu0 0.0
    %5549 = vmatprep.subr.mxu0 0.0
    %5550 = vmatpush1.msra.mxu0 0.0
    %5551 = vmatprep.subr.mxu0 0.0
    %5552 = vmatpush1.msra.mxu0 0.0
    %5553 = vmatprep.subr.mxu0 0.0
    %5554 = vmatpush1.msra.mxu0 0.0
    %5555 = vmatprep.subr.mxu0 0.0
    %5556 = vmatpush1.msra.mxu0 0.0
    %5557 = vmatprep.subr.mxu0 0.0
    %5558 = vmatpush1.msra.mxu0 0.0
    %5559 = vmatprep.subr.mxu0 0.0
    %5560 = vmatpush1.msra.mxu0 0.0
    %5561 = vmatprep.subr.mxu0 0.0
    %5562 = vmatpush1.msra.mxu0 0.0
    %5563 = vmatprep.subr.mxu0 0.0
    %5564 = vmatpush1.msra.mxu0 0.0
    %5565 = vmatprep.subr.mxu0 0.0
    %5566 = vmatpush1.msra.mxu0 0.0
    %5567 = vmatprep.subr.mxu0 0.0
    %5568 = vmatpush1.msra.mxu0 0.0
    %5569 = vmatprep.subr.mxu0 0.0
    %5570 = vmatpush1.msra.mxu0 0.0
    %5571 = vmatprep.subr.mxu0 0.0
    %5572 = vmatpush1.msra.mxu0 0.0
    %5573 = vmatprep.mubr.f32.mxu0 0.0
    %5574 = vmatmul.mubr.f32.gmra.mrb[0].mxu0 %v5504
    %v5575 = vpop.f32.mrb[0].mxu0
    %v5576 = vadd.f32 0.0, %v5575
    %v5577 = vpop.f32.mrb[0].mxu0
    %5578 = vmatprep.mubr.f32.mxu0 0.0
    %5579 = vmatmul.mubr.f32.gmra.mrb[0].mxu0 %v5507
    %v5580 = vpop.f32.mrb[0].mxu0
    %v5581 = vadd.f32 0.0, %v5580
    %v5582 = vpop.f32.mrb[0].mxu0
    %5583 = vdwg.mxu0
    %5584 = vxpose.xlu0.b32.start [1/16] %v4007, 128
    %5585 = vxpose.xlu0.b32.cont [2/16] %v4008, 128
    %5586 = vxpose.xlu0.b32.cont [3/16] 0.0, 128
    %5587 = vxpose.xlu0.b32.cont [4/16] 0.0, 128
    %5588 = vxpose.xlu0.b32.cont [5/16] 0.0, 128
    %5589 = vxpose.xlu0.b32.cont [6/16] 0.0, 128
    %5590 = vxpose.xlu0.b32.cont [7/16] 0.0, 128
    %5591 = vxpose.xlu0.b32.cont [8/16] 0.0, 128
    %5592 = vxpose.xlu0.b32.cont [9/16] 0.0, 128
    %5593 = vxpose.xlu0.b32.cont [10/16] 0.0, 128
    %5594 = vxpose.xlu0.b32.cont [11/16] 0.0, 128
    %5595 = vxpose.xlu0.b32.cont [12/16] 0.0, 128
    %5596 = vxpose.xlu0.b32.cont [13/16] 0.0, 128
    %5597 = vxpose.xlu0.b32.cont [14/16] 0.0, 128
    %5598 = vxpose.xlu0.b32.cont [15/16] 0.0, 128
    %5599 = vxpose.xlu0.b32.end [16/16] 0.0, 128
    %v5600 = vpop.trf.xlu0
    %v5601 = vpop.trf.xlu0
    %v5602 = vpop.trf.xlu0
    %v5603 = vpop.trf.xlu0
    %v5604 = vpop.trf.xlu0
    %v5605 = vpop.trf.xlu0
    %v5606 = vpop.trf.xlu0
    %v5607 = vpop.trf.xlu0
    %v5608 = vpop.trf.xlu0
    %v5609 = vpop.trf.xlu0
    %v5610 = vpop.trf.xlu0
    %v5611 = vpop.trf.xlu0
    %v5612 = vpop.trf.xlu0
    %v5613 = vpop.trf.xlu0
    %v5614 = vpop.trf.xlu0
    %v5615 = vpop.trf.xlu0
    %5616 = vrot.lane.b32.xlu0 %v248, 32
    %v5617 = vpop.permute.xlu0 %5616
    %5618 = vrot.lane.b32.xlu0 %v253, 32
    %v5619 = vpop.permute.xlu0 %5618
    %v5623 = vsel %vm69, %v5600, 0
    %v5626 = vsel %vm69, %v5601, 0
    %5628 = vmatprep.subr.mxu0 0.0
    %5629 = vmatpush1.msra.mxu0 %v5617
    %5630 = vmatprep.subr.mxu0 0.0
    %5631 = vmatpush1.msra.mxu0 %v5619
    %5632 = vmatprep.subr.mxu0 0.0
    %5633 = vmatpush1.msra.mxu0 0.0
    %5634 = vmatprep.subr.mxu0 0.0
    %5635 = vmatpush1.msra.mxu0 0.0
    %5636 = vmatprep.subr.mxu0 0.0
    %5637 = vmatpush1.msra.mxu0 0.0
    %5638 = vmatprep.subr.mxu0 0.0
    %5639 = vmatpush1.msra.mxu0 0.0
    %5640 = vmatprep.subr.mxu0 0.0
    %5641 = vmatpush1.msra.mxu0 0.0
    %5642 = vmatprep.subr.mxu0 0.0
    %5643 = vmatpush1.msra.mxu0 0.0
    %5644 = vmatprep.subr.mxu0 0.0
    %5645 = vmatpush1.msra.mxu0 0.0
    %5646 = vmatprep.subr.mxu0 0.0
    %5647 = vmatpush1.msra.mxu0 0.0
    %5648 = vmatprep.subr.mxu0 0.0
    %5649 = vmatpush1.msra.mxu0 0.0
    %5650 = vmatprep.subr.mxu0 0.0
    %5651 = vmatpush1.msra.mxu0 0.0
    %5652 = vmatprep.subr.mxu0 0.0
    %5653 = vmatpush1.msra.mxu0 0.0
    %5654 = vmatprep.subr.mxu0 0.0
    %5655 = vmatpush1.msra.mxu0 0.0
    %5656 = vmatprep.subr.mxu0 0.0
    %5657 = vmatpush1.msra.mxu0 0.0
    %5658 = vmatprep.subr.mxu0 0.0
    %5659 = vmatpush1.msra.mxu0 0.0
    %5660 = vmatprep.subr.mxu0 0.0
    %5661 = vmatpush1.msra.mxu0 0.0
    %5662 = vmatprep.subr.mxu0 0.0
    %5663 = vmatpush1.msra.mxu0 0.0
    %5664 = vmatprep.subr.mxu0 0.0
    %5665 = vmatpush1.msra.mxu0 0.0
    %5666 = vmatprep.subr.mxu0 0.0
    %5667 = vmatpush1.msra.mxu0 0.0
    %5668 = vmatprep.subr.mxu0 0.0
    %5669 = vmatpush1.msra.mxu0 0.0
    %5670 = vmatprep.subr.mxu0 0.0
    %5671 = vmatpush1.msra.mxu0 0.0
    %5672 = vmatprep.subr.mxu0 0.0
    %5673 = vmatpush1.msra.mxu0 0.0
    %5674 = vmatprep.subr.mxu0 0.0
    %5675 = vmatpush1.msra.mxu0 0.0
    %5676 = vmatprep.subr.mxu0 0.0
    %5677 = vmatpush1.msra.mxu0 0.0
    %5678 = vmatprep.subr.mxu0 0.0
    %5679 = vmatpush1.msra.mxu0 0.0
    %5680 = vmatprep.subr.mxu0 0.0
    %5681 = vmatpush1.msra.mxu0 0.0
    %5682 = vmatprep.subr.mxu0 0.0
    %5683 = vmatpush1.msra.mxu0 0.0
    %5684 = vmatprep.subr.mxu0 0.0
    %5685 = vmatpush1.msra.mxu0 0.0
    %5686 = vmatprep.subr.mxu0 0.0
    %5687 = vmatpush1.msra.mxu0 0.0
    %5688 = vmatprep.subr.mxu0 0.0
    %5689 = vmatpush1.msra.mxu0 0.0
    %5690 = vmatprep.subr.mxu0 0.0
    %5691 = vmatpush1.msra.mxu0 0.0
    %5692 = vmatprep.mubr.f32.mxu0 0.0
    %5693 = vmatmul.mubr.f32.gmra.mrb[0].mxu0 %v5623
    %v5694 = vpop.f32.mrb[0].mxu0
    %v5695 = vadd.f32 0.0, %v5694
    %v5696 = vpop.f32.mrb[0].mxu0
    %5697 = vmatprep.mubr.f32.mxu0 0.0
    %5698 = vmatmul.mubr.f32.gmra.mrb[0].mxu0 %v5626
    %v5699 = vpop.f32.mrb[0].mxu0
    %v5700 = vadd.f32 0.0, %v5699
    %v5701 = vpop.f32.mrb[0].mxu0
    %5702 = vdwg.mxu0
    %5705 = vrot.lane.b32.xlu0 %v5162, 32
    %v5706 = vpop.permute.xlu0 %5705
    %5707 = vrot.lane.b32.xlu0 %v5167, 32
    %v5708 = vpop.permute.xlu0 %5707
    %5713 = vrot.lane.b32.xlu0 %v5370, 64
    %v5714 = vpop.permute.xlu0 %5713
    %5715 = vrot.lane.b32.xlu0 %v5375, 64
    %v5716 = vpop.permute.xlu0 %5715
    %5721 = vrot.lane.b32.xlu0 %v5576, 96
    %v5722 = vpop.permute.xlu0 %5721
    %5723 = vrot.lane.b32.xlu0 %v5581, 96
    %v5724 = vpop.permute.xlu0 %5723
    %v5727 = vsel %vm448, %v4960, %v5706
    %v5728 = vsel %vm448, %v4965, %v5708
    %v5729 = vsel %vm4851, %v5727, %v5714
    %v5730 = vsel %vm4851, %v5728, %v5716
    %v5731 = vsel %vm4854, %v5729, %v5722
    %v5732 = vsel %vm4854, %v5730, %v5724
    %5735 = vrot.lane.b32.xlu0 %v5283, 32
    %v5736 = vpop.permute.xlu0 %5735
    %5737 = vrot.lane.b32.xlu0 %v5288, 32
    %v5738 = vpop.permute.xlu0 %5737
    %5743 = vrot.lane.b32.xlu0 %v5489, 64
    %v5744 = vpop.permute.xlu0 %5743
    %5745 = vrot.lane.b32.xlu0 %v5494, 64
    %v5746 = vpop.permute.xlu0 %5745
    %5751 = vrot.lane.b32.xlu0 %v5695, 96
    %v5752 = vpop.permute.xlu0 %5751
    %5753 = vrot.lane.b32.xlu0 %v5700, 96
    %v5754 = vpop.permute.xlu0 %5753
    %v5757 = vsel %vm448, %v5073, %v5736
    %v5758 = vsel %vm448, %v5078, %v5738
    %v5759 = vsel %vm4851, %v5757, %v5744
    %v5760 = vsel %vm4851, %v5758, %v5746
    %v5761 = vsel %vm4854, %v5759, %v5752
    %v5762 = vsel %vm4854, %v5760, %v5754
    %v5763 = vld [vmem:[#allocation2] sm:$0xff]
    %v5764 = vld [vmem:[#allocation2 + $0x8] sm:$0xff]
    %v5765 = vld [vmem:[#allocation2 + $0x10] sm:$0xff]
    %v5766 = vld [vmem:[#allocation2 + $0x18] sm:$0xff]
    %v5767 = vld [vmem:[#allocation2 + $0x20] sm:$0xff]
    %v5768 = vld [vmem:[#allocation2 + $0x28] sm:$0xff]
    %v5769 = vld [vmem:[#allocation2 + $0x30] sm:$0xff]
    %v5770 = vld [vmem:[#allocation2 + $0x38] sm:$0xff]
    %v5771 = vld [vmem:[#allocation2 + $0x40] sm:$0xff]
    %v5772 = vld [vmem:[#allocation2 + $0x48] sm:$0xff]
    %v5773 = vld [vmem:[#allocation2 + $0x50] sm:$0xff]
    %v5774 = vld [vmem:[#allocation2 + $0x58] sm:$0xff]
    %v5775 = vld [vmem:[#allocation2 + $0x60] sm:$0xff]
    %v5776 = vld [vmem:[#allocation2 + $0x68] sm:$0xff]
    %v5777 = vld [vmem:[#allocation2 + $0x70] sm:$0xff]
    %v5778 = vld [vmem:[#allocation2 + $0x78] sm:$0xff]
    %5779 = vmatprep.subr.mxu0 0.0
    %5780 = vmatpush1.msra.mxu0 %v5763
    %5781 = vmatprep.subr.mxu0 0.0
    %5782 = vmatpush1.msra.mxu0 %v5764
    %5783 = vmatprep.subr.mxu0 0.0
    %5784 = vmatpush1.msra.mxu0 %v5765
    %5785 = vmatprep.subr.mxu0 0.0
    %5786 = vmatpush1.msra.mxu0 %v5766
    %5787 = vmatprep.subr.mxu0 0.0
    %5788 = vmatpush1.msra.mxu0 %v5767
    %5789 = vmatprep.subr.mxu0 0.0
    %5790 = vmatpush1.msra.mxu0 %v5768
    %5791 = vmatprep.subr.mxu0 0.0
    %5792 = vmatpush1.msra.mxu0 %v5769
    %5793 = vmatprep.subr.mxu0 0.0
    %5794 = vmatpush1.msra.mxu0 %v5770
    %5795 = vmatprep.subr.mxu0 0.0
    %5796 = vmatpush1.msra.mxu0 %v5771
    %5797 = vmatprep.subr.mxu0 0.0
    %5798 = vmatpush1.msra.mxu0 %v5772
    %5799 = vmatprep.subr.mxu0 0.0
    %5800 = vmatpush1.msra.mxu0 %v5773
    %5801 = vmatprep.subr.mxu0 0.0
    %5802 = vmatpush1.msra.mxu0 %v5774
    %5803 = vmatprep.subr.mxu0 0.0
    %5804 = vmatpush1.msra.mxu0 %v5775
    %5805 = vmatprep.subr.mxu0 0.0
    %5806 = vmatpush1.msra.mxu0 %v5776
    %5807 = vmatprep.subr.mxu0 0.0
    %5808 = vmatpush1.msra.mxu0 %v5777
    %5809 = vmatprep.subr.mxu0 0.0
    %5810 = vmatpush1.msra.mxu0 %v5778
    %5811 = vmatprep.subr.mxu0 0.0
    %5812 = vmatpush1.msra.mxu0 0.0
    %5813 = vmatprep.subr.mxu0 0.0
    %5814 = vmatpush1.msra.mxu0 0.0
    %5815 = vmatprep.subr.mxu0 0.0
    %5816 = vmatpush1.msra.mxu0 0.0
    %5817 = vmatprep.subr.mxu0 0.0
    %5818 = vmatpush1.msra.mxu0 0.0
    %5819 = vmatprep.subr.mxu0 0.0
    %5820 = vmatpush1.msra.mxu0 0.0
    %5821 = vmatprep.subr.mxu0 0.0
    %5822 = vmatpush1.msra.mxu0 0.0
    %5823 = vmatprep.subr.mxu0 0.0
    %5824 = vmatpush1.msra.mxu0 0.0
    %5825 = vmatprep.subr.mxu0 0.0
    %5826 = vmatpush1.msra.mxu0 0.0
    %5827 = vmatprep.subr.mxu0 0.0
    %5828 = vmatpush1.msra.mxu0 0.0
    %5829 = vmatprep.subr.mxu0 0.0
    %5830 = vmatpush1.msra.mxu0 0.0
    %5831 = vmatprep.subr.mxu0 0.0
    %5832 = vmatpush1.msra.mxu0 0.0
    %5833 = vmatprep.subr.mxu0 0.0
    %5834 = vmatpush1.msra.mxu0 0.0
    %5835 = vmatprep.subr.mxu0 0.0
    %5836 = vmatpush1.msra.mxu0 0.0
    %5837 = vmatprep.subr.mxu0 0.0
    %5838 = vmatpush1.msra.mxu0 0.0
    %5839 = vmatprep.subr.mxu0 0.0
    %5840 = vmatpush1.msra.mxu0 0.0
    %5841 = vmatprep.subr.mxu0 0.0
    %5842 = vmatpush1.msra.mxu0 0.0
    %5843 = vmatprep.mubr.f32.mxu0 0.0
    %5844 = vmatmul.mubr.f32.gmra.mrb[0].mxu0 %v4855
    %v5845 = vpop.f32.mrb[0].mxu0
    %v5846 = vadd.f32 0.0, %v5845
    %v5847 = vpop.f32.mrb[0].mxu0
    %5848 = vmatprep.mubr.f32.mxu0 0.0
    %5849 = vmatmul.mubr.f32.gmra.mrb[0].mxu0 %v4856
    %v5850 = vpop.f32.mrb[0].mxu0
    %v5851 = vadd.f32 0.0, %v5850
    %v5852 = vpop.f32.mrb[0].mxu0
    %5853 = vmatprep.mubr.f32.mxu0 0.0
    %5854 = vmatmul.mubr.f32.gmra.mrb[0].mxu0 %v5731
    %v5855 = vpop.f32.mrb[0].mxu0
    %v5856 = vadd.f32 0.0, %v5855
    %v5857 = vpop.f32.mrb[0].mxu0
    %5858 = vmatprep.mubr.f32.mxu0 0.0
    %5859 = vmatmul.mubr.f32.gmra.mrb[0].mxu0 %v5732
    %v5860 = vpop.f32.mrb[0].mxu0
    %v5861 = vadd.f32 0.0, %v5860
    %v5862 = vpop.f32.mrb[0].mxu0
    %5863 = vdwg.mxu0
    %5864 = vst [vmem:[#allocation7] sm:$0xff] %v5846
    %5865 = vst [vmem:[#allocation7 + $0x8] sm:$0xff] %v5851
    %5866 = vst [vmem:[#allocation7 + $0x10] sm:$0xff] %v5856
    %5867 = vst [vmem:[#allocation7 + $0x18] sm:$0xff] %v5861
    %v5868 = vld [vmem:[#allocation5] sm:$0xff]
    %v5869 = vld [vmem:[#allocation5 + $0x8] sm:$0xff]
    %v5870 = vld [vmem:[#allocation5 + $0x10] sm:$0xff]
    %v5871 = vld [vmem:[#allocation5 + $0x18] sm:$0xff]
    %v5872 = vld [vmem:[#allocation5 + $0x20] sm:$0xff]
    %v5873 = vld [vmem:[#allocation5 + $0x28] sm:$0xff]
    %v5874 = vld [vmem:[#allocation5 + $0x30] sm:$0xff]
    %v5875 = vld [vmem:[#allocation5 + $0x38] sm:$0xff]
    %v5876 = vld [vmem:[#allocation5 + $0x40] sm:$0xff]
    %v5877 = vld [vmem:[#allocation5 + $0x48] sm:$0xff]
    %v5878 = vld [vmem:[#allocation5 + $0x50] sm:$0xff]
    %v5879 = vld [vmem:[#allocation5 + $0x58] sm:$0xff]
    %v5880 = vld [vmem:[#allocation5 + $0x60] sm:$0xff]
    %v5881 = vld [vmem:[#allocation5 + $0x68] sm:$0xff]
    %v5882 = vld [vmem:[#allocation5 + $0x70] sm:$0xff]
    %v5883 = vld [vmem:[#allocation5 + $0x78] sm:$0xff]
    %5884 = vmatprep.subr.mxu0 0.0
    %5885 = vmatpush1.msra.mxu0 %v5868
    %5886 = vmatprep.subr.mxu0 0.0
    %5887 = vmatpush1.msra.mxu0 %v5869
    %5888 = vmatprep.subr.mxu0 0.0
    %5889 = vmatpush1.msra.mxu0 %v5870
    %5890 = vmatprep.subr.mxu0 0.0
    %5891 = vmatpush1.msra.mxu0 %v5871
    %5892 = vmatprep.subr.mxu0 0.0
    %5893 = vmatpush1.msra.mxu0 %v5872
    %5894 = vmatprep.subr.mxu0 0.0
    %5895 = vmatpush1.msra.mxu0 %v5873
    %5896 = vmatprep.subr.mxu0 0.0
    %5897 = vmatpush1.msra.mxu0 %v5874
    %5898 = vmatprep.subr.mxu0 0.0
    %5899 = vmatpush1.msra.mxu0 %v5875
    %5900 = vmatprep.subr.mxu0 0.0
    %5901 = vmatpush1.msra.mxu0 %v5876
    %5902 = vmatprep.subr.mxu0 0.0
    %5903 = vmatpush1.msra.mxu0 %v5877
    %5904 = vmatprep.subr.mxu0 0.0
    %5905 = vmatpush1.msra.mxu0 %v5878
    %5906 = vmatprep.subr.mxu0 0.0
    %5907 = vmatpush1.msra.mxu0 %v5879
    %5908 = vmatprep.subr.mxu0 0.0
    %5909 = vmatpush1.msra.mxu0 %v5880
    %5910 = vmatprep.subr.mxu0 0.0
    %5911 = vmatpush1.msra.mxu0 %v5881
    %5912 = vmatprep.subr.mxu0 0.0
    %5913 = vmatpush1.msra.mxu0 %v5882
    %5914 = vmatprep.subr.mxu0 0.0
    %5915 = vmatpush1.msra.mxu0 %v5883
    %5916 = vmatprep.subr.mxu0 0.0
    %5917 = vmatpush1.msra.mxu0 0.0
    %5918 = vmatprep.subr.mxu0 0.0
    %5919 = vmatpush1.msra.mxu0 0.0
    %5920 = vmatprep.subr.mxu0 0.0
    %5921 = vmatpush1.msra.mxu0 0.0
    %5922 = vmatprep.subr.mxu0 0.0
    %5923 = vmatpush1.msra.mxu0 0.0
    %5924 = vmatprep.subr.mxu0 0.0
    %5925 = vmatpush1.msra.mxu0 0.0
    %5926 = vmatprep.subr.mxu0 0.0
    %5927 = vmatpush1.msra.mxu0 0.0
    %5928 = vmatprep.subr.mxu0 0.0
    %5929 = vmatpush1.msra.mxu0 0.0
    %5930 = vmatprep.subr.mxu0 0.0
    %5931 = vmatpush1.msra.mxu0 0.0
    %5932 = vmatprep.subr.mxu0 0.0
    %5933 = vmatpush1.msra.mxu0 0.0
    %5934 = vmatprep.subr.mxu0 0.0
    %5935 = vmatpush1.msra.mxu0 0.0
    %5936 = vmatprep.subr.mxu0 0.0
    %5937 = vmatpush1.msra.mxu0 0.0
    %5938 = vmatprep.subr.mxu0 0.0
    %5939 = vmatpush1.msra.mxu0 0.0
    %5940 = vmatprep.subr.mxu0 0.0
    %5941 = vmatpush1.msra.mxu0 0.0
    %5942 = vmatprep.subr.mxu0 0.0
    %5943 = vmatpush1.msra.mxu0 0.0
    %5944 = vmatprep.subr.mxu0 0.0
    %5945 = vmatpush1.msra.mxu0 0.0
    %5946 = vmatprep.subr.mxu0 0.0
    %5947 = vmatpush1.msra.mxu0 0.0
    %5948 = vmatprep.mubr.f32.mxu0 0.0
    %5949 = vmatmul.mubr.f32.gmra.mrb[0].mxu0 %v4885
    %v5950 = vpop.f32.mrb[0].mxu0
    %v5951 = vadd.f32 0.0, %v5950
    %v5952 = vpop.f32.mrb[0].mxu0
    %5953 = vmatprep.mubr.f32.mxu0 0.0
    %5954 = vmatmul.mubr.f32.gmra.mrb[0].mxu0 %v4886
    %v5955 = vpop.f32.mrb[0].mxu0
    %v5956 = vadd.f32 0.0, %v5955
    %v5957 = vpop.f32.mrb[0].mxu0
    %5958 = vmatprep.mubr.f32.mxu0 0.0
    %5959 = vmatmul.mubr.f32.gmra.mrb[0].mxu0 %v5761
    %v5960 = vpop.f32.mrb[0].mxu0
    %v5961 = vadd.f32 0.0, %v5960
    %v5962 = vpop.f32.mrb[0].mxu0
    %5963 = vmatprep.mubr.f32.mxu0 0.0
    %5964 = vmatmul.mubr.f32.gmra.mrb[0].mxu0 %v5762
    %v5965 = vpop.f32.mrb[0].mxu0
    %v5966 = vadd.f32 0.0, %v5965
    %v5967 = vpop.f32.mrb[0].mxu0
    %5968 = vdwg.mxu0
    %5969 = vst [vmem:[#allocation8] sm:$0xff] %v5951
    %5970 = vst [vmem:[#allocation8 + $0x8] sm:$0xff] %v5956
    %5971 = vst [vmem:[#allocation8 + $0x10] sm:$0xff] %v5961
    %5972 = vst [vmem:[#allocation8 + $0x18] sm:$0xff] %v5966
    // Predicated region
    $region34: #{tpu_custom_call.1} parent=1 // pred_check
      _
    $region35: #{tpu_custom_call.1} parent=1 // pred_check_branch
      %5974 = sbr.rel (0) target = $region37
    $region36: #{tpu_custom_call.1} parent=1 // pred_region
      %s5976 = ssub.s32 512, 512
      %5977 = vsyncadd [#allocation4], %s5976
      %s5978 = sshll.u32 [#allocation7], 4
      %s5979 = int_to_ptr.vmem [resolvable:$true] %s5978
      %5984 = dma.vmem_to_hbm [thread:$0]  %s5979, 512, %s6, [#allocation4], 128, 128, 8
    $region37: #{tpu_custom_call.1} parent=1 // pred_fallthru
      _
    // Predicated region
    $region38: #{tpu_custom_call.1} parent=1 // pred_check
      _
    $region39: #{tpu_custom_call.1} parent=1 // pred_check_branch
      %5986 = sbr.rel (0) target = $region41
    $region40: #{tpu_custom_call.1} parent=1 // pred_region
      %s5988 = ssub.s32 512, 512
      %5989 = vsyncadd [#allocation9], %s5988
      %s5990 = sshll.u32 [#allocation8], 4
      %s5991 = int_to_ptr.vmem [resolvable:$true] %s5990
      %5996 = dma.vmem_to_hbm [thread:$0]  %s5991, 512, %s7, [#allocation9], 128, 128, 8
    $region41: #{tpu_custom_call.1} parent=1 // pred_fallthru
      _
    // Predicated region
    $region42: #{tpu_custom_call.1} parent=1 // pred_check
      _
    $region43: #{tpu_custom_call.1} parent=1 // pred_check_branch
      %5998 = sbr.rel (0) target = $region45
    $region44: #{tpu_custom_call.1} parent=1 // pred_region
      %5999 = dma.done [#allocation4], 512
    $region45: #{tpu_custom_call.1} parent=1 // pred_fallthru
      _
    // Predicated region
    $region46: #{tpu_custom_call.1} parent=1 // pred_check
      _
    $region47: #{tpu_custom_call.1} parent=1 // pred_check_branch
      %6001 = sbr.rel (0) target = $region49
    $region48: #{tpu_custom_call.1} parent=1 // pred_region
      %6002 = dma.done [#allocation9], 512
    $region49: #{tpu_custom_call.1} parent=1 // pred_fallthru
      _
    %6003 = vsyncpa [#allocation3], 1
    %6004 = vsyncpa [#allocation6], 1
    %6005 = vsyncpa [#allocation4], 1
    %6006 = vsyncpa [#allocation9], 1

</llo_original>
